<compile_context>
chip_gen: v7x
topology: tpu7x:2x2x1
jax: 0.10.0
libtpu: 0.0.40
codegen_flags: <defaults>
</compile_context>

<pallas_src>
import jax
import jax.numpy as jnp
from jax.experimental import pallas as pl
from jax.experimental.pallas import tpu as pltpu


# ---------------------------------------------------------------------------
# Kernel 1: conv1 (im2col matmul) + maxpool(2) + bias + relu, batched.
# ---------------------------------------------------------------------------
def conv_pool_relu_kernel(p_ref, w_ref, b_ref, o_ref):
    # p_ref: (Bt, 4, P, K) bf16 -- 4 pooling offsets, P pooled positions,
    #                              K = k*k*Cin im2col patch length
    # w_ref: (K, Cout) bf16, b_ref: (1, Cout) f32, o_ref: (Bt, P, Cout) bf16
    bt, noff, p_sz, k_sz = p_ref.shape
    cout = w_ref.shape[1]
    # One MXU pass over the whole batch tile and all 4 pooling offsets.
    lhs = p_ref[...].reshape(bt * noff * p_sz, k_sz)
    acc = jnp.dot(lhs, w_ref[...], preferred_element_type=jnp.float32)
    acc = acc.reshape(bt, noff, p_sz, cout)
    # maxpool(2): max over the 4 conv positions inside each pooling window.
    mx = jnp.maximum(jnp.maximum(acc[:, 0], acc[:, 1]),
                     jnp.maximum(acc[:, 2], acc[:, 3]))
    mx = mx + b_ref[...]                      # bias commutes with the max
    o_ref[...] = jnp.maximum(mx, 0.0).astype(o_ref.dtype)


# ---------------------------------------------------------------------------
# Kernel 2: conv2 + maxpool + relu + flatten + fc1 + relu + fc2 + log_softmax,
#           all fused (intermediates stay in VMEM).
# ---------------------------------------------------------------------------
def conv2_mlp_kernel(p_ref, w2_ref, b2_ref, w1_ref, b1_ref, w3_ref, b3_ref,
                     o_ref, a2_ref):
    # p_ref : (Bt, 4, 16, 250) bf16  conv2 im2col patches (4 pool offsets)
    # w2_ref: (250, 20) bf16, b2_ref: (1, 20) f32
    # w1_ref: (16, 20, 50) bf16  fc1 weights pre-permuted to (p=h*4+w, c, j)
    # b1_ref: (1, 50) f32
    # w3_ref: (50, 10) bf16, b3_ref: (1, 10) f32
    # o_ref : (Bt, 10) f32 log-probabilities
    # a2_ref: (Bt, 16, 20) bf16 VMEM scratch holding the pooled conv2 output
    bt, noff, p_sz, k_sz = p_ref.shape
    c2 = w2_ref.shape[1]
    h1 = w1_ref.shape[2]

    # conv2 as one batched im2col matmul over (batch, 4 offsets, 16 positions).
    lhs = p_ref[...].reshape(bt * noff * p_sz, k_sz)
    acc = jnp.dot(lhs, w2_ref[...], preferred_element_type=jnp.float32)
    acc = acc.reshape(bt, noff, p_sz, c2)
    a2 = jnp.maximum(jnp.maximum(acc[:, 0], acc[:, 1]),
                     jnp.maximum(acc[:, 2], acc[:, 3]))
    a2 = jnp.maximum(a2 + b2_ref[...], 0.0)                  # (Bt, 16, 20) f32
    # TODO(synk): Dropout2d / F.dropout are identity in inference mode;
    # training-mode stochastic dropout is not implemented.
    a2_ref[...] = a2.astype(jnp.bfloat16)

    # fc1:  h[b, j] = sum_{p, c} a2[b, p, c] * w1[p, c, j]
    # (equivalent to PyTorch's x.view(-1, 320) @ fc1.T since w1 rows were
    #  permuted from (c, h, w) order to (p=h*4+w, c) order outside).
    w1 = w1_ref[...]
    h = jnp.zeros((bt, h1), jnp.float32)
    for pp in range(p_sz):
        h = h + jnp.dot(a2_ref[:, pp, :], w1[pp],
                        preferred_element_type=jnp.float32)
    h = jnp.maximum(h + b1_ref[...], 0.0).astype(jnp.bfloat16)

    # fc2 + numerically-stable log_softmax (exp/log run on the EUP slot).
    logits = jnp.dot(h, w3_ref[...], preferred_element_type=jnp.float32)
    logits = logits + b3_ref[...]
    m = jnp.max(logits, axis=-1, keepdims=True)
    s = logits - m
    lse = jnp.log(jnp.sum(jnp.exp(s), axis=-1, keepdims=True))
    o_ref[...] = (s - lse).astype(o_ref.dtype)


# ---------------------------------------------------------------------------
# JAX glue: gather-free im2col patches for conv(valid, k) fused with maxpool(2)
# ---------------------------------------------------------------------------
def _round_up(n, m):
    return (n + m - 1) // m * m


def _pooled_conv_patches(x, k, pool):
    """x: (N, H, W, C) -> (N, pool*pool, outp*outp, k*k*C), outp=(H-k+1)//pool.

    Built only from contiguous static slices + reshape/transpose (no XLA
    gather, no 100-way strided indexing)."""
    n, h, w, c = x.shape
    hc = h - k + 1                      # stride-1 conv output size
    outp = hc // pool
    cols = [x[:, kh:kh + hc, kw:kw + hc, :]
            for kh in range(k) for kw in range(k)]           # each (N,hc,hc,C)
    pt = jnp.stack(cols, axis=3).reshape(n, hc, hc, k * k * c)
    # split the stride-1 conv grid into (pooled position, pooling offset)
    pt = pt.reshape(n, outp, pool, outp, pool, k * k * c)
    pt = pt.transpose(0, 2, 4, 1, 3, 5)                      # (N,dh,dw,ph,pw,K)
    return pt.reshape(n, pool * pool, outp * outp, k * k * c), outp


# ---------------------------------------------------------------------------
# pallas_call wrappers
# ---------------------------------------------------------------------------
def conv_pool_relu(patches, w, b, bt):
    n, noff, p_sz, k_sz = patches.shape
    cout = w.shape[1]
    return pl.pallas_call(
        conv_pool_relu_kernel,
        out_shape=jax.ShapeDtypeStruct((n, p_sz, cout), jnp.bfloat16),
        grid=(n // bt,),
        in_specs=[
            pl.BlockSpec((bt, noff, p_sz, k_sz), lambda i: (i, 0, 0, 0)),
            pl.BlockSpec((k_sz, cout), lambda i: (0, 0)),
            pl.BlockSpec((1, cout), lambda i: (0, 0)),
        ],
        out_specs=pl.BlockSpec((bt, p_sz, cout), lambda i: (i, 0, 0)),
        compiler_params=pltpu.CompilerParams(
            dimension_semantics=("parallel",)),
    )(patches, w, b)


def conv2_mlp_head(patches, w2, b2, w1r, b1, w3, b3, bt):
    n, noff, p_sz, k_sz = patches.shape
    c2 = w2.shape[1]
    h1 = w1r.shape[2]
    out_dim = w3.shape[1]
    return pl.pallas_call(
        conv2_mlp_kernel,
        out_shape=jax.ShapeDtypeStruct((n, out_dim), jnp.float32),
        grid=(n // bt,),
        in_specs=[
            pl.BlockSpec((bt, noff, p_sz, k_sz), lambda i: (i, 0, 0, 0)),
            pl.BlockSpec((k_sz, c2), lambda i: (0, 0)),
            pl.BlockSpec((1, c2), lambda i: (0, 0)),
            pl.BlockSpec((p_sz, c2, h1), lambda i: (0, 0, 0)),
            pl.BlockSpec((1, h1), lambda i: (0, 0)),
            pl.BlockSpec((h1, out_dim), lambda i: (0, 0)),
            pl.BlockSpec((1, out_dim), lambda i: (0, 0)),
        ],
        out_specs=pl.BlockSpec((bt, out_dim), lambda i: (i, 0)),
        scratch_shapes=[pltpu.VMEM((bt, p_sz, c2), jnp.bfloat16)],
        compiler_params=pltpu.CompilerParams(
            dimension_semantics=("parallel",)),
    )(patches, w2, b2, w1r, b1, w3, b3)


# ---------------------------------------------------------------------------
# Full forward (equivalent of Net.forward, inference mode)
# ---------------------------------------------------------------------------
@jax.jit
def net_forward(x_nchw, params):
    x = jnp.transpose(x_nchw, (0, 2, 3, 1))            # NCHW -> NHWC
    n = x.shape[0]
    # Batch tile: >= 8 (sublane-aligned), capped so blocks + f32 accumulators
    # stay far below the default scoped-VMEM limit even on v7x (64 MiB chip).
    bt = min(16, _round_up(n, 8))
    n_pad = _round_up(n, bt)
    if n_pad != n:
        x = jnp.pad(x, ((0, n_pad - n), (0, 0), (0, 0), (0, 0)))
    x = x.astype(jnp.bfloat16)

    # Weights: bf16 for MXU operands, f32 biases for the epilogues.
    w1 = params["conv1_w"].reshape(25, 10).astype(jnp.bfloat16)
    b1 = params["conv1_b"].reshape(1, 10).astype(jnp.float32)
    w2 = params["conv2_w"].reshape(250, 20).astype(jnp.bfloat16)
    b2 = params["conv2_b"].reshape(1, 20).astype(jnp.float32)
    # fc1 rows are indexed (c, h, w) in PyTorch's x.view(-1, 320); re-pack to
    # (p=h*4+w, c, j) so the kernel contracts HWC activations with no
    # in-kernel flatten/transpose.
    w_fc1 = (params["fc1_w"].reshape(20, 4, 4, 50)
             .transpose(1, 2, 0, 3).reshape(16, 20, 50).astype(jnp.bfloat16))
    b_fc1 = params["fc1_b"].reshape(1, 50).astype(jnp.float32)
    w_fc2 = params["fc2_w"].astype(jnp.bfloat16)
    b_fc2 = params["fc2_b"].reshape(1, 10).astype(jnp.float32)

    # conv1 -> maxpool -> relu
    p1, op1 = _pooled_conv_patches(x, 5, 2)            # (Np, 4, 144, 25) bf16
    a1 = conv_pool_relu(p1, w1, b1, bt)                # (Np, 144, 10) bf16
    a1 = a1.reshape(n_pad, op1, op1, 10)               # (Np, 12, 12, 10)

    # conv2 -> (dropout2d: identity) -> maxpool -> relu -> flatten ->
    # fc1 -> relu -> (dropout: identity) -> fc2 -> log_softmax : one kernel.
    p2, _ = _pooled_conv_patches(a1, 5, 2)             # (Np, 4, 16, 250) bf16
    out = conv2_mlp_head(p2, w2, b2, w_fc1, b_fc1, w_fc2, b_fc2, bt)
    return out[:n]


# Pure-JAX reference using the same bf16-operand / f32-accumulate recipe.
def net_forward_ref(x_nchw, p):
    x = jnp.transpose(x_nchw, (0, 2, 3, 1)).astype(jnp.bfloat16)

    def conv(x, w, b):
        y = jax.lax.conv_general_dilated(
            x, w.astype(jnp.bfloat16), (1, 1), "VALID",
            dimension_numbers=("NHWC", "HWIO", "NHWC"),
            preferred_element_type=jnp.float32)
        return y + b

    def pool_relu(y):
        y = jax.lax.reduce_window(y, -jnp.inf, jax.lax.max,
                                  (1, 2, 2, 1), (1, 2, 2, 1), "VALID")
        return jnp.maximum(y, 0.0)

    a1 = pool_relu(conv(x, p["conv1_w"], p["conv1_b"])).astype(jnp.bfloat16)
    a2 = pool_relu(conv(a1, p["conv2_w"], p["conv2_b"]))
    flat = jnp.transpose(a2, (0, 3, 1, 2)).reshape(x.shape[0], -1)
    flat = flat.astype(jnp.bfloat16)
    h = jnp.maximum(
        jnp.dot(flat, p["fc1_w"].astype(jnp.bfloat16),
                preferred_element_type=jnp.float32) + p["fc1_b"], 0.0)
    h = h.astype(jnp.bfloat16)
    logits = jnp.dot(h, p["fc2_w"].astype(jnp.bfloat16),
                     preferred_element_type=jnp.float32) + p["fc2_b"]
    return jax.nn.log_softmax(logits, axis=-1)


def init_params(key):
    ks = jax.random.split(key, 8)

    def rnd(k, shape, scale):
        return (scale * jax.random.normal(k, shape)).astype(jnp.float32)

    return dict(
        conv1_w=rnd(ks[0], (5, 5, 1, 10), 0.2),    # HWIO
        conv1_b=rnd(ks[1], (10,), 0.1),
        conv2_w=rnd(ks[2], (5, 5, 10, 20), 0.1),
        conv2_b=rnd(ks[3], (20,), 0.1),
        fc1_w=rnd(ks[4], (320, 50), 0.05),         # (in, out)
        fc1_b=rnd(ks[5], (50,), 0.05),
        fc2_w=rnd(ks[6], (50, 10), 0.1),
        fc2_b=rnd(ks[7], (10,), 0.1),
    )


if __name__ == "__main__":
    key = jax.random.PRNGKey(0)
    k_x, k_p = jax.random.split(key)
    # fc1's 320 = 20*4*4 input features imply 1x28x28 (MNIST) inputs; batch=2.
    x = jax.random.normal(k_x, (2, 1, 28, 28), dtype=jnp.float32)
    params = init_params(k_p)

    out = jax.block_until_ready(net_forward(x, params))
    ref = jax.block_until_ready(net_forward_ref(x, params))

    assert out.shape == (2, 10), out.shape
    max_err = float(jnp.max(jnp.abs(out - ref)))
    assert jnp.allclose(out, ref, atol=5e-3, rtol=5e-3), (
        f"mismatch vs reference: max abs err {max_err}")
    print("KERNEL_OK")
</pallas_src>

<mosaic_0001>
module attributes {stable_mosaic.version = 11 : i64} {
  func.func @conv_pool_relu_kernel(%arg0: i32, %arg1: memref<8x4x144x25xbf16, #tpu.memory_space<vmem>>, %arg2: memref<25x10xbf16, #tpu.memory_space<vmem>>, %arg3: memref<1x10xf32, #tpu.memory_space<vmem>>, %arg4: memref<8x144x10xbf16, #tpu.memory_space<vmem>>) attributes {dimension_semantics = [#tpu.dimension_semantics<parallel>], iteration_bounds = array<i64: 1>, scalar_prefetch = 0 : i64, scratch_operands = 0 : i64, tpu.core_type = #tpu.core_type<tc>, window_params = [{transform_indices = @transform_0, window_bounds = array<i64: 8, 4, 144, 25>}, {pipeline_mode = #tpu.pipeline_mode<synchronous>, transform_indices = @transform_1, window_bounds = array<i64: 25, 10>}, {pipeline_mode = #tpu.pipeline_mode<synchronous>, transform_indices = @transform_2, window_bounds = array<i64: 1, 10>}, {transform_indices = @transform_3, window_bounds = array<i64: 8, 144, 10>}]} {
    %c0 = arith.constant 0 : index
    %c0_0 = arith.constant 0 : index
    %c0_1 = arith.constant 0 : index
    %c0_2 = arith.constant 0 : index
    %0 = vector.load %arg1[%c0, %c0_0, %c0_1, %c0_2] : memref<8x4x144x25xbf16, #tpu.memory_space<vmem>>, vector<8x4x144x25xbf16>
    %1 = vector.shape_cast %0 : vector<8x4x144x25xbf16> to vector<4608x25xbf16>
    %c0_3 = arith.constant 0 : index
    %c0_4 = arith.constant 0 : index
    %2 = vector.load %arg2[%c0_3, %c0_4] : memref<25x10xbf16, #tpu.memory_space<vmem>>, vector<25x10xbf16>
    %cst = arith.constant dense<0.000000e+00> : vector<4608x10xf32>
    %3 = tpu.matmul %1, %2, %cst {dimension_numbers = #tpu.dot_dimension_numbers<[1], [0], [0], [1], [0, 0, 1, 1], [], []>} : vector<4608x25xbf16>, vector<25x10xbf16>, vector<4608x10xf32> -> vector<4608x10xf32>
    %4 = vector.shape_cast %3 : vector<4608x10xf32> to vector<8x4x144x10xf32>
    %5 = vector.extract_strided_slice %4 {offsets = [0, 0, 0, 0], sizes = [8, 1, 144, 10], strides = [1, 1, 1, 1]} : vector<8x4x144x10xf32> to vector<8x1x144x10xf32>
    %6 = vector.shape_cast %5 : vector<8x1x144x10xf32> to vector<8x144x10xf32>
    %7 = vector.extract_strided_slice %4 {offsets = [0, 1, 0, 0], sizes = [8, 1, 144, 10], strides = [1, 1, 1, 1]} : vector<8x4x144x10xf32> to vector<8x1x144x10xf32>
    %8 = vector.shape_cast %7 : vector<8x1x144x10xf32> to vector<8x144x10xf32>
    %9 = arith.maximumf %6, %8 : vector<8x144x10xf32>
    %10 = vector.extract_strided_slice %4 {offsets = [0, 2, 0, 0], sizes = [8, 1, 144, 10], strides = [1, 1, 1, 1]} : vector<8x4x144x10xf32> to vector<8x1x144x10xf32>
    %11 = vector.shape_cast %10 : vector<8x1x144x10xf32> to vector<8x144x10xf32>
    %12 = vector.extract_strided_slice %4 {offsets = [0, 3, 0, 0], sizes = [8, 1, 144, 10], strides = [1, 1, 1, 1]} : vector<8x4x144x10xf32> to vector<8x1x144x10xf32>
    %13 = vector.shape_cast %12 : vector<8x1x144x10xf32> to vector<8x144x10xf32>
    %14 = arith.maximumf %11, %13 : vector<8x144x10xf32>
    %15 = arith.maximumf %9, %14 : vector<8x144x10xf32>
    %c0_5 = arith.constant 0 : index
    %c0_6 = arith.constant 0 : index
    %16 = vector.load %arg3[%c0_5, %c0_6] : memref<1x10xf32, #tpu.memory_space<vmem>>, vector<1x10xf32>
    %17 = vector.shape_cast %16 : vector<1x10xf32> to vector<1x1x10xf32>
    %18 = vector.broadcast %17 : vector<1x1x10xf32> to vector<8x144x10xf32>
    %19 = arith.addf %15, %18 : vector<8x144x10xf32>
    %cst_7 = arith.constant 0.000000e+00 : f32
    %20 = vector.broadcast %cst_7 : f32 to vector<8x144x10xf32>
    %21 = arith.maximumf %19, %20 : vector<8x144x10xf32>
    %22 = arith.truncf %21 : vector<8x144x10xf32> to vector<8x144x10xbf16>
    %c0_8 = arith.constant 0 : index
    %c0_9 = arith.constant 0 : index
    %c0_10 = arith.constant 0 : index
    %23 = vector.load %arg4[%c0_8, %c0_9, %c0_10] : memref<8x144x10xbf16, #tpu.memory_space<vmem>>, vector<8x144x10xbf16>
    tpu.vector_store %arg4[%c0_8, %c0_9, %c0_10], %22 {strides = array<i32>} : memref<8x144x10xbf16, #tpu.memory_space<vmem>>, vector<8x144x10xbf16>,
    return
  }
  func.func @transform_0(%arg0: i32) -> (i32, i32, i32, i32) {
    %c0_i32 = arith.constant 0 : i32
    %c0_i32_0 = arith.constant 0 : i32
    %c0_i32_1 = arith.constant 0 : i32
    %c0_i32_2 = arith.constant 0 : i32
    return %arg0, %c0_i32, %c0_i32_0, %c0_i32_1 : i32, i32, i32, i32
  }
  func.func @transform_1(%arg0: i32) -> (i32, i32) {
    %c0_i32 = arith.constant 0 : i32
    %c0_i32_0 = arith.constant 0 : i32
    %c0_i32_1 = arith.constant 0 : i32
    return %c0_i32, %c0_i32_0 : i32, i32
  }
  func.func @transform_2(%arg0: i32) -> (i32, i32) {
    %c0_i32 = arith.constant 0 : i32
    %c0_i32_0 = arith.constant 0 : i32
    %c0_i32_1 = arith.constant 0 : i32
    return %c0_i32, %c0_i32_0 : i32, i32
  }
  func.func @transform_3(%arg0: i32) -> (i32, i32, i32) {
    %c0_i32 = arith.constant 0 : i32
    %c0_i32_0 = arith.constant 0 : i32
    %c0_i32_1 = arith.constant 0 : i32
    return %arg0, %c0_i32, %c0_i32_0 : i32, i32, i32
  }
}

module attributes {stable_mosaic.version = 11 : i64} {
  func.func @conv2_mlp_kernel(%arg0: i32, %arg1: memref<8x4x16x250xbf16, #tpu.memory_space<vmem>>, %arg2: memref<250x20xbf16, #tpu.memory_space<vmem>>, %arg3: memref<1x20xf32, #tpu.memory_space<vmem>>, %arg4: memref<16x20x50xbf16, #tpu.memory_space<vmem>>, %arg5: memref<1x50xf32, #tpu.memory_space<vmem>>, %arg6: memref<50x10xbf16, #tpu.memory_space<vmem>>, %arg7: memref<1x10xf32, #tpu.memory_space<vmem>>, %arg8: memref<8x10xf32, #tpu.memory_space<vmem>>, %arg9: memref<8x16x20xbf16, #tpu.memory_space<vmem>>) attributes {dimension_semantics = [#tpu.dimension_semantics<parallel>], iteration_bounds = array<i64: 1>, scalar_prefetch = 0 : i64, scratch_operands = 1 : i64, tpu.core_type = #tpu.core_type<tc>, window_params = [{transform_indices = @transform_0, window_bounds = array<i64: 8, 4, 16, 250>}, {pipeline_mode = #tpu.pipeline_mode<synchronous>, transform_indices = @transform_1, window_bounds = array<i64: 250, 20>}, {pipeline_mode = #tpu.pipeline_mode<synchronous>, transform_indices = @transform_2, window_bounds = array<i64: 1, 20>}, {pipeline_mode = #tpu.pipeline_mode<synchronous>, transform_indices = @transform_3, window_bounds = array<i64: 16, 20, 50>}, {pipeline_mode = #tpu.pipeline_mode<synchronous>, transform_indices = @transform_4, window_bounds = array<i64: 1, 50>}, {pipeline_mode = #tpu.pipeline_mode<synchronous>, transform_indices = @transform_5, window_bounds = array<i64: 50, 10>}, {pipeline_mode = #tpu.pipeline_mode<synchronous>, transform_indices = @transform_6, window_bounds = array<i64: 1, 10>}, {transform_indices = @transform_7, window_bounds = array<i64: 8, 10>}]} {
    %c0 = arith.constant 0 : index
    %c0_0 = arith.constant 0 : index
    %c0_1 = arith.constant 0 : index
    %c0_2 = arith.constant 0 : index
    %0 = vector.load %arg1[%c0, %c0_0, %c0_1, %c0_2] : memref<8x4x16x250xbf16, #tpu.memory_space<vmem>>, vector<8x4x16x250xbf16>
    %1 = vector.shape_cast %0 : vector<8x4x16x250xbf16> to vector<512x250xbf16>
    %c0_3 = arith.constant 0 : index
    %c0_4 = arith.constant 0 : index
    %2 = vector.load %arg2[%c0_3, %c0_4] : memref<250x20xbf16, #tpu.memory_space<vmem>>, vector<250x20xbf16>
    %cst = arith.constant dense<0.000000e+00> : vector<512x20xf32>
    %3 = tpu.matmul %1, %2, %cst {dimension_numbers = #tpu.dot_dimension_numbers<[1], [0], [0], [1], [0, 0, 1, 1], [], []>} : vector<512x250xbf16>, vector<250x20xbf16>, vector<512x20xf32> -> vector<512x20xf32>
    %4 = vector.shape_cast %3 : vector<512x20xf32> to vector<8x4x16x20xf32>
    %5 = vector.extract_strided_slice %4 {offsets = [0, 0, 0, 0], sizes = [8, 1, 16, 20], strides = [1, 1, 1, 1]} : vector<8x4x16x20xf32> to vector<8x1x16x20xf32>
    %6 = vector.shape_cast %5 : vector<8x1x16x20xf32> to vector<8x16x20xf32>
    %7 = vector.extract_strided_slice %4 {offsets = [0, 1, 0, 0], sizes = [8, 1, 16, 20], strides = [1, 1, 1, 1]} : vector<8x4x16x20xf32> to vector<8x1x16x20xf32>
    %8 = vector.shape_cast %7 : vector<8x1x16x20xf32> to vector<8x16x20xf32>
    %9 = arith.maximumf %6, %8 : vector<8x16x20xf32>
    %10 = vector.extract_strided_slice %4 {offsets = [0, 2, 0, 0], sizes = [8, 1, 16, 20], strides = [1, 1, 1, 1]} : vector<8x4x16x20xf32> to vector<8x1x16x20xf32>
    %11 = vector.shape_cast %10 : vector<8x1x16x20xf32> to vector<8x16x20xf32>
    %12 = vector.extract_strided_slice %4 {offsets = [0, 3, 0, 0], sizes = [8, 1, 16, 20], strides = [1, 1, 1, 1]} : vector<8x4x16x20xf32> to vector<8x1x16x20xf32>
    %13 = vector.shape_cast %12 : vector<8x1x16x20xf32> to vector<8x16x20xf32>
    %14 = arith.maximumf %11, %13 : vector<8x16x20xf32>
    %15 = arith.maximumf %9, %14 : vector<8x16x20xf32>
    %c0_5 = arith.constant 0 : index
    %c0_6 = arith.constant 0 : index
    %16 = vector.load %arg3[%c0_5, %c0_6] : memref<1x20xf32, #tpu.memory_space<vmem>>, vector<1x20xf32>
    %17 = vector.shape_cast %16 : vector<1x20xf32> to vector<1x1x20xf32>
    %18 = vector.broadcast %17 : vector<1x1x20xf32> to vector<8x16x20xf32>
    %19 = arith.addf %15, %18 : vector<8x16x20xf32>
    %cst_7 = arith.constant 0.000000e+00 : f32
    %20 = vector.broadcast %cst_7 : f32 to vector<8x16x20xf32>
    %21 = arith.maximumf %19, %20 : vector<8x16x20xf32>
    %22 = arith.truncf %21 : vector<8x16x20xf32> to vector<8x16x20xbf16>
    %c0_8 = arith.constant 0 : index
    %c0_9 = arith.constant 0 : index
    %c0_10 = arith.constant 0 : index
    %23 = vector.load %arg9[%c0_8, %c0_9, %c0_10] : memref<8x16x20xbf16, #tpu.memory_space<vmem>>, vector<8x16x20xbf16>
    tpu.vector_store %arg9[%c0_8, %c0_9, %c0_10], %22 {strides = array<i32>} : memref<8x16x20xbf16, #tpu.memory_space<vmem>>, vector<8x16x20xbf16>,
    %c0_11 = arith.constant 0 : index
    %c0_12 = arith.constant 0 : index
    %c0_13 = arith.constant 0 : index
    %24 = vector.load %arg4[%c0_11, %c0_12, %c0_13] : memref<16x20x50xbf16, #tpu.memory_space<vmem>>, vector<16x20x50xbf16>
    %cst_14 = arith.constant 0.000000e+00 : f32
    %25 = vector.broadcast %cst_14 : f32 to vector<8x50xf32>
    %c0_15 = arith.constant 0 : index
    %c0_16 = arith.constant 0 : index
    %c0_17 = arith.constant 0 : index
    %26 = vector.load %arg9[%c0_15, %c0_16, %c0_17] : memref<8x16x20xbf16, #tpu.memory_space<vmem>>, vector<8x1x20xbf16>
    %27 = vector.shape_cast %26 : vector<8x1x20xbf16> to vector<8x20xbf16>
    %28 = vector.extract_strided_slice %24 {offsets = [0, 0, 0], sizes = [1, 20, 50], strides = [1, 1, 1]} : vector<16x20x50xbf16> to vector<1x20x50xbf16>
    %29 = vector.shape_cast %28 : vector<1x20x50xbf16> to vector<20x50xbf16>
    %cst_18 = arith.constant dense<0.000000e+00> : vector<8x50xf32>
    %30 = tpu.matmul %27, %29, %cst_18 {dimension_numbers = #tpu.dot_dimension_numbers<[1], [0], [0], [1], [0, 0, 1, 1], [], []>} : vector<8x20xbf16>, vector<20x50xbf16>, vector<8x50xf32> -> vector<8x50xf32>
    %31 = arith.addf %25, %30 : vector<8x50xf32>
    %c0_19 = arith.constant 0 : index
    %c1 = arith.constant 1 : index
    %c0_20 = arith.constant 0 : index
    %32 = vector.load %arg9[%c0_19, %c1, %c0_20] : memref<8x16x20xbf16, #tpu.memory_space<vmem>>, vector<8x1x20xbf16>
    %33 = vector.shape_cast %32 : vector<8x1x20xbf16> to vector<8x20xbf16>
    %34 = vector.extract_strided_slice %24 {offsets = [1, 0, 0], sizes = [1, 20, 50], strides = [1, 1, 1]} : vector<16x20x50xbf16> to vector<1x20x50xbf16>
    %35 = vector.shape_cast %34 : vector<1x20x50xbf16> to vector<20x50xbf16>
    %cst_21 = arith.constant dense<0.000000e+00> : vector<8x50xf32>
    %36 = tpu.matmul %33, %35, %cst_21 {dimension_numbers = #tpu.dot_dimension_numbers<[1], [0], [0], [1], [0, 0, 1, 1], [], []>} : vector<8x20xbf16>, vector<20x50xbf16>, vector<8x50xf32> -> vector<8x50xf32>
    %37 = arith.addf %31, %36 : vector<8x50xf32>
    %c0_22 = arith.constant 0 : index
    %c2 = arith.constant 2 : index
    %c0_23 = arith.constant 0 : index
    %38 = vector.load %arg9[%c0_22, %c2, %c0_23] : memref<8x16x20xbf16, #tpu.memory_space<vmem>>, vector<8x1x20xbf16>
    %39 = vector.shape_cast %38 : vector<8x1x20xbf16> to vector<8x20xbf16>
    %40 = vector.extract_strided_slice %24 {offsets = [2, 0, 0], sizes = [1, 20, 50], strides = [1, 1, 1]} : vector<16x20x50xbf16> to vector<1x20x50xbf16>
    %41 = vector.shape_cast %40 : vector<1x20x50xbf16> to vector<20x50xbf16>
    %cst_24 = arith.constant dense<0.000000e+00> : vector<8x50xf32>
    %42 = tpu.matmul %39, %41, %cst_24 {dimension_numbers = #tpu.dot_dimension_numbers<[1], [0], [0], [1], [0, 0, 1, 1], [], []>} : vector<8x20xbf16>, vector<20x50xbf16>, vector<8x50xf32> -> vector<8x50xf32>
    %43 = arith.addf %37, %42 : vector<8x50xf32>
    %c0_25 = arith.constant 0 : index
    %c3 = arith.constant 3 : index
    %c0_26 = arith.constant 0 : index
    %44 = vector.load %arg9[%c0_25, %c3, %c0_26] : memref<8x16x20xbf16, #tpu.memory_space<vmem>>, vector<8x1x20xbf16>
    %45 = vector.shape_cast %44 : vector<8x1x20xbf16> to vector<8x20xbf16>
    %46 = vector.extract_strided_slice %24 {offsets = [3, 0, 0], sizes = [1, 20, 50], strides = [1, 1, 1]} : vector<16x20x50xbf16> to vector<1x20x50xbf16>
    %47 = vector.shape_cast %46 : vector<1x20x50xbf16> to vector<20x50xbf16>
    %cst_27 = arith.constant dense<0.000000e+00> : vector<8x50xf32>
    %48 = tpu.matmul %45, %47, %cst_27 {dimension_numbers = #tpu.dot_dimension_numbers<[1], [0], [0], [1], [0, 0, 1, 1], [], []>} : vector<8x20xbf16>, vector<20x50xbf16>, vector<8x50xf32> -> vector<8x50xf32>
    %49 = arith.addf %43, %48 : vector<8x50xf32>
    %c0_28 = arith.constant 0 : index
    %c4 = arith.constant 4 : index
    %c0_29 = arith.constant 0 : index
    %50 = vector.load %arg9[%c0_28, %c4, %c0_29] : memref<8x16x20xbf16, #tpu.memory_space<vmem>>, vector<8x1x20xbf16>
    %51 = vector.shape_cast %50 : vector<8x1x20xbf16> to vector<8x20xbf16>
    %52 = vector.extract_strided_slice %24 {offsets = [4, 0, 0], sizes = [1, 20, 50], strides = [1, 1, 1]} : vector<16x20x50xbf16> to vector<1x20x50xbf16>
    %53 = vector.shape_cast %52 : vector<1x20x50xbf16> to vector<20x50xbf16>
    %cst_30 = arith.constant dense<0.000000e+00> : vector<8x50xf32>
    %54 = tpu.matmul %51, %53, %cst_30 {dimension_numbers = #tpu.dot_dimension_numbers<[1], [0], [0], [1], [0, 0, 1, 1], [], []>} : vector<8x20xbf16>, vector<20x50xbf16>, vector<8x50xf32> -> vector<8x50xf32>
    %55 = arith.addf %49, %54 : vector<8x50xf32>
    %c0_31 = arith.constant 0 : index
    %c5 = arith.constant 5 : index
    %c0_32 = arith.constant 0 : index
    %56 = vector.load %arg9[%c0_31, %c5, %c0_32] : memref<8x16x20xbf16, #tpu.memory_space<vmem>>, vector<8x1x20xbf16>
    %57 = vector.shape_cast %56 : vector<8x1x20xbf16> to vector<8x20xbf16>
    %58 = vector.extract_strided_slice %24 {offsets = [5, 0, 0], sizes = [1, 20, 50], strides = [1, 1, 1]} : vector<16x20x50xbf16> to vector<1x20x50xbf16>
    %59 = vector.shape_cast %58 : vector<1x20x50xbf16> to vector<20x50xbf16>
    %cst_33 = arith.constant dense<0.000000e+00> : vector<8x50xf32>
    %60 = tpu.matmul %57, %59, %cst_33 {dimension_numbers = #tpu.dot_dimension_numbers<[1], [0], [0], [1], [0, 0, 1, 1], [], []>} : vector<8x20xbf16>, vector<20x50xbf16>, vector<8x50xf32> -> vector<8x50xf32>
    %61 = arith.addf %55, %60 : vector<8x50xf32>
    %c0_34 = arith.constant 0 : index
    %c6 = arith.constant 6 : index
    %c0_35 = arith.constant 0 : index
    %62 = vector.load %arg9[%c0_34, %c6, %c0_35] : memref<8x16x20xbf16, #tpu.memory_space<vmem>>, vector<8x1x20xbf16>
    %63 = vector.shape_cast %62 : vector<8x1x20xbf16> to vector<8x20xbf16>
    %64 = vector.extract_strided_slice %24 {offsets = [6, 0, 0], sizes = [1, 20, 50], strides = [1, 1, 1]} : vector<16x20x50xbf16> to vector<1x20x50xbf16>
    %65 = vector.shape_cast %64 : vector<1x20x50xbf16> to vector<20x50xbf16>
    %cst_36 = arith.constant dense<0.000000e+00> : vector<8x50xf32>
    %66 = tpu.matmul %63, %65, %cst_36 {dimension_numbers = #tpu.dot_dimension_numbers<[1], [0], [0], [1], [0, 0, 1, 1], [], []>} : vector<8x20xbf16>, vector<20x50xbf16>, vector<8x50xf32> -> vector<8x50xf32>
    %67 = arith.addf %61, %66 : vector<8x50xf32>
    %c0_37 = arith.constant 0 : index
    %c7 = arith.constant 7 : index
    %c0_38 = arith.constant 0 : index
    %68 = vector.load %arg9[%c0_37, %c7, %c0_38] : memref<8x16x20xbf16, #tpu.memory_space<vmem>>, vector<8x1x20xbf16>
    %69 = vector.shape_cast %68 : vector<8x1x20xbf16> to vector<8x20xbf16>
    %70 = vector.extract_strided_slice %24 {offsets = [7, 0, 0], sizes = [1, 20, 50], strides = [1, 1, 1]} : vector<16x20x50xbf16> to vector<1x20x50xbf16>
    %71 = vector.shape_cast %70 : vector<1x20x50xbf16> to vector<20x50xbf16>
    %cst_39 = arith.constant dense<0.000000e+00> : vector<8x50xf32>
    %72 = tpu.matmul %69, %71, %cst_39 {dimension_numbers = #tpu.dot_dimension_numbers<[1], [0], [0], [1], [0, 0, 1, 1], [], []>} : vector<8x20xbf16>, vector<20x50xbf16>, vector<8x50xf32> -> vector<8x50xf32>
    %73 = arith.addf %67, %72 : vector<8x50xf32>
    %c0_40 = arith.constant 0 : index
    %c8 = arith.constant 8 : index
    %c0_41 = arith.constant 0 : index
    %74 = vector.load %arg9[%c0_40, %c8, %c0_41] : memref<8x16x20xbf16, #tpu.memory_space<vmem>>, vector<8x1x20xbf16>
    %75 = vector.shape_cast %74 : vector<8x1x20xbf16> to vector<8x20xbf16>
    %76 = vector.extract_strided_slice %24 {offsets = [8, 0, 0], sizes = [1, 20, 50], strides = [1, 1, 1]} : vector<16x20x50xbf16> to vector<1x20x50xbf16>
    %77 = vector.shape_cast %76 : vector<1x20x50xbf16> to vector<20x50xbf16>
    %cst_42 = arith.constant dense<0.000000e+00> : vector<8x50xf32>
    %78 = tpu.matmul %75, %77, %cst_42 {dimension_numbers = #tpu.dot_dimension_numbers<[1], [0], [0], [1], [0, 0, 1, 1], [], []>} : vector<8x20xbf16>, vector<20x50xbf16>, vector<8x50xf32> -> vector<8x50xf32>
    %79 = arith.addf %73, %78 : vector<8x50xf32>
    %c0_43 = arith.constant 0 : index
    %c9 = arith.constant 9 : index
    %c0_44 = arith.constant 0 : index
    %80 = vector.load %arg9[%c0_43, %c9, %c0_44] : memref<8x16x20xbf16, #tpu.memory_space<vmem>>, vector<8x1x20xbf16>
    %81 = vector.shape_cast %80 : vector<8x1x20xbf16> to vector<8x20xbf16>
    %82 = vector.extract_strided_slice %24 {offsets = [9, 0, 0], sizes = [1, 20, 50], strides = [1, 1, 1]} : vector<16x20x50xbf16> to vector<1x20x50xbf16>
    %83 = vector.shape_cast %82 : vector<1x20x50xbf16> to vector<20x50xbf16>
    %cst_45 = arith.constant dense<0.000000e+00> : vector<8x50xf32>
    %84 = tpu.matmul %81, %83, %cst_45 {dimension_numbers = #tpu.dot_dimension_numbers<[1], [0], [0], [1], [0, 0, 1, 1], [], []>} : vector<8x20xbf16>, vector<20x50xbf16>, vector<8x50xf32> -> vector<8x50xf32>
    %85 = arith.addf %79, %84 : vector<8x50xf32>
    %c0_46 = arith.constant 0 : index
    %c10 = arith.constant 10 : index
    %c0_47 = arith.constant 0 : index
    %86 = vector.load %arg9[%c0_46, %c10, %c0_47] : memref<8x16x20xbf16, #tpu.memory_space<vmem>>, vector<8x1x20xbf16>
    %87 = vector.shape_cast %86 : vector<8x1x20xbf16> to vector<8x20xbf16>
    %88 = vector.extract_strided_slice %24 {offsets = [10, 0, 0], sizes = [1, 20, 50], strides = [1, 1, 1]} : vector<16x20x50xbf16> to vector<1x20x50xbf16>
    %89 = vector.shape_cast %88 : vector<1x20x50xbf16> to vector<20x50xbf16>
    %cst_48 = arith.constant dense<0.000000e+00> : vector<8x50xf32>
    %90 = tpu.matmul %87, %89, %cst_48 {dimension_numbers = #tpu.dot_dimension_numbers<[1], [0], [0], [1], [0, 0, 1, 1], [], []>} : vector<8x20xbf16>, vector<20x50xbf16>, vector<8x50xf32> -> vector<8x50xf32>
    %91 = arith.addf %85, %90 : vector<8x50xf32>
    %c0_49 = arith.constant 0 : index
    %c11 = arith.constant 11 : index
    %c0_50 = arith.constant 0 : index
    %92 = vector.load %arg9[%c0_49, %c11, %c0_50] : memref<8x16x20xbf16, #tpu.memory_space<vmem>>, vector<8x1x20xbf16>
    %93 = vector.shape_cast %92 : vector<8x1x20xbf16> to vector<8x20xbf16>
    %94 = vector.extract_strided_slice %24 {offsets = [11, 0, 0], sizes = [1, 20, 50], strides = [1, 1, 1]} : vector<16x20x50xbf16> to vector<1x20x50xbf16>
    %95 = vector.shape_cast %94 : vector<1x20x50xbf16> to vector<20x50xbf16>
    %cst_51 = arith.constant dense<0.000000e+00> : vector<8x50xf32>
    %96 = tpu.matmul %93, %95, %cst_51 {dimension_numbers = #tpu.dot_dimension_numbers<[1], [0], [0], [1], [0, 0, 1, 1], [], []>} : vector<8x20xbf16>, vector<20x50xbf16>, vector<8x50xf32> -> vector<8x50xf32>
    %97 = arith.addf %91, %96 : vector<8x50xf32>
    %c0_52 = arith.constant 0 : index
    %c12 = arith.constant 12 : index
    %c0_53 = arith.constant 0 : index
    %98 = vector.load %arg9[%c0_52, %c12, %c0_53] : memref<8x16x20xbf16, #tpu.memory_space<vmem>>, vector<8x1x20xbf16>
    %99 = vector.shape_cast %98 : vector<8x1x20xbf16> to vector<8x20xbf16>
    %100 = vector.extract_strided_slice %24 {offsets = [12, 0, 0], sizes = [1, 20, 50], strides = [1, 1, 1]} : vector<16x20x50xbf16> to vector<1x20x50xbf16>
    %101 = vector.shape_cast %100 : vector<1x20x50xbf16> to vector<20x50xbf16>
    %cst_54 = arith.constant dense<0.000000e+00> : vector<8x50xf32>
    %102 = tpu.matmul %99, %101, %cst_54 {dimension_numbers = #tpu.dot_dimension_numbers<[1], [0], [0], [1], [0, 0, 1, 1], [], []>} : vector<8x20xbf16>, vector<20x50xbf16>, vector<8x50xf32> -> vector<8x50xf32>
    %103 = arith.addf %97, %102 : vector<8x50xf32>
    %c0_55 = arith.constant 0 : index
    %c13 = arith.constant 13 : index
    %c0_56 = arith.constant 0 : index
    %104 = vector.load %arg9[%c0_55, %c13, %c0_56] : memref<8x16x20xbf16, #tpu.memory_space<vmem>>, vector<8x1x20xbf16>
    %105 = vector.shape_cast %104 : vector<8x1x20xbf16> to vector<8x20xbf16>
    %106 = vector.extract_strided_slice %24 {offsets = [13, 0, 0], sizes = [1, 20, 50], strides = [1, 1, 1]} : vector<16x20x50xbf16> to vector<1x20x50xbf16>
    %107 = vector.shape_cast %106 : vector<1x20x50xbf16> to vector<20x50xbf16>
    %cst_57 = arith.constant dense<0.000000e+00> : vector<8x50xf32>
    %108 = tpu.matmul %105, %107, %cst_57 {dimension_numbers = #tpu.dot_dimension_numbers<[1], [0], [0], [1], [0, 0, 1, 1], [], []>} : vector<8x20xbf16>, vector<20x50xbf16>, vector<8x50xf32> -> vector<8x50xf32>
    %109 = arith.addf %103, %108 : vector<8x50xf32>
    %c0_58 = arith.constant 0 : index
    %c14 = arith.constant 14 : index
    %c0_59 = arith.constant 0 : index
    %110 = vector.load %arg9[%c0_58, %c14, %c0_59] : memref<8x16x20xbf16, #tpu.memory_space<vmem>>, vector<8x1x20xbf16>
    %111 = vector.shape_cast %110 : vector<8x1x20xbf16> to vector<8x20xbf16>
    %112 = vector.extract_strided_slice %24 {offsets = [14, 0, 0], sizes = [1, 20, 50], strides = [1, 1, 1]} : vector<16x20x50xbf16> to vector<1x20x50xbf16>
    %113 = vector.shape_cast %112 : vector<1x20x50xbf16> to vector<20x50xbf16>
    %cst_60 = arith.constant dense<0.000000e+00> : vector<8x50xf32>
    %114 = tpu.matmul %111, %113, %cst_60 {dimension_numbers = #tpu.dot_dimension_numbers<[1], [0], [0], [1], [0, 0, 1, 1], [], []>} : vector<8x20xbf16>, vector<20x50xbf16>, vector<8x50xf32> -> vector<8x50xf32>
    %115 = arith.addf %109, %114 : vector<8x50xf32>
    %c0_61 = arith.constant 0 : index
    %c15 = arith.constant 15 : index
    %c0_62 = arith.constant 0 : index
    %116 = vector.load %arg9[%c0_61, %c15, %c0_62] : memref<8x16x20xbf16, #tpu.memory_space<vmem>>, vector<8x1x20xbf16>
    %117 = vector.shape_cast %116 : vector<8x1x20xbf16> to vector<8x20xbf16>
    %118 = vector.extract_strided_slice %24 {offsets = [15, 0, 0], sizes = [1, 20, 50], strides = [1, 1, 1]} : vector<16x20x50xbf16> to vector<1x20x50xbf16>
    %119 = vector.shape_cast %118 : vector<1x20x50xbf16> to vector<20x50xbf16>
    %cst_63 = arith.constant dense<0.000000e+00> : vector<8x50xf32>
    %120 = tpu.matmul %117, %119, %cst_63 {dimension_numbers = #tpu.dot_dimension_numbers<[1], [0], [0], [1], [0, 0, 1, 1], [], []>} : vector<8x20xbf16>, vector<20x50xbf16>, vector<8x50xf32> -> vector<8x50xf32>
    %121 = arith.addf %115, %120 : vector<8x50xf32>
    %c0_64 = arith.constant 0 : index
    %c0_65 = arith.constant 0 : index
    %122 = vector.load %arg5[%c0_64, %c0_65] : memref<1x50xf32, #tpu.memory_space<vmem>>, vector<1x50xf32>
    %123 = vector.broadcast %122 : vector<1x50xf32> to vector<8x50xf32>
    %124 = arith.addf %121, %123 : vector<8x50xf32>
    %cst_66 = arith.constant 0.000000e+00 : f32
    %125 = vector.broadcast %cst_66 : f32 to vector<8x50xf32>
    %126 = arith.maximumf %124, %125 : vector<8x50xf32>
    %127 = arith.truncf %126 : vector<8x50xf32> to vector<8x50xbf16>
    %c0_67 = arith.constant 0 : index
    %c0_68 = arith.constant 0 : index
    %128 = vector.load %arg6[%c0_67, %c0_68] : memref<50x10xbf16, #tpu.memory_space<vmem>>, vector<50x10xbf16>
    %cst_69 = arith.constant dense<0.000000e+00> : vector<8x10xf32>
    %129 = tpu.matmul %127, %128, %cst_69 {dimension_numbers = #tpu.dot_dimension_numbers<[1], [0], [0], [1], [0, 0, 1, 1], [], []>} : vector<8x50xbf16>, vector<50x10xbf16>, vector<8x10xf32> -> vector<8x10xf32>
    %c0_70 = arith.constant 0 : index
    %c0_71 = arith.constant 0 : index
    %130 = vector.load %arg7[%c0_70, %c0_71] : memref<1x10xf32, #tpu.memory_space<vmem>>, vector<1x10xf32>
    %131 = vector.broadcast %130 : vector<1x10xf32> to vector<8x10xf32>
    %132 = arith.addf %129, %131 : vector<8x10xf32>
    %cst_72 = arith.constant dense<0xFF800000> : vector<8xf32>
    %133 = vector.multi_reduction <maximumf>, %132, %cst_72 [1] : vector<8x10xf32> to vector<8xf32>
    %134 = vector.shape_cast %133 : vector<8xf32> to vector<8x1xf32>
    %135 = vector.broadcast %134 : vector<8x1xf32> to vector<8x10xf32>
    %136 = arith.subf %132, %135 : vector<8x10xf32>
    %137 = math.exp %136 : vector<8x10xf32>
    %cst_73 = arith.constant dense<0.000000e+00> : vector<8xf32>
    %138 = vector.multi_reduction <add>, %137, %cst_73 [1] : vector<8x10xf32> to vector<8xf32>
    %139 = vector.shape_cast %138 : vector<8xf32> to vector<8x1xf32>
    %140 = math.log %139 : vector<8x1xf32>
    %141 = vector.broadcast %140 : vector<8x1xf32> to vector<8x10xf32>
    %142 = arith.subf %136, %141 : vector<8x10xf32>
    %c0_74 = arith.constant 0 : index
    %c0_75 = arith.constant 0 : index
    %143 = vector.load %arg8[%c0_74, %c0_75] : memref<8x10xf32, #tpu.memory_space<vmem>>, vector<8x10xf32>
    tpu.vector_store %arg8[%c0_74, %c0_75], %142 {strides = array<i32>} : memref<8x10xf32, #tpu.memory_space<vmem>>, vector<8x10xf32>,
    return
  }
  func.func @transform_0(%arg0: i32) -> (i32, i32, i32, i32) {
    %c0_i32 = arith.constant 0 : i32
    %c0_i32_0 = arith.constant 0 : i32
    %c0_i32_1 = arith.constant 0 : i32
    %c0_i32_2 = arith.constant 0 : i32
    return %arg0, %c0_i32, %c0_i32_0, %c0_i32_1 : i32, i32, i32, i32
  }
  func.func @transform_1(%arg0: i32) -> (i32, i32) {
    %c0_i32 = arith.constant 0 : i32
    %c0_i32_0 = arith.constant 0 : i32
    %c0_i32_1 = arith.constant 0 : i32
    return %c0_i32, %c0_i32_0 : i32, i32
  }
  func.func @transform_2(%arg0: i32) -> (i32, i32) {
    %c0_i32 = arith.constant 0 : i32
    %c0_i32_0 = arith.constant 0 : i32
    %c0_i32_1 = arith.constant 0 : i32
    return %c0_i32, %c0_i32_0 : i32, i32
  }
  func.func @transform_3(%arg0: i32) -> (i32, i32, i32) {
    %c0_i32 = arith.constant 0 : i32
    %c0_i32_0 = arith.constant 0 : i32
    %c0_i32_1 = arith.constant 0 : i32
    %c0_i32_2 = arith.constant 0 : i32
    return %c0_i32, %c0_i32_0, %c0_i32_1 : i32, i32, i32
  }
  func.func @transform_4(%arg0: i32) -> (i32, i32) {
    %c0_i32 = arith.constant 0 : i32
    %c0_i32_0 = arith.constant 0 : i32
    %c0_i32_1 = arith.constant 0 : i32
    return %c0_i32, %c0_i32_0 : i32, i32
  }
  func.func @transform_5(%arg0: i32) -> (i32, i32) {
    %c0_i32 = arith.constant 0 : i32
    %c0_i32_0 = arith.constant 0 : i32
    %c0_i32_1 = arith.constant 0 : i32
    return %c0_i32, %c0_i32_0 : i32, i32
  }
  func.func @transform_6(%arg0: i32) -> (i32, i32) {
    %c0_i32 = arith.constant 0 : i32
    %c0_i32_0 = arith.constant 0 : i32
    %c0_i32_1 = arith.constant 0 : i32
    return %c0_i32, %c0_i32_0 : i32, i32
  }
  func.func @transform_7(%arg0: i32) -> (i32, i32) {
    %c0_i32 = arith.constant 0 : i32
    %c0_i32_0 = arith.constant 0 : i32
    return %arg0, %c0_i32 : i32, i32
  }
}

</mosaic_0001>

<llo_original>
// kernel: net_forward.2
$region0: #{net_forward.2}
  #allocation0 [shape = 'u32[]', space=smem, size = 0x4, offset = 0x4, fixed_abs, tag = 'smem constant byte address 0x4 - core index']
  #allocation1 [shape = 'u32[144,128]{1,0:T(1,128)}', space=vmem, size = 0x12000, scoped, tag = 'internal scratch']
  %s0 = inlined_call_operand.vmem [shape: bf16[8,4,144,25], index: 0, kind: input, shape index: {}]
  %s1 = inlined_call_operand.vmem [shape: bf16[25,10], index: 1, kind: input, shape index: {}]
  %s2 = inlined_call_operand.vmem [shape: f32[1,10], index: 2, kind: input, shape index: {}]
  %s3 = inlined_call_operand.vmem [shape: bf16[8,144,10], index: 3, kind: output, shape index: {}]
  %s4 = sld [smem:[#allocation0]]
  $region22: #{net_forward.2} parent=0
    _
  %s6 = ssub.s32 1, %s4
  %s7 = scalar_select 0, %s6, %s4
  // Predicated region
  $region2: #{net_forward.2} parent=0 // pred_check
    _
  $region3: #{net_forward.2} parent=0 // pred_check_branch
    %9 = sbr.rel (0) target = $region5
  $region4: #{net_forward.2} parent=0 // pred_region
    _
  $region5: #{net_forward.2} parent=0 // pred_fallthru
    _
  // Predicated region
  $region6: #{net_forward.2} parent=0 // pred_check
    _
  $region7: #{net_forward.2} parent=0 // pred_check_branch
    %11 = sbr.rel (0) target = $region9
  $region8: #{net_forward.2} parent=0 // pred_region
    _
  $region9: #{net_forward.2} parent=0 // pred_fallthru
    _
  // Predicated region
  $region10: #{net_forward.2} parent=0 // pred_check
    _
  $region11: #{net_forward.2} parent=0 // pred_check_branch
    %13 = sbr.rel (0) target = $region13
  $region12: #{net_forward.2} parent=0 // pred_region
    _
  $region13: #{net_forward.2} parent=0 // pred_fallthru
    _
  %v15 = vld [vmem:[%s0] sm:$0xf]
  %v16 = vld [vmem:[%s0 + $0x4] sm:$0xf]
  %v17 = vld [vmem:[%s0 + $0x8] sm:$0xf]
  %v18 = vld [vmem:[%s0 + $0xc] sm:$0xf]
  %v19 = vld [vmem:[%s0 + $0x10] sm:$0xf]
  %v20 = vld [vmem:[%s0 + $0x14] sm:$0xf]
  %v21 = vld [vmem:[%s0 + $0x18] sm:$0xf]
  %v22 = vld [vmem:[%s0 + $0x1c] sm:$0xf]
  %v23 = vld [vmem:[%s0 + $0x20] sm:$0xf]
  %v24 = vld [vmem:[%s0 + $0x24] sm:$0xf]
  %v25 = vld [vmem:[%s0 + $0x28] sm:$0xf]
  %v26 = vld [vmem:[%s0 + $0x2c] sm:$0xf]
  %v27 = vld [vmem:[%s0 + $0x30] sm:$0xf]
  %v28 = vld [vmem:[%s0 + $0x34] sm:$0xf]
  %v29 = vld [vmem:[%s0 + $0x38] sm:$0xf]
  %v30 = vld [vmem:[%s0 + $0x3c] sm:$0xf]
  %v31 = vld [vmem:[%s0 + $0x40] sm:$0xf]
  %v32 = vld [vmem:[%s0 + $0x44] sm:$0xf]
  %v33 = vld [vmem:[%s0 + $0x48] sm:$0xf]
  %v34 = vld [vmem:[%s0 + $0x4c] sm:$0xf]
  %v35 = vld [vmem:[%s0 + $0x50] sm:$0xf]
  %v36 = vld [vmem:[%s0 + $0x54] sm:$0xf]
  %v37 = vld [vmem:[%s0 + $0x58] sm:$0xf]
  %v38 = vld [vmem:[%s0 + $0x5c] sm:$0xf]
  %v39 = vld [vmem:[%s0 + $0x60] sm:$0xf]
  %v40 = vld [vmem:[%s0 + $0x64] sm:$0xf]
  %v41 = vld [vmem:[%s0 + $0x68] sm:$0xf]
  %v42 = vld [vmem:[%s0 + $0x6c] sm:$0xf]
  %v43 = vld [vmem:[%s0 + $0x70] sm:$0xf]
  %v44 = vld [vmem:[%s0 + $0x74] sm:$0xf]
  %v45 = vld [vmem:[%s0 + $0x78] sm:$0xf]
  %v46 = vld [vmem:[%s0 + $0x7c] sm:$0xf]
  %v47 = vld [vmem:[%s0 + $0x80] sm:$0xf]
  %v48 = vld [vmem:[%s0 + $0x84] sm:$0xf]
  %v49 = vld [vmem:[%s0 + $0x88] sm:$0xf]
  %v50 = vld [vmem:[%s0 + $0x8c] sm:$0xf]
  %v51 = vld [vmem:[%s0 + $0x90] sm:$0xf]
  %v52 = vld [vmem:[%s0 + $0x94] sm:$0xf]
  %v53 = vld [vmem:[%s0 + $0x98] sm:$0xf]
  %v54 = vld [vmem:[%s0 + $0x9c] sm:$0xf]
  %v55 = vld [vmem:[%s0 + $0xa0] sm:$0xf]
  %v56 = vld [vmem:[%s0 + $0xa4] sm:$0xf]
  %v57 = vld [vmem:[%s0 + $0xa8] sm:$0xf]
  %v58 = vld [vmem:[%s0 + $0xac] sm:$0xf]
  %v59 = vld [vmem:[%s0 + $0xb0] sm:$0xf]
  %v60 = vld [vmem:[%s0 + $0xb4] sm:$0xf]
  %v61 = vld [vmem:[%s0 + $0xb8] sm:$0xf]
  %v62 = vld [vmem:[%s0 + $0xbc] sm:$0xf]
  %v63 = vld [vmem:[%s0 + $0xc0] sm:$0xf]
  %v64 = vld [vmem:[%s0 + $0xc4] sm:$0xf]
  %v65 = vld [vmem:[%s0 + $0xc8] sm:$0xf]
  %v66 = vld [vmem:[%s0 + $0xcc] sm:$0xf]
  %v67 = vld [vmem:[%s0 + $0xd0] sm:$0xf]
  %v68 = vld [vmem:[%s0 + $0xd4] sm:$0xf]
  %v69 = vld [vmem:[%s0 + $0xd8] sm:$0xf]
  %v70 = vld [vmem:[%s0 + $0xdc] sm:$0xf]
  %v71 = vld [vmem:[%s0 + $0xe0] sm:$0xf]
  %v72 = vld [vmem:[%s0 + $0xe4] sm:$0xf]
  %v73 = vld [vmem:[%s0 + $0xe8] sm:$0xf]
  %v74 = vld [vmem:[%s0 + $0xec] sm:$0xf]
  %v75 = vld [vmem:[%s0 + $0xf0] sm:$0xf]
  %v76 = vld [vmem:[%s0 + $0xf4] sm:$0xf]
  %v77 = vld [vmem:[%s0 + $0xf8] sm:$0xf]
  %v78 = vld [vmem:[%s0 + $0xfc] sm:$0xf]
  %v79 = vld [vmem:[%s0 + $0x100] sm:$0xf]
  %v80 = vld [vmem:[%s0 + $0x104] sm:$0xf]
  %v81 = vld [vmem:[%s0 + $0x108] sm:$0xf]
  %v82 = vld [vmem:[%s0 + $0x10c] sm:$0xf]
  %v83 = vld [vmem:[%s0 + $0x110] sm:$0xf]
  %v84 = vld [vmem:[%s0 + $0x114] sm:$0xf]
  %v85 = vld [vmem:[%s0 + $0x118] sm:$0xf]
  %v86 = vld [vmem:[%s0 + $0x11c] sm:$0xf]
  %v87 = vld [vmem:[%s0 + $0x120] sm:$0xf]
  %v88 = vld [vmem:[%s0 + $0x124] sm:$0xf]
  %v89 = vld [vmem:[%s0 + $0x128] sm:$0xf]
  %v90 = vld [vmem:[%s0 + $0x12c] sm:$0xf]
  %v91 = vld [vmem:[%s0 + $0x130] sm:$0xf]
  %v92 = vld [vmem:[%s0 + $0x134] sm:$0xf]
  %v93 = vld [vmem:[%s0 + $0x138] sm:$0xf]
  %v94 = vld [vmem:[%s0 + $0x13c] sm:$0xf]
  %v95 = vld [vmem:[%s0 + $0x140] sm:$0xf]
  %v96 = vld [vmem:[%s0 + $0x144] sm:$0xf]
  %v97 = vld [vmem:[%s0 + $0x148] sm:$0xf]
  %v98 = vld [vmem:[%s0 + $0x14c] sm:$0xf]
  %v99 = vld [vmem:[%s0 + $0x150] sm:$0xf]
  %v100 = vld [vmem:[%s0 + $0x154] sm:$0xf]
  %v101 = vld [vmem:[%s0 + $0x158] sm:$0xf]
  %v102 = vld [vmem:[%s0 + $0x15c] sm:$0xf]
  %v103 = vld [vmem:[%s0 + $0x160] sm:$0xf]
  %v104 = vld [vmem:[%s0 + $0x164] sm:$0xf]
  %v105 = vld [vmem:[%s0 + $0x168] sm:$0xf]
  %v106 = vld [vmem:[%s0 + $0x16c] sm:$0xf]
  %v107 = vld [vmem:[%s0 + $0x170] sm:$0xf]
  %v108 = vld [vmem:[%s0 + $0x174] sm:$0xf]
  %v109 = vld [vmem:[%s0 + $0x178] sm:$0xf]
  %v110 = vld [vmem:[%s0 + $0x17c] sm:$0xf]
  %v111 = vld [vmem:[%s0 + $0x180] sm:$0xf]
  %v112 = vld [vmem:[%s0 + $0x184] sm:$0xf]
  %v113 = vld [vmem:[%s0 + $0x188] sm:$0xf]
  %v114 = vld [vmem:[%s0 + $0x18c] sm:$0xf]
  %v115 = vld [vmem:[%s0 + $0x190] sm:$0xf]
  %v116 = vld [vmem:[%s0 + $0x194] sm:$0xf]
  %v117 = vld [vmem:[%s0 + $0x198] sm:$0xf]
  %v118 = vld [vmem:[%s0 + $0x19c] sm:$0xf]
  %v119 = vld [vmem:[%s0 + $0x1a0] sm:$0xf]
  %v120 = vld [vmem:[%s0 + $0x1a4] sm:$0xf]
  %v121 = vld [vmem:[%s0 + $0x1a8] sm:$0xf]
  %v122 = vld [vmem:[%s0 + $0x1ac] sm:$0xf]
  %v123 = vld [vmem:[%s0 + $0x1b0] sm:$0xf]
  %v124 = vld [vmem:[%s0 + $0x1b4] sm:$0xf]
  %v125 = vld [vmem:[%s0 + $0x1b8] sm:$0xf]
  %v126 = vld [vmem:[%s0 + $0x1bc] sm:$0xf]
  %v127 = vld [vmem:[%s0 + $0x1c0] sm:$0xf]
  %v128 = vld [vmem:[%s0 + $0x1c4] sm:$0xf]
  %v129 = vld [vmem:[%s0 + $0x1c8] sm:$0xf]
  %v130 = vld [vmem:[%s0 + $0x1cc] sm:$0xf]
  %v131 = vld [vmem:[%s0 + $0x1d0] sm:$0xf]
  %v132 = vld [vmem:[%s0 + $0x1d4] sm:$0xf]
  %v133 = vld [vmem:[%s0 + $0x1d8] sm:$0xf]
  %v134 = vld [vmem:[%s0 + $0x1dc] sm:$0xf]
  %v135 = vld [vmem:[%s0 + $0x1e0] sm:$0xf]
  %v136 = vld [vmem:[%s0 + $0x1e4] sm:$0xf]
  %v137 = vld [vmem:[%s0 + $0x1e8] sm:$0xf]
  %v138 = vld [vmem:[%s0 + $0x1ec] sm:$0xf]
  %v139 = vld [vmem:[%s0 + $0x1f0] sm:$0xf]
  %v140 = vld [vmem:[%s0 + $0x1f4] sm:$0xf]
  %v141 = vld [vmem:[%s0 + $0x1f8] sm:$0xf]
  %v142 = vld [vmem:[%s0 + $0x1fc] sm:$0xf]
  %v143 = vld [vmem:[%s0 + $0x200] sm:$0xf]
  %v144 = vld [vmem:[%s0 + $0x204] sm:$0xf]
  %v145 = vld [vmem:[%s0 + $0x208] sm:$0xf]
  %v146 = vld [vmem:[%s0 + $0x20c] sm:$0xf]
  %v147 = vld [vmem:[%s0 + $0x210] sm:$0xf]
  %v148 = vld [vmem:[%s0 + $0x214] sm:$0xf]
  %v149 = vld [vmem:[%s0 + $0x218] sm:$0xf]
  %v150 = vld [vmem:[%s0 + $0x21c] sm:$0xf]
  %v151 = vld [vmem:[%s0 + $0x220] sm:$0xf]
  %v152 = vld [vmem:[%s0 + $0x224] sm:$0xf]
  %v153 = vld [vmem:[%s0 + $0x228] sm:$0xf]
  %v154 = vld [vmem:[%s0 + $0x22c] sm:$0xf]
  %v155 = vld [vmem:[%s0 + $0x230] sm:$0xf]
  %v156 = vld [vmem:[%s0 + $0x234] sm:$0xf]
  %v157 = vld [vmem:[%s0 + $0x238] sm:$0xf]
  %v158 = vld [vmem:[%s0 + $0x23c] sm:$0xf]
  %v159 = vld [vmem:[%s0 + $0x240] sm:$0xf]
  %v160 = vld [vmem:[%s0 + $0x244] sm:$0xf]
  %v161 = vld [vmem:[%s0 + $0x248] sm:$0xf]
  %v162 = vld [vmem:[%s0 + $0x24c] sm:$0xf]
  %v163 = vld [vmem:[%s0 + $0x250] sm:$0xf]
  %v164 = vld [vmem:[%s0 + $0x254] sm:$0xf]
  %v165 = vld [vmem:[%s0 + $0x258] sm:$0xf]
  %v166 = vld [vmem:[%s0 + $0x25c] sm:$0xf]
  %v167 = vld [vmem:[%s0 + $0x260] sm:$0xf]
  %v168 = vld [vmem:[%s0 + $0x264] sm:$0xf]
  %v169 = vld [vmem:[%s0 + $0x268] sm:$0xf]
  %v170 = vld [vmem:[%s0 + $0x26c] sm:$0xf]
  %v171 = vld [vmem:[%s0 + $0x270] sm:$0xf]
  %v172 = vld [vmem:[%s0 + $0x274] sm:$0xf]
  %v173 = vld [vmem:[%s0 + $0x278] sm:$0xf]
  %v174 = vld [vmem:[%s0 + $0x27c] sm:$0xf]
  %v175 = vld [vmem:[%s0 + $0x280] sm:$0xf]
  %v176 = vld [vmem:[%s0 + $0x284] sm:$0xf]
  %v177 = vld [vmem:[%s0 + $0x288] sm:$0xf]
  %v178 = vld [vmem:[%s0 + $0x28c] sm:$0xf]
  %v179 = vld [vmem:[%s0 + $0x290] sm:$0xf]
  %v180 = vld [vmem:[%s0 + $0x294] sm:$0xf]
  %v181 = vld [vmem:[%s0 + $0x298] sm:$0xf]
  %v182 = vld [vmem:[%s0 + $0x29c] sm:$0xf]
  %v183 = vld [vmem:[%s0 + $0x2a0] sm:$0xf]
  %v184 = vld [vmem:[%s0 + $0x2a4] sm:$0xf]
  %v185 = vld [vmem:[%s0 + $0x2a8] sm:$0xf]
  %v186 = vld [vmem:[%s0 + $0x2ac] sm:$0xf]
  %v187 = vld [vmem:[%s0 + $0x2b0] sm:$0xf]
  %v188 = vld [vmem:[%s0 + $0x2b4] sm:$0xf]
  %v189 = vld [vmem:[%s0 + $0x2b8] sm:$0xf]
  %v190 = vld [vmem:[%s0 + $0x2bc] sm:$0xf]
  %v191 = vld [vmem:[%s0 + $0x2c0] sm:$0xf]
  %v192 = vld [vmem:[%s0 + $0x2c4] sm:$0xf]
  %v193 = vld [vmem:[%s0 + $0x2c8] sm:$0xf]
  %v194 = vld [vmem:[%s0 + $0x2cc] sm:$0xf]
  %v195 = vld [vmem:[%s0 + $0x2d0] sm:$0xf]
  %v196 = vld [vmem:[%s0 + $0x2d4] sm:$0xf]
  %v197 = vld [vmem:[%s0 + $0x2d8] sm:$0xf]
  %v198 = vld [vmem:[%s0 + $0x2dc] sm:$0xf]
  %v199 = vld [vmem:[%s0 + $0x2e0] sm:$0xf]
  %v200 = vld [vmem:[%s0 + $0x2e4] sm:$0xf]
  %v201 = vld [vmem:[%s0 + $0x2e8] sm:$0xf]
  %v202 = vld [vmem:[%s0 + $0x2ec] sm:$0xf]
  %v203 = vld [vmem:[%s0 + $0x2f0] sm:$0xf]
  %v204 = vld [vmem:[%s0 + $0x2f4] sm:$0xf]
  %v205 = vld [vmem:[%s0 + $0x2f8] sm:$0xf]
  %v206 = vld [vmem:[%s0 + $0x2fc] sm:$0xf]
  %v207 = vld [vmem:[%s0 + $0x300] sm:$0xf]
  %v208 = vld [vmem:[%s0 + $0x304] sm:$0xf]
  %v209 = vld [vmem:[%s0 + $0x308] sm:$0xf]
  %v210 = vld [vmem:[%s0 + $0x30c] sm:$0xf]
  %v211 = vld [vmem:[%s0 + $0x310] sm:$0xf]
  %v212 = vld [vmem:[%s0 + $0x314] sm:$0xf]
  %v213 = vld [vmem:[%s0 + $0x318] sm:$0xf]
  %v214 = vld [vmem:[%s0 + $0x31c] sm:$0xf]
  %v215 = vld [vmem:[%s0 + $0x320] sm:$0xf]
  %v216 = vld [vmem:[%s0 + $0x324] sm:$0xf]
  %v217 = vld [vmem:[%s0 + $0x328] sm:$0xf]
  %v218 = vld [vmem:[%s0 + $0x32c] sm:$0xf]
  %v219 = vld [vmem:[%s0 + $0x330] sm:$0xf]
  %v220 = vld [vmem:[%s0 + $0x334] sm:$0xf]
  %v221 = vld [vmem:[%s0 + $0x338] sm:$0xf]
  %v222 = vld [vmem:[%s0 + $0x33c] sm:$0xf]
  %v223 = vld [vmem:[%s0 + $0x340] sm:$0xf]
  %v224 = vld [vmem:[%s0 + $0x344] sm:$0xf]
  %v225 = vld [vmem:[%s0 + $0x348] sm:$0xf]
  %v226 = vld [vmem:[%s0 + $0x34c] sm:$0xf]
  %v227 = vld [vmem:[%s0 + $0x350] sm:$0xf]
  %v228 = vld [vmem:[%s0 + $0x354] sm:$0xf]
  %v229 = vld [vmem:[%s0 + $0x358] sm:$0xf]
  %v230 = vld [vmem:[%s0 + $0x35c] sm:$0xf]
  %v231 = vld [vmem:[%s0 + $0x360] sm:$0xf]
  %v232 = vld [vmem:[%s0 + $0x364] sm:$0xf]
  %v233 = vld [vmem:[%s0 + $0x368] sm:$0xf]
  %v234 = vld [vmem:[%s0 + $0x36c] sm:$0xf]
  %v235 = vld [vmem:[%s0 + $0x370] sm:$0xf]
  %v236 = vld [vmem:[%s0 + $0x374] sm:$0xf]
  %v237 = vld [vmem:[%s0 + $0x378] sm:$0xf]
  %v238 = vld [vmem:[%s0 + $0x37c] sm:$0xf]
  %v239 = vld [vmem:[%s0 + $0x380] sm:$0xf]
  %v240 = vld [vmem:[%s0 + $0x384] sm:$0xf]
  %v241 = vld [vmem:[%s0 + $0x388] sm:$0xf]
  %v242 = vld [vmem:[%s0 + $0x38c] sm:$0xf]
  %v243 = vld [vmem:[%s0 + $0x390] sm:$0xf]
  %v244 = vld [vmem:[%s0 + $0x394] sm:$0xf]
  %v245 = vld [vmem:[%s0 + $0x398] sm:$0xf]
  %v246 = vld [vmem:[%s0 + $0x39c] sm:$0xf]
  %v247 = vld [vmem:[%s0 + $0x3a0] sm:$0xf]
  %v248 = vld [vmem:[%s0 + $0x3a4] sm:$0xf]
  %v249 = vld [vmem:[%s0 + $0x3a8] sm:$0xf]
  %v250 = vld [vmem:[%s0 + $0x3ac] sm:$0xf]
  %v251 = vld [vmem:[%s0 + $0x3b0] sm:$0xf]
  %v252 = vld [vmem:[%s0 + $0x3b4] sm:$0xf]
  %v253 = vld [vmem:[%s0 + $0x3b8] sm:$0xf]
  %v254 = vld [vmem:[%s0 + $0x3bc] sm:$0xf]
  %v255 = vld [vmem:[%s0 + $0x3c0] sm:$0xf]
  %v256 = vld [vmem:[%s0 + $0x3c4] sm:$0xf]
  %v257 = vld [vmem:[%s0 + $0x3c8] sm:$0xf]
  %v258 = vld [vmem:[%s0 + $0x3cc] sm:$0xf]
  %v259 = vld [vmem:[%s0 + $0x3d0] sm:$0xf]
  %v260 = vld [vmem:[%s0 + $0x3d4] sm:$0xf]
  %v261 = vld [vmem:[%s0 + $0x3d8] sm:$0xf]
  %v262 = vld [vmem:[%s0 + $0x3dc] sm:$0xf]
  %v263 = vld [vmem:[%s0 + $0x3e0] sm:$0xf]
  %v264 = vld [vmem:[%s0 + $0x3e4] sm:$0xf]
  %v265 = vld [vmem:[%s0 + $0x3e8] sm:$0xf]
  %v266 = vld [vmem:[%s0 + $0x3ec] sm:$0xf]
  %v267 = vld [vmem:[%s0 + $0x3f0] sm:$0xf]
  %v268 = vld [vmem:[%s0 + $0x3f4] sm:$0xf]
  %v269 = vld [vmem:[%s0 + $0x3f8] sm:$0xf]
  %v270 = vld [vmem:[%s0 + $0x3fc] sm:$0xf]
  %v271 = vld [vmem:[%s0 + $0x400] sm:$0xf]
  %v272 = vld [vmem:[%s0 + $0x404] sm:$0xf]
  %v273 = vld [vmem:[%s0 + $0x408] sm:$0xf]
  %v274 = vld [vmem:[%s0 + $0x40c] sm:$0xf]
  %v275 = vld [vmem:[%s0 + $0x410] sm:$0xf]
  %v276 = vld [vmem:[%s0 + $0x414] sm:$0xf]
  %v277 = vld [vmem:[%s0 + $0x418] sm:$0xf]
  %v278 = vld [vmem:[%s0 + $0x41c] sm:$0xf]
  %v279 = vld [vmem:[%s0 + $0x420] sm:$0xf]
  %v280 = vld [vmem:[%s0 + $0x424] sm:$0xf]
  %v281 = vld [vmem:[%s0 + $0x428] sm:$0xf]
  %v282 = vld [vmem:[%s0 + $0x42c] sm:$0xf]
  %v283 = vld [vmem:[%s0 + $0x430] sm:$0xf]
  %v284 = vld [vmem:[%s0 + $0x434] sm:$0xf]
  %v285 = vld [vmem:[%s0 + $0x438] sm:$0xf]
  %v286 = vld [vmem:[%s0 + $0x43c] sm:$0xf]
  %v287 = vld [vmem:[%s0 + $0x440] sm:$0xf]
  %v288 = vld [vmem:[%s0 + $0x444] sm:$0xf]
  %v289 = vld [vmem:[%s0 + $0x448] sm:$0xf]
  %v290 = vld [vmem:[%s0 + $0x44c] sm:$0xf]
  %v291 = vld [vmem:[%s0 + $0x450] sm:$0xf]
  %v292 = vld [vmem:[%s0 + $0x454] sm:$0xf]
  %v293 = vld [vmem:[%s0 + $0x458] sm:$0xf]
  %v294 = vld [vmem:[%s0 + $0x45c] sm:$0xf]
  %v295 = vld [vmem:[%s0 + $0x460] sm:$0xf]
  %v296 = vld [vmem:[%s0 + $0x464] sm:$0xf]
  %v297 = vld [vmem:[%s0 + $0x468] sm:$0xf]
  %v298 = vld [vmem:[%s0 + $0x46c] sm:$0xf]
  %v299 = vld [vmem:[%s0 + $0x470] sm:$0xf]
  %v300 = vld [vmem:[%s0 + $0x474] sm:$0xf]
  %v301 = vld [vmem:[%s0 + $0x478] sm:$0xf]
  %v302 = vld [vmem:[%s0 + $0x47c] sm:$0xf]
  %v303 = vld [vmem:[%s0 + $0x480] sm:$0xf]
  %v304 = vld [vmem:[%s0 + $0x484] sm:$0xf]
  %v305 = vld [vmem:[%s0 + $0x488] sm:$0xf]
  %v306 = vld [vmem:[%s0 + $0x48c] sm:$0xf]
  %v307 = vld [vmem:[%s0 + $0x490] sm:$0xf]
  %v308 = vld [vmem:[%s0 + $0x494] sm:$0xf]
  %v309 = vld [vmem:[%s0 + $0x498] sm:$0xf]
  %v310 = vld [vmem:[%s0 + $0x49c] sm:$0xf]
  %v311 = vld [vmem:[%s0 + $0x4a0] sm:$0xf]
  %v312 = vld [vmem:[%s0 + $0x4a4] sm:$0xf]
  %v313 = vld [vmem:[%s0 + $0x4a8] sm:$0xf]
  %v314 = vld [vmem:[%s0 + $0x4ac] sm:$0xf]
  %v315 = vld [vmem:[%s0 + $0x4b0] sm:$0xf]
  %v316 = vld [vmem:[%s0 + $0x4b4] sm:$0xf]
  %v317 = vld [vmem:[%s0 + $0x4b8] sm:$0xf]
  %v318 = vld [vmem:[%s0 + $0x4bc] sm:$0xf]
  %v319 = vld [vmem:[%s0 + $0x4c0] sm:$0xf]
  %v320 = vld [vmem:[%s0 + $0x4c4] sm:$0xf]
  %v321 = vld [vmem:[%s0 + $0x4c8] sm:$0xf]
  %v322 = vld [vmem:[%s0 + $0x4cc] sm:$0xf]
  %v323 = vld [vmem:[%s0 + $0x4d0] sm:$0xf]
  %v324 = vld [vmem:[%s0 + $0x4d4] sm:$0xf]
  %v325 = vld [vmem:[%s0 + $0x4d8] sm:$0xf]
  %v326 = vld [vmem:[%s0 + $0x4dc] sm:$0xf]
  %v327 = vld [vmem:[%s0 + $0x4e0] sm:$0xf]
  %v328 = vld [vmem:[%s0 + $0x4e4] sm:$0xf]
  %v329 = vld [vmem:[%s0 + $0x4e8] sm:$0xf]
  %v330 = vld [vmem:[%s0 + $0x4ec] sm:$0xf]
  %v331 = vld [vmem:[%s0 + $0x4f0] sm:$0xf]
  %v332 = vld [vmem:[%s0 + $0x4f4] sm:$0xf]
  %v333 = vld [vmem:[%s0 + $0x4f8] sm:$0xf]
  %v334 = vld [vmem:[%s0 + $0x4fc] sm:$0xf]
  %v335 = vld [vmem:[%s0 + $0x500] sm:$0xf]
  %v336 = vld [vmem:[%s0 + $0x504] sm:$0xf]
  %v337 = vld [vmem:[%s0 + $0x508] sm:$0xf]
  %v338 = vld [vmem:[%s0 + $0x50c] sm:$0xf]
  %v339 = vld [vmem:[%s0 + $0x510] sm:$0xf]
  %v340 = vld [vmem:[%s0 + $0x514] sm:$0xf]
  %v341 = vld [vmem:[%s0 + $0x518] sm:$0xf]
  %v342 = vld [vmem:[%s0 + $0x51c] sm:$0xf]
  %v343 = vld [vmem:[%s0 + $0x520] sm:$0xf]
  %v344 = vld [vmem:[%s0 + $0x524] sm:$0xf]
  %v345 = vld [vmem:[%s0 + $0x528] sm:$0xf]
  %v346 = vld [vmem:[%s0 + $0x52c] sm:$0xf]
  %v347 = vld [vmem:[%s0 + $0x530] sm:$0xf]
  %v348 = vld [vmem:[%s0 + $0x534] sm:$0xf]
  %v349 = vld [vmem:[%s0 + $0x538] sm:$0xf]
  %v350 = vld [vmem:[%s0 + $0x53c] sm:$0xf]
  %v351 = vld [vmem:[%s0 + $0x540] sm:$0xf]
  %v352 = vld [vmem:[%s0 + $0x544] sm:$0xf]
  %v353 = vld [vmem:[%s0 + $0x548] sm:$0xf]
  %v354 = vld [vmem:[%s0 + $0x54c] sm:$0xf]
  %v355 = vld [vmem:[%s0 + $0x550] sm:$0xf]
  %v356 = vld [vmem:[%s0 + $0x554] sm:$0xf]
  %v357 = vld [vmem:[%s0 + $0x558] sm:$0xf]
  %v358 = vld [vmem:[%s0 + $0x55c] sm:$0xf]
  %v359 = vld [vmem:[%s0 + $0x560] sm:$0xf]
  %v360 = vld [vmem:[%s0 + $0x564] sm:$0xf]
  %v361 = vld [vmem:[%s0 + $0x568] sm:$0xf]
  %v362 = vld [vmem:[%s0 + $0x56c] sm:$0xf]
  %v363 = vld [vmem:[%s0 + $0x570] sm:$0xf]
  %v364 = vld [vmem:[%s0 + $0x574] sm:$0xf]
  %v365 = vld [vmem:[%s0 + $0x578] sm:$0xf]
  %v366 = vld [vmem:[%s0 + $0x57c] sm:$0xf]
  %v367 = vld [vmem:[%s0 + $0x580] sm:$0xf]
  %v368 = vld [vmem:[%s0 + $0x584] sm:$0xf]
  %v369 = vld [vmem:[%s0 + $0x588] sm:$0xf]
  %v370 = vld [vmem:[%s0 + $0x58c] sm:$0xf]
  %v371 = vld [vmem:[%s0 + $0x590] sm:$0xf]
  %v372 = vld [vmem:[%s0 + $0x594] sm:$0xf]
  %v373 = vld [vmem:[%s0 + $0x598] sm:$0xf]
  %v374 = vld [vmem:[%s0 + $0x59c] sm:$0xf]
  %v375 = vld [vmem:[%s0 + $0x5a0] sm:$0xf]
  %v376 = vld [vmem:[%s0 + $0x5a4] sm:$0xf]
  %v377 = vld [vmem:[%s0 + $0x5a8] sm:$0xf]
  %v378 = vld [vmem:[%s0 + $0x5ac] sm:$0xf]
  %v379 = vld [vmem:[%s0 + $0x5b0] sm:$0xf]
  %v380 = vld [vmem:[%s0 + $0x5b4] sm:$0xf]
  %v381 = vld [vmem:[%s0 + $0x5b8] sm:$0xf]
  %v382 = vld [vmem:[%s0 + $0x5bc] sm:$0xf]
  %v383 = vld [vmem:[%s0 + $0x5c0] sm:$0xf]
  %v384 = vld [vmem:[%s0 + $0x5c4] sm:$0xf]
  %v385 = vld [vmem:[%s0 + $0x5c8] sm:$0xf]
  %v386 = vld [vmem:[%s0 + $0x5cc] sm:$0xf]
  %v387 = vld [vmem:[%s0 + $0x5d0] sm:$0xf]
  %v388 = vld [vmem:[%s0 + $0x5d4] sm:$0xf]
  %v389 = vld [vmem:[%s0 + $0x5d8] sm:$0xf]
  %v390 = vld [vmem:[%s0 + $0x5dc] sm:$0xf]
  %v391 = vld [vmem:[%s0 + $0x5e0] sm:$0xf]
  %v392 = vld [vmem:[%s0 + $0x5e4] sm:$0xf]
  %v393 = vld [vmem:[%s0 + $0x5e8] sm:$0xf]
  %v394 = vld [vmem:[%s0 + $0x5ec] sm:$0xf]
  %v395 = vld [vmem:[%s0 + $0x5f0] sm:$0xf]
  %v396 = vld [vmem:[%s0 + $0x5f4] sm:$0xf]
  %v397 = vld [vmem:[%s0 + $0x5f8] sm:$0xf]
  %v398 = vld [vmem:[%s0 + $0x5fc] sm:$0xf]
  %v399 = vld [vmem:[%s0 + $0x600] sm:$0xf]
  %v400 = vld [vmem:[%s0 + $0x604] sm:$0xf]
  %v401 = vld [vmem:[%s0 + $0x608] sm:$0xf]
  %v402 = vld [vmem:[%s0 + $0x60c] sm:$0xf]
  %v403 = vld [vmem:[%s0 + $0x610] sm:$0xf]
  %v404 = vld [vmem:[%s0 + $0x614] sm:$0xf]
  %v405 = vld [vmem:[%s0 + $0x618] sm:$0xf]
  %v406 = vld [vmem:[%s0 + $0x61c] sm:$0xf]
  %v407 = vld [vmem:[%s0 + $0x620] sm:$0xf]
  %v408 = vld [vmem:[%s0 + $0x624] sm:$0xf]
  %v409 = vld [vmem:[%s0 + $0x628] sm:$0xf]
  %v410 = vld [vmem:[%s0 + $0x62c] sm:$0xf]
  %v411 = vld [vmem:[%s0 + $0x630] sm:$0xf]
  %v412 = vld [vmem:[%s0 + $0x634] sm:$0xf]
  %v413 = vld [vmem:[%s0 + $0x638] sm:$0xf]
  %v414 = vld [vmem:[%s0 + $0x63c] sm:$0xf]
  %v415 = vld [vmem:[%s0 + $0x640] sm:$0xf]
  %v416 = vld [vmem:[%s0 + $0x644] sm:$0xf]
  %v417 = vld [vmem:[%s0 + $0x648] sm:$0xf]
  %v418 = vld [vmem:[%s0 + $0x64c] sm:$0xf]
  %v419 = vld [vmem:[%s0 + $0x650] sm:$0xf]
  %v420 = vld [vmem:[%s0 + $0x654] sm:$0xf]
  %v421 = vld [vmem:[%s0 + $0x658] sm:$0xf]
  %v422 = vld [vmem:[%s0 + $0x65c] sm:$0xf]
  %v423 = vld [vmem:[%s0 + $0x660] sm:$0xf]
  %v424 = vld [vmem:[%s0 + $0x664] sm:$0xf]
  %v425 = vld [vmem:[%s0 + $0x668] sm:$0xf]
  %v426 = vld [vmem:[%s0 + $0x66c] sm:$0xf]
  %v427 = vld [vmem:[%s0 + $0x670] sm:$0xf]
  %v428 = vld [vmem:[%s0 + $0x674] sm:$0xf]
  %v429 = vld [vmem:[%s0 + $0x678] sm:$0xf]
  %v430 = vld [vmem:[%s0 + $0x67c] sm:$0xf]
  %v431 = vld [vmem:[%s0 + $0x680] sm:$0xf]
  %v432 = vld [vmem:[%s0 + $0x684] sm:$0xf]
  %v433 = vld [vmem:[%s0 + $0x688] sm:$0xf]
  %v434 = vld [vmem:[%s0 + $0x68c] sm:$0xf]
  %v435 = vld [vmem:[%s0 + $0x690] sm:$0xf]
  %v436 = vld [vmem:[%s0 + $0x694] sm:$0xf]
  %v437 = vld [vmem:[%s0 + $0x698] sm:$0xf]
  %v438 = vld [vmem:[%s0 + $0x69c] sm:$0xf]
  %v439 = vld [vmem:[%s0 + $0x6a0] sm:$0xf]
  %v440 = vld [vmem:[%s0 + $0x6a4] sm:$0xf]
  %v441 = vld [vmem:[%s0 + $0x6a8] sm:$0xf]
  %v442 = vld [vmem:[%s0 + $0x6ac] sm:$0xf]
  %v443 = vld [vmem:[%s0 + $0x6b0] sm:$0xf]
  %v444 = vld [vmem:[%s0 + $0x6b4] sm:$0xf]
  %v445 = vld [vmem:[%s0 + $0x6b8] sm:$0xf]
  %v446 = vld [vmem:[%s0 + $0x6bc] sm:$0xf]
  %v447 = vld [vmem:[%s0 + $0x6c0] sm:$0xf]
  %v448 = vld [vmem:[%s0 + $0x6c4] sm:$0xf]
  %v449 = vld [vmem:[%s0 + $0x6c8] sm:$0xf]
  %v450 = vld [vmem:[%s0 + $0x6cc] sm:$0xf]
  %v451 = vld [vmem:[%s0 + $0x6d0] sm:$0xf]
  %v452 = vld [vmem:[%s0 + $0x6d4] sm:$0xf]
  %v453 = vld [vmem:[%s0 + $0x6d8] sm:$0xf]
  %v454 = vld [vmem:[%s0 + $0x6dc] sm:$0xf]
  %v455 = vld [vmem:[%s0 + $0x6e0] sm:$0xf]
  %v456 = vld [vmem:[%s0 + $0x6e4] sm:$0xf]
  %v457 = vld [vmem:[%s0 + $0x6e8] sm:$0xf]
  %v458 = vld [vmem:[%s0 + $0x6ec] sm:$0xf]
  %v459 = vld [vmem:[%s0 + $0x6f0] sm:$0xf]
  %v460 = vld [vmem:[%s0 + $0x6f4] sm:$0xf]
  %v461 = vld [vmem:[%s0 + $0x6f8] sm:$0xf]
  %v462 = vld [vmem:[%s0 + $0x6fc] sm:$0xf]
  %v463 = vld [vmem:[%s0 + $0x700] sm:$0xf]
  %v464 = vld [vmem:[%s0 + $0x704] sm:$0xf]
  %v465 = vld [vmem:[%s0 + $0x708] sm:$0xf]
  %v466 = vld [vmem:[%s0 + $0x70c] sm:$0xf]
  %v467 = vld [vmem:[%s0 + $0x710] sm:$0xf]
  %v468 = vld [vmem:[%s0 + $0x714] sm:$0xf]
  %v469 = vld [vmem:[%s0 + $0x718] sm:$0xf]
  %v470 = vld [vmem:[%s0 + $0x71c] sm:$0xf]
  %v471 = vld [vmem:[%s0 + $0x720] sm:$0xf]
  %v472 = vld [vmem:[%s0 + $0x724] sm:$0xf]
  %v473 = vld [vmem:[%s0 + $0x728] sm:$0xf]
  %v474 = vld [vmem:[%s0 + $0x72c] sm:$0xf]
  %v475 = vld [vmem:[%s0 + $0x730] sm:$0xf]
  %v476 = vld [vmem:[%s0 + $0x734] sm:$0xf]
  %v477 = vld [vmem:[%s0 + $0x738] sm:$0xf]
  %v478 = vld [vmem:[%s0 + $0x73c] sm:$0xf]
  %v479 = vld [vmem:[%s0 + $0x740] sm:$0xf]
  %v480 = vld [vmem:[%s0 + $0x744] sm:$0xf]
  %v481 = vld [vmem:[%s0 + $0x748] sm:$0xf]
  %v482 = vld [vmem:[%s0 + $0x74c] sm:$0xf]
  %v483 = vld [vmem:[%s0 + $0x750] sm:$0xf]
  %v484 = vld [vmem:[%s0 + $0x754] sm:$0xf]
  %v485 = vld [vmem:[%s0 + $0x758] sm:$0xf]
  %v486 = vld [vmem:[%s0 + $0x75c] sm:$0xf]
  %v487 = vld [vmem:[%s0 + $0x760] sm:$0xf]
  %v488 = vld [vmem:[%s0 + $0x764] sm:$0xf]
  %v489 = vld [vmem:[%s0 + $0x768] sm:$0xf]
  %v490 = vld [vmem:[%s0 + $0x76c] sm:$0xf]
  %v491 = vld [vmem:[%s0 + $0x770] sm:$0xf]
  %v492 = vld [vmem:[%s0 + $0x774] sm:$0xf]
  %v493 = vld [vmem:[%s0 + $0x778] sm:$0xf]
  %v494 = vld [vmem:[%s0 + $0x77c] sm:$0xf]
  %v495 = vld [vmem:[%s0 + $0x780] sm:$0xf]
  %v496 = vld [vmem:[%s0 + $0x784] sm:$0xf]
  %v497 = vld [vmem:[%s0 + $0x788] sm:$0xf]
  %v498 = vld [vmem:[%s0 + $0x78c] sm:$0xf]
  %v499 = vld [vmem:[%s0 + $0x790] sm:$0xf]
  %v500 = vld [vmem:[%s0 + $0x794] sm:$0xf]
  %v501 = vld [vmem:[%s0 + $0x798] sm:$0xf]
  %v502 = vld [vmem:[%s0 + $0x79c] sm:$0xf]
  %v503 = vld [vmem:[%s0 + $0x7a0] sm:$0xf]
  %v504 = vld [vmem:[%s0 + $0x7a4] sm:$0xf]
  %v505 = vld [vmem:[%s0 + $0x7a8] sm:$0xf]
  %v506 = vld [vmem:[%s0 + $0x7ac] sm:$0xf]
  %v507 = vld [vmem:[%s0 + $0x7b0] sm:$0xf]
  %v508 = vld [vmem:[%s0 + $0x7b4] sm:$0xf]
  %v509 = vld [vmem:[%s0 + $0x7b8] sm:$0xf]
  %v510 = vld [vmem:[%s0 + $0x7bc] sm:$0xf]
  %v511 = vld [vmem:[%s0 + $0x7c0] sm:$0xf]
  %v512 = vld [vmem:[%s0 + $0x7c4] sm:$0xf]
  %v513 = vld [vmem:[%s0 + $0x7c8] sm:$0xf]
  %v514 = vld [vmem:[%s0 + $0x7cc] sm:$0xf]
  %v515 = vld [vmem:[%s0 + $0x7d0] sm:$0xf]
  %v516 = vld [vmem:[%s0 + $0x7d4] sm:$0xf]
  %v517 = vld [vmem:[%s0 + $0x7d8] sm:$0xf]
  %v518 = vld [vmem:[%s0 + $0x7dc] sm:$0xf]
  %v519 = vld [vmem:[%s0 + $0x7e0] sm:$0xf]
  %v520 = vld [vmem:[%s0 + $0x7e4] sm:$0xf]
  %v521 = vld [vmem:[%s0 + $0x7e8] sm:$0xf]
  %v522 = vld [vmem:[%s0 + $0x7ec] sm:$0xf]
  %v523 = vld [vmem:[%s0 + $0x7f0] sm:$0xf]
  %v524 = vld [vmem:[%s0 + $0x7f4] sm:$0xf]
  %v525 = vld [vmem:[%s0 + $0x7f8] sm:$0xf]
  %v526 = vld [vmem:[%s0 + $0x7fc] sm:$0xf]
  %v527 = vld [vmem:[%s0 + $0x800] sm:$0xf]
  %v528 = vld [vmem:[%s0 + $0x804] sm:$0xf]
  %v529 = vld [vmem:[%s0 + $0x808] sm:$0xf]
  %v530 = vld [vmem:[%s0 + $0x80c] sm:$0xf]
  %v531 = vld [vmem:[%s0 + $0x810] sm:$0xf]
  %v532 = vld [vmem:[%s0 + $0x814] sm:$0xf]
  %v533 = vld [vmem:[%s0 + $0x818] sm:$0xf]
  %v534 = vld [vmem:[%s0 + $0x81c] sm:$0xf]
  %v535 = vld [vmem:[%s0 + $0x820] sm:$0xf]
  %v536 = vld [vmem:[%s0 + $0x824] sm:$0xf]
  %v537 = vld [vmem:[%s0 + $0x828] sm:$0xf]
  %v538 = vld [vmem:[%s0 + $0x82c] sm:$0xf]
  %v539 = vld [vmem:[%s0 + $0x830] sm:$0xf]
  %v540 = vld [vmem:[%s0 + $0x834] sm:$0xf]
  %v541 = vld [vmem:[%s0 + $0x838] sm:$0xf]
  %v542 = vld [vmem:[%s0 + $0x83c] sm:$0xf]
  %v543 = vld [vmem:[%s0 + $0x840] sm:$0xf]
  %v544 = vld [vmem:[%s0 + $0x844] sm:$0xf]
  %v545 = vld [vmem:[%s0 + $0x848] sm:$0xf]
  %v546 = vld [vmem:[%s0 + $0x84c] sm:$0xf]
  %v547 = vld [vmem:[%s0 + $0x850] sm:$0xf]
  %v548 = vld [vmem:[%s0 + $0x854] sm:$0xf]
  %v549 = vld [vmem:[%s0 + $0x858] sm:$0xf]
  %v550 = vld [vmem:[%s0 + $0x85c] sm:$0xf]
  %v551 = vld [vmem:[%s0 + $0x860] sm:$0xf]
  %v552 = vld [vmem:[%s0 + $0x864] sm:$0xf]
  %v553 = vld [vmem:[%s0 + $0x868] sm:$0xf]
  %v554 = vld [vmem:[%s0 + $0x86c] sm:$0xf]
  %v555 = vld [vmem:[%s0 + $0x870] sm:$0xf]
  %v556 = vld [vmem:[%s0 + $0x874] sm:$0xf]
  %v557 = vld [vmem:[%s0 + $0x878] sm:$0xf]
  %v558 = vld [vmem:[%s0 + $0x87c] sm:$0xf]
  %v559 = vld [vmem:[%s0 + $0x880] sm:$0xf]
  %v560 = vld [vmem:[%s0 + $0x884] sm:$0xf]
  %v561 = vld [vmem:[%s0 + $0x888] sm:$0xf]
  %v562 = vld [vmem:[%s0 + $0x88c] sm:$0xf]
  %v563 = vld [vmem:[%s0 + $0x890] sm:$0xf]
  %v564 = vld [vmem:[%s0 + $0x894] sm:$0xf]
  %v565 = vld [vmem:[%s0 + $0x898] sm:$0xf]
  %v566 = vld [vmem:[%s0 + $0x89c] sm:$0xf]
  %v567 = vld [vmem:[%s0 + $0x8a0] sm:$0xf]
  %v568 = vld [vmem:[%s0 + $0x8a4] sm:$0xf]
  %v569 = vld [vmem:[%s0 + $0x8a8] sm:$0xf]
  %v570 = vld [vmem:[%s0 + $0x8ac] sm:$0xf]
  %v571 = vld [vmem:[%s0 + $0x8b0] sm:$0xf]
  %v572 = vld [vmem:[%s0 + $0x8b4] sm:$0xf]
  %v573 = vld [vmem:[%s0 + $0x8b8] sm:$0xf]
  %v574 = vld [vmem:[%s0 + $0x8bc] sm:$0xf]
  %v575 = vld [vmem:[%s0 + $0x8c0] sm:$0xf]
  %v576 = vld [vmem:[%s0 + $0x8c4] sm:$0xf]
  %v577 = vld [vmem:[%s0 + $0x8c8] sm:$0xf]
  %v578 = vld [vmem:[%s0 + $0x8cc] sm:$0xf]
  %v579 = vld [vmem:[%s0 + $0x8d0] sm:$0xf]
  %v580 = vld [vmem:[%s0 + $0x8d4] sm:$0xf]
  %v581 = vld [vmem:[%s0 + $0x8d8] sm:$0xf]
  %v582 = vld [vmem:[%s0 + $0x8dc] sm:$0xf]
  %v583 = vld [vmem:[%s0 + $0x8e0] sm:$0xf]
  %v584 = vld [vmem:[%s0 + $0x8e4] sm:$0xf]
  %v585 = vld [vmem:[%s0 + $0x8e8] sm:$0xf]
  %v586 = vld [vmem:[%s0 + $0x8ec] sm:$0xf]
  %v587 = vld [vmem:[%s0 + $0x8f0] sm:$0xf]
  %v588 = vld [vmem:[%s0 + $0x8f4] sm:$0xf]
  %v589 = vld [vmem:[%s0 + $0x8f8] sm:$0xf]
  %v590 = vld [vmem:[%s0 + $0x8fc] sm:$0xf]
  %v591 = vld [vmem:[%s1] sm:$0xf]
  %v592 = vld [vmem:[%s1 + $0x4] sm:$0xf]
  %v593 = vld [vmem:[%s1 + $0x8] sm:$0xf]
  %v594 = vld [vmem:[%s1 + $0xc] sm:$0x1]
  %v1171 = vunpack.c.l.b16 %v15
  %v1172 = vunpack.c.l.b16 %v16
  %v1173 = vunpack.c.l.b16 %v17
  %v1174 = vunpack.c.l.b16 %v18
  %v1175 = vunpack.c.l.b16 %v19
  %v1176 = vunpack.c.l.b16 %v20
  %v1177 = vunpack.c.l.b16 %v21
  %v1178 = vunpack.c.l.b16 %v22
  %v1179 = vunpack.c.l.b16 %v23
  %v1180 = vunpack.c.l.b16 %v24
  %v1181 = vunpack.c.l.b16 %v25
  %v1182 = vunpack.c.l.b16 %v26
  %v1183 = vunpack.c.l.b16 %v27
  %v1184 = vunpack.c.l.b16 %v28
  %v1185 = vunpack.c.l.b16 %v29
  %v1186 = vunpack.c.l.b16 %v30
  %v1187 = vunpack.c.l.b16 %v31
  %v1188 = vunpack.c.l.b16 %v32
  %v1189 = vunpack.c.l.b16 %v33
  %v1190 = vunpack.c.l.b16 %v34
  %v1191 = vunpack.c.l.b16 %v35
  %v1192 = vunpack.c.l.b16 %v36
  %v1193 = vunpack.c.l.b16 %v37
  %v1194 = vunpack.c.l.b16 %v38
  %v1195 = vunpack.c.l.b16 %v39
  %v1196 = vunpack.c.l.b16 %v40
  %v1197 = vunpack.c.l.b16 %v41
  %v1198 = vunpack.c.l.b16 %v42
  %v1199 = vunpack.c.l.b16 %v43
  %v1200 = vunpack.c.l.b16 %v44
  %v1201 = vunpack.c.l.b16 %v45
  %v1202 = vunpack.c.l.b16 %v46
  %v1203 = vunpack.c.l.b16 %v47
  %v1204 = vunpack.c.l.b16 %v48
  %v1205 = vunpack.c.l.b16 %v49
  %v1206 = vunpack.c.l.b16 %v50
  %v1207 = vunpack.c.l.b16 %v51
  %v1208 = vunpack.c.l.b16 %v52
  %v1209 = vunpack.c.l.b16 %v53
  %v1210 = vunpack.c.l.b16 %v54
  %v1211 = vunpack.c.l.b16 %v55
  %v1212 = vunpack.c.l.b16 %v56
  %v1213 = vunpack.c.l.b16 %v57
  %v1214 = vunpack.c.l.b16 %v58
  %v1215 = vunpack.c.l.b16 %v59
  %v1216 = vunpack.c.l.b16 %v60
  %v1217 = vunpack.c.l.b16 %v61
  %v1218 = vunpack.c.l.b16 %v62
  %v1219 = vunpack.c.l.b16 %v63
  %v1220 = vunpack.c.l.b16 %v64
  %v1221 = vunpack.c.l.b16 %v65
  %v1222 = vunpack.c.l.b16 %v66
  %v1223 = vunpack.c.l.b16 %v67
  %v1224 = vunpack.c.l.b16 %v68
  %v1225 = vunpack.c.l.b16 %v69
  %v1226 = vunpack.c.l.b16 %v70
  %v1227 = vunpack.c.l.b16 %v71
  %v1228 = vunpack.c.l.b16 %v72
  %v1229 = vunpack.c.l.b16 %v73
  %v1230 = vunpack.c.l.b16 %v74
  %v1231 = vunpack.c.l.b16 %v75
  %v1232 = vunpack.c.l.b16 %v76
  %v1233 = vunpack.c.l.b16 %v77
  %v1234 = vunpack.c.l.b16 %v78
  %v1235 = vunpack.c.l.b16 %v79
  %v1236 = vunpack.c.l.b16 %v80
  %v1237 = vunpack.c.l.b16 %v81
  %v1238 = vunpack.c.l.b16 %v82
  %v1239 = vunpack.c.l.b16 %v83
  %v1240 = vunpack.c.l.b16 %v84
  %v1241 = vunpack.c.l.b16 %v85
  %v1242 = vunpack.c.l.b16 %v86
  %v1243 = vunpack.c.l.b16 %v87
  %v1244 = vunpack.c.l.b16 %v88
  %v1245 = vunpack.c.l.b16 %v89
  %v1246 = vunpack.c.l.b16 %v90
  %v1247 = vunpack.c.l.b16 %v91
  %v1248 = vunpack.c.l.b16 %v92
  %v1249 = vunpack.c.l.b16 %v93
  %v1250 = vunpack.c.l.b16 %v94
  %v1251 = vunpack.c.l.b16 %v95
  %v1252 = vunpack.c.l.b16 %v96
  %v1253 = vunpack.c.l.b16 %v97
  %v1254 = vunpack.c.l.b16 %v98
  %v1255 = vunpack.c.l.b16 %v99
  %v1256 = vunpack.c.l.b16 %v100
  %v1257 = vunpack.c.l.b16 %v101
  %v1258 = vunpack.c.l.b16 %v102
  %v1259 = vunpack.c.l.b16 %v103
  %v1260 = vunpack.c.l.b16 %v104
  %v1261 = vunpack.c.l.b16 %v105
  %v1262 = vunpack.c.l.b16 %v106
  %v1263 = vunpack.c.l.b16 %v107
  %v1264 = vunpack.c.l.b16 %v108
  %v1265 = vunpack.c.l.b16 %v109
  %v1266 = vunpack.c.l.b16 %v110
  %v1267 = vunpack.c.l.b16 %v111
  %v1268 = vunpack.c.l.b16 %v112
  %v1269 = vunpack.c.l.b16 %v113
  %v1270 = vunpack.c.l.b16 %v114
  %v1271 = vunpack.c.l.b16 %v115
  %v1272 = vunpack.c.l.b16 %v116
  %v1273 = vunpack.c.l.b16 %v117
  %v1274 = vunpack.c.l.b16 %v118
  %v1275 = vunpack.c.l.b16 %v119
  %v1276 = vunpack.c.l.b16 %v120
  %v1277 = vunpack.c.l.b16 %v121
  %v1278 = vunpack.c.l.b16 %v122
  %v1279 = vunpack.c.l.b16 %v123
  %v1280 = vunpack.c.l.b16 %v124
  %v1281 = vunpack.c.l.b16 %v125
  %v1282 = vunpack.c.l.b16 %v126
  %v1283 = vunpack.c.l.b16 %v127
  %v1284 = vunpack.c.l.b16 %v128
  %v1285 = vunpack.c.l.b16 %v129
  %v1286 = vunpack.c.l.b16 %v130
  %v1287 = vunpack.c.l.b16 %v131
  %v1288 = vunpack.c.l.b16 %v132
  %v1289 = vunpack.c.l.b16 %v133
  %v1290 = vunpack.c.l.b16 %v134
  %v1291 = vunpack.c.l.b16 %v135
  %v1292 = vunpack.c.l.b16 %v136
  %v1293 = vunpack.c.l.b16 %v137
  %v1294 = vunpack.c.l.b16 %v138
  %v1295 = vunpack.c.l.b16 %v139
  %v1296 = vunpack.c.l.b16 %v140
  %v1297 = vunpack.c.l.b16 %v141
  %v1298 = vunpack.c.l.b16 %v142
  %v1299 = vunpack.c.l.b16 %v143
  %v1300 = vunpack.c.l.b16 %v144
  %v1301 = vunpack.c.l.b16 %v145
  %v1302 = vunpack.c.l.b16 %v146
  %v1303 = vunpack.c.l.b16 %v147
  %v1304 = vunpack.c.l.b16 %v148
  %v1305 = vunpack.c.l.b16 %v149
  %v1306 = vunpack.c.l.b16 %v150
  %v1307 = vunpack.c.l.b16 %v151
  %v1308 = vunpack.c.l.b16 %v152
  %v1309 = vunpack.c.l.b16 %v153
  %v1310 = vunpack.c.l.b16 %v154
  %v1311 = vunpack.c.l.b16 %v155
  %v1312 = vunpack.c.l.b16 %v156
  %v1313 = vunpack.c.l.b16 %v157
  %v1314 = vunpack.c.l.b16 %v158
  %v1315 = vunpack.c.l.b16 %v159
  %v1316 = vunpack.c.l.b16 %v160
  %v1317 = vunpack.c.l.b16 %v161
  %v1318 = vunpack.c.l.b16 %v162
  %v1319 = vunpack.c.l.b16 %v163
  %v1320 = vunpack.c.l.b16 %v164
  %v1321 = vunpack.c.l.b16 %v165
  %v1322 = vunpack.c.l.b16 %v166
  %v1323 = vunpack.c.l.b16 %v167
  %v1324 = vunpack.c.l.b16 %v168
  %v1325 = vunpack.c.l.b16 %v169
  %v1326 = vunpack.c.l.b16 %v170
  %v1327 = vunpack.c.l.b16 %v171
  %v1328 = vunpack.c.l.b16 %v172
  %v1329 = vunpack.c.l.b16 %v173
  %v1330 = vunpack.c.l.b16 %v174
  %v1331 = vunpack.c.l.b16 %v175
  %v1332 = vunpack.c.l.b16 %v176
  %v1333 = vunpack.c.l.b16 %v177
  %v1334 = vunpack.c.l.b16 %v178
  %v1335 = vunpack.c.l.b16 %v179
  %v1336 = vunpack.c.l.b16 %v180
  %v1337 = vunpack.c.l.b16 %v181
  %v1338 = vunpack.c.l.b16 %v182
  %v1339 = vunpack.c.l.b16 %v183
  %v1340 = vunpack.c.l.b16 %v184
  %v1341 = vunpack.c.l.b16 %v185
  %v1342 = vunpack.c.l.b16 %v186
  %v1343 = vunpack.c.l.b16 %v187
  %v1344 = vunpack.c.l.b16 %v188
  %v1345 = vunpack.c.l.b16 %v189
  %v1346 = vunpack.c.l.b16 %v190
  %v1347 = vunpack.c.l.b16 %v191
  %v1348 = vunpack.c.l.b16 %v192
  %v1349 = vunpack.c.l.b16 %v193
  %v1350 = vunpack.c.l.b16 %v194
  %v1351 = vunpack.c.l.b16 %v195
  %v1352 = vunpack.c.l.b16 %v196
  %v1353 = vunpack.c.l.b16 %v197
  %v1354 = vunpack.c.l.b16 %v198
  %v1355 = vunpack.c.l.b16 %v199
  %v1356 = vunpack.c.l.b16 %v200
  %v1357 = vunpack.c.l.b16 %v201
  %v1358 = vunpack.c.l.b16 %v202
  %v1359 = vunpack.c.l.b16 %v203
  %v1360 = vunpack.c.l.b16 %v204
  %v1361 = vunpack.c.l.b16 %v205
  %v1362 = vunpack.c.l.b16 %v206
  %v1363 = vunpack.c.l.b16 %v207
  %v1364 = vunpack.c.l.b16 %v208
  %v1365 = vunpack.c.l.b16 %v209
  %v1366 = vunpack.c.l.b16 %v210
  %v1367 = vunpack.c.l.b16 %v211
  %v1368 = vunpack.c.l.b16 %v212
  %v1369 = vunpack.c.l.b16 %v213
  %v1370 = vunpack.c.l.b16 %v214
  %v1371 = vunpack.c.l.b16 %v215
  %v1372 = vunpack.c.l.b16 %v216
  %v1373 = vunpack.c.l.b16 %v217
  %v1374 = vunpack.c.l.b16 %v218
  %v1375 = vunpack.c.l.b16 %v219
  %v1376 = vunpack.c.l.b16 %v220
  %v1377 = vunpack.c.l.b16 %v221
  %v1378 = vunpack.c.l.b16 %v222
  %v1379 = vunpack.c.l.b16 %v223
  %v1380 = vunpack.c.l.b16 %v224
  %v1381 = vunpack.c.l.b16 %v225
  %v1382 = vunpack.c.l.b16 %v226
  %v1383 = vunpack.c.l.b16 %v227
  %v1384 = vunpack.c.l.b16 %v228
  %v1385 = vunpack.c.l.b16 %v229
  %v1386 = vunpack.c.l.b16 %v230
  %v1387 = vunpack.c.l.b16 %v231
  %v1388 = vunpack.c.l.b16 %v232
  %v1389 = vunpack.c.l.b16 %v233
  %v1390 = vunpack.c.l.b16 %v234
  %v1391 = vunpack.c.l.b16 %v235
  %v1392 = vunpack.c.l.b16 %v236
  %v1393 = vunpack.c.l.b16 %v237
  %v1394 = vunpack.c.l.b16 %v238
  %v1395 = vunpack.c.l.b16 %v239
  %v1396 = vunpack.c.l.b16 %v240
  %v1397 = vunpack.c.l.b16 %v241
  %v1398 = vunpack.c.l.b16 %v242
  %v1399 = vunpack.c.l.b16 %v243
  %v1400 = vunpack.c.l.b16 %v244
  %v1401 = vunpack.c.l.b16 %v245
  %v1402 = vunpack.c.l.b16 %v246
  %v1403 = vunpack.c.l.b16 %v247
  %v1404 = vunpack.c.l.b16 %v248
  %v1405 = vunpack.c.l.b16 %v249
  %v1406 = vunpack.c.l.b16 %v250
  %v1407 = vunpack.c.l.b16 %v251
  %v1408 = vunpack.c.l.b16 %v252
  %v1409 = vunpack.c.l.b16 %v253
  %v1410 = vunpack.c.l.b16 %v254
  %v1411 = vunpack.c.l.b16 %v255
  %v1412 = vunpack.c.l.b16 %v256
  %v1413 = vunpack.c.l.b16 %v257
  %v1414 = vunpack.c.l.b16 %v258
  %v1415 = vunpack.c.l.b16 %v259
  %v1416 = vunpack.c.l.b16 %v260
  %v1417 = vunpack.c.l.b16 %v261
  %v1418 = vunpack.c.l.b16 %v262
  %v1419 = vunpack.c.l.b16 %v263
  %v1420 = vunpack.c.l.b16 %v264
  %v1421 = vunpack.c.l.b16 %v265
  %v1422 = vunpack.c.l.b16 %v266
  %v1423 = vunpack.c.l.b16 %v267
  %v1424 = vunpack.c.l.b16 %v268
  %v1425 = vunpack.c.l.b16 %v269
  %v1426 = vunpack.c.l.b16 %v270
  %v1427 = vunpack.c.l.b16 %v271
  %v1428 = vunpack.c.l.b16 %v272
  %v1429 = vunpack.c.l.b16 %v273
  %v1430 = vunpack.c.l.b16 %v274
  %v1431 = vunpack.c.l.b16 %v275
  %v1432 = vunpack.c.l.b16 %v276
  %v1433 = vunpack.c.l.b16 %v277
  %v1434 = vunpack.c.l.b16 %v278
  %v1435 = vunpack.c.l.b16 %v279
  %v1436 = vunpack.c.l.b16 %v280
  %v1437 = vunpack.c.l.b16 %v281
  %v1438 = vunpack.c.l.b16 %v282
  %v1439 = vunpack.c.l.b16 %v283
  %v1440 = vunpack.c.l.b16 %v284
  %v1441 = vunpack.c.l.b16 %v285
  %v1442 = vunpack.c.l.b16 %v286
  %v1443 = vunpack.c.l.b16 %v287
  %v1444 = vunpack.c.l.b16 %v288
  %v1445 = vunpack.c.l.b16 %v289
  %v1446 = vunpack.c.l.b16 %v290
  %v1447 = vunpack.c.l.b16 %v291
  %v1448 = vunpack.c.l.b16 %v292
  %v1449 = vunpack.c.l.b16 %v293
  %v1450 = vunpack.c.l.b16 %v294
  %v1451 = vunpack.c.l.b16 %v295
  %v1452 = vunpack.c.l.b16 %v296
  %v1453 = vunpack.c.l.b16 %v297
  %v1454 = vunpack.c.l.b16 %v298
  %v1455 = vunpack.c.l.b16 %v299
  %v1456 = vunpack.c.l.b16 %v300
  %v1457 = vunpack.c.l.b16 %v301
  %v1458 = vunpack.c.l.b16 %v302
  %v1459 = vunpack.c.l.b16 %v303
  %v1460 = vunpack.c.l.b16 %v304
  %v1461 = vunpack.c.l.b16 %v305
  %v1462 = vunpack.c.l.b16 %v306
  %v1463 = vunpack.c.l.b16 %v307
  %v1464 = vunpack.c.l.b16 %v308
  %v1465 = vunpack.c.l.b16 %v309
  %v1466 = vunpack.c.l.b16 %v310
  %v1467 = vunpack.c.l.b16 %v311
  %v1468 = vunpack.c.l.b16 %v312
  %v1469 = vunpack.c.l.b16 %v313
  %v1470 = vunpack.c.l.b16 %v314
  %v1471 = vunpack.c.l.b16 %v315
  %v1472 = vunpack.c.l.b16 %v316
  %v1473 = vunpack.c.l.b16 %v317
  %v1474 = vunpack.c.l.b16 %v318
  %v1475 = vunpack.c.l.b16 %v319
  %v1476 = vunpack.c.l.b16 %v320
  %v1477 = vunpack.c.l.b16 %v321
  %v1478 = vunpack.c.l.b16 %v322
  %v1479 = vunpack.c.l.b16 %v323
  %v1480 = vunpack.c.l.b16 %v324
  %v1481 = vunpack.c.l.b16 %v325
  %v1482 = vunpack.c.l.b16 %v326
  %v1483 = vunpack.c.l.b16 %v327
  %v1484 = vunpack.c.l.b16 %v328
  %v1485 = vunpack.c.l.b16 %v329
  %v1486 = vunpack.c.l.b16 %v330
  %v1487 = vunpack.c.l.b16 %v331
  %v1488 = vunpack.c.l.b16 %v332
  %v1489 = vunpack.c.l.b16 %v333
  %v1490 = vunpack.c.l.b16 %v334
  %v1491 = vunpack.c.l.b16 %v335
  %v1492 = vunpack.c.l.b16 %v336
  %v1493 = vunpack.c.l.b16 %v337
  %v1494 = vunpack.c.l.b16 %v338
  %v1495 = vunpack.c.l.b16 %v339
  %v1496 = vunpack.c.l.b16 %v340
  %v1497 = vunpack.c.l.b16 %v341
  %v1498 = vunpack.c.l.b16 %v342
  %v1499 = vunpack.c.l.b16 %v343
  %v1500 = vunpack.c.l.b16 %v344
  %v1501 = vunpack.c.l.b16 %v345
  %v1502 = vunpack.c.l.b16 %v346
  %v1503 = vunpack.c.l.b16 %v347
  %v1504 = vunpack.c.l.b16 %v348
  %v1505 = vunpack.c.l.b16 %v349
  %v1506 = vunpack.c.l.b16 %v350
  %v1507 = vunpack.c.l.b16 %v351
  %v1508 = vunpack.c.l.b16 %v352
  %v1509 = vunpack.c.l.b16 %v353
  %v1510 = vunpack.c.l.b16 %v354
  %v1511 = vunpack.c.l.b16 %v355
  %v1512 = vunpack.c.l.b16 %v356
  %v1513 = vunpack.c.l.b16 %v357
  %v1514 = vunpack.c.l.b16 %v358
  %v1515 = vunpack.c.l.b16 %v359
  %v1516 = vunpack.c.l.b16 %v360
  %v1517 = vunpack.c.l.b16 %v361
  %v1518 = vunpack.c.l.b16 %v362
  %v1519 = vunpack.c.l.b16 %v363
  %v1520 = vunpack.c.l.b16 %v364
  %v1521 = vunpack.c.l.b16 %v365
  %v1522 = vunpack.c.l.b16 %v366
  %v1523 = vunpack.c.l.b16 %v367
  %v1524 = vunpack.c.l.b16 %v368
  %v1525 = vunpack.c.l.b16 %v369
  %v1526 = vunpack.c.l.b16 %v370
  %v1527 = vunpack.c.l.b16 %v371
  %v1528 = vunpack.c.l.b16 %v372
  %v1529 = vunpack.c.l.b16 %v373
  %v1530 = vunpack.c.l.b16 %v374
  %v1531 = vunpack.c.l.b16 %v375
  %v1532 = vunpack.c.l.b16 %v376
  %v1533 = vunpack.c.l.b16 %v377
  %v1534 = vunpack.c.l.b16 %v378
  %v1535 = vunpack.c.l.b16 %v379
  %v1536 = vunpack.c.l.b16 %v380
  %v1537 = vunpack.c.l.b16 %v381
  %v1538 = vunpack.c.l.b16 %v382
  %v1539 = vunpack.c.l.b16 %v383
  %v1540 = vunpack.c.l.b16 %v384
  %v1541 = vunpack.c.l.b16 %v385
  %v1542 = vunpack.c.l.b16 %v386
  %v1543 = vunpack.c.l.b16 %v387
  %v1544 = vunpack.c.l.b16 %v388
  %v1545 = vunpack.c.l.b16 %v389
  %v1546 = vunpack.c.l.b16 %v390
  %v1547 = vunpack.c.l.b16 %v391
  %v1548 = vunpack.c.l.b16 %v392
  %v1549 = vunpack.c.l.b16 %v393
  %v1550 = vunpack.c.l.b16 %v394
  %v1551 = vunpack.c.l.b16 %v395
  %v1552 = vunpack.c.l.b16 %v396
  %v1553 = vunpack.c.l.b16 %v397
  %v1554 = vunpack.c.l.b16 %v398
  %v1555 = vunpack.c.l.b16 %v399
  %v1556 = vunpack.c.l.b16 %v400
  %v1557 = vunpack.c.l.b16 %v401
  %v1558 = vunpack.c.l.b16 %v402
  %v1559 = vunpack.c.l.b16 %v403
  %v1560 = vunpack.c.l.b16 %v404
  %v1561 = vunpack.c.l.b16 %v405
  %v1562 = vunpack.c.l.b16 %v406
  %v1563 = vunpack.c.l.b16 %v407
  %v1564 = vunpack.c.l.b16 %v408
  %v1565 = vunpack.c.l.b16 %v409
  %v1566 = vunpack.c.l.b16 %v410
  %v1567 = vunpack.c.l.b16 %v411
  %v1568 = vunpack.c.l.b16 %v412
  %v1569 = vunpack.c.l.b16 %v413
  %v1570 = vunpack.c.l.b16 %v414
  %v1571 = vunpack.c.l.b16 %v415
  %v1572 = vunpack.c.l.b16 %v416
  %v1573 = vunpack.c.l.b16 %v417
  %v1574 = vunpack.c.l.b16 %v418
  %v1575 = vunpack.c.l.b16 %v419
  %v1576 = vunpack.c.l.b16 %v420
  %v1577 = vunpack.c.l.b16 %v421
  %v1578 = vunpack.c.l.b16 %v422
  %v1579 = vunpack.c.l.b16 %v423
  %v1580 = vunpack.c.l.b16 %v424
  %v1581 = vunpack.c.l.b16 %v425
  %v1582 = vunpack.c.l.b16 %v426
  %v1583 = vunpack.c.l.b16 %v427
  %v1584 = vunpack.c.l.b16 %v428
  %v1585 = vunpack.c.l.b16 %v429
  %v1586 = vunpack.c.l.b16 %v430
  %v1587 = vunpack.c.l.b16 %v431
  %v1588 = vunpack.c.l.b16 %v432
  %v1589 = vunpack.c.l.b16 %v433
  %v1590 = vunpack.c.l.b16 %v434
  %v1591 = vunpack.c.l.b16 %v435
  %v1592 = vunpack.c.l.b16 %v436
  %v1593 = vunpack.c.l.b16 %v437
  %v1594 = vunpack.c.l.b16 %v438
  %v1595 = vunpack.c.l.b16 %v439
  %v1596 = vunpack.c.l.b16 %v440
  %v1597 = vunpack.c.l.b16 %v441
  %v1598 = vunpack.c.l.b16 %v442
  %v1599 = vunpack.c.l.b16 %v443
  %v1600 = vunpack.c.l.b16 %v444
  %v1601 = vunpack.c.l.b16 %v445
  %v1602 = vunpack.c.l.b16 %v446
  %v1603 = vunpack.c.l.b16 %v447
  %v1604 = vunpack.c.l.b16 %v448
  %v1605 = vunpack.c.l.b16 %v449
  %v1606 = vunpack.c.l.b16 %v450
  %v1607 = vunpack.c.l.b16 %v451
  %v1608 = vunpack.c.l.b16 %v452
  %v1609 = vunpack.c.l.b16 %v453
  %v1610 = vunpack.c.l.b16 %v454
  %v1611 = vunpack.c.l.b16 %v455
  %v1612 = vunpack.c.l.b16 %v456
  %v1613 = vunpack.c.l.b16 %v457
  %v1614 = vunpack.c.l.b16 %v458
  %v1615 = vunpack.c.l.b16 %v459
  %v1616 = vunpack.c.l.b16 %v460
  %v1617 = vunpack.c.l.b16 %v461
  %v1618 = vunpack.c.l.b16 %v462
  %v1619 = vunpack.c.l.b16 %v463
  %v1620 = vunpack.c.l.b16 %v464
  %v1621 = vunpack.c.l.b16 %v465
  %v1622 = vunpack.c.l.b16 %v466
  %v1623 = vunpack.c.l.b16 %v467
  %v1624 = vunpack.c.l.b16 %v468
  %v1625 = vunpack.c.l.b16 %v469
  %v1626 = vunpack.c.l.b16 %v470
  %v1627 = vunpack.c.l.b16 %v471
  %v1628 = vunpack.c.l.b16 %v472
  %v1629 = vunpack.c.l.b16 %v473
  %v1630 = vunpack.c.l.b16 %v474
  %v1631 = vunpack.c.l.b16 %v475
  %v1632 = vunpack.c.l.b16 %v476
  %v1633 = vunpack.c.l.b16 %v477
  %v1634 = vunpack.c.l.b16 %v478
  %v1635 = vunpack.c.l.b16 %v479
  %v1636 = vunpack.c.l.b16 %v480
  %v1637 = vunpack.c.l.b16 %v481
  %v1638 = vunpack.c.l.b16 %v482
  %v1639 = vunpack.c.l.b16 %v483
  %v1640 = vunpack.c.l.b16 %v484
  %v1641 = vunpack.c.l.b16 %v485
  %v1642 = vunpack.c.l.b16 %v486
  %v1643 = vunpack.c.l.b16 %v487
  %v1644 = vunpack.c.l.b16 %v488
  %v1645 = vunpack.c.l.b16 %v489
  %v1646 = vunpack.c.l.b16 %v490
  %v1647 = vunpack.c.l.b16 %v491
  %v1648 = vunpack.c.l.b16 %v492
  %v1649 = vunpack.c.l.b16 %v493
  %v1650 = vunpack.c.l.b16 %v494
  %v1651 = vunpack.c.l.b16 %v495
  %v1652 = vunpack.c.l.b16 %v496
  %v1653 = vunpack.c.l.b16 %v497
  %v1654 = vunpack.c.l.b16 %v498
  %v1655 = vunpack.c.l.b16 %v499
  %v1656 = vunpack.c.l.b16 %v500
  %v1657 = vunpack.c.l.b16 %v501
  %v1658 = vunpack.c.l.b16 %v502
  %v1659 = vunpack.c.l.b16 %v503
  %v1660 = vunpack.c.l.b16 %v504
  %v1661 = vunpack.c.l.b16 %v505
  %v1662 = vunpack.c.l.b16 %v506
  %v1663 = vunpack.c.l.b16 %v507
  %v1664 = vunpack.c.l.b16 %v508
  %v1665 = vunpack.c.l.b16 %v509
  %v1666 = vunpack.c.l.b16 %v510
  %v1667 = vunpack.c.l.b16 %v511
  %v1668 = vunpack.c.l.b16 %v512
  %v1669 = vunpack.c.l.b16 %v513
  %v1670 = vunpack.c.l.b16 %v514
  %v1671 = vunpack.c.l.b16 %v515
  %v1672 = vunpack.c.l.b16 %v516
  %v1673 = vunpack.c.l.b16 %v517
  %v1674 = vunpack.c.l.b16 %v518
  %v1675 = vunpack.c.l.b16 %v519
  %v1676 = vunpack.c.l.b16 %v520
  %v1677 = vunpack.c.l.b16 %v521
  %v1678 = vunpack.c.l.b16 %v522
  %v1679 = vunpack.c.l.b16 %v523
  %v1680 = vunpack.c.l.b16 %v524
  %v1681 = vunpack.c.l.b16 %v525
  %v1682 = vunpack.c.l.b16 %v526
  %v1683 = vunpack.c.l.b16 %v527
  %v1684 = vunpack.c.l.b16 %v528
  %v1685 = vunpack.c.l.b16 %v529
  %v1686 = vunpack.c.l.b16 %v530
  %v1687 = vunpack.c.l.b16 %v531
  %v1688 = vunpack.c.l.b16 %v532
  %v1689 = vunpack.c.l.b16 %v533
  %v1690 = vunpack.c.l.b16 %v534
  %v1691 = vunpack.c.l.b16 %v535
  %v1692 = vunpack.c.l.b16 %v536
  %v1693 = vunpack.c.l.b16 %v537
  %v1694 = vunpack.c.l.b16 %v538
  %v1695 = vunpack.c.l.b16 %v539
  %v1696 = vunpack.c.l.b16 %v540
  %v1697 = vunpack.c.l.b16 %v541
  %v1698 = vunpack.c.l.b16 %v542
  %v1699 = vunpack.c.l.b16 %v543
  %v1700 = vunpack.c.l.b16 %v544
  %v1701 = vunpack.c.l.b16 %v545
  %v1702 = vunpack.c.l.b16 %v546
  %v1703 = vunpack.c.l.b16 %v547
  %v1704 = vunpack.c.l.b16 %v548
  %v1705 = vunpack.c.l.b16 %v549
  %v1706 = vunpack.c.l.b16 %v550
  %v1707 = vunpack.c.l.b16 %v551
  %v1708 = vunpack.c.l.b16 %v552
  %v1709 = vunpack.c.l.b16 %v553
  %v1710 = vunpack.c.l.b16 %v554
  %v1711 = vunpack.c.l.b16 %v555
  %v1712 = vunpack.c.l.b16 %v556
  %v1713 = vunpack.c.l.b16 %v557
  %v1714 = vunpack.c.l.b16 %v558
  %v1715 = vunpack.c.l.b16 %v559
  %v1716 = vunpack.c.l.b16 %v560
  %v1717 = vunpack.c.l.b16 %v561
  %v1718 = vunpack.c.l.b16 %v562
  %v1719 = vunpack.c.l.b16 %v563
  %v1720 = vunpack.c.l.b16 %v564
  %v1721 = vunpack.c.l.b16 %v565
  %v1722 = vunpack.c.l.b16 %v566
  %v1723 = vunpack.c.l.b16 %v567
  %v1724 = vunpack.c.l.b16 %v568
  %v1725 = vunpack.c.l.b16 %v569
  %v1726 = vunpack.c.l.b16 %v570
  %v1727 = vunpack.c.l.b16 %v571
  %v1728 = vunpack.c.l.b16 %v572
  %v1729 = vunpack.c.l.b16 %v573
  %v1730 = vunpack.c.l.b16 %v574
  %v1731 = vunpack.c.l.b16 %v575
  %v1732 = vunpack.c.l.b16 %v576
  %v1733 = vunpack.c.l.b16 %v577
  %v1734 = vunpack.c.l.b16 %v578
  %v1735 = vunpack.c.l.b16 %v579
  %v1736 = vunpack.c.l.b16 %v580
  %v1737 = vunpack.c.l.b16 %v581
  %v1738 = vunpack.c.l.b16 %v582
  %v1739 = vunpack.c.l.b16 %v583
  %v1740 = vunpack.c.l.b16 %v584
  %v1741 = vunpack.c.l.b16 %v585
  %v1742 = vunpack.c.l.b16 %v586
  %v1743 = vunpack.c.l.b16 %v587
  %v1744 = vunpack.c.l.b16 %v588
  %v1745 = vunpack.c.l.b16 %v589
  %v1746 = vunpack.c.l.b16 %v590
  %v1747 = vpack.c.b16 %v1172, %v1171
  %v1748 = vpack.c.b16 %v1174, %v1173
  %v1749 = vpack.c.b16 %v1176, %v1175
  %v1750 = vpack.c.b16 %v1178, %v1177
  %v1751 = vpack.c.b16 %v1180, %v1179
  %v1752 = vpack.c.b16 %v1182, %v1181
  %v1753 = vpack.c.b16 %v1184, %v1183
  %v1754 = vpack.c.b16 %v1186, %v1185
  %v1755 = vpack.c.b16 %v1188, %v1187
  %v1756 = vpack.c.b16 %v1190, %v1189
  %v1757 = vpack.c.b16 %v1192, %v1191
  %v1758 = vpack.c.b16 %v1194, %v1193
  %v1759 = vpack.c.b16 %v1196, %v1195
  %v1760 = vpack.c.b16 %v1198, %v1197
  %v1761 = vpack.c.b16 %v1200, %v1199
  %v1762 = vpack.c.b16 %v1202, %v1201
  %v1763 = vpack.c.b16 %v1204, %v1203
  %v1764 = vpack.c.b16 %v1206, %v1205
  %v1765 = vpack.c.b16 %v1208, %v1207
  %v1766 = vpack.c.b16 %v1210, %v1209
  %v1767 = vpack.c.b16 %v1212, %v1211
  %v1768 = vpack.c.b16 %v1214, %v1213
  %v1769 = vpack.c.b16 %v1216, %v1215
  %v1770 = vpack.c.b16 %v1218, %v1217
  %v1771 = vpack.c.b16 %v1220, %v1219
  %v1772 = vpack.c.b16 %v1222, %v1221
  %v1773 = vpack.c.b16 %v1224, %v1223
  %v1774 = vpack.c.b16 %v1226, %v1225
  %v1775 = vpack.c.b16 %v1228, %v1227
  %v1776 = vpack.c.b16 %v1230, %v1229
  %v1777 = vpack.c.b16 %v1232, %v1231
  %v1778 = vpack.c.b16 %v1234, %v1233
  %v1779 = vpack.c.b16 %v1236, %v1235
  %v1780 = vpack.c.b16 %v1238, %v1237
  %v1781 = vpack.c.b16 %v1240, %v1239
  %v1782 = vpack.c.b16 %v1242, %v1241
  %v1783 = vpack.c.b16 %v1244, %v1243
  %v1784 = vpack.c.b16 %v1246, %v1245
  %v1785 = vpack.c.b16 %v1248, %v1247
  %v1786 = vpack.c.b16 %v1250, %v1249
  %v1787 = vpack.c.b16 %v1252, %v1251
  %v1788 = vpack.c.b16 %v1254, %v1253
  %v1789 = vpack.c.b16 %v1256, %v1255
  %v1790 = vpack.c.b16 %v1258, %v1257
  %v1791 = vpack.c.b16 %v1260, %v1259
  %v1792 = vpack.c.b16 %v1262, %v1261
  %v1793 = vpack.c.b16 %v1264, %v1263
  %v1794 = vpack.c.b16 %v1266, %v1265
  %v1795 = vpack.c.b16 %v1268, %v1267
  %v1796 = vpack.c.b16 %v1270, %v1269
  %v1797 = vpack.c.b16 %v1272, %v1271
  %v1798 = vpack.c.b16 %v1274, %v1273
  %v1799 = vpack.c.b16 %v1276, %v1275
  %v1800 = vpack.c.b16 %v1278, %v1277
  %v1801 = vpack.c.b16 %v1280, %v1279
  %v1802 = vpack.c.b16 %v1282, %v1281
  %v1803 = vpack.c.b16 %v1284, %v1283
  %v1804 = vpack.c.b16 %v1286, %v1285
  %v1805 = vpack.c.b16 %v1288, %v1287
  %v1806 = vpack.c.b16 %v1290, %v1289
  %v1807 = vpack.c.b16 %v1292, %v1291
  %v1808 = vpack.c.b16 %v1294, %v1293
  %v1809 = vpack.c.b16 %v1296, %v1295
  %v1810 = vpack.c.b16 %v1298, %v1297
  %v1811 = vpack.c.b16 %v1300, %v1299
  %v1812 = vpack.c.b16 %v1302, %v1301
  %v1813 = vpack.c.b16 %v1304, %v1303
  %v1814 = vpack.c.b16 %v1306, %v1305
  %v1815 = vpack.c.b16 %v1308, %v1307
  %v1816 = vpack.c.b16 %v1310, %v1309
  %v1817 = vpack.c.b16 %v1312, %v1311
  %v1818 = vpack.c.b16 %v1314, %v1313
  %v1819 = vpack.c.b16 %v1316, %v1315
  %v1820 = vpack.c.b16 %v1318, %v1317
  %v1821 = vpack.c.b16 %v1320, %v1319
  %v1822 = vpack.c.b16 %v1322, %v1321
  %v1823 = vpack.c.b16 %v1324, %v1323
  %v1824 = vpack.c.b16 %v1326, %v1325
  %v1825 = vpack.c.b16 %v1328, %v1327
  %v1826 = vpack.c.b16 %v1330, %v1329
  %v1827 = vpack.c.b16 %v1332, %v1331
  %v1828 = vpack.c.b16 %v1334, %v1333
  %v1829 = vpack.c.b16 %v1336, %v1335
  %v1830 = vpack.c.b16 %v1338, %v1337
  %v1831 = vpack.c.b16 %v1340, %v1339
  %v1832 = vpack.c.b16 %v1342, %v1341
  %v1833 = vpack.c.b16 %v1344, %v1343
  %v1834 = vpack.c.b16 %v1346, %v1345
  %v1835 = vpack.c.b16 %v1348, %v1347
  %v1836 = vpack.c.b16 %v1350, %v1349
  %v1837 = vpack.c.b16 %v1352, %v1351
  %v1838 = vpack.c.b16 %v1354, %v1353
  %v1839 = vpack.c.b16 %v1356, %v1355
  %v1840 = vpack.c.b16 %v1358, %v1357
  %v1841 = vpack.c.b16 %v1360, %v1359
  %v1842 = vpack.c.b16 %v1362, %v1361
  %v1843 = vpack.c.b16 %v1364, %v1363
  %v1844 = vpack.c.b16 %v1366, %v1365
  %v1845 = vpack.c.b16 %v1368, %v1367
  %v1846 = vpack.c.b16 %v1370, %v1369
  %v1847 = vpack.c.b16 %v1372, %v1371
  %v1848 = vpack.c.b16 %v1374, %v1373
  %v1849 = vpack.c.b16 %v1376, %v1375
  %v1850 = vpack.c.b16 %v1378, %v1377
  %v1851 = vpack.c.b16 %v1380, %v1379
  %v1852 = vpack.c.b16 %v1382, %v1381
  %v1853 = vpack.c.b16 %v1384, %v1383
  %v1854 = vpack.c.b16 %v1386, %v1385
  %v1855 = vpack.c.b16 %v1388, %v1387
  %v1856 = vpack.c.b16 %v1390, %v1389
  %v1857 = vpack.c.b16 %v1392, %v1391
  %v1858 = vpack.c.b16 %v1394, %v1393
  %v1859 = vpack.c.b16 %v1396, %v1395
  %v1860 = vpack.c.b16 %v1398, %v1397
  %v1861 = vpack.c.b16 %v1400, %v1399
  %v1862 = vpack.c.b16 %v1402, %v1401
  %v1863 = vpack.c.b16 %v1404, %v1403
  %v1864 = vpack.c.b16 %v1406, %v1405
  %v1865 = vpack.c.b16 %v1408, %v1407
  %v1866 = vpack.c.b16 %v1410, %v1409
  %v1867 = vpack.c.b16 %v1412, %v1411
  %v1868 = vpack.c.b16 %v1414, %v1413
  %v1869 = vpack.c.b16 %v1416, %v1415
  %v1870 = vpack.c.b16 %v1418, %v1417
  %v1871 = vpack.c.b16 %v1420, %v1419
  %v1872 = vpack.c.b16 %v1422, %v1421
  %v1873 = vpack.c.b16 %v1424, %v1423
  %v1874 = vpack.c.b16 %v1426, %v1425
  %v1875 = vpack.c.b16 %v1428, %v1427
  %v1876 = vpack.c.b16 %v1430, %v1429
  %v1877 = vpack.c.b16 %v1432, %v1431
  %v1878 = vpack.c.b16 %v1434, %v1433
  %v1879 = vpack.c.b16 %v1436, %v1435
  %v1880 = vpack.c.b16 %v1438, %v1437
  %v1881 = vpack.c.b16 %v1440, %v1439
  %v1882 = vpack.c.b16 %v1442, %v1441
  %v1883 = vpack.c.b16 %v1444, %v1443
  %v1884 = vpack.c.b16 %v1446, %v1445
  %v1885 = vpack.c.b16 %v1448, %v1447
  %v1886 = vpack.c.b16 %v1450, %v1449
  %v1887 = vpack.c.b16 %v1452, %v1451
  %v1888 = vpack.c.b16 %v1454, %v1453
  %v1889 = vpack.c.b16 %v1456, %v1455
  %v1890 = vpack.c.b16 %v1458, %v1457
  %v1891 = vpack.c.b16 %v1460, %v1459
  %v1892 = vpack.c.b16 %v1462, %v1461
  %v1893 = vpack.c.b16 %v1464, %v1463
  %v1894 = vpack.c.b16 %v1466, %v1465
  %v1895 = vpack.c.b16 %v1468, %v1467
  %v1896 = vpack.c.b16 %v1470, %v1469
  %v1897 = vpack.c.b16 %v1472, %v1471
  %v1898 = vpack.c.b16 %v1474, %v1473
  %v1899 = vpack.c.b16 %v1476, %v1475
  %v1900 = vpack.c.b16 %v1478, %v1477
  %v1901 = vpack.c.b16 %v1480, %v1479
  %v1902 = vpack.c.b16 %v1482, %v1481
  %v1903 = vpack.c.b16 %v1484, %v1483
  %v1904 = vpack.c.b16 %v1486, %v1485
  %v1905 = vpack.c.b16 %v1488, %v1487
  %v1906 = vpack.c.b16 %v1490, %v1489
  %v1907 = vpack.c.b16 %v1492, %v1491
  %v1908 = vpack.c.b16 %v1494, %v1493
  %v1909 = vpack.c.b16 %v1496, %v1495
  %v1910 = vpack.c.b16 %v1498, %v1497
  %v1911 = vpack.c.b16 %v1500, %v1499
  %v1912 = vpack.c.b16 %v1502, %v1501
  %v1913 = vpack.c.b16 %v1504, %v1503
  %v1914 = vpack.c.b16 %v1506, %v1505
  %v1915 = vpack.c.b16 %v1508, %v1507
  %v1916 = vpack.c.b16 %v1510, %v1509
  %v1917 = vpack.c.b16 %v1512, %v1511
  %v1918 = vpack.c.b16 %v1514, %v1513
  %v1919 = vpack.c.b16 %v1516, %v1515
  %v1920 = vpack.c.b16 %v1518, %v1517
  %v1921 = vpack.c.b16 %v1520, %v1519
  %v1922 = vpack.c.b16 %v1522, %v1521
  %v1923 = vpack.c.b16 %v1524, %v1523
  %v1924 = vpack.c.b16 %v1526, %v1525
  %v1925 = vpack.c.b16 %v1528, %v1527
  %v1926 = vpack.c.b16 %v1530, %v1529
  %v1927 = vpack.c.b16 %v1532, %v1531
  %v1928 = vpack.c.b16 %v1534, %v1533
  %v1929 = vpack.c.b16 %v1536, %v1535
  %v1930 = vpack.c.b16 %v1538, %v1537
  %v1931 = vpack.c.b16 %v1540, %v1539
  %v1932 = vpack.c.b16 %v1542, %v1541
  %v1933 = vpack.c.b16 %v1544, %v1543
  %v1934 = vpack.c.b16 %v1546, %v1545
  %v1935 = vpack.c.b16 %v1548, %v1547
  %v1936 = vpack.c.b16 %v1550, %v1549
  %v1937 = vpack.c.b16 %v1552, %v1551
  %v1938 = vpack.c.b16 %v1554, %v1553
  %v1939 = vpack.c.b16 %v1556, %v1555
  %v1940 = vpack.c.b16 %v1558, %v1557
  %v1941 = vpack.c.b16 %v1560, %v1559
  %v1942 = vpack.c.b16 %v1562, %v1561
  %v1943 = vpack.c.b16 %v1564, %v1563
  %v1944 = vpack.c.b16 %v1566, %v1565
  %v1945 = vpack.c.b16 %v1568, %v1567
  %v1946 = vpack.c.b16 %v1570, %v1569
  %v1947 = vpack.c.b16 %v1572, %v1571
  %v1948 = vpack.c.b16 %v1574, %v1573
  %v1949 = vpack.c.b16 %v1576, %v1575
  %v1950 = vpack.c.b16 %v1578, %v1577
  %v1951 = vpack.c.b16 %v1580, %v1579
  %v1952 = vpack.c.b16 %v1582, %v1581
  %v1953 = vpack.c.b16 %v1584, %v1583
  %v1954 = vpack.c.b16 %v1586, %v1585
  %v1955 = vpack.c.b16 %v1588, %v1587
  %v1956 = vpack.c.b16 %v1590, %v1589
  %v1957 = vpack.c.b16 %v1592, %v1591
  %v1958 = vpack.c.b16 %v1594, %v1593
  %v1959 = vpack.c.b16 %v1596, %v1595
  %v1960 = vpack.c.b16 %v1598, %v1597
  %v1961 = vpack.c.b16 %v1600, %v1599
  %v1962 = vpack.c.b16 %v1602, %v1601
  %v1963 = vpack.c.b16 %v1604, %v1603
  %v1964 = vpack.c.b16 %v1606, %v1605
  %v1965 = vpack.c.b16 %v1608, %v1607
  %v1966 = vpack.c.b16 %v1610, %v1609
  %v1967 = vpack.c.b16 %v1612, %v1611
  %v1968 = vpack.c.b16 %v1614, %v1613
  %v1969 = vpack.c.b16 %v1616, %v1615
  %v1970 = vpack.c.b16 %v1618, %v1617
  %v1971 = vpack.c.b16 %v1620, %v1619
  %v1972 = vpack.c.b16 %v1622, %v1621
  %v1973 = vpack.c.b16 %v1624, %v1623
  %v1974 = vpack.c.b16 %v1626, %v1625
  %v1975 = vpack.c.b16 %v1628, %v1627
  %v1976 = vpack.c.b16 %v1630, %v1629
  %v1977 = vpack.c.b16 %v1632, %v1631
  %v1978 = vpack.c.b16 %v1634, %v1633
  %v1979 = vpack.c.b16 %v1636, %v1635
  %v1980 = vpack.c.b16 %v1638, %v1637
  %v1981 = vpack.c.b16 %v1640, %v1639
  %v1982 = vpack.c.b16 %v1642, %v1641
  %v1983 = vpack.c.b16 %v1644, %v1643
  %v1984 = vpack.c.b16 %v1646, %v1645
  %v1985 = vpack.c.b16 %v1648, %v1647
  %v1986 = vpack.c.b16 %v1650, %v1649
  %v1987 = vpack.c.b16 %v1652, %v1651
  %v1988 = vpack.c.b16 %v1654, %v1653
  %v1989 = vpack.c.b16 %v1656, %v1655
  %v1990 = vpack.c.b16 %v1658, %v1657
  %v1991 = vpack.c.b16 %v1660, %v1659
  %v1992 = vpack.c.b16 %v1662, %v1661
  %v1993 = vpack.c.b16 %v1664, %v1663
  %v1994 = vpack.c.b16 %v1666, %v1665
  %v1995 = vpack.c.b16 %v1668, %v1667
  %v1996 = vpack.c.b16 %v1670, %v1669
  %v1997 = vpack.c.b16 %v1672, %v1671
  %v1998 = vpack.c.b16 %v1674, %v1673
  %v1999 = vpack.c.b16 %v1676, %v1675
  %v2000 = vpack.c.b16 %v1678, %v1677
  %v2001 = vpack.c.b16 %v1680, %v1679
  %v2002 = vpack.c.b16 %v1682, %v1681
  %v2003 = vpack.c.b16 %v1684, %v1683
  %v2004 = vpack.c.b16 %v1686, %v1685
  %v2005 = vpack.c.b16 %v1688, %v1687
  %v2006 = vpack.c.b16 %v1690, %v1689
  %v2007 = vpack.c.b16 %v1692, %v1691
  %v2008 = vpack.c.b16 %v1694, %v1693
  %v2009 = vpack.c.b16 %v1696, %v1695
  %v2010 = vpack.c.b16 %v1698, %v1697
  %v2011 = vpack.c.b16 %v1700, %v1699
  %v2012 = vpack.c.b16 %v1702, %v1701
  %v2013 = vpack.c.b16 %v1704, %v1703
  %v2014 = vpack.c.b16 %v1706, %v1705
  %v2015 = vpack.c.b16 %v1708, %v1707
  %v2016 = vpack.c.b16 %v1710, %v1709
  %v2017 = vpack.c.b16 %v1712, %v1711
  %v2018 = vpack.c.b16 %v1714, %v1713
  %v2019 = vpack.c.b16 %v1716, %v1715
  %v2020 = vpack.c.b16 %v1718, %v1717
  %v2021 = vpack.c.b16 %v1720, %v1719
  %v2022 = vpack.c.b16 %v1722, %v1721
  %v2023 = vpack.c.b16 %v1724, %v1723
  %v2024 = vpack.c.b16 %v1726, %v1725
  %v2025 = vpack.c.b16 %v1728, %v1727
  %v2026 = vpack.c.b16 %v1730, %v1729
  %v2027 = vpack.c.b16 %v1732, %v1731
  %v2028 = vpack.c.b16 %v1734, %v1733
  %v2029 = vpack.c.b16 %v1736, %v1735
  %v2030 = vpack.c.b16 %v1738, %v1737
  %v2031 = vpack.c.b16 %v1740, %v1739
  %v2032 = vpack.c.b16 %v1742, %v1741
  %v2033 = vpack.c.b16 %v1744, %v1743
  %v2034 = vpack.c.b16 %v1746, %v1745
  %v2039 = vunpack.c.l.b16 %v591
  %v2040 = vunpack.c.l.b16 %v592
  %v2041 = vunpack.c.l.b16 %v593
  %v2042 = vunpack.c.l.b16 %v594
  %v2043 = vpack.c.b16 %v2040, %v2039
  %v2044 = vpack.c.b16 %v2042, %v2041
  %vm2046 = vcmask 203776
  %v2048 = vsel %vm2046, %v1747, 0
  %v2051 = vsel %vm2046, %v1748, 0
  %v2054 = vsel %vm2046, %v1749, 0
  %v2057 = vsel %vm2046, %v1750, 0
  %v2060 = vsel %vm2046, %v1751, 0
  %v2063 = vsel %vm2046, %v1752, 0
  %v2066 = vsel %vm2046, %v1753, 0
  %v2069 = vsel %vm2046, %v1754, 0
  %v2072 = vsel %vm2046, %v1755, 0
  %v2075 = vsel %vm2046, %v1756, 0
  %v2078 = vsel %vm2046, %v1757, 0
  %v2081 = vsel %vm2046, %v1758, 0
  %v2084 = vsel %vm2046, %v1759, 0
  %v2087 = vsel %vm2046, %v1760, 0
  %v2090 = vsel %vm2046, %v1761, 0
  %v2093 = vsel %vm2046, %v1762, 0
  %v2096 = vsel %vm2046, %v1763, 0
  %v2099 = vsel %vm2046, %v1764, 0
  %v2102 = vsel %vm2046, %v1765, 0
  %v2105 = vsel %vm2046, %v1766, 0
  %v2108 = vsel %vm2046, %v1767, 0
  %v2111 = vsel %vm2046, %v1768, 0
  %v2114 = vsel %vm2046, %v1769, 0
  %v2117 = vsel %vm2046, %v1770, 0
  %v2120 = vsel %vm2046, %v1771, 0
  %v2123 = vsel %vm2046, %v1772, 0
  %v2126 = vsel %vm2046, %v1773, 0
  %v2129 = vsel %vm2046, %v1774, 0
  %v2132 = vsel %vm2046, %v1775, 0
  %v2135 = vsel %vm2046, %v1776, 0
  %v2138 = vsel %vm2046, %v1777, 0
  %v2141 = vsel %vm2046, %v1778, 0
  %v2144 = vsel %vm2046, %v1779, 0
  %v2147 = vsel %vm2046, %v1780, 0
  %v2150 = vsel %vm2046, %v1781, 0
  %v2153 = vsel %vm2046, %v1782, 0
  %v2156 = vsel %vm2046, %v1783, 0
  %v2159 = vsel %vm2046, %v1784, 0
  %v2162 = vsel %vm2046, %v1785, 0
  %v2165 = vsel %vm2046, %v1786, 0
  %v2168 = vsel %vm2046, %v1787, 0
  %v2171 = vsel %vm2046, %v1788, 0
  %v2174 = vsel %vm2046, %v1789, 0
  %v2177 = vsel %vm2046, %v1790, 0
  %v2180 = vsel %vm2046, %v1791, 0
  %v2183 = vsel %vm2046, %v1792, 0
  %v2186 = vsel %vm2046, %v1793, 0
  %v2189 = vsel %vm2046, %v1794, 0
  %v2192 = vsel %vm2046, %v1795, 0
  %v2195 = vsel %vm2046, %v1796, 0
  %v2198 = vsel %vm2046, %v1797, 0
  %v2201 = vsel %vm2046, %v1798, 0
  %v2204 = vsel %vm2046, %v1799, 0
  %v2207 = vsel %vm2046, %v1800, 0
  %v2210 = vsel %vm2046, %v1801, 0
  %v2213 = vsel %vm2046, %v1802, 0
  %v2216 = vsel %vm2046, %v1803, 0
  %v2219 = vsel %vm2046, %v1804, 0
  %v2222 = vsel %vm2046, %v1805, 0
  %v2225 = vsel %vm2046, %v1806, 0
  %v2228 = vsel %vm2046, %v1807, 0
  %v2231 = vsel %vm2046, %v1808, 0
  %v2234 = vsel %vm2046, %v1809, 0
  %v2237 = vsel %vm2046, %v1810, 0
  %v2240 = vsel %vm2046, %v1811, 0
  %v2243 = vsel %vm2046, %v1812, 0
  %v2246 = vsel %vm2046, %v1813, 0
  %v2249 = vsel %vm2046, %v1814, 0
  %v2252 = vsel %vm2046, %v1815, 0
  %v2255 = vsel %vm2046, %v1816, 0
  %v2258 = vsel %vm2046, %v1817, 0
  %v2261 = vsel %vm2046, %v1818, 0
  %v2264 = vsel %vm2046, %v1819, 0
  %v2267 = vsel %vm2046, %v1820, 0
  %v2270 = vsel %vm2046, %v1821, 0
  %v2273 = vsel %vm2046, %v1822, 0
  %v2276 = vsel %vm2046, %v1823, 0
  %v2279 = vsel %vm2046, %v1824, 0
  %v2282 = vsel %vm2046, %v1825, 0
  %v2285 = vsel %vm2046, %v1826, 0
  %v2288 = vsel %vm2046, %v1827, 0
  %v2291 = vsel %vm2046, %v1828, 0
  %v2294 = vsel %vm2046, %v1829, 0
  %v2297 = vsel %vm2046, %v1830, 0
  %v2300 = vsel %vm2046, %v1831, 0
  %v2303 = vsel %vm2046, %v1832, 0
  %v2306 = vsel %vm2046, %v1833, 0
  %v2309 = vsel %vm2046, %v1834, 0
  %v2312 = vsel %vm2046, %v1835, 0
  %v2315 = vsel %vm2046, %v1836, 0
  %v2318 = vsel %vm2046, %v1837, 0
  %v2321 = vsel %vm2046, %v1838, 0
  %v2324 = vsel %vm2046, %v1839, 0
  %v2327 = vsel %vm2046, %v1840, 0
  %v2330 = vsel %vm2046, %v1841, 0
  %v2333 = vsel %vm2046, %v1842, 0
  %v2336 = vsel %vm2046, %v1843, 0
  %v2339 = vsel %vm2046, %v1844, 0
  %v2342 = vsel %vm2046, %v1845, 0
  %v2345 = vsel %vm2046, %v1846, 0
  %v2348 = vsel %vm2046, %v1847, 0
  %v2351 = vsel %vm2046, %v1848, 0
  %v2354 = vsel %vm2046, %v1849, 0
  %v2357 = vsel %vm2046, %v1850, 0
  %v2360 = vsel %vm2046, %v1851, 0
  %v2363 = vsel %vm2046, %v1852, 0
  %v2366 = vsel %vm2046, %v1853, 0
  %v2369 = vsel %vm2046, %v1854, 0
  %v2372 = vsel %vm2046, %v1855, 0
  %v2375 = vsel %vm2046, %v1856, 0
  %v2378 = vsel %vm2046, %v1857, 0
  %v2381 = vsel %vm2046, %v1858, 0
  %v2384 = vsel %vm2046, %v1859, 0
  %v2387 = vsel %vm2046, %v1860, 0
  %v2390 = vsel %vm2046, %v1861, 0
  %v2393 = vsel %vm2046, %v1862, 0
  %v2396 = vsel %vm2046, %v1863, 0
  %v2399 = vsel %vm2046, %v1864, 0
  %v2402 = vsel %vm2046, %v1865, 0
  %v2405 = vsel %vm2046, %v1866, 0
  %v2408 = vsel %vm2046, %v1867, 0
  %v2411 = vsel %vm2046, %v1868, 0
  %v2414 = vsel %vm2046, %v1869, 0
  %v2417 = vsel %vm2046, %v1870, 0
  %v2420 = vsel %vm2046, %v1871, 0
  %v2423 = vsel %vm2046, %v1872, 0
  %v2426 = vsel %vm2046, %v1873, 0
  %v2429 = vsel %vm2046, %v1874, 0
  %v2432 = vsel %vm2046, %v1875, 0
  %v2435 = vsel %vm2046, %v1876, 0
  %v2438 = vsel %vm2046, %v1877, 0
  %v2441 = vsel %vm2046, %v1878, 0
  %v2444 = vsel %vm2046, %v1879, 0
  %v2447 = vsel %vm2046, %v1880, 0
  %v2450 = vsel %vm2046, %v1881, 0
  %v2453 = vsel %vm2046, %v1882, 0
  %v2456 = vsel %vm2046, %v1883, 0
  %v2459 = vsel %vm2046, %v1884, 0
  %v2462 = vsel %vm2046, %v1885, 0
  %v2465 = vsel %vm2046, %v1886, 0
  %v2468 = vsel %vm2046, %v1887, 0
  %v2471 = vsel %vm2046, %v1888, 0
  %v2474 = vsel %vm2046, %v1889, 0
  %v2477 = vsel %vm2046, %v1890, 0
  %v2480 = vsel %vm2046, %v1891, 0
  %v2483 = vsel %vm2046, %v1892, 0
  %v2486 = vsel %vm2046, %v1893, 0
  %v2489 = vsel %vm2046, %v1894, 0
  %v2492 = vsel %vm2046, %v1895, 0
  %v2495 = vsel %vm2046, %v1896, 0
  %v2498 = vsel %vm2046, %v1897, 0
  %v2501 = vsel %vm2046, %v1898, 0
  %v2504 = vsel %vm2046, %v1899, 0
  %v2507 = vsel %vm2046, %v1900, 0
  %v2510 = vsel %vm2046, %v1901, 0
  %v2513 = vsel %vm2046, %v1902, 0
  %v2516 = vsel %vm2046, %v1903, 0
  %v2519 = vsel %vm2046, %v1904, 0
  %v2522 = vsel %vm2046, %v1905, 0
  %v2525 = vsel %vm2046, %v1906, 0
  %v2528 = vsel %vm2046, %v1907, 0
  %v2531 = vsel %vm2046, %v1908, 0
  %v2534 = vsel %vm2046, %v1909, 0
  %v2537 = vsel %vm2046, %v1910, 0
  %v2540 = vsel %vm2046, %v1911, 0
  %v2543 = vsel %vm2046, %v1912, 0
  %v2546 = vsel %vm2046, %v1913, 0
  %v2549 = vsel %vm2046, %v1914, 0
  %v2552 = vsel %vm2046, %v1915, 0
  %v2555 = vsel %vm2046, %v1916, 0
  %v2558 = vsel %vm2046, %v1917, 0
  %v2561 = vsel %vm2046, %v1918, 0
  %v2564 = vsel %vm2046, %v1919, 0
  %v2567 = vsel %vm2046, %v1920, 0
  %v2570 = vsel %vm2046, %v1921, 0
  %v2573 = vsel %vm2046, %v1922, 0
  %v2576 = vsel %vm2046, %v1923, 0
  %v2579 = vsel %vm2046, %v1924, 0
  %v2582 = vsel %vm2046, %v1925, 0
  %v2585 = vsel %vm2046, %v1926, 0
  %v2588 = vsel %vm2046, %v1927, 0
  %v2591 = vsel %vm2046, %v1928, 0
  %v2594 = vsel %vm2046, %v1929, 0
  %v2597 = vsel %vm2046, %v1930, 0
  %v2600 = vsel %vm2046, %v1931, 0
  %v2603 = vsel %vm2046, %v1932, 0
  %v2606 = vsel %vm2046, %v1933, 0
  %v2609 = vsel %vm2046, %v1934, 0
  %v2612 = vsel %vm2046, %v1935, 0
  %v2615 = vsel %vm2046, %v1936, 0
  %v2618 = vsel %vm2046, %v1937, 0
  %v2621 = vsel %vm2046, %v1938, 0
  %v2624 = vsel %vm2046, %v1939, 0
  %v2627 = vsel %vm2046, %v1940, 0
  %v2630 = vsel %vm2046, %v1941, 0
  %v2633 = vsel %vm2046, %v1942, 0
  %v2636 = vsel %vm2046, %v1943, 0
  %v2639 = vsel %vm2046, %v1944, 0
  %v2642 = vsel %vm2046, %v1945, 0
  %v2645 = vsel %vm2046, %v1946, 0
  %v2648 = vsel %vm2046, %v1947, 0
  %v2651 = vsel %vm2046, %v1948, 0
  %v2654 = vsel %vm2046, %v1949, 0
  %v2657 = vsel %vm2046, %v1950, 0
  %v2660 = vsel %vm2046, %v1951, 0
  %v2663 = vsel %vm2046, %v1952, 0
  %v2666 = vsel %vm2046, %v1953, 0
  %v2669 = vsel %vm2046, %v1954, 0
  %v2672 = vsel %vm2046, %v1955, 0
  %v2675 = vsel %vm2046, %v1956, 0
  %v2678 = vsel %vm2046, %v1957, 0
  %v2681 = vsel %vm2046, %v1958, 0
  %v2684 = vsel %vm2046, %v1959, 0
  %v2687 = vsel %vm2046, %v1960, 0
  %v2690 = vsel %vm2046, %v1961, 0
  %v2693 = vsel %vm2046, %v1962, 0
  %v2696 = vsel %vm2046, %v1963, 0
  %v2699 = vsel %vm2046, %v1964, 0
  %v2702 = vsel %vm2046, %v1965, 0
  %v2705 = vsel %vm2046, %v1966, 0
  %v2708 = vsel %vm2046, %v1967, 0
  %v2711 = vsel %vm2046, %v1968, 0
  %v2714 = vsel %vm2046, %v1969, 0
  %v2717 = vsel %vm2046, %v1970, 0
  %v2720 = vsel %vm2046, %v1971, 0
  %v2723 = vsel %vm2046, %v1972, 0
  %v2726 = vsel %vm2046, %v1973, 0
  %v2729 = vsel %vm2046, %v1974, 0
  %v2732 = vsel %vm2046, %v1975, 0
  %v2735 = vsel %vm2046, %v1976, 0
  %v2738 = vsel %vm2046, %v1977, 0
  %v2741 = vsel %vm2046, %v1978, 0
  %v2744 = vsel %vm2046, %v1979, 0
  %v2747 = vsel %vm2046, %v1980, 0
  %v2750 = vsel %vm2046, %v1981, 0
  %v2753 = vsel %vm2046, %v1982, 0
  %v2756 = vsel %vm2046, %v1983, 0
  %v2759 = vsel %vm2046, %v1984, 0
  %v2762 = vsel %vm2046, %v1985, 0
  %v2765 = vsel %vm2046, %v1986, 0
  %v2768 = vsel %vm2046, %v1987, 0
  %v2771 = vsel %vm2046, %v1988, 0
  %v2774 = vsel %vm2046, %v1989, 0
  %v2777 = vsel %vm2046, %v1990, 0
  %v2780 = vsel %vm2046, %v1991, 0
  %v2783 = vsel %vm2046, %v1992, 0
  %v2786 = vsel %vm2046, %v1993, 0
  %v2789 = vsel %vm2046, %v1994, 0
  %v2792 = vsel %vm2046, %v1995, 0
  %v2795 = vsel %vm2046, %v1996, 0
  %v2798 = vsel %vm2046, %v1997, 0
  %v2801 = vsel %vm2046, %v1998, 0
  %v2804 = vsel %vm2046, %v1999, 0
  %v2807 = vsel %vm2046, %v2000, 0
  %v2810 = vsel %vm2046, %v2001, 0
  %v2813 = vsel %vm2046, %v2002, 0
  %v2816 = vsel %vm2046, %v2003, 0
  %v2819 = vsel %vm2046, %v2004, 0
  %v2822 = vsel %vm2046, %v2005, 0
  %v2825 = vsel %vm2046, %v2006, 0
  %v2828 = vsel %vm2046, %v2007, 0
  %v2831 = vsel %vm2046, %v2008, 0
  %v2834 = vsel %vm2046, %v2009, 0
  %v2837 = vsel %vm2046, %v2010, 0
  %v2840 = vsel %vm2046, %v2011, 0
  %v2843 = vsel %vm2046, %v2012, 0
  %v2846 = vsel %vm2046, %v2013, 0
  %v2849 = vsel %vm2046, %v2014, 0
  %v2852 = vsel %vm2046, %v2015, 0
  %v2855 = vsel %vm2046, %v2016, 0
  %v2858 = vsel %vm2046, %v2017, 0
  %v2861 = vsel %vm2046, %v2018, 0
  %v2864 = vsel %vm2046, %v2019, 0
  %v2867 = vsel %vm2046, %v2020, 0
  %v2870 = vsel %vm2046, %v2021, 0
  %v2873 = vsel %vm2046, %v2022, 0
  %v2876 = vsel %vm2046, %v2023, 0
  %v2879 = vsel %vm2046, %v2024, 0
  %v2882 = vsel %vm2046, %v2025, 0
  %v2885 = vsel %vm2046, %v2026, 0
  %v2888 = vsel %vm2046, %v2027, 0
  %v2891 = vsel %vm2046, %v2028, 0
  %v2894 = vsel %vm2046, %v2029, 0
  %v2897 = vsel %vm2046, %v2030, 0
  %v2900 = vsel %vm2046, %v2031, 0
  %v2903 = vsel %vm2046, %v2032, 0
  %v2906 = vsel %vm2046, %v2033, 0
  %v2909 = vsel %vm2046, %v2034, 0
  %vm2911 = vcmask 1043456
  %vm2912 = vcmask 1044480
  %v2913 = vsel %vm2911, 4294967295, 65535
  %v2914 = vsel %vm2912, %v2913, 0
  %v2916 = vand.u32 %v2044, %v2914
  %2918 = vmatprep.subr.bf16.mxu0 0
  %2919 = vmatpush1.bf16.msra.mxu0 %v2043
  %2920 = vmatprep.subr.bf16.mxu0 0
  %2921 = vmatpush1.bf16.msra.mxu0 %v2916
  %2922 = vmatprep.subr.bf16.mxu0 0
  %2923 = vmatpush1.bf16.msra.mxu0 0
  %2924 = vmatprep.subr.bf16.mxu0 0
  %2925 = vmatpush1.bf16.msra.mxu0 0
  %2926 = vmatprep.subr.bf16.mxu0 0
  %2927 = vmatpush1.bf16.msra.mxu0 0
  %2928 = vmatprep.subr.bf16.mxu0 0
  %2929 = vmatpush1.bf16.msra.mxu0 0
  %2930 = vmatprep.subr.bf16.mxu0 0
  %2931 = vmatpush1.bf16.msra.mxu0 0
  %2932 = vmatprep.subr.bf16.mxu0 0
  %2933 = vmatpush1.bf16.msra.mxu0 0
  %2934 = vmatprep.subr.bf16.mxu0 0
  %2935 = vmatpush1.bf16.msra.mxu0 0
  %2936 = vmatprep.subr.bf16.mxu0 0
  %2937 = vmatpush1.bf16.msra.mxu0 0
  %2938 = vmatprep.subr.bf16.mxu0 0
  %2939 = vmatpush1.bf16.msra.mxu0 0
  %2940 = vmatprep.subr.bf16.mxu0 0
  %2941 = vmatpush1.bf16.msra.mxu0 0
  %2942 = vmatprep.subr.bf16.mxu0 0
  %2943 = vmatpush1.bf16.msra.mxu0 0
  %2944 = vmatprep.subr.bf16.mxu0 0
  %2945 = vmatpush1.bf16.msra.mxu0 0
  %2946 = vmatprep.subr.bf16.mxu0 0
  %2947 = vmatpush1.bf16.msra.mxu0 0
  %2948 = vmatprep.subr.bf16.mxu0 0
  %2949 = vmatpush1.bf16.msra.mxu0 0
  %2950 = vmatprep.mubr.bf16.mxu0 0
  %2951 = vmatmul.mubr.bf16.gmra.mrb[0].mxu0 %v2048
  %v2952 = vpop.f32.mrb[0].mxu0
  %v2953 = vadd.f32 0.0, %v2952
  %v2954 = vpop.f32.mrb[0].mxu0
  %v2955 = vpop.f32.mrb[0].mxu0
  %v2956 = vadd.f32 0.0, %v2955
  %v2957 = vpop.f32.mrb[0].mxu0
  %2958 = vmatprep.mubr.bf16.mxu0 0
  %2959 = vmatmul.mubr.bf16.gmra.mrb[0].mxu0 %v2051
  %v2960 = vpop.f32.mrb[0].mxu0
  %v2961 = vadd.f32 0.0, %v2960
  %v2962 = vpop.f32.mrb[0].mxu0
  %v2963 = vpop.f32.mrb[0].mxu0
  %v2964 = vadd.f32 0.0, %v2963
  %v2965 = vpop.f32.mrb[0].mxu0
  %2966 = vmatprep.mubr.bf16.mxu0 0
  %2967 = vmatmul.mubr.bf16.gmra.mrb[0].mxu0 %v2054
  %v2968 = vpop.f32.mrb[0].mxu0
  %v2969 = vadd.f32 0.0, %v2968
  %v2970 = vpop.f32.mrb[0].mxu0
  %v2971 = vpop.f32.mrb[0].mxu0
  %v2972 = vadd.f32 0.0, %v2971
  %v2973 = vpop.f32.mrb[0].mxu0
  %2974 = vmatprep.mubr.bf16.mxu0 0
  %2975 = vmatmul.mubr.bf16.gmra.mrb[0].mxu0 %v2057
  %v2976 = vpop.f32.mrb[0].mxu0
  %v2977 = vadd.f32 0.0, %v2976
  %v2978 = vpop.f32.mrb[0].mxu0
  %v2979 = vpop.f32.mrb[0].mxu0
  %v2980 = vadd.f32 0.0, %v2979
  %v2981 = vpop.f32.mrb[0].mxu0
  %2982 = vmatprep.mubr.bf16.mxu0 0
  %2983 = vmatmul.mubr.bf16.gmra.mrb[0].mxu0 %v2060
  %v2984 = vpop.f32.mrb[0].mxu0
  %v2985 = vadd.f32 0.0, %v2984
  %v2986 = vpop.f32.mrb[0].mxu0
  %v2987 = vpop.f32.mrb[0].mxu0
  %v2988 = vadd.f32 0.0, %v2987
  %v2989 = vpop.f32.mrb[0].mxu0
  %2990 = vmatprep.mubr.bf16.mxu0 0
  %2991 = vmatmul.mubr.bf16.gmra.mrb[0].mxu0 %v2063
  %v2992 = vpop.f32.mrb[0].mxu0
  %v2993 = vadd.f32 0.0, %v2992
  %v2994 = vpop.f32.mrb[0].mxu0
  %v2995 = vpop.f32.mrb[0].mxu0
  %v2996 = vadd.f32 0.0, %v2995
  %v2997 = vpop.f32.mrb[0].mxu0
  %2998 = vmatprep.mubr.bf16.mxu0 0
  %2999 = vmatmul.mubr.bf16.gmra.mrb[0].mxu0 %v2066
  %v3000 = vpop.f32.mrb[0].mxu0
  %v3001 = vadd.f32 0.0, %v3000
  %v3002 = vpop.f32.mrb[0].mxu0
  %v3003 = vpop.f32.mrb[0].mxu0
  %v3004 = vadd.f32 0.0, %v3003
  %v3005 = vpop.f32.mrb[0].mxu0
  %3006 = vmatprep.mubr.bf16.mxu0 0
  %3007 = vmatmul.mubr.bf16.gmra.mrb[0].mxu0 %v2069
  %v3008 = vpop.f32.mrb[0].mxu0
  %v3009 = vadd.f32 0.0, %v3008
  %v3010 = vpop.f32.mrb[0].mxu0
  %v3011 = vpop.f32.mrb[0].mxu0
  %v3012 = vadd.f32 0.0, %v3011
  %v3013 = vpop.f32.mrb[0].mxu0
  %3014 = vmatprep.mubr.bf16.mxu0 0
  %3015 = vmatmul.mubr.bf16.gmra.mrb[0].mxu0 %v2072
  %v3016 = vpop.f32.mrb[0].mxu0
  %v3017 = vadd.f32 0.0, %v3016
  %v3018 = vpop.f32.mrb[0].mxu0
  %v3019 = vpop.f32.mrb[0].mxu0
  %v3020 = vadd.f32 0.0, %v3019
  %v3021 = vpop.f32.mrb[0].mxu0
  %3022 = vmatprep.mubr.bf16.mxu0 0
  %3023 = vmatmul.mubr.bf16.gmra.mrb[0].mxu0 %v2075
  %v3024 = vpop.f32.mrb[0].mxu0
  %v3025 = vadd.f32 0.0, %v3024
  %v3026 = vpop.f32.mrb[0].mxu0
  %v3027 = vpop.f32.mrb[0].mxu0
  %v3028 = vadd.f32 0.0, %v3027
  %v3029 = vpop.f32.mrb[0].mxu0
  %3030 = vmatprep.mubr.bf16.mxu0 0
  %3031 = vmatmul.mubr.bf16.gmra.mrb[0].mxu0 %v2078
  %v3032 = vpop.f32.mrb[0].mxu0
  %v3033 = vadd.f32 0.0, %v3032
  %v3034 = vpop.f32.mrb[0].mxu0
  %v3035 = vpop.f32.mrb[0].mxu0
  %v3036 = vadd.f32 0.0, %v3035
  %v3037 = vpop.f32.mrb[0].mxu0
  %3038 = vmatprep.mubr.bf16.mxu0 0
  %3039 = vmatmul.mubr.bf16.gmra.mrb[0].mxu0 %v2081
  %v3040 = vpop.f32.mrb[0].mxu0
  %v3041 = vadd.f32 0.0, %v3040
  %v3042 = vpop.f32.mrb[0].mxu0
  %v3043 = vpop.f32.mrb[0].mxu0
  %v3044 = vadd.f32 0.0, %v3043
  %v3045 = vpop.f32.mrb[0].mxu0
  %3046 = vmatprep.mubr.bf16.mxu0 0
  %3047 = vmatmul.mubr.bf16.gmra.mrb[0].mxu0 %v2084
  %v3048 = vpop.f32.mrb[0].mxu0
  %v3049 = vadd.f32 0.0, %v3048
  %v3050 = vpop.f32.mrb[0].mxu0
  %v3051 = vpop.f32.mrb[0].mxu0
  %v3052 = vadd.f32 0.0, %v3051
  %v3053 = vpop.f32.mrb[0].mxu0
  %3054 = vmatprep.mubr.bf16.mxu0 0
  %3055 = vmatmul.mubr.bf16.gmra.mrb[0].mxu0 %v2087
  %v3056 = vpop.f32.mrb[0].mxu0
  %v3057 = vadd.f32 0.0, %v3056
  %v3058 = vpop.f32.mrb[0].mxu0
  %v3059 = vpop.f32.mrb[0].mxu0
  %v3060 = vadd.f32 0.0, %v3059
  %v3061 = vpop.f32.mrb[0].mxu0
  %3062 = vmatprep.mubr.bf16.mxu0 0
  %3063 = vmatmul.mubr.bf16.gmra.mrb[0].mxu0 %v2090
  %v3064 = vpop.f32.mrb[0].mxu0
  %v3065 = vadd.f32 0.0, %v3064
  %v3066 = vpop.f32.mrb[0].mxu0
  %v3067 = vpop.f32.mrb[0].mxu0
  %v3068 = vadd.f32 0.0, %v3067
  %v3069 = vpop.f32.mrb[0].mxu0
  %3070 = vmatprep.mubr.bf16.mxu0 0
  %3071 = vmatmul.mubr.bf16.gmra.mrb[0].mxu0 %v2093
  %v3072 = vpop.f32.mrb[0].mxu0
  %v3073 = vadd.f32 0.0, %v3072
  %v3074 = vpop.f32.mrb[0].mxu0
  %v3075 = vpop.f32.mrb[0].mxu0
  %v3076 = vadd.f32 0.0, %v3075
  %v3077 = vpop.f32.mrb[0].mxu0
  %3078 = vmatprep.mubr.bf16.mxu0 0
  %3079 = vmatmul.mubr.bf16.gmra.mrb[0].mxu0 %v2096
  %v3080 = vpop.f32.mrb[0].mxu0
  %v3081 = vadd.f32 0.0, %v3080
  %v3082 = vpop.f32.mrb[0].mxu0
  %v3083 = vpop.f32.mrb[0].mxu0
  %v3084 = vadd.f32 0.0, %v3083
  %v3085 = vpop.f32.mrb[0].mxu0
  %3086 = vmatprep.mubr.bf16.mxu0 0
  %3087 = vmatmul.mubr.bf16.gmra.mrb[0].mxu0 %v2099
  %v3088 = vpop.f32.mrb[0].mxu0
  %v3089 = vadd.f32 0.0, %v3088
  %v3090 = vpop.f32.mrb[0].mxu0
  %v3091 = vpop.f32.mrb[0].mxu0
  %v3092 = vadd.f32 0.0, %v3091
  %v3093 = vpop.f32.mrb[0].mxu0
  %3094 = vmatprep.mubr.bf16.mxu0 0
  %3095 = vmatmul.mubr.bf16.gmra.mrb[0].mxu0 %v2102
  %v3096 = vpop.f32.mrb[0].mxu0
  %v3097 = vadd.f32 0.0, %v3096
  %v3098 = vpop.f32.mrb[0].mxu0
  %v3099 = vpop.f32.mrb[0].mxu0
  %v3100 = vadd.f32 0.0, %v3099
  %v3101 = vpop.f32.mrb[0].mxu0
  %3102 = vmatprep.mubr.bf16.mxu0 0
  %3103 = vmatmul.mubr.bf16.gmra.mrb[0].mxu0 %v2105
  %v3104 = vpop.f32.mrb[0].mxu0
  %v3105 = vadd.f32 0.0, %v3104
  %v3106 = vpop.f32.mrb[0].mxu0
  %v3107 = vpop.f32.mrb[0].mxu0
  %v3108 = vadd.f32 0.0, %v3107
  %v3109 = vpop.f32.mrb[0].mxu0
  %3110 = vmatprep.mubr.bf16.mxu0 0
  %3111 = vmatmul.mubr.bf16.gmra.mrb[0].mxu0 %v2108
  %v3112 = vpop.f32.mrb[0].mxu0
  %v3113 = vadd.f32 0.0, %v3112
  %v3114 = vpop.f32.mrb[0].mxu0
  %v3115 = vpop.f32.mrb[0].mxu0
  %v3116 = vadd.f32 0.0, %v3115
  %v3117 = vpop.f32.mrb[0].mxu0
  %3118 = vmatprep.mubr.bf16.mxu0 0
  %3119 = vmatmul.mubr.bf16.gmra.mrb[0].mxu0 %v2111
  %v3120 = vpop.f32.mrb[0].mxu0
  %v3121 = vadd.f32 0.0, %v3120
  %v3122 = vpop.f32.mrb[0].mxu0
  %v3123 = vpop.f32.mrb[0].mxu0
  %v3124 = vadd.f32 0.0, %v3123
  %v3125 = vpop.f32.mrb[0].mxu0
  %3126 = vmatprep.mubr.bf16.mxu0 0
  %3127 = vmatmul.mubr.bf16.gmra.mrb[0].mxu0 %v2114
  %v3128 = vpop.f32.mrb[0].mxu0
  %v3129 = vadd.f32 0.0, %v3128
  %v3130 = vpop.f32.mrb[0].mxu0
  %v3131 = vpop.f32.mrb[0].mxu0
  %v3132 = vadd.f32 0.0, %v3131
  %v3133 = vpop.f32.mrb[0].mxu0
  %3134 = vmatprep.mubr.bf16.mxu0 0
  %3135 = vmatmul.mubr.bf16.gmra.mrb[0].mxu0 %v2117
  %v3136 = vpop.f32.mrb[0].mxu0
  %v3137 = vadd.f32 0.0, %v3136
  %v3138 = vpop.f32.mrb[0].mxu0
  %v3139 = vpop.f32.mrb[0].mxu0
  %v3140 = vadd.f32 0.0, %v3139
  %v3141 = vpop.f32.mrb[0].mxu0
  %3142 = vmatprep.mubr.bf16.mxu0 0
  %3143 = vmatmul.mubr.bf16.gmra.mrb[0].mxu0 %v2120
  %v3144 = vpop.f32.mrb[0].mxu0
  %v3145 = vadd.f32 0.0, %v3144
  %v3146 = vpop.f32.mrb[0].mxu0
  %v3147 = vpop.f32.mrb[0].mxu0
  %v3148 = vadd.f32 0.0, %v3147
  %v3149 = vpop.f32.mrb[0].mxu0
  %3150 = vmatprep.mubr.bf16.mxu0 0
  %3151 = vmatmul.mubr.bf16.gmra.mrb[0].mxu0 %v2123
  %v3152 = vpop.f32.mrb[0].mxu0
  %v3153 = vadd.f32 0.0, %v3152
  %v3154 = vpop.f32.mrb[0].mxu0
  %v3155 = vpop.f32.mrb[0].mxu0
  %v3156 = vadd.f32 0.0, %v3155
  %v3157 = vpop.f32.mrb[0].mxu0
  %3158 = vmatprep.mubr.bf16.mxu0 0
  %3159 = vmatmul.mubr.bf16.gmra.mrb[0].mxu0 %v2126
  %v3160 = vpop.f32.mrb[0].mxu0
  %v3161 = vadd.f32 0.0, %v3160
  %v3162 = vpop.f32.mrb[0].mxu0
  %v3163 = vpop.f32.mrb[0].mxu0
  %v3164 = vadd.f32 0.0, %v3163
  %v3165 = vpop.f32.mrb[0].mxu0
  %3166 = vmatprep.mubr.bf16.mxu0 0
  %3167 = vmatmul.mubr.bf16.gmra.mrb[0].mxu0 %v2129
  %v3168 = vpop.f32.mrb[0].mxu0
  %v3169 = vadd.f32 0.0, %v3168
  %v3170 = vpop.f32.mrb[0].mxu0
  %v3171 = vpop.f32.mrb[0].mxu0
  %v3172 = vadd.f32 0.0, %v3171
  %v3173 = vpop.f32.mrb[0].mxu0
  %3174 = vmatprep.mubr.bf16.mxu0 0
  %3175 = vmatmul.mubr.bf16.gmra.mrb[0].mxu0 %v2132
  %v3176 = vpop.f32.mrb[0].mxu0
  %v3177 = vadd.f32 0.0, %v3176
  %v3178 = vpop.f32.mrb[0].mxu0
  %v3179 = vpop.f32.mrb[0].mxu0
  %v3180 = vadd.f32 0.0, %v3179
  %v3181 = vpop.f32.mrb[0].mxu0
  %3182 = vmatprep.mubr.bf16.mxu0 0
  %3183 = vmatmul.mubr.bf16.gmra.mrb[0].mxu0 %v2135
  %v3184 = vpop.f32.mrb[0].mxu0
  %v3185 = vadd.f32 0.0, %v3184
  %v3186 = vpop.f32.mrb[0].mxu0
  %v3187 = vpop.f32.mrb[0].mxu0
  %v3188 = vadd.f32 0.0, %v3187
  %v3189 = vpop.f32.mrb[0].mxu0
  %3190 = vmatprep.mubr.bf16.mxu0 0
  %3191 = vmatmul.mubr.bf16.gmra.mrb[0].mxu0 %v2138
  %v3192 = vpop.f32.mrb[0].mxu0
  %v3193 = vadd.f32 0.0, %v3192
  %v3194 = vpop.f32.mrb[0].mxu0
  %v3195 = vpop.f32.mrb[0].mxu0
  %v3196 = vadd.f32 0.0, %v3195
  %v3197 = vpop.f32.mrb[0].mxu0
  %3198 = vmatprep.mubr.bf16.mxu0 0
  %3199 = vmatmul.mubr.bf16.gmra.mrb[0].mxu0 %v2141
  %v3200 = vpop.f32.mrb[0].mxu0
  %v3201 = vadd.f32 0.0, %v3200
  %v3202 = vpop.f32.mrb[0].mxu0
  %v3203 = vpop.f32.mrb[0].mxu0
  %v3204 = vadd.f32 0.0, %v3203
  %v3205 = vpop.f32.mrb[0].mxu0
  %3206 = vmatprep.mubr.bf16.mxu0 0
  %3207 = vmatmul.mubr.bf16.gmra.mrb[0].mxu0 %v2144
  %v3208 = vpop.f32.mrb[0].mxu0
  %v3209 = vadd.f32 0.0, %v3208
  %v3210 = vpop.f32.mrb[0].mxu0
  %v3211 = vpop.f32.mrb[0].mxu0
  %v3212 = vadd.f32 0.0, %v3211
  %v3213 = vpop.f32.mrb[0].mxu0
  %3214 = vmatprep.mubr.bf16.mxu0 0
  %3215 = vmatmul.mubr.bf16.gmra.mrb[0].mxu0 %v2147
  %v3216 = vpop.f32.mrb[0].mxu0
  %v3217 = vadd.f32 0.0, %v3216
  %v3218 = vpop.f32.mrb[0].mxu0
  %v3219 = vpop.f32.mrb[0].mxu0
  %v3220 = vadd.f32 0.0, %v3219
  %v3221 = vpop.f32.mrb[0].mxu0
  %3222 = vmatprep.mubr.bf16.mxu0 0
  %3223 = vmatmul.mubr.bf16.gmra.mrb[0].mxu0 %v2150
  %v3224 = vpop.f32.mrb[0].mxu0
  %v3225 = vadd.f32 0.0, %v3224
  %v3226 = vpop.f32.mrb[0].mxu0
  %v3227 = vpop.f32.mrb[0].mxu0
  %v3228 = vadd.f32 0.0, %v3227
  %v3229 = vpop.f32.mrb[0].mxu0
  %3230 = vmatprep.mubr.bf16.mxu0 0
  %3231 = vmatmul.mubr.bf16.gmra.mrb[0].mxu0 %v2153
  %v3232 = vpop.f32.mrb[0].mxu0
  %v3233 = vadd.f32 0.0, %v3232
  %v3234 = vpop.f32.mrb[0].mxu0
  %v3235 = vpop.f32.mrb[0].mxu0
  %v3236 = vadd.f32 0.0, %v3235
  %v3237 = vpop.f32.mrb[0].mxu0
  %3238 = vmatprep.mubr.bf16.mxu0 0
  %3239 = vmatmul.mubr.bf16.gmra.mrb[0].mxu0 %v2156
  %v3240 = vpop.f32.mrb[0].mxu0
  %v3241 = vadd.f32 0.0, %v3240
  %v3242 = vpop.f32.mrb[0].mxu0
  %v3243 = vpop.f32.mrb[0].mxu0
  %v3244 = vadd.f32 0.0, %v3243
  %v3245 = vpop.f32.mrb[0].mxu0
  %3246 = vmatprep.mubr.bf16.mxu0 0
  %3247 = vmatmul.mubr.bf16.gmra.mrb[0].mxu0 %v2159
  %v3248 = vpop.f32.mrb[0].mxu0
  %v3249 = vadd.f32 0.0, %v3248
  %v3250 = vpop.f32.mrb[0].mxu0
  %v3251 = vpop.f32.mrb[0].mxu0
  %v3252 = vadd.f32 0.0, %v3251
  %v3253 = vpop.f32.mrb[0].mxu0
  %3254 = vmatprep.mubr.bf16.mxu0 0
  %3255 = vmatmul.mubr.bf16.gmra.mrb[0].mxu0 %v2162
  %v3256 = vpop.f32.mrb[0].mxu0
  %v3257 = vadd.f32 0.0, %v3256
  %v3258 = vpop.f32.mrb[0].mxu0
  %v3259 = vpop.f32.mrb[0].mxu0
  %v3260 = vadd.f32 0.0, %v3259
  %v3261 = vpop.f32.mrb[0].mxu0
  %3262 = vmatprep.mubr.bf16.mxu0 0
  %3263 = vmatmul.mubr.bf16.gmra.mrb[0].mxu0 %v2165
  %v3264 = vpop.f32.mrb[0].mxu0
  %v3265 = vadd.f32 0.0, %v3264
  %v3266 = vpop.f32.mrb[0].mxu0
  %v3267 = vpop.f32.mrb[0].mxu0
  %v3268 = vadd.f32 0.0, %v3267
  %v3269 = vpop.f32.mrb[0].mxu0
  %3270 = vmatprep.mubr.bf16.mxu0 0
  %3271 = vmatmul.mubr.bf16.gmra.mrb[0].mxu0 %v2168
  %v3272 = vpop.f32.mrb[0].mxu0
  %v3273 = vadd.f32 0.0, %v3272
  %v3274 = vpop.f32.mrb[0].mxu0
  %v3275 = vpop.f32.mrb[0].mxu0
  %v3276 = vadd.f32 0.0, %v3275
  %v3277 = vpop.f32.mrb[0].mxu0
  %3278 = vmatprep.mubr.bf16.mxu0 0
  %3279 = vmatmul.mubr.bf16.gmra.mrb[0].mxu0 %v2171
  %v3280 = vpop.f32.mrb[0].mxu0
  %v3281 = vadd.f32 0.0, %v3280
  %v3282 = vpop.f32.mrb[0].mxu0
  %v3283 = vpop.f32.mrb[0].mxu0
  %v3284 = vadd.f32 0.0, %v3283
  %v3285 = vpop.f32.mrb[0].mxu0
  %3286 = vmatprep.mubr.bf16.mxu0 0
  %3287 = vmatmul.mubr.bf16.gmra.mrb[0].mxu0 %v2174
  %v3288 = vpop.f32.mrb[0].mxu0
  %v3289 = vadd.f32 0.0, %v3288
  %v3290 = vpop.f32.mrb[0].mxu0
  %v3291 = vpop.f32.mrb[0].mxu0
  %v3292 = vadd.f32 0.0, %v3291
  %v3293 = vpop.f32.mrb[0].mxu0
  %3294 = vmatprep.mubr.bf16.mxu0 0
  %3295 = vmatmul.mubr.bf16.gmra.mrb[0].mxu0 %v2177
  %v3296 = vpop.f32.mrb[0].mxu0
  %v3297 = vadd.f32 0.0, %v3296
  %v3298 = vpop.f32.mrb[0].mxu0
  %v3299 = vpop.f32.mrb[0].mxu0
  %v3300 = vadd.f32 0.0, %v3299
  %v3301 = vpop.f32.mrb[0].mxu0
  %3302 = vmatprep.mubr.bf16.mxu0 0
  %3303 = vmatmul.mubr.bf16.gmra.mrb[0].mxu0 %v2180
  %v3304 = vpop.f32.mrb[0].mxu0
  %v3305 = vadd.f32 0.0, %v3304
  %v3306 = vpop.f32.mrb[0].mxu0
  %v3307 = vpop.f32.mrb[0].mxu0
  %v3308 = vadd.f32 0.0, %v3307
  %v3309 = vpop.f32.mrb[0].mxu0
  %3310 = vmatprep.mubr.bf16.mxu0 0
  %3311 = vmatmul.mubr.bf16.gmra.mrb[0].mxu0 %v2183
  %v3312 = vpop.f32.mrb[0].mxu0
  %v3313 = vadd.f32 0.0, %v3312
  %v3314 = vpop.f32.mrb[0].mxu0
  %v3315 = vpop.f32.mrb[0].mxu0
  %v3316 = vadd.f32 0.0, %v3315
  %v3317 = vpop.f32.mrb[0].mxu0
  %3318 = vmatprep.mubr.bf16.mxu0 0
  %3319 = vmatmul.mubr.bf16.gmra.mrb[0].mxu0 %v2186
  %v3320 = vpop.f32.mrb[0].mxu0
  %v3321 = vadd.f32 0.0, %v3320
  %v3322 = vpop.f32.mrb[0].mxu0
  %v3323 = vpop.f32.mrb[0].mxu0
  %v3324 = vadd.f32 0.0, %v3323
  %v3325 = vpop.f32.mrb[0].mxu0
  %3326 = vmatprep.mubr.bf16.mxu0 0
  %3327 = vmatmul.mubr.bf16.gmra.mrb[0].mxu0 %v2189
  %v3328 = vpop.f32.mrb[0].mxu0
  %v3329 = vadd.f32 0.0, %v3328
  %v3330 = vpop.f32.mrb[0].mxu0
  %v3331 = vpop.f32.mrb[0].mxu0
  %v3332 = vadd.f32 0.0, %v3331
  %v3333 = vpop.f32.mrb[0].mxu0
  %3334 = vmatprep.mubr.bf16.mxu0 0
  %3335 = vmatmul.mubr.bf16.gmra.mrb[0].mxu0 %v2192
  %v3336 = vpop.f32.mrb[0].mxu0
  %v3337 = vadd.f32 0.0, %v3336
  %v3338 = vpop.f32.mrb[0].mxu0
  %v3339 = vpop.f32.mrb[0].mxu0
  %v3340 = vadd.f32 0.0, %v3339
  %v3341 = vpop.f32.mrb[0].mxu0
  %3342 = vmatprep.mubr.bf16.mxu0 0
  %3343 = vmatmul.mubr.bf16.gmra.mrb[0].mxu0 %v2195
  %v3344 = vpop.f32.mrb[0].mxu0
  %v3345 = vadd.f32 0.0, %v3344
  %v3346 = vpop.f32.mrb[0].mxu0
  %v3347 = vpop.f32.mrb[0].mxu0
  %v3348 = vadd.f32 0.0, %v3347
  %v3349 = vpop.f32.mrb[0].mxu0
  %3350 = vmatprep.mubr.bf16.mxu0 0
  %3351 = vmatmul.mubr.bf16.gmra.mrb[0].mxu0 %v2198
  %v3352 = vpop.f32.mrb[0].mxu0
  %v3353 = vadd.f32 0.0, %v3352
  %v3354 = vpop.f32.mrb[0].mxu0
  %v3355 = vpop.f32.mrb[0].mxu0
  %v3356 = vadd.f32 0.0, %v3355
  %v3357 = vpop.f32.mrb[0].mxu0
  %3358 = vmatprep.mubr.bf16.mxu0 0
  %3359 = vmatmul.mubr.bf16.gmra.mrb[0].mxu0 %v2201
  %v3360 = vpop.f32.mrb[0].mxu0
  %v3361 = vadd.f32 0.0, %v3360
  %v3362 = vpop.f32.mrb[0].mxu0
  %v3363 = vpop.f32.mrb[0].mxu0
  %v3364 = vadd.f32 0.0, %v3363
  %v3365 = vpop.f32.mrb[0].mxu0
  %3366 = vmatprep.mubr.bf16.mxu0 0
  %3367 = vmatmul.mubr.bf16.gmra.mrb[0].mxu0 %v2204
  %v3368 = vpop.f32.mrb[0].mxu0
  %v3369 = vadd.f32 0.0, %v3368
  %v3370 = vpop.f32.mrb[0].mxu0
  %v3371 = vpop.f32.mrb[0].mxu0
  %v3372 = vadd.f32 0.0, %v3371
  %v3373 = vpop.f32.mrb[0].mxu0
  %3374 = vmatprep.mubr.bf16.mxu0 0
  %3375 = vmatmul.mubr.bf16.gmra.mrb[0].mxu0 %v2207
  %v3376 = vpop.f32.mrb[0].mxu0
  %v3377 = vadd.f32 0.0, %v3376
  %v3378 = vpop.f32.mrb[0].mxu0
  %v3379 = vpop.f32.mrb[0].mxu0
  %v3380 = vadd.f32 0.0, %v3379
  %v3381 = vpop.f32.mrb[0].mxu0
  %3382 = vmatprep.mubr.bf16.mxu0 0
  %3383 = vmatmul.mubr.bf16.gmra.mrb[0].mxu0 %v2210
  %v3384 = vpop.f32.mrb[0].mxu0
  %v3385 = vadd.f32 0.0, %v3384
  %v3386 = vpop.f32.mrb[0].mxu0
  %v3387 = vpop.f32.mrb[0].mxu0
  %v3388 = vadd.f32 0.0, %v3387
  %v3389 = vpop.f32.mrb[0].mxu0
  %3390 = vmatprep.mubr.bf16.mxu0 0
  %3391 = vmatmul.mubr.bf16.gmra.mrb[0].mxu0 %v2213
  %v3392 = vpop.f32.mrb[0].mxu0
  %v3393 = vadd.f32 0.0, %v3392
  %v3394 = vpop.f32.mrb[0].mxu0
  %v3395 = vpop.f32.mrb[0].mxu0
  %v3396 = vadd.f32 0.0, %v3395
  %v3397 = vpop.f32.mrb[0].mxu0
  %3398 = vmatprep.mubr.bf16.mxu0 0
  %3399 = vmatmul.mubr.bf16.gmra.mrb[0].mxu0 %v2216
  %v3400 = vpop.f32.mrb[0].mxu0
  %v3401 = vadd.f32 0.0, %v3400
  %v3402 = vpop.f32.mrb[0].mxu0
  %v3403 = vpop.f32.mrb[0].mxu0
  %v3404 = vadd.f32 0.0, %v3403
  %v3405 = vpop.f32.mrb[0].mxu0
  %3406 = vmatprep.mubr.bf16.mxu0 0
  %3407 = vmatmul.mubr.bf16.gmra.mrb[0].mxu0 %v2219
  %v3408 = vpop.f32.mrb[0].mxu0
  %v3409 = vadd.f32 0.0, %v3408
  %v3410 = vpop.f32.mrb[0].mxu0
  %v3411 = vpop.f32.mrb[0].mxu0
  %v3412 = vadd.f32 0.0, %v3411
  %v3413 = vpop.f32.mrb[0].mxu0
  %3414 = vmatprep.mubr.bf16.mxu0 0
  %3415 = vmatmul.mubr.bf16.gmra.mrb[0].mxu0 %v2222
  %v3416 = vpop.f32.mrb[0].mxu0
  %v3417 = vadd.f32 0.0, %v3416
  %v3418 = vpop.f32.mrb[0].mxu0
  %v3419 = vpop.f32.mrb[0].mxu0
  %v3420 = vadd.f32 0.0, %v3419
  %v3421 = vpop.f32.mrb[0].mxu0
  %3422 = vmatprep.mubr.bf16.mxu0 0
  %3423 = vmatmul.mubr.bf16.gmra.mrb[0].mxu0 %v2225
  %v3424 = vpop.f32.mrb[0].mxu0
  %v3425 = vadd.f32 0.0, %v3424
  %v3426 = vpop.f32.mrb[0].mxu0
  %v3427 = vpop.f32.mrb[0].mxu0
  %v3428 = vadd.f32 0.0, %v3427
  %v3429 = vpop.f32.mrb[0].mxu0
  %3430 = vmatprep.mubr.bf16.mxu0 0
  %3431 = vmatmul.mubr.bf16.gmra.mrb[0].mxu0 %v2228
  %v3432 = vpop.f32.mrb[0].mxu0
  %v3433 = vadd.f32 0.0, %v3432
  %v3434 = vpop.f32.mrb[0].mxu0
  %v3435 = vpop.f32.mrb[0].mxu0
  %v3436 = vadd.f32 0.0, %v3435
  %v3437 = vpop.f32.mrb[0].mxu0
  %3438 = vmatprep.mubr.bf16.mxu0 0
  %3439 = vmatmul.mubr.bf16.gmra.mrb[0].mxu0 %v2231
  %v3440 = vpop.f32.mrb[0].mxu0
  %v3441 = vadd.f32 0.0, %v3440
  %v3442 = vpop.f32.mrb[0].mxu0
  %v3443 = vpop.f32.mrb[0].mxu0
  %v3444 = vadd.f32 0.0, %v3443
  %v3445 = vpop.f32.mrb[0].mxu0
  %3446 = vmatprep.mubr.bf16.mxu0 0
  %3447 = vmatmul.mubr.bf16.gmra.mrb[0].mxu0 %v2234
  %v3448 = vpop.f32.mrb[0].mxu0
  %v3449 = vadd.f32 0.0, %v3448
  %v3450 = vpop.f32.mrb[0].mxu0
  %v3451 = vpop.f32.mrb[0].mxu0
  %v3452 = vadd.f32 0.0, %v3451
  %v3453 = vpop.f32.mrb[0].mxu0
  %3454 = vmatprep.mubr.bf16.mxu0 0
  %3455 = vmatmul.mubr.bf16.gmra.mrb[0].mxu0 %v2237
  %v3456 = vpop.f32.mrb[0].mxu0
  %v3457 = vadd.f32 0.0, %v3456
  %v3458 = vpop.f32.mrb[0].mxu0
  %v3459 = vpop.f32.mrb[0].mxu0
  %v3460 = vadd.f32 0.0, %v3459
  %v3461 = vpop.f32.mrb[0].mxu0
  %3462 = vmatprep.mubr.bf16.mxu0 0
  %3463 = vmatmul.mubr.bf16.gmra.mrb[0].mxu0 %v2240
  %v3464 = vpop.f32.mrb[0].mxu0
  %v3465 = vadd.f32 0.0, %v3464
  %v3466 = vpop.f32.mrb[0].mxu0
  %v3467 = vpop.f32.mrb[0].mxu0
  %v3468 = vadd.f32 0.0, %v3467
  %v3469 = vpop.f32.mrb[0].mxu0
  %3470 = vmatprep.mubr.bf16.mxu0 0
  %3471 = vmatmul.mubr.bf16.gmra.mrb[0].mxu0 %v2243
  %v3472 = vpop.f32.mrb[0].mxu0
  %v3473 = vadd.f32 0.0, %v3472
  %v3474 = vpop.f32.mrb[0].mxu0
  %v3475 = vpop.f32.mrb[0].mxu0
  %v3476 = vadd.f32 0.0, %v3475
  %v3477 = vpop.f32.mrb[0].mxu0
  %3478 = vmatprep.mubr.bf16.mxu0 0
  %3479 = vmatmul.mubr.bf16.gmra.mrb[0].mxu0 %v2246
  %v3480 = vpop.f32.mrb[0].mxu0
  %v3481 = vadd.f32 0.0, %v3480
  %v3482 = vpop.f32.mrb[0].mxu0
  %v3483 = vpop.f32.mrb[0].mxu0
  %v3484 = vadd.f32 0.0, %v3483
  %v3485 = vpop.f32.mrb[0].mxu0
  %3486 = vmatprep.mubr.bf16.mxu0 0
  %3487 = vmatmul.mubr.bf16.gmra.mrb[0].mxu0 %v2249
  %v3488 = vpop.f32.mrb[0].mxu0
  %v3489 = vadd.f32 0.0, %v3488
  %v3490 = vpop.f32.mrb[0].mxu0
  %v3491 = vpop.f32.mrb[0].mxu0
  %v3492 = vadd.f32 0.0, %v3491
  %v3493 = vpop.f32.mrb[0].mxu0
  %3494 = vmatprep.mubr.bf16.mxu0 0
  %3495 = vmatmul.mubr.bf16.gmra.mrb[0].mxu0 %v2252
  %v3496 = vpop.f32.mrb[0].mxu0
  %v3497 = vadd.f32 0.0, %v3496
  %v3498 = vpop.f32.mrb[0].mxu0
  %v3499 = vpop.f32.mrb[0].mxu0
  %v3500 = vadd.f32 0.0, %v3499
  %v3501 = vpop.f32.mrb[0].mxu0
  %3502 = vmatprep.mubr.bf16.mxu0 0
  %3503 = vmatmul.mubr.bf16.gmra.mrb[0].mxu0 %v2255
  %v3504 = vpop.f32.mrb[0].mxu0
  %v3505 = vadd.f32 0.0, %v3504
  %v3506 = vpop.f32.mrb[0].mxu0
  %v3507 = vpop.f32.mrb[0].mxu0
  %v3508 = vadd.f32 0.0, %v3507
  %v3509 = vpop.f32.mrb[0].mxu0
  %3510 = vmatprep.mubr.bf16.mxu0 0
  %3511 = vmatmul.mubr.bf16.gmra.mrb[0].mxu0 %v2258
  %v3512 = vpop.f32.mrb[0].mxu0
  %v3513 = vadd.f32 0.0, %v3512
  %v3514 = vpop.f32.mrb[0].mxu0
  %v3515 = vpop.f32.mrb[0].mxu0
  %v3516 = vadd.f32 0.0, %v3515
  %v3517 = vpop.f32.mrb[0].mxu0
  %3518 = vmatprep.mubr.bf16.mxu0 0
  %3519 = vmatmul.mubr.bf16.gmra.mrb[0].mxu0 %v2261
  %v3520 = vpop.f32.mrb[0].mxu0
  %v3521 = vadd.f32 0.0, %v3520
  %v3522 = vpop.f32.mrb[0].mxu0
  %v3523 = vpop.f32.mrb[0].mxu0
  %v3524 = vadd.f32 0.0, %v3523
  %v3525 = vpop.f32.mrb[0].mxu0
  %3526 = vmatprep.mubr.bf16.mxu0 0
  %3527 = vmatmul.mubr.bf16.gmra.mrb[0].mxu0 %v2264
  %v3528 = vpop.f32.mrb[0].mxu0
  %v3529 = vadd.f32 0.0, %v3528
  %v3530 = vpop.f32.mrb[0].mxu0
  %v3531 = vpop.f32.mrb[0].mxu0
  %v3532 = vadd.f32 0.0, %v3531
  %v3533 = vpop.f32.mrb[0].mxu0
  %3534 = vmatprep.mubr.bf16.mxu0 0
  %3535 = vmatmul.mubr.bf16.gmra.mrb[0].mxu0 %v2267
  %v3536 = vpop.f32.mrb[0].mxu0
  %v3537 = vadd.f32 0.0, %v3536
  %v3538 = vpop.f32.mrb[0].mxu0
  %v3539 = vpop.f32.mrb[0].mxu0
  %v3540 = vadd.f32 0.0, %v3539
  %v3541 = vpop.f32.mrb[0].mxu0
  %3542 = vmatprep.mubr.bf16.mxu0 0
  %3543 = vmatmul.mubr.bf16.gmra.mrb[0].mxu0 %v2270
  %v3544 = vpop.f32.mrb[0].mxu0
  %v3545 = vadd.f32 0.0, %v3544
  %v3546 = vpop.f32.mrb[0].mxu0
  %v3547 = vpop.f32.mrb[0].mxu0
  %v3548 = vadd.f32 0.0, %v3547
  %v3549 = vpop.f32.mrb[0].mxu0
  %3550 = vmatprep.mubr.bf16.mxu0 0
  %3551 = vmatmul.mubr.bf16.gmra.mrb[0].mxu0 %v2273
  %v3552 = vpop.f32.mrb[0].mxu0
  %v3553 = vadd.f32 0.0, %v3552
  %v3554 = vpop.f32.mrb[0].mxu0
  %v3555 = vpop.f32.mrb[0].mxu0
  %v3556 = vadd.f32 0.0, %v3555
  %v3557 = vpop.f32.mrb[0].mxu0
  %3558 = vmatprep.mubr.bf16.mxu0 0
  %3559 = vmatmul.mubr.bf16.gmra.mrb[0].mxu0 %v2276
  %v3560 = vpop.f32.mrb[0].mxu0
  %v3561 = vadd.f32 0.0, %v3560
  %v3562 = vpop.f32.mrb[0].mxu0
  %v3563 = vpop.f32.mrb[0].mxu0
  %v3564 = vadd.f32 0.0, %v3563
  %v3565 = vpop.f32.mrb[0].mxu0
  %3566 = vmatprep.mubr.bf16.mxu0 0
  %3567 = vmatmul.mubr.bf16.gmra.mrb[0].mxu0 %v2279
  %v3568 = vpop.f32.mrb[0].mxu0
  %v3569 = vadd.f32 0.0, %v3568
  %v3570 = vpop.f32.mrb[0].mxu0
  %v3571 = vpop.f32.mrb[0].mxu0
  %v3572 = vadd.f32 0.0, %v3571
  %v3573 = vpop.f32.mrb[0].mxu0
  %3574 = vmatprep.mubr.bf16.mxu0 0
  %3575 = vmatmul.mubr.bf16.gmra.mrb[0].mxu0 %v2282
  %v3576 = vpop.f32.mrb[0].mxu0
  %v3577 = vadd.f32 0.0, %v3576
  %v3578 = vpop.f32.mrb[0].mxu0
  %v3579 = vpop.f32.mrb[0].mxu0
  %v3580 = vadd.f32 0.0, %v3579
  %v3581 = vpop.f32.mrb[0].mxu0
  %3582 = vmatprep.mubr.bf16.mxu0 0
  %3583 = vmatmul.mubr.bf16.gmra.mrb[0].mxu0 %v2285
  %v3584 = vpop.f32.mrb[0].mxu0
  %v3585 = vadd.f32 0.0, %v3584
  %v3586 = vpop.f32.mrb[0].mxu0
  %v3587 = vpop.f32.mrb[0].mxu0
  %v3588 = vadd.f32 0.0, %v3587
  %v3589 = vpop.f32.mrb[0].mxu0
  %3590 = vmatprep.mubr.bf16.mxu0 0
  %3591 = vmatmul.mubr.bf16.gmra.mrb[0].mxu0 %v2288
  %v3592 = vpop.f32.mrb[0].mxu0
  %v3593 = vadd.f32 0.0, %v3592
  %v3594 = vpop.f32.mrb[0].mxu0
  %v3595 = vpop.f32.mrb[0].mxu0
  %v3596 = vadd.f32 0.0, %v3595
  %v3597 = vpop.f32.mrb[0].mxu0
  %3598 = vmatprep.mubr.bf16.mxu0 0
  %3599 = vmatmul.mubr.bf16.gmra.mrb[0].mxu0 %v2291
  %v3600 = vpop.f32.mrb[0].mxu0
  %v3601 = vadd.f32 0.0, %v3600
  %v3602 = vpop.f32.mrb[0].mxu0
  %v3603 = vpop.f32.mrb[0].mxu0
  %v3604 = vadd.f32 0.0, %v3603
  %v3605 = vpop.f32.mrb[0].mxu0
  %3606 = vmatprep.mubr.bf16.mxu0 0
  %3607 = vmatmul.mubr.bf16.gmra.mrb[0].mxu0 %v2294
  %v3608 = vpop.f32.mrb[0].mxu0
  %v3609 = vadd.f32 0.0, %v3608
  %v3610 = vpop.f32.mrb[0].mxu0
  %v3611 = vpop.f32.mrb[0].mxu0
  %v3612 = vadd.f32 0.0, %v3611
  %v3613 = vpop.f32.mrb[0].mxu0
  %3614 = vmatprep.mubr.bf16.mxu0 0
  %3615 = vmatmul.mubr.bf16.gmra.mrb[0].mxu0 %v2297
  %v3616 = vpop.f32.mrb[0].mxu0
  %v3617 = vadd.f32 0.0, %v3616
  %v3618 = vpop.f32.mrb[0].mxu0
  %v3619 = vpop.f32.mrb[0].mxu0
  %v3620 = vadd.f32 0.0, %v3619
  %v3621 = vpop.f32.mrb[0].mxu0
  %3622 = vmatprep.mubr.bf16.mxu0 0
  %3623 = vmatmul.mubr.bf16.gmra.mrb[0].mxu0 %v2300
  %v3624 = vpop.f32.mrb[0].mxu0
  %v3625 = vadd.f32 0.0, %v3624
  %v3626 = vpop.f32.mrb[0].mxu0
  %v3627 = vpop.f32.mrb[0].mxu0
  %v3628 = vadd.f32 0.0, %v3627
  %v3629 = vpop.f32.mrb[0].mxu0
  %3630 = vmatprep.mubr.bf16.mxu0 0
  %3631 = vmatmul.mubr.bf16.gmra.mrb[0].mxu0 %v2303
  %v3632 = vpop.f32.mrb[0].mxu0
  %v3633 = vadd.f32 0.0, %v3632
  %v3634 = vpop.f32.mrb[0].mxu0
  %v3635 = vpop.f32.mrb[0].mxu0
  %v3636 = vadd.f32 0.0, %v3635
  %v3637 = vpop.f32.mrb[0].mxu0
  %3638 = vmatprep.mubr.bf16.mxu0 0
  %3639 = vmatmul.mubr.bf16.gmra.mrb[0].mxu0 %v2306
  %v3640 = vpop.f32.mrb[0].mxu0
  %v3641 = vadd.f32 0.0, %v3640
  %v3642 = vpop.f32.mrb[0].mxu0
  %v3643 = vpop.f32.mrb[0].mxu0
  %v3644 = vadd.f32 0.0, %v3643
  %v3645 = vpop.f32.mrb[0].mxu0
  %3646 = vmatprep.mubr.bf16.mxu0 0
  %3647 = vmatmul.mubr.bf16.gmra.mrb[0].mxu0 %v2309
  %v3648 = vpop.f32.mrb[0].mxu0
  %v3649 = vadd.f32 0.0, %v3648
  %v3650 = vpop.f32.mrb[0].mxu0
  %v3651 = vpop.f32.mrb[0].mxu0
  %v3652 = vadd.f32 0.0, %v3651
  %v3653 = vpop.f32.mrb[0].mxu0
  %3654 = vmatprep.mubr.bf16.mxu0 0
  %3655 = vmatmul.mubr.bf16.gmra.mrb[0].mxu0 %v2312
  %v3656 = vpop.f32.mrb[0].mxu0
  %v3657 = vadd.f32 0.0, %v3656
  %v3658 = vpop.f32.mrb[0].mxu0
  %v3659 = vpop.f32.mrb[0].mxu0
  %v3660 = vadd.f32 0.0, %v3659
  %v3661 = vpop.f32.mrb[0].mxu0
  %3662 = vmatprep.mubr.bf16.mxu0 0
  %3663 = vmatmul.mubr.bf16.gmra.mrb[0].mxu0 %v2315
  %v3664 = vpop.f32.mrb[0].mxu0
  %v3665 = vadd.f32 0.0, %v3664
  %v3666 = vpop.f32.mrb[0].mxu0
  %v3667 = vpop.f32.mrb[0].mxu0
  %v3668 = vadd.f32 0.0, %v3667
  %v3669 = vpop.f32.mrb[0].mxu0
  %3670 = vmatprep.mubr.bf16.mxu0 0
  %3671 = vmatmul.mubr.bf16.gmra.mrb[0].mxu0 %v2318
  %v3672 = vpop.f32.mrb[0].mxu0
  %v3673 = vadd.f32 0.0, %v3672
  %v3674 = vpop.f32.mrb[0].mxu0
  %v3675 = vpop.f32.mrb[0].mxu0
  %v3676 = vadd.f32 0.0, %v3675
  %v3677 = vpop.f32.mrb[0].mxu0
  %3678 = vmatprep.mubr.bf16.mxu0 0
  %3679 = vmatmul.mubr.bf16.gmra.mrb[0].mxu0 %v2321
  %v3680 = vpop.f32.mrb[0].mxu0
  %v3681 = vadd.f32 0.0, %v3680
  %v3682 = vpop.f32.mrb[0].mxu0
  %v3683 = vpop.f32.mrb[0].mxu0
  %v3684 = vadd.f32 0.0, %v3683
  %v3685 = vpop.f32.mrb[0].mxu0
  %3686 = vmatprep.mubr.bf16.mxu0 0
  %3687 = vmatmul.mubr.bf16.gmra.mrb[0].mxu0 %v2324
  %v3688 = vpop.f32.mrb[0].mxu0
  %v3689 = vadd.f32 0.0, %v3688
  %v3690 = vpop.f32.mrb[0].mxu0
  %v3691 = vpop.f32.mrb[0].mxu0
  %v3692 = vadd.f32 0.0, %v3691
  %v3693 = vpop.f32.mrb[0].mxu0
  %3694 = vmatprep.mubr.bf16.mxu0 0
  %3695 = vmatmul.mubr.bf16.gmra.mrb[0].mxu0 %v2327
  %v3696 = vpop.f32.mrb[0].mxu0
  %v3697 = vadd.f32 0.0, %v3696
  %v3698 = vpop.f32.mrb[0].mxu0
  %v3699 = vpop.f32.mrb[0].mxu0
  %v3700 = vadd.f32 0.0, %v3699
  %v3701 = vpop.f32.mrb[0].mxu0
  %3702 = vmatprep.mubr.bf16.mxu0 0
  %3703 = vmatmul.mubr.bf16.gmra.mrb[0].mxu0 %v2330
  %v3704 = vpop.f32.mrb[0].mxu0
  %v3705 = vadd.f32 0.0, %v3704
  %v3706 = vpop.f32.mrb[0].mxu0
  %v3707 = vpop.f32.mrb[0].mxu0
  %v3708 = vadd.f32 0.0, %v3707
  %v3709 = vpop.f32.mrb[0].mxu0
  %3710 = vmatprep.mubr.bf16.mxu0 0
  %3711 = vmatmul.mubr.bf16.gmra.mrb[0].mxu0 %v2333
  %v3712 = vpop.f32.mrb[0].mxu0
  %v3713 = vadd.f32 0.0, %v3712
  %v3714 = vpop.f32.mrb[0].mxu0
  %v3715 = vpop.f32.mrb[0].mxu0
  %v3716 = vadd.f32 0.0, %v3715
  %v3717 = vpop.f32.mrb[0].mxu0
  %3718 = vmatprep.mubr.bf16.mxu0 0
  %3719 = vmatmul.mubr.bf16.gmra.mrb[0].mxu0 %v2336
  %v3720 = vpop.f32.mrb[0].mxu0
  %v3721 = vadd.f32 0.0, %v3720
  %v3722 = vpop.f32.mrb[0].mxu0
  %v3723 = vpop.f32.mrb[0].mxu0
  %v3724 = vadd.f32 0.0, %v3723
  %v3725 = vpop.f32.mrb[0].mxu0
  %3726 = vmatprep.mubr.bf16.mxu0 0
  %3727 = vmatmul.mubr.bf16.gmra.mrb[0].mxu0 %v2339
  %v3728 = vpop.f32.mrb[0].mxu0
  %v3729 = vadd.f32 0.0, %v3728
  %v3730 = vpop.f32.mrb[0].mxu0
  %v3731 = vpop.f32.mrb[0].mxu0
  %v3732 = vadd.f32 0.0, %v3731
  %v3733 = vpop.f32.mrb[0].mxu0
  %3734 = vmatprep.mubr.bf16.mxu0 0
  %3735 = vmatmul.mubr.bf16.gmra.mrb[0].mxu0 %v2342
  %v3736 = vpop.f32.mrb[0].mxu0
  %v3737 = vadd.f32 0.0, %v3736
  %v3738 = vpop.f32.mrb[0].mxu0
  %v3739 = vpop.f32.mrb[0].mxu0
  %v3740 = vadd.f32 0.0, %v3739
  %v3741 = vpop.f32.mrb[0].mxu0
  %3742 = vmatprep.mubr.bf16.mxu0 0
  %3743 = vmatmul.mubr.bf16.gmra.mrb[0].mxu0 %v2345
  %v3744 = vpop.f32.mrb[0].mxu0
  %v3745 = vadd.f32 0.0, %v3744
  %v3746 = vpop.f32.mrb[0].mxu0
  %v3747 = vpop.f32.mrb[0].mxu0
  %v3748 = vadd.f32 0.0, %v3747
  %v3749 = vpop.f32.mrb[0].mxu0
  %3750 = vmatprep.mubr.bf16.mxu0 0
  %3751 = vmatmul.mubr.bf16.gmra.mrb[0].mxu0 %v2348
  %v3752 = vpop.f32.mrb[0].mxu0
  %v3753 = vadd.f32 0.0, %v3752
  %v3754 = vpop.f32.mrb[0].mxu0
  %v3755 = vpop.f32.mrb[0].mxu0
  %v3756 = vadd.f32 0.0, %v3755
  %v3757 = vpop.f32.mrb[0].mxu0
  %3758 = vmatprep.mubr.bf16.mxu0 0
  %3759 = vmatmul.mubr.bf16.gmra.mrb[0].mxu0 %v2351
  %v3760 = vpop.f32.mrb[0].mxu0
  %v3761 = vadd.f32 0.0, %v3760
  %v3762 = vpop.f32.mrb[0].mxu0
  %v3763 = vpop.f32.mrb[0].mxu0
  %v3764 = vadd.f32 0.0, %v3763
  %v3765 = vpop.f32.mrb[0].mxu0
  %3766 = vmatprep.mubr.bf16.mxu0 0
  %3767 = vmatmul.mubr.bf16.gmra.mrb[0].mxu0 %v2354
  %v3768 = vpop.f32.mrb[0].mxu0
  %v3769 = vadd.f32 0.0, %v3768
  %v3770 = vpop.f32.mrb[0].mxu0
  %v3771 = vpop.f32.mrb[0].mxu0
  %v3772 = vadd.f32 0.0, %v3771
  %v3773 = vpop.f32.mrb[0].mxu0
  %3774 = vmatprep.mubr.bf16.mxu0 0
  %3775 = vmatmul.mubr.bf16.gmra.mrb[0].mxu0 %v2357
  %v3776 = vpop.f32.mrb[0].mxu0
  %v3777 = vadd.f32 0.0, %v3776
  %v3778 = vpop.f32.mrb[0].mxu0
  %v3779 = vpop.f32.mrb[0].mxu0
  %v3780 = vadd.f32 0.0, %v3779
  %v3781 = vpop.f32.mrb[0].mxu0
  %3782 = vmatprep.mubr.bf16.mxu0 0
  %3783 = vmatmul.mubr.bf16.gmra.mrb[0].mxu0 %v2360
  %v3784 = vpop.f32.mrb[0].mxu0
  %v3785 = vadd.f32 0.0, %v3784
  %v3786 = vpop.f32.mrb[0].mxu0
  %v3787 = vpop.f32.mrb[0].mxu0
  %v3788 = vadd.f32 0.0, %v3787
  %v3789 = vpop.f32.mrb[0].mxu0
  %3790 = vmatprep.mubr.bf16.mxu0 0
  %3791 = vmatmul.mubr.bf16.gmra.mrb[0].mxu0 %v2363
  %v3792 = vpop.f32.mrb[0].mxu0
  %v3793 = vadd.f32 0.0, %v3792
  %v3794 = vpop.f32.mrb[0].mxu0
  %v3795 = vpop.f32.mrb[0].mxu0
  %v3796 = vadd.f32 0.0, %v3795
  %v3797 = vpop.f32.mrb[0].mxu0
  %3798 = vmatprep.mubr.bf16.mxu0 0
  %3799 = vmatmul.mubr.bf16.gmra.mrb[0].mxu0 %v2366
  %v3800 = vpop.f32.mrb[0].mxu0
  %v3801 = vadd.f32 0.0, %v3800
  %v3802 = vpop.f32.mrb[0].mxu0
  %v3803 = vpop.f32.mrb[0].mxu0
  %v3804 = vadd.f32 0.0, %v3803
  %v3805 = vpop.f32.mrb[0].mxu0
  %3806 = vmatprep.mubr.bf16.mxu0 0
  %3807 = vmatmul.mubr.bf16.gmra.mrb[0].mxu0 %v2369
  %v3808 = vpop.f32.mrb[0].mxu0
  %v3809 = vadd.f32 0.0, %v3808
  %v3810 = vpop.f32.mrb[0].mxu0
  %v3811 = vpop.f32.mrb[0].mxu0
  %v3812 = vadd.f32 0.0, %v3811
  %v3813 = vpop.f32.mrb[0].mxu0
  %3814 = vmatprep.mubr.bf16.mxu0 0
  %3815 = vmatmul.mubr.bf16.gmra.mrb[0].mxu0 %v2372
  %v3816 = vpop.f32.mrb[0].mxu0
  %v3817 = vadd.f32 0.0, %v3816
  %v3818 = vpop.f32.mrb[0].mxu0
  %v3819 = vpop.f32.mrb[0].mxu0
  %v3820 = vadd.f32 0.0, %v3819
  %v3821 = vpop.f32.mrb[0].mxu0
  %3822 = vmatprep.mubr.bf16.mxu0 0
  %3823 = vmatmul.mubr.bf16.gmra.mrb[0].mxu0 %v2375
  %v3824 = vpop.f32.mrb[0].mxu0
  %v3825 = vadd.f32 0.0, %v3824
  %v3826 = vpop.f32.mrb[0].mxu0
  %v3827 = vpop.f32.mrb[0].mxu0
  %v3828 = vadd.f32 0.0, %v3827
  %v3829 = vpop.f32.mrb[0].mxu0
  %3830 = vmatprep.mubr.bf16.mxu0 0
  %3831 = vmatmul.mubr.bf16.gmra.mrb[0].mxu0 %v2378
  %v3832 = vpop.f32.mrb[0].mxu0
  %v3833 = vadd.f32 0.0, %v3832
  %v3834 = vpop.f32.mrb[0].mxu0
  %v3835 = vpop.f32.mrb[0].mxu0
  %v3836 = vadd.f32 0.0, %v3835
  %v3837 = vpop.f32.mrb[0].mxu0
  %3838 = vmatprep.mubr.bf16.mxu0 0
  %3839 = vmatmul.mubr.bf16.gmra.mrb[0].mxu0 %v2381
  %v3840 = vpop.f32.mrb[0].mxu0
  %v3841 = vadd.f32 0.0, %v3840
  %v3842 = vpop.f32.mrb[0].mxu0
  %v3843 = vpop.f32.mrb[0].mxu0
  %v3844 = vadd.f32 0.0, %v3843
  %v3845 = vpop.f32.mrb[0].mxu0
  %3846 = vmatprep.mubr.bf16.mxu0 0
  %3847 = vmatmul.mubr.bf16.gmra.mrb[0].mxu0 %v2384
  %v3848 = vpop.f32.mrb[0].mxu0
  %v3849 = vadd.f32 0.0, %v3848
  %v3850 = vpop.f32.mrb[0].mxu0
  %v3851 = vpop.f32.mrb[0].mxu0
  %v3852 = vadd.f32 0.0, %v3851
  %v3853 = vpop.f32.mrb[0].mxu0
  %3854 = vmatprep.mubr.bf16.mxu0 0
  %3855 = vmatmul.mubr.bf16.gmra.mrb[0].mxu0 %v2387
  %v3856 = vpop.f32.mrb[0].mxu0
  %v3857 = vadd.f32 0.0, %v3856
  %v3858 = vpop.f32.mrb[0].mxu0
  %v3859 = vpop.f32.mrb[0].mxu0
  %v3860 = vadd.f32 0.0, %v3859
  %v3861 = vpop.f32.mrb[0].mxu0
  %3862 = vmatprep.mubr.bf16.mxu0 0
  %3863 = vmatmul.mubr.bf16.gmra.mrb[0].mxu0 %v2390
  %v3864 = vpop.f32.mrb[0].mxu0
  %v3865 = vadd.f32 0.0, %v3864
  %v3866 = vpop.f32.mrb[0].mxu0
  %v3867 = vpop.f32.mrb[0].mxu0
  %v3868 = vadd.f32 0.0, %v3867
  %v3869 = vpop.f32.mrb[0].mxu0
  %3870 = vmatprep.mubr.bf16.mxu0 0
  %3871 = vmatmul.mubr.bf16.gmra.mrb[0].mxu0 %v2393
  %v3872 = vpop.f32.mrb[0].mxu0
  %v3873 = vadd.f32 0.0, %v3872
  %v3874 = vpop.f32.mrb[0].mxu0
  %v3875 = vpop.f32.mrb[0].mxu0
  %v3876 = vadd.f32 0.0, %v3875
  %v3877 = vpop.f32.mrb[0].mxu0
  %3878 = vmatprep.mubr.bf16.mxu0 0
  %3879 = vmatmul.mubr.bf16.gmra.mrb[0].mxu0 %v2396
  %v3880 = vpop.f32.mrb[0].mxu0
  %v3881 = vadd.f32 0.0, %v3880
  %v3882 = vpop.f32.mrb[0].mxu0
  %v3883 = vpop.f32.mrb[0].mxu0
  %v3884 = vadd.f32 0.0, %v3883
  %v3885 = vpop.f32.mrb[0].mxu0
  %3886 = vmatprep.mubr.bf16.mxu0 0
  %3887 = vmatmul.mubr.bf16.gmra.mrb[0].mxu0 %v2399
  %v3888 = vpop.f32.mrb[0].mxu0
  %v3889 = vadd.f32 0.0, %v3888
  %v3890 = vpop.f32.mrb[0].mxu0
  %v3891 = vpop.f32.mrb[0].mxu0
  %v3892 = vadd.f32 0.0, %v3891
  %v3893 = vpop.f32.mrb[0].mxu0
  %3894 = vmatprep.mubr.bf16.mxu0 0
  %3895 = vmatmul.mubr.bf16.gmra.mrb[0].mxu0 %v2402
  %v3896 = vpop.f32.mrb[0].mxu0
  %v3897 = vadd.f32 0.0, %v3896
  %v3898 = vpop.f32.mrb[0].mxu0
  %v3899 = vpop.f32.mrb[0].mxu0
  %v3900 = vadd.f32 0.0, %v3899
  %v3901 = vpop.f32.mrb[0].mxu0
  %3902 = vmatprep.mubr.bf16.mxu0 0
  %3903 = vmatmul.mubr.bf16.gmra.mrb[0].mxu0 %v2405
  %v3904 = vpop.f32.mrb[0].mxu0
  %v3905 = vadd.f32 0.0, %v3904
  %v3906 = vpop.f32.mrb[0].mxu0
  %v3907 = vpop.f32.mrb[0].mxu0
  %v3908 = vadd.f32 0.0, %v3907
  %v3909 = vpop.f32.mrb[0].mxu0
  %3910 = vmatprep.mubr.bf16.mxu0 0
  %3911 = vmatmul.mubr.bf16.gmra.mrb[0].mxu0 %v2408
  %v3912 = vpop.f32.mrb[0].mxu0
  %v3913 = vadd.f32 0.0, %v3912
  %v3914 = vpop.f32.mrb[0].mxu0
  %v3915 = vpop.f32.mrb[0].mxu0
  %v3916 = vadd.f32 0.0, %v3915
  %v3917 = vpop.f32.mrb[0].mxu0
  %3918 = vmatprep.mubr.bf16.mxu0 0
  %3919 = vmatmul.mubr.bf16.gmra.mrb[0].mxu0 %v2411
  %v3920 = vpop.f32.mrb[0].mxu0
  %v3921 = vadd.f32 0.0, %v3920
  %v3922 = vpop.f32.mrb[0].mxu0
  %v3923 = vpop.f32.mrb[0].mxu0
  %v3924 = vadd.f32 0.0, %v3923
  %v3925 = vpop.f32.mrb[0].mxu0
  %3926 = vmatprep.mubr.bf16.mxu0 0
  %3927 = vmatmul.mubr.bf16.gmra.mrb[0].mxu0 %v2414
  %v3928 = vpop.f32.mrb[0].mxu0
  %v3929 = vadd.f32 0.0, %v3928
  %v3930 = vpop.f32.mrb[0].mxu0
  %v3931 = vpop.f32.mrb[0].mxu0
  %v3932 = vadd.f32 0.0, %v3931
  %v3933 = vpop.f32.mrb[0].mxu0
  %3934 = vmatprep.mubr.bf16.mxu0 0
  %3935 = vmatmul.mubr.bf16.gmra.mrb[0].mxu0 %v2417
  %v3936 = vpop.f32.mrb[0].mxu0
  %v3937 = vadd.f32 0.0, %v3936
  %v3938 = vpop.f32.mrb[0].mxu0
  %v3939 = vpop.f32.mrb[0].mxu0
  %v3940 = vadd.f32 0.0, %v3939
  %v3941 = vpop.f32.mrb[0].mxu0
  %3942 = vmatprep.mubr.bf16.mxu0 0
  %3943 = vmatmul.mubr.bf16.gmra.mrb[0].mxu0 %v2420
  %v3944 = vpop.f32.mrb[0].mxu0
  %v3945 = vadd.f32 0.0, %v3944
  %v3946 = vpop.f32.mrb[0].mxu0
  %v3947 = vpop.f32.mrb[0].mxu0
  %v3948 = vadd.f32 0.0, %v3947
  %v3949 = vpop.f32.mrb[0].mxu0
  %3950 = vmatprep.mubr.bf16.mxu0 0
  %3951 = vmatmul.mubr.bf16.gmra.mrb[0].mxu0 %v2423
  %v3952 = vpop.f32.mrb[0].mxu0
  %v3953 = vadd.f32 0.0, %v3952
  %v3954 = vpop.f32.mrb[0].mxu0
  %v3955 = vpop.f32.mrb[0].mxu0
  %v3956 = vadd.f32 0.0, %v3955
  %v3957 = vpop.f32.mrb[0].mxu0
  %3958 = vmatprep.mubr.bf16.mxu0 0
  %3959 = vmatmul.mubr.bf16.gmra.mrb[0].mxu0 %v2426
  %v3960 = vpop.f32.mrb[0].mxu0
  %v3961 = vadd.f32 0.0, %v3960
  %v3962 = vpop.f32.mrb[0].mxu0
  %v3963 = vpop.f32.mrb[0].mxu0
  %v3964 = vadd.f32 0.0, %v3963
  %v3965 = vpop.f32.mrb[0].mxu0
  %3966 = vmatprep.mubr.bf16.mxu0 0
  %3967 = vmatmul.mubr.bf16.gmra.mrb[0].mxu0 %v2429
  %v3968 = vpop.f32.mrb[0].mxu0
  %v3969 = vadd.f32 0.0, %v3968
  %v3970 = vpop.f32.mrb[0].mxu0
  %v3971 = vpop.f32.mrb[0].mxu0
  %v3972 = vadd.f32 0.0, %v3971
  %v3973 = vpop.f32.mrb[0].mxu0
  %3974 = vmatprep.mubr.bf16.mxu0 0
  %3975 = vmatmul.mubr.bf16.gmra.mrb[0].mxu0 %v2432
  %v3976 = vpop.f32.mrb[0].mxu0
  %v3977 = vadd.f32 0.0, %v3976
  %v3978 = vpop.f32.mrb[0].mxu0
  %v3979 = vpop.f32.mrb[0].mxu0
  %v3980 = vadd.f32 0.0, %v3979
  %v3981 = vpop.f32.mrb[0].mxu0
  %3982 = vmatprep.mubr.bf16.mxu0 0
  %3983 = vmatmul.mubr.bf16.gmra.mrb[0].mxu0 %v2435
  %v3984 = vpop.f32.mrb[0].mxu0
  %v3985 = vadd.f32 0.0, %v3984
  %v3986 = vpop.f32.mrb[0].mxu0
  %v3987 = vpop.f32.mrb[0].mxu0
  %v3988 = vadd.f32 0.0, %v3987
  %v3989 = vpop.f32.mrb[0].mxu0
  %3990 = vmatprep.mubr.bf16.mxu0 0
  %3991 = vmatmul.mubr.bf16.gmra.mrb[0].mxu0 %v2438
  %v3992 = vpop.f32.mrb[0].mxu0
  %v3993 = vadd.f32 0.0, %v3992
  %v3994 = vpop.f32.mrb[0].mxu0
  %v3995 = vpop.f32.mrb[0].mxu0
  %v3996 = vadd.f32 0.0, %v3995
  %v3997 = vpop.f32.mrb[0].mxu0
  %3998 = vmatprep.mubr.bf16.mxu0 0
  %3999 = vmatmul.mubr.bf16.gmra.mrb[0].mxu0 %v2441
  %v4000 = vpop.f32.mrb[0].mxu0
  %v4001 = vadd.f32 0.0, %v4000
  %v4002 = vpop.f32.mrb[0].mxu0
  %v4003 = vpop.f32.mrb[0].mxu0
  %v4004 = vadd.f32 0.0, %v4003
  %v4005 = vpop.f32.mrb[0].mxu0
  %4006 = vmatprep.mubr.bf16.mxu0 0
  %4007 = vmatmul.mubr.bf16.gmra.mrb[0].mxu0 %v2444
  %v4008 = vpop.f32.mrb[0].mxu0
  %v4009 = vadd.f32 0.0, %v4008
  %v4010 = vpop.f32.mrb[0].mxu0
  %v4011 = vpop.f32.mrb[0].mxu0
  %v4012 = vadd.f32 0.0, %v4011
  %v4013 = vpop.f32.mrb[0].mxu0
  %4014 = vmatprep.mubr.bf16.mxu0 0
  %4015 = vmatmul.mubr.bf16.gmra.mrb[0].mxu0 %v2447
  %v4016 = vpop.f32.mrb[0].mxu0
  %v4017 = vadd.f32 0.0, %v4016
  %v4018 = vpop.f32.mrb[0].mxu0
  %v4019 = vpop.f32.mrb[0].mxu0
  %v4020 = vadd.f32 0.0, %v4019
  %v4021 = vpop.f32.mrb[0].mxu0
  %4022 = vmatprep.mubr.bf16.mxu0 0
  %4023 = vmatmul.mubr.bf16.gmra.mrb[0].mxu0 %v2450
  %v4024 = vpop.f32.mrb[0].mxu0
  %v4025 = vadd.f32 0.0, %v4024
  %v4026 = vpop.f32.mrb[0].mxu0
  %v4027 = vpop.f32.mrb[0].mxu0
  %v4028 = vadd.f32 0.0, %v4027
  %v4029 = vpop.f32.mrb[0].mxu0
  %4030 = vmatprep.mubr.bf16.mxu0 0
  %4031 = vmatmul.mubr.bf16.gmra.mrb[0].mxu0 %v2453
  %v4032 = vpop.f32.mrb[0].mxu0
  %v4033 = vadd.f32 0.0, %v4032
  %v4034 = vpop.f32.mrb[0].mxu0
  %v4035 = vpop.f32.mrb[0].mxu0
  %v4036 = vadd.f32 0.0, %v4035
  %v4037 = vpop.f32.mrb[0].mxu0
  %4038 = vmatprep.mubr.bf16.mxu0 0
  %4039 = vmatmul.mubr.bf16.gmra.mrb[0].mxu0 %v2456
  %v4040 = vpop.f32.mrb[0].mxu0
  %v4041 = vadd.f32 0.0, %v4040
  %v4042 = vpop.f32.mrb[0].mxu0
  %v4043 = vpop.f32.mrb[0].mxu0
  %v4044 = vadd.f32 0.0, %v4043
  %v4045 = vpop.f32.mrb[0].mxu0
  %4046 = vmatprep.mubr.bf16.mxu0 0
  %4047 = vmatmul.mubr.bf16.gmra.mrb[0].mxu0 %v2459
  %v4048 = vpop.f32.mrb[0].mxu0
  %v4049 = vadd.f32 0.0, %v4048
  %v4050 = vpop.f32.mrb[0].mxu0
  %v4051 = vpop.f32.mrb[0].mxu0
  %v4052 = vadd.f32 0.0, %v4051
  %v4053 = vpop.f32.mrb[0].mxu0
  %4054 = vmatprep.mubr.bf16.mxu0 0
  %4055 = vmatmul.mubr.bf16.gmra.mrb[0].mxu0 %v2462
  %v4056 = vpop.f32.mrb[0].mxu0
  %v4057 = vadd.f32 0.0, %v4056
  %v4058 = vpop.f32.mrb[0].mxu0
  %v4059 = vpop.f32.mrb[0].mxu0
  %v4060 = vadd.f32 0.0, %v4059
  %v4061 = vpop.f32.mrb[0].mxu0
  %4062 = vmatprep.mubr.bf16.mxu0 0
  %4063 = vmatmul.mubr.bf16.gmra.mrb[0].mxu0 %v2465
  %v4064 = vpop.f32.mrb[0].mxu0
  %v4065 = vadd.f32 0.0, %v4064
  %v4066 = vpop.f32.mrb[0].mxu0
  %v4067 = vpop.f32.mrb[0].mxu0
  %v4068 = vadd.f32 0.0, %v4067
  %v4069 = vpop.f32.mrb[0].mxu0
  %4070 = vmatprep.mubr.bf16.mxu0 0
  %4071 = vmatmul.mubr.bf16.gmra.mrb[0].mxu0 %v2468
  %v4072 = vpop.f32.mrb[0].mxu0
  %v4073 = vadd.f32 0.0, %v4072
  %v4074 = vpop.f32.mrb[0].mxu0
  %v4075 = vpop.f32.mrb[0].mxu0
  %v4076 = vadd.f32 0.0, %v4075
  %v4077 = vpop.f32.mrb[0].mxu0
  %4078 = vmatprep.mubr.bf16.mxu0 0
  %4079 = vmatmul.mubr.bf16.gmra.mrb[0].mxu0 %v2471
  %v4080 = vpop.f32.mrb[0].mxu0
  %v4081 = vadd.f32 0.0, %v4080
  %v4082 = vpop.f32.mrb[0].mxu0
  %v4083 = vpop.f32.mrb[0].mxu0
  %v4084 = vadd.f32 0.0, %v4083
  %v4085 = vpop.f32.mrb[0].mxu0
  %4086 = vmatprep.mubr.bf16.mxu0 0
  %4087 = vmatmul.mubr.bf16.gmra.mrb[0].mxu0 %v2474
  %v4088 = vpop.f32.mrb[0].mxu0
  %v4089 = vadd.f32 0.0, %v4088
  %v4090 = vpop.f32.mrb[0].mxu0
  %v4091 = vpop.f32.mrb[0].mxu0
  %v4092 = vadd.f32 0.0, %v4091
  %v4093 = vpop.f32.mrb[0].mxu0
  %4094 = vmatprep.mubr.bf16.mxu0 0
  %4095 = vmatmul.mubr.bf16.gmra.mrb[0].mxu0 %v2477
  %v4096 = vpop.f32.mrb[0].mxu0
  %v4097 = vadd.f32 0.0, %v4096
  %v4098 = vpop.f32.mrb[0].mxu0
  %v4099 = vpop.f32.mrb[0].mxu0
  %v4100 = vadd.f32 0.0, %v4099
  %v4101 = vpop.f32.mrb[0].mxu0
  %4102 = vmatprep.mubr.bf16.mxu0 0
  %4103 = vmatmul.mubr.bf16.gmra.mrb[0].mxu0 %v2480
  %v4104 = vpop.f32.mrb[0].mxu0
  %v4105 = vadd.f32 0.0, %v4104
  %v4106 = vpop.f32.mrb[0].mxu0
  %v4107 = vpop.f32.mrb[0].mxu0
  %v4108 = vadd.f32 0.0, %v4107
  %v4109 = vpop.f32.mrb[0].mxu0
  %4110 = vmatprep.mubr.bf16.mxu0 0
  %4111 = vmatmul.mubr.bf16.gmra.mrb[0].mxu0 %v2483
  %v4112 = vpop.f32.mrb[0].mxu0
  %v4113 = vadd.f32 0.0, %v4112
  %v4114 = vpop.f32.mrb[0].mxu0
  %v4115 = vpop.f32.mrb[0].mxu0
  %v4116 = vadd.f32 0.0, %v4115
  %v4117 = vpop.f32.mrb[0].mxu0
  %4118 = vmatprep.mubr.bf16.mxu0 0
  %4119 = vmatmul.mubr.bf16.gmra.mrb[0].mxu0 %v2486
  %v4120 = vpop.f32.mrb[0].mxu0
  %v4121 = vadd.f32 0.0, %v4120
  %v4122 = vpop.f32.mrb[0].mxu0
  %v4123 = vpop.f32.mrb[0].mxu0
  %v4124 = vadd.f32 0.0, %v4123
  %v4125 = vpop.f32.mrb[0].mxu0
  %4126 = vmatprep.mubr.bf16.mxu0 0
  %4127 = vmatmul.mubr.bf16.gmra.mrb[0].mxu0 %v2489
  %v4128 = vpop.f32.mrb[0].mxu0
  %v4129 = vadd.f32 0.0, %v4128
  %v4130 = vpop.f32.mrb[0].mxu0
  %v4131 = vpop.f32.mrb[0].mxu0
  %v4132 = vadd.f32 0.0, %v4131
  %v4133 = vpop.f32.mrb[0].mxu0
  %4134 = vmatprep.mubr.bf16.mxu0 0
  %4135 = vmatmul.mubr.bf16.gmra.mrb[0].mxu0 %v2492
  %v4136 = vpop.f32.mrb[0].mxu0
  %v4137 = vadd.f32 0.0, %v4136
  %v4138 = vpop.f32.mrb[0].mxu0
  %v4139 = vpop.f32.mrb[0].mxu0
  %v4140 = vadd.f32 0.0, %v4139
  %v4141 = vpop.f32.mrb[0].mxu0
  %4142 = vmatprep.mubr.bf16.mxu0 0
  %4143 = vmatmul.mubr.bf16.gmra.mrb[0].mxu0 %v2495
  %v4144 = vpop.f32.mrb[0].mxu0
  %v4145 = vadd.f32 0.0, %v4144
  %v4146 = vpop.f32.mrb[0].mxu0
  %v4147 = vpop.f32.mrb[0].mxu0
  %v4148 = vadd.f32 0.0, %v4147
  %v4149 = vpop.f32.mrb[0].mxu0
  %4150 = vmatprep.mubr.bf16.mxu0 0
  %4151 = vmatmul.mubr.bf16.gmra.mrb[0].mxu0 %v2498
  %v4152 = vpop.f32.mrb[0].mxu0
  %v4153 = vadd.f32 0.0, %v4152
  %v4154 = vpop.f32.mrb[0].mxu0
  %v4155 = vpop.f32.mrb[0].mxu0
  %v4156 = vadd.f32 0.0, %v4155
  %v4157 = vpop.f32.mrb[0].mxu0
  %4158 = vmatprep.mubr.bf16.mxu0 0
  %4159 = vmatmul.mubr.bf16.gmra.mrb[0].mxu0 %v2501
  %v4160 = vpop.f32.mrb[0].mxu0
  %v4161 = vadd.f32 0.0, %v4160
  %v4162 = vpop.f32.mrb[0].mxu0
  %v4163 = vpop.f32.mrb[0].mxu0
  %v4164 = vadd.f32 0.0, %v4163
  %v4165 = vpop.f32.mrb[0].mxu0
  %4166 = vmatprep.mubr.bf16.mxu0 0
  %4167 = vmatmul.mubr.bf16.gmra.mrb[0].mxu0 %v2504
  %v4168 = vpop.f32.mrb[0].mxu0
  %v4169 = vadd.f32 0.0, %v4168
  %v4170 = vpop.f32.mrb[0].mxu0
  %v4171 = vpop.f32.mrb[0].mxu0
  %v4172 = vadd.f32 0.0, %v4171
  %v4173 = vpop.f32.mrb[0].mxu0
  %4174 = vmatprep.mubr.bf16.mxu0 0
  %4175 = vmatmul.mubr.bf16.gmra.mrb[0].mxu0 %v2507
  %v4176 = vpop.f32.mrb[0].mxu0
  %v4177 = vadd.f32 0.0, %v4176
  %v4178 = vpop.f32.mrb[0].mxu0
  %v4179 = vpop.f32.mrb[0].mxu0
  %v4180 = vadd.f32 0.0, %v4179
  %v4181 = vpop.f32.mrb[0].mxu0
  %4182 = vmatprep.mubr.bf16.mxu0 0
  %4183 = vmatmul.mubr.bf16.gmra.mrb[0].mxu0 %v2510
  %v4184 = vpop.f32.mrb[0].mxu0
  %v4185 = vadd.f32 0.0, %v4184
  %v4186 = vpop.f32.mrb[0].mxu0
  %v4187 = vpop.f32.mrb[0].mxu0
  %v4188 = vadd.f32 0.0, %v4187
  %v4189 = vpop.f32.mrb[0].mxu0
  %4190 = vmatprep.mubr.bf16.mxu0 0
  %4191 = vmatmul.mubr.bf16.gmra.mrb[0].mxu0 %v2513
  %v4192 = vpop.f32.mrb[0].mxu0
  %v4193 = vadd.f32 0.0, %v4192
  %v4194 = vpop.f32.mrb[0].mxu0
  %v4195 = vpop.f32.mrb[0].mxu0
  %v4196 = vadd.f32 0.0, %v4195
  %v4197 = vpop.f32.mrb[0].mxu0
  %4198 = vmatprep.mubr.bf16.mxu0 0
  %4199 = vmatmul.mubr.bf16.gmra.mrb[0].mxu0 %v2516
  %v4200 = vpop.f32.mrb[0].mxu0
  %v4201 = vadd.f32 0.0, %v4200
  %v4202 = vpop.f32.mrb[0].mxu0
  %v4203 = vpop.f32.mrb[0].mxu0
  %v4204 = vadd.f32 0.0, %v4203
  %v4205 = vpop.f32.mrb[0].mxu0
  %4206 = vmatprep.mubr.bf16.mxu0 0
  %4207 = vmatmul.mubr.bf16.gmra.mrb[0].mxu0 %v2519
  %v4208 = vpop.f32.mrb[0].mxu0
  %v4209 = vadd.f32 0.0, %v4208
  %v4210 = vpop.f32.mrb[0].mxu0
  %v4211 = vpop.f32.mrb[0].mxu0
  %v4212 = vadd.f32 0.0, %v4211
  %v4213 = vpop.f32.mrb[0].mxu0
  %4214 = vmatprep.mubr.bf16.mxu0 0
  %4215 = vmatmul.mubr.bf16.gmra.mrb[0].mxu0 %v2522
  %v4216 = vpop.f32.mrb[0].mxu0
  %v4217 = vadd.f32 0.0, %v4216
  %v4218 = vpop.f32.mrb[0].mxu0
  %v4219 = vpop.f32.mrb[0].mxu0
  %v4220 = vadd.f32 0.0, %v4219
  %v4221 = vpop.f32.mrb[0].mxu0
  %4222 = vmatprep.mubr.bf16.mxu0 0
  %4223 = vmatmul.mubr.bf16.gmra.mrb[0].mxu0 %v2525
  %v4224 = vpop.f32.mrb[0].mxu0
  %v4225 = vadd.f32 0.0, %v4224
  %v4226 = vpop.f32.mrb[0].mxu0
  %v4227 = vpop.f32.mrb[0].mxu0
  %v4228 = vadd.f32 0.0, %v4227
  %v4229 = vpop.f32.mrb[0].mxu0
  %4230 = vmatprep.mubr.bf16.mxu0 0
  %4231 = vmatmul.mubr.bf16.gmra.mrb[0].mxu0 %v2528
  %v4232 = vpop.f32.mrb[0].mxu0
  %v4233 = vadd.f32 0.0, %v4232
  %v4234 = vpop.f32.mrb[0].mxu0
  %v4235 = vpop.f32.mrb[0].mxu0
  %v4236 = vadd.f32 0.0, %v4235
  %v4237 = vpop.f32.mrb[0].mxu0
  %4238 = vmatprep.mubr.bf16.mxu0 0
  %4239 = vmatmul.mubr.bf16.gmra.mrb[0].mxu0 %v2531
  %v4240 = vpop.f32.mrb[0].mxu0
  %v4241 = vadd.f32 0.0, %v4240
  %v4242 = vpop.f32.mrb[0].mxu0
  %v4243 = vpop.f32.mrb[0].mxu0
  %v4244 = vadd.f32 0.0, %v4243
  %v4245 = vpop.f32.mrb[0].mxu0
  %4246 = vmatprep.mubr.bf16.mxu0 0
  %4247 = vmatmul.mubr.bf16.gmra.mrb[0].mxu0 %v2534
  %v4248 = vpop.f32.mrb[0].mxu0
  %v4249 = vadd.f32 0.0, %v4248
  %v4250 = vpop.f32.mrb[0].mxu0
  %v4251 = vpop.f32.mrb[0].mxu0
  %v4252 = vadd.f32 0.0, %v4251
  %v4253 = vpop.f32.mrb[0].mxu0
  %4254 = vmatprep.mubr.bf16.mxu0 0
  %4255 = vmatmul.mubr.bf16.gmra.mrb[0].mxu0 %v2537
  %v4256 = vpop.f32.mrb[0].mxu0
  %v4257 = vadd.f32 0.0, %v4256
  %v4258 = vpop.f32.mrb[0].mxu0
  %v4259 = vpop.f32.mrb[0].mxu0
  %v4260 = vadd.f32 0.0, %v4259
  %v4261 = vpop.f32.mrb[0].mxu0
  %4262 = vmatprep.mubr.bf16.mxu0 0
  %4263 = vmatmul.mubr.bf16.gmra.mrb[0].mxu0 %v2540
  %v4264 = vpop.f32.mrb[0].mxu0
  %v4265 = vadd.f32 0.0, %v4264
  %v4266 = vpop.f32.mrb[0].mxu0
  %v4267 = vpop.f32.mrb[0].mxu0
  %v4268 = vadd.f32 0.0, %v4267
  %v4269 = vpop.f32.mrb[0].mxu0
  %4270 = vmatprep.mubr.bf16.mxu0 0
  %4271 = vmatmul.mubr.bf16.gmra.mrb[0].mxu0 %v2543
  %v4272 = vpop.f32.mrb[0].mxu0
  %v4273 = vadd.f32 0.0, %v4272
  %v4274 = vpop.f32.mrb[0].mxu0
  %v4275 = vpop.f32.mrb[0].mxu0
  %v4276 = vadd.f32 0.0, %v4275
  %v4277 = vpop.f32.mrb[0].mxu0
  %4278 = vmatprep.mubr.bf16.mxu0 0
  %4279 = vmatmul.mubr.bf16.gmra.mrb[0].mxu0 %v2546
  %v4280 = vpop.f32.mrb[0].mxu0
  %v4281 = vadd.f32 0.0, %v4280
  %v4282 = vpop.f32.mrb[0].mxu0
  %v4283 = vpop.f32.mrb[0].mxu0
  %v4284 = vadd.f32 0.0, %v4283
  %v4285 = vpop.f32.mrb[0].mxu0
  %4286 = vmatprep.mubr.bf16.mxu0 0
  %4287 = vmatmul.mubr.bf16.gmra.mrb[0].mxu0 %v2549
  %v4288 = vpop.f32.mrb[0].mxu0
  %v4289 = vadd.f32 0.0, %v4288
  %v4290 = vpop.f32.mrb[0].mxu0
  %v4291 = vpop.f32.mrb[0].mxu0
  %v4292 = vadd.f32 0.0, %v4291
  %v4293 = vpop.f32.mrb[0].mxu0
  %4294 = vmatprep.mubr.bf16.mxu0 0
  %4295 = vmatmul.mubr.bf16.gmra.mrb[0].mxu0 %v2552
  %v4296 = vpop.f32.mrb[0].mxu0
  %v4297 = vadd.f32 0.0, %v4296
  %v4298 = vpop.f32.mrb[0].mxu0
  %v4299 = vpop.f32.mrb[0].mxu0
  %v4300 = vadd.f32 0.0, %v4299
  %v4301 = vpop.f32.mrb[0].mxu0
  %4302 = vmatprep.mubr.bf16.mxu0 0
  %4303 = vmatmul.mubr.bf16.gmra.mrb[0].mxu0 %v2555
  %v4304 = vpop.f32.mrb[0].mxu0
  %v4305 = vadd.f32 0.0, %v4304
  %v4306 = vpop.f32.mrb[0].mxu0
  %v4307 = vpop.f32.mrb[0].mxu0
  %v4308 = vadd.f32 0.0, %v4307
  %v4309 = vpop.f32.mrb[0].mxu0
  %4310 = vmatprep.mubr.bf16.mxu0 0
  %4311 = vmatmul.mubr.bf16.gmra.mrb[0].mxu0 %v2558
  %v4312 = vpop.f32.mrb[0].mxu0
  %v4313 = vadd.f32 0.0, %v4312
  %v4314 = vpop.f32.mrb[0].mxu0
  %v4315 = vpop.f32.mrb[0].mxu0
  %v4316 = vadd.f32 0.0, %v4315
  %v4317 = vpop.f32.mrb[0].mxu0
  %4318 = vmatprep.mubr.bf16.mxu0 0
  %4319 = vmatmul.mubr.bf16.gmra.mrb[0].mxu0 %v2561
  %v4320 = vpop.f32.mrb[0].mxu0
  %v4321 = vadd.f32 0.0, %v4320
  %v4322 = vpop.f32.mrb[0].mxu0
  %v4323 = vpop.f32.mrb[0].mxu0
  %v4324 = vadd.f32 0.0, %v4323
  %v4325 = vpop.f32.mrb[0].mxu0
  %4326 = vmatprep.mubr.bf16.mxu0 0
  %4327 = vmatmul.mubr.bf16.gmra.mrb[0].mxu0 %v2564
  %v4328 = vpop.f32.mrb[0].mxu0
  %v4329 = vadd.f32 0.0, %v4328
  %v4330 = vpop.f32.mrb[0].mxu0
  %v4331 = vpop.f32.mrb[0].mxu0
  %v4332 = vadd.f32 0.0, %v4331
  %v4333 = vpop.f32.mrb[0].mxu0
  %4334 = vmatprep.mubr.bf16.mxu0 0
  %4335 = vmatmul.mubr.bf16.gmra.mrb[0].mxu0 %v2567
  %v4336 = vpop.f32.mrb[0].mxu0
  %v4337 = vadd.f32 0.0, %v4336
  %v4338 = vpop.f32.mrb[0].mxu0
  %v4339 = vpop.f32.mrb[0].mxu0
  %v4340 = vadd.f32 0.0, %v4339
  %v4341 = vpop.f32.mrb[0].mxu0
  %4342 = vmatprep.mubr.bf16.mxu0 0
  %4343 = vmatmul.mubr.bf16.gmra.mrb[0].mxu0 %v2570
  %v4344 = vpop.f32.mrb[0].mxu0
  %v4345 = vadd.f32 0.0, %v4344
  %v4346 = vpop.f32.mrb[0].mxu0
  %v4347 = vpop.f32.mrb[0].mxu0
  %v4348 = vadd.f32 0.0, %v4347
  %v4349 = vpop.f32.mrb[0].mxu0
  %4350 = vmatprep.mubr.bf16.mxu0 0
  %4351 = vmatmul.mubr.bf16.gmra.mrb[0].mxu0 %v2573
  %v4352 = vpop.f32.mrb[0].mxu0
  %v4353 = vadd.f32 0.0, %v4352
  %v4354 = vpop.f32.mrb[0].mxu0
  %v4355 = vpop.f32.mrb[0].mxu0
  %v4356 = vadd.f32 0.0, %v4355
  %v4357 = vpop.f32.mrb[0].mxu0
  %4358 = vmatprep.mubr.bf16.mxu0 0
  %4359 = vmatmul.mubr.bf16.gmra.mrb[0].mxu0 %v2576
  %v4360 = vpop.f32.mrb[0].mxu0
  %v4361 = vadd.f32 0.0, %v4360
  %v4362 = vpop.f32.mrb[0].mxu0
  %v4363 = vpop.f32.mrb[0].mxu0
  %v4364 = vadd.f32 0.0, %v4363
  %v4365 = vpop.f32.mrb[0].mxu0
  %4366 = vmatprep.mubr.bf16.mxu0 0
  %4367 = vmatmul.mubr.bf16.gmra.mrb[0].mxu0 %v2579
  %v4368 = vpop.f32.mrb[0].mxu0
  %v4369 = vadd.f32 0.0, %v4368
  %v4370 = vpop.f32.mrb[0].mxu0
  %v4371 = vpop.f32.mrb[0].mxu0
  %v4372 = vadd.f32 0.0, %v4371
  %v4373 = vpop.f32.mrb[0].mxu0
  %4374 = vmatprep.mubr.bf16.mxu0 0
  %4375 = vmatmul.mubr.bf16.gmra.mrb[0].mxu0 %v2582
  %v4376 = vpop.f32.mrb[0].mxu0
  %v4377 = vadd.f32 0.0, %v4376
  %v4378 = vpop.f32.mrb[0].mxu0
  %v4379 = vpop.f32.mrb[0].mxu0
  %v4380 = vadd.f32 0.0, %v4379
  %v4381 = vpop.f32.mrb[0].mxu0
  %4382 = vmatprep.mubr.bf16.mxu0 0
  %4383 = vmatmul.mubr.bf16.gmra.mrb[0].mxu0 %v2585
  %v4384 = vpop.f32.mrb[0].mxu0
  %v4385 = vadd.f32 0.0, %v4384
  %v4386 = vpop.f32.mrb[0].mxu0
  %v4387 = vpop.f32.mrb[0].mxu0
  %v4388 = vadd.f32 0.0, %v4387
  %v4389 = vpop.f32.mrb[0].mxu0
  %4390 = vmatprep.mubr.bf16.mxu0 0
  %4391 = vmatmul.mubr.bf16.gmra.mrb[0].mxu0 %v2588
  %v4392 = vpop.f32.mrb[0].mxu0
  %v4393 = vadd.f32 0.0, %v4392
  %v4394 = vpop.f32.mrb[0].mxu0
  %v4395 = vpop.f32.mrb[0].mxu0
  %v4396 = vadd.f32 0.0, %v4395
  %v4397 = vpop.f32.mrb[0].mxu0
  %4398 = vmatprep.mubr.bf16.mxu0 0
  %4399 = vmatmul.mubr.bf16.gmra.mrb[0].mxu0 %v2591
  %v4400 = vpop.f32.mrb[0].mxu0
  %v4401 = vadd.f32 0.0, %v4400
  %v4402 = vpop.f32.mrb[0].mxu0
  %v4403 = vpop.f32.mrb[0].mxu0
  %v4404 = vadd.f32 0.0, %v4403
  %v4405 = vpop.f32.mrb[0].mxu0
  %4406 = vmatprep.mubr.bf16.mxu0 0
  %4407 = vmatmul.mubr.bf16.gmra.mrb[0].mxu0 %v2594
  %v4408 = vpop.f32.mrb[0].mxu0
  %v4409 = vadd.f32 0.0, %v4408
  %v4410 = vpop.f32.mrb[0].mxu0
  %v4411 = vpop.f32.mrb[0].mxu0
  %v4412 = vadd.f32 0.0, %v4411
  %v4413 = vpop.f32.mrb[0].mxu0
  %4414 = vmatprep.mubr.bf16.mxu0 0
  %4415 = vmatmul.mubr.bf16.gmra.mrb[0].mxu0 %v2597
  %v4416 = vpop.f32.mrb[0].mxu0
  %v4417 = vadd.f32 0.0, %v4416
  %v4418 = vpop.f32.mrb[0].mxu0
  %v4419 = vpop.f32.mrb[0].mxu0
  %v4420 = vadd.f32 0.0, %v4419
  %v4421 = vpop.f32.mrb[0].mxu0
  %4422 = vmatprep.mubr.bf16.mxu0 0
  %4423 = vmatmul.mubr.bf16.gmra.mrb[0].mxu0 %v2600
  %v4424 = vpop.f32.mrb[0].mxu0
  %v4425 = vadd.f32 0.0, %v4424
  %v4426 = vpop.f32.mrb[0].mxu0
  %v4427 = vpop.f32.mrb[0].mxu0
  %v4428 = vadd.f32 0.0, %v4427
  %v4429 = vpop.f32.mrb[0].mxu0
  %4430 = vmatprep.mubr.bf16.mxu0 0
  %4431 = vmatmul.mubr.bf16.gmra.mrb[0].mxu0 %v2603
  %v4432 = vpop.f32.mrb[0].mxu0
  %v4433 = vadd.f32 0.0, %v4432
  %v4434 = vpop.f32.mrb[0].mxu0
  %v4435 = vpop.f32.mrb[0].mxu0
  %v4436 = vadd.f32 0.0, %v4435
  %v4437 = vpop.f32.mrb[0].mxu0
  %4438 = vmatprep.mubr.bf16.mxu0 0
  %4439 = vmatmul.mubr.bf16.gmra.mrb[0].mxu0 %v2606
  %v4440 = vpop.f32.mrb[0].mxu0
  %v4441 = vadd.f32 0.0, %v4440
  %v4442 = vpop.f32.mrb[0].mxu0
  %v4443 = vpop.f32.mrb[0].mxu0
  %v4444 = vadd.f32 0.0, %v4443
  %v4445 = vpop.f32.mrb[0].mxu0
  %4446 = vmatprep.mubr.bf16.mxu0 0
  %4447 = vmatmul.mubr.bf16.gmra.mrb[0].mxu0 %v2609
  %v4448 = vpop.f32.mrb[0].mxu0
  %v4449 = vadd.f32 0.0, %v4448
  %v4450 = vpop.f32.mrb[0].mxu0
  %v4451 = vpop.f32.mrb[0].mxu0
  %v4452 = vadd.f32 0.0, %v4451
  %v4453 = vpop.f32.mrb[0].mxu0
  %4454 = vmatprep.mubr.bf16.mxu0 0
  %4455 = vmatmul.mubr.bf16.gmra.mrb[0].mxu0 %v2612
  %v4456 = vpop.f32.mrb[0].mxu0
  %v4457 = vadd.f32 0.0, %v4456
  %v4458 = vpop.f32.mrb[0].mxu0
  %v4459 = vpop.f32.mrb[0].mxu0
  %v4460 = vadd.f32 0.0, %v4459
  %v4461 = vpop.f32.mrb[0].mxu0
  %4462 = vmatprep.mubr.bf16.mxu0 0
  %4463 = vmatmul.mubr.bf16.gmra.mrb[0].mxu0 %v2615
  %v4464 = vpop.f32.mrb[0].mxu0
  %v4465 = vadd.f32 0.0, %v4464
  %v4466 = vpop.f32.mrb[0].mxu0
  %v4467 = vpop.f32.mrb[0].mxu0
  %v4468 = vadd.f32 0.0, %v4467
  %v4469 = vpop.f32.mrb[0].mxu0
  %4470 = vmatprep.mubr.bf16.mxu0 0
  %4471 = vmatmul.mubr.bf16.gmra.mrb[0].mxu0 %v2618
  %v4472 = vpop.f32.mrb[0].mxu0
  %v4473 = vadd.f32 0.0, %v4472
  %v4474 = vpop.f32.mrb[0].mxu0
  %v4475 = vpop.f32.mrb[0].mxu0
  %v4476 = vadd.f32 0.0, %v4475
  %v4477 = vpop.f32.mrb[0].mxu0
  %4478 = vmatprep.mubr.bf16.mxu0 0
  %4479 = vmatmul.mubr.bf16.gmra.mrb[0].mxu0 %v2621
  %v4480 = vpop.f32.mrb[0].mxu0
  %v4481 = vadd.f32 0.0, %v4480
  %v4482 = vpop.f32.mrb[0].mxu0
  %v4483 = vpop.f32.mrb[0].mxu0
  %v4484 = vadd.f32 0.0, %v4483
  %v4485 = vpop.f32.mrb[0].mxu0
  %4486 = vmatprep.mubr.bf16.mxu0 0
  %4487 = vmatmul.mubr.bf16.gmra.mrb[0].mxu0 %v2624
  %v4488 = vpop.f32.mrb[0].mxu0
  %v4489 = vadd.f32 0.0, %v4488
  %v4490 = vpop.f32.mrb[0].mxu0
  %v4491 = vpop.f32.mrb[0].mxu0
  %v4492 = vadd.f32 0.0, %v4491
  %v4493 = vpop.f32.mrb[0].mxu0
  %4494 = vmatprep.mubr.bf16.mxu0 0
  %4495 = vmatmul.mubr.bf16.gmra.mrb[0].mxu0 %v2627
  %v4496 = vpop.f32.mrb[0].mxu0
  %v4497 = vadd.f32 0.0, %v4496
  %v4498 = vpop.f32.mrb[0].mxu0
  %v4499 = vpop.f32.mrb[0].mxu0
  %v4500 = vadd.f32 0.0, %v4499
  %v4501 = vpop.f32.mrb[0].mxu0
  %4502 = vmatprep.mubr.bf16.mxu0 0
  %4503 = vmatmul.mubr.bf16.gmra.mrb[0].mxu0 %v2630
  %v4504 = vpop.f32.mrb[0].mxu0
  %v4505 = vadd.f32 0.0, %v4504
  %v4506 = vpop.f32.mrb[0].mxu0
  %v4507 = vpop.f32.mrb[0].mxu0
  %v4508 = vadd.f32 0.0, %v4507
  %v4509 = vpop.f32.mrb[0].mxu0
  %4510 = vmatprep.mubr.bf16.mxu0 0
  %4511 = vmatmul.mubr.bf16.gmra.mrb[0].mxu0 %v2633
  %v4512 = vpop.f32.mrb[0].mxu0
  %v4513 = vadd.f32 0.0, %v4512
  %v4514 = vpop.f32.mrb[0].mxu0
  %v4515 = vpop.f32.mrb[0].mxu0
  %v4516 = vadd.f32 0.0, %v4515
  %v4517 = vpop.f32.mrb[0].mxu0
  %4518 = vmatprep.mubr.bf16.mxu0 0
  %4519 = vmatmul.mubr.bf16.gmra.mrb[0].mxu0 %v2636
  %v4520 = vpop.f32.mrb[0].mxu0
  %v4521 = vadd.f32 0.0, %v4520
  %v4522 = vpop.f32.mrb[0].mxu0
  %v4523 = vpop.f32.mrb[0].mxu0
  %v4524 = vadd.f32 0.0, %v4523
  %v4525 = vpop.f32.mrb[0].mxu0
  %4526 = vmatprep.mubr.bf16.mxu0 0
  %4527 = vmatmul.mubr.bf16.gmra.mrb[0].mxu0 %v2639
  %v4528 = vpop.f32.mrb[0].mxu0
  %v4529 = vadd.f32 0.0, %v4528
  %v4530 = vpop.f32.mrb[0].mxu0
  %v4531 = vpop.f32.mrb[0].mxu0
  %v4532 = vadd.f32 0.0, %v4531
  %v4533 = vpop.f32.mrb[0].mxu0
  %4534 = vmatprep.mubr.bf16.mxu0 0
  %4535 = vmatmul.mubr.bf16.gmra.mrb[0].mxu0 %v2642
  %v4536 = vpop.f32.mrb[0].mxu0
  %v4537 = vadd.f32 0.0, %v4536
  %v4538 = vpop.f32.mrb[0].mxu0
  %v4539 = vpop.f32.mrb[0].mxu0
  %v4540 = vadd.f32 0.0, %v4539
  %v4541 = vpop.f32.mrb[0].mxu0
  %4542 = vmatprep.mubr.bf16.mxu0 0
  %4543 = vmatmul.mubr.bf16.gmra.mrb[0].mxu0 %v2645
  %v4544 = vpop.f32.mrb[0].mxu0
  %v4545 = vadd.f32 0.0, %v4544
  %v4546 = vpop.f32.mrb[0].mxu0
  %v4547 = vpop.f32.mrb[0].mxu0
  %v4548 = vadd.f32 0.0, %v4547
  %v4549 = vpop.f32.mrb[0].mxu0
  %4550 = vmatprep.mubr.bf16.mxu0 0
  %4551 = vmatmul.mubr.bf16.gmra.mrb[0].mxu0 %v2648
  %v4552 = vpop.f32.mrb[0].mxu0
  %v4553 = vadd.f32 0.0, %v4552
  %v4554 = vpop.f32.mrb[0].mxu0
  %v4555 = vpop.f32.mrb[0].mxu0
  %v4556 = vadd.f32 0.0, %v4555
  %v4557 = vpop.f32.mrb[0].mxu0
  %4558 = vmatprep.mubr.bf16.mxu0 0
  %4559 = vmatmul.mubr.bf16.gmra.mrb[0].mxu0 %v2651
  %v4560 = vpop.f32.mrb[0].mxu0
  %v4561 = vadd.f32 0.0, %v4560
  %v4562 = vpop.f32.mrb[0].mxu0
  %v4563 = vpop.f32.mrb[0].mxu0
  %v4564 = vadd.f32 0.0, %v4563
  %v4565 = vpop.f32.mrb[0].mxu0
  %4566 = vmatprep.mubr.bf16.mxu0 0
  %4567 = vmatmul.mubr.bf16.gmra.mrb[0].mxu0 %v2654
  %v4568 = vpop.f32.mrb[0].mxu0
  %v4569 = vadd.f32 0.0, %v4568
  %v4570 = vpop.f32.mrb[0].mxu0
  %v4571 = vpop.f32.mrb[0].mxu0
  %v4572 = vadd.f32 0.0, %v4571
  %v4573 = vpop.f32.mrb[0].mxu0
  %4574 = vmatprep.mubr.bf16.mxu0 0
  %4575 = vmatmul.mubr.bf16.gmra.mrb[0].mxu0 %v2657
  %v4576 = vpop.f32.mrb[0].mxu0
  %v4577 = vadd.f32 0.0, %v4576
  %v4578 = vpop.f32.mrb[0].mxu0
  %v4579 = vpop.f32.mrb[0].mxu0
  %v4580 = vadd.f32 0.0, %v4579
  %v4581 = vpop.f32.mrb[0].mxu0
  %4582 = vmatprep.mubr.bf16.mxu0 0
  %4583 = vmatmul.mubr.bf16.gmra.mrb[0].mxu0 %v2660
  %v4584 = vpop.f32.mrb[0].mxu0
  %v4585 = vadd.f32 0.0, %v4584
  %v4586 = vpop.f32.mrb[0].mxu0
  %v4587 = vpop.f32.mrb[0].mxu0
  %v4588 = vadd.f32 0.0, %v4587
  %v4589 = vpop.f32.mrb[0].mxu0
  %4590 = vmatprep.mubr.bf16.mxu0 0
  %4591 = vmatmul.mubr.bf16.gmra.mrb[0].mxu0 %v2663
  %v4592 = vpop.f32.mrb[0].mxu0
  %v4593 = vadd.f32 0.0, %v4592
  %v4594 = vpop.f32.mrb[0].mxu0
  %v4595 = vpop.f32.mrb[0].mxu0
  %v4596 = vadd.f32 0.0, %v4595
  %v4597 = vpop.f32.mrb[0].mxu0
  %4598 = vmatprep.mubr.bf16.mxu0 0
  %4599 = vmatmul.mubr.bf16.gmra.mrb[0].mxu0 %v2666
  %v4600 = vpop.f32.mrb[0].mxu0
  %v4601 = vadd.f32 0.0, %v4600
  %v4602 = vpop.f32.mrb[0].mxu0
  %v4603 = vpop.f32.mrb[0].mxu0
  %v4604 = vadd.f32 0.0, %v4603
  %v4605 = vpop.f32.mrb[0].mxu0
  %4606 = vmatprep.mubr.bf16.mxu0 0
  %4607 = vmatmul.mubr.bf16.gmra.mrb[0].mxu0 %v2669
  %v4608 = vpop.f32.mrb[0].mxu0
  %v4609 = vadd.f32 0.0, %v4608
  %v4610 = vpop.f32.mrb[0].mxu0
  %v4611 = vpop.f32.mrb[0].mxu0
  %v4612 = vadd.f32 0.0, %v4611
  %v4613 = vpop.f32.mrb[0].mxu0
  %4614 = vmatprep.mubr.bf16.mxu0 0
  %4615 = vmatmul.mubr.bf16.gmra.mrb[0].mxu0 %v2672
  %v4616 = vpop.f32.mrb[0].mxu0
  %v4617 = vadd.f32 0.0, %v4616
  %v4618 = vpop.f32.mrb[0].mxu0
  %v4619 = vpop.f32.mrb[0].mxu0
  %v4620 = vadd.f32 0.0, %v4619
  %v4621 = vpop.f32.mrb[0].mxu0
  %4622 = vmatprep.mubr.bf16.mxu0 0
  %4623 = vmatmul.mubr.bf16.gmra.mrb[0].mxu0 %v2675
  %v4624 = vpop.f32.mrb[0].mxu0
  %v4625 = vadd.f32 0.0, %v4624
  %v4626 = vpop.f32.mrb[0].mxu0
  %v4627 = vpop.f32.mrb[0].mxu0
  %v4628 = vadd.f32 0.0, %v4627
  %v4629 = vpop.f32.mrb[0].mxu0
  %4630 = vmatprep.mubr.bf16.mxu0 0
  %4631 = vmatmul.mubr.bf16.gmra.mrb[0].mxu0 %v2678
  %v4632 = vpop.f32.mrb[0].mxu0
  %v4633 = vadd.f32 0.0, %v4632
  %v4634 = vpop.f32.mrb[0].mxu0
  %v4635 = vpop.f32.mrb[0].mxu0
  %v4636 = vadd.f32 0.0, %v4635
  %v4637 = vpop.f32.mrb[0].mxu0
  %4638 = vmatprep.mubr.bf16.mxu0 0
  %4639 = vmatmul.mubr.bf16.gmra.mrb[0].mxu0 %v2681
  %v4640 = vpop.f32.mrb[0].mxu0
  %v4641 = vadd.f32 0.0, %v4640
  %v4642 = vpop.f32.mrb[0].mxu0
  %v4643 = vpop.f32.mrb[0].mxu0
  %v4644 = vadd.f32 0.0, %v4643
  %v4645 = vpop.f32.mrb[0].mxu0
  %4646 = vmatprep.mubr.bf16.mxu0 0
  %4647 = vmatmul.mubr.bf16.gmra.mrb[0].mxu0 %v2684
  %v4648 = vpop.f32.mrb[0].mxu0
  %v4649 = vadd.f32 0.0, %v4648
  %v4650 = vpop.f32.mrb[0].mxu0
  %v4651 = vpop.f32.mrb[0].mxu0
  %v4652 = vadd.f32 0.0, %v4651
  %v4653 = vpop.f32.mrb[0].mxu0
  %4654 = vmatprep.mubr.bf16.mxu0 0
  %4655 = vmatmul.mubr.bf16.gmra.mrb[0].mxu0 %v2687
  %v4656 = vpop.f32.mrb[0].mxu0
  %v4657 = vadd.f32 0.0, %v4656
  %v4658 = vpop.f32.mrb[0].mxu0
  %v4659 = vpop.f32.mrb[0].mxu0
  %v4660 = vadd.f32 0.0, %v4659
  %v4661 = vpop.f32.mrb[0].mxu0
  %4662 = vmatprep.mubr.bf16.mxu0 0
  %4663 = vmatmul.mubr.bf16.gmra.mrb[0].mxu0 %v2690
  %v4664 = vpop.f32.mrb[0].mxu0
  %v4665 = vadd.f32 0.0, %v4664
  %v4666 = vpop.f32.mrb[0].mxu0
  %v4667 = vpop.f32.mrb[0].mxu0
  %v4668 = vadd.f32 0.0, %v4667
  %v4669 = vpop.f32.mrb[0].mxu0
  %4670 = vmatprep.mubr.bf16.mxu0 0
  %4671 = vmatmul.mubr.bf16.gmra.mrb[0].mxu0 %v2693
  %v4672 = vpop.f32.mrb[0].mxu0
  %v4673 = vadd.f32 0.0, %v4672
  %v4674 = vpop.f32.mrb[0].mxu0
  %v4675 = vpop.f32.mrb[0].mxu0
  %v4676 = vadd.f32 0.0, %v4675
  %v4677 = vpop.f32.mrb[0].mxu0
  %4678 = vmatprep.mubr.bf16.mxu0 0
  %4679 = vmatmul.mubr.bf16.gmra.mrb[0].mxu0 %v2696
  %v4680 = vpop.f32.mrb[0].mxu0
  %v4681 = vadd.f32 0.0, %v4680
  %v4682 = vpop.f32.mrb[0].mxu0
  %v4683 = vpop.f32.mrb[0].mxu0
  %v4684 = vadd.f32 0.0, %v4683
  %v4685 = vpop.f32.mrb[0].mxu0
  %4686 = vmatprep.mubr.bf16.mxu0 0
  %4687 = vmatmul.mubr.bf16.gmra.mrb[0].mxu0 %v2699
  %v4688 = vpop.f32.mrb[0].mxu0
  %v4689 = vadd.f32 0.0, %v4688
  %v4690 = vpop.f32.mrb[0].mxu0
  %v4691 = vpop.f32.mrb[0].mxu0
  %v4692 = vadd.f32 0.0, %v4691
  %v4693 = vpop.f32.mrb[0].mxu0
  %4694 = vmatprep.mubr.bf16.mxu0 0
  %4695 = vmatmul.mubr.bf16.gmra.mrb[0].mxu0 %v2702
  %v4696 = vpop.f32.mrb[0].mxu0
  %v4697 = vadd.f32 0.0, %v4696
  %v4698 = vpop.f32.mrb[0].mxu0
  %v4699 = vpop.f32.mrb[0].mxu0
  %v4700 = vadd.f32 0.0, %v4699
  %v4701 = vpop.f32.mrb[0].mxu0
  %4702 = vmatprep.mubr.bf16.mxu0 0
  %4703 = vmatmul.mubr.bf16.gmra.mrb[0].mxu0 %v2705
  %v4704 = vpop.f32.mrb[0].mxu0
  %v4705 = vadd.f32 0.0, %v4704
  %v4706 = vpop.f32.mrb[0].mxu0
  %v4707 = vpop.f32.mrb[0].mxu0
  %v4708 = vadd.f32 0.0, %v4707
  %v4709 = vpop.f32.mrb[0].mxu0
  %4710 = vmatprep.mubr.bf16.mxu0 0
  %4711 = vmatmul.mubr.bf16.gmra.mrb[0].mxu0 %v2708
  %v4712 = vpop.f32.mrb[0].mxu0
  %v4713 = vadd.f32 0.0, %v4712
  %v4714 = vpop.f32.mrb[0].mxu0
  %v4715 = vpop.f32.mrb[0].mxu0
  %v4716 = vadd.f32 0.0, %v4715
  %v4717 = vpop.f32.mrb[0].mxu0
  %4718 = vmatprep.mubr.bf16.mxu0 0
  %4719 = vmatmul.mubr.bf16.gmra.mrb[0].mxu0 %v2711
  %v4720 = vpop.f32.mrb[0].mxu0
  %v4721 = vadd.f32 0.0, %v4720
  %v4722 = vpop.f32.mrb[0].mxu0
  %v4723 = vpop.f32.mrb[0].mxu0
  %v4724 = vadd.f32 0.0, %v4723
  %v4725 = vpop.f32.mrb[0].mxu0
  %4726 = vmatprep.mubr.bf16.mxu0 0
  %4727 = vmatmul.mubr.bf16.gmra.mrb[0].mxu0 %v2714
  %v4728 = vpop.f32.mrb[0].mxu0
  %v4729 = vadd.f32 0.0, %v4728
  %v4730 = vpop.f32.mrb[0].mxu0
  %v4731 = vpop.f32.mrb[0].mxu0
  %v4732 = vadd.f32 0.0, %v4731
  %v4733 = vpop.f32.mrb[0].mxu0
  %4734 = vmatprep.mubr.bf16.mxu0 0
  %4735 = vmatmul.mubr.bf16.gmra.mrb[0].mxu0 %v2717
  %v4736 = vpop.f32.mrb[0].mxu0
  %v4737 = vadd.f32 0.0, %v4736
  %v4738 = vpop.f32.mrb[0].mxu0
  %v4739 = vpop.f32.mrb[0].mxu0
  %v4740 = vadd.f32 0.0, %v4739
  %v4741 = vpop.f32.mrb[0].mxu0
  %4742 = vmatprep.mubr.bf16.mxu0 0
  %4743 = vmatmul.mubr.bf16.gmra.mrb[0].mxu0 %v2720
  %v4744 = vpop.f32.mrb[0].mxu0
  %v4745 = vadd.f32 0.0, %v4744
  %v4746 = vpop.f32.mrb[0].mxu0
  %v4747 = vpop.f32.mrb[0].mxu0
  %v4748 = vadd.f32 0.0, %v4747
  %v4749 = vpop.f32.mrb[0].mxu0
  %4750 = vmatprep.mubr.bf16.mxu0 0
  %4751 = vmatmul.mubr.bf16.gmra.mrb[0].mxu0 %v2723
  %v4752 = vpop.f32.mrb[0].mxu0
  %v4753 = vadd.f32 0.0, %v4752
  %v4754 = vpop.f32.mrb[0].mxu0
  %v4755 = vpop.f32.mrb[0].mxu0
  %v4756 = vadd.f32 0.0, %v4755
  %v4757 = vpop.f32.mrb[0].mxu0
  %4758 = vmatprep.mubr.bf16.mxu0 0
  %4759 = vmatmul.mubr.bf16.gmra.mrb[0].mxu0 %v2726
  %v4760 = vpop.f32.mrb[0].mxu0
  %v4761 = vadd.f32 0.0, %v4760
  %v4762 = vpop.f32.mrb[0].mxu0
  %v4763 = vpop.f32.mrb[0].mxu0
  %v4764 = vadd.f32 0.0, %v4763
  %v4765 = vpop.f32.mrb[0].mxu0
  %4766 = vmatprep.mubr.bf16.mxu0 0
  %4767 = vmatmul.mubr.bf16.gmra.mrb[0].mxu0 %v2729
  %v4768 = vpop.f32.mrb[0].mxu0
  %v4769 = vadd.f32 0.0, %v4768
  %v4770 = vpop.f32.mrb[0].mxu0
  %v4771 = vpop.f32.mrb[0].mxu0
  %v4772 = vadd.f32 0.0, %v4771
  %v4773 = vpop.f32.mrb[0].mxu0
  %4774 = vmatprep.mubr.bf16.mxu0 0
  %4775 = vmatmul.mubr.bf16.gmra.mrb[0].mxu0 %v2732
  %v4776 = vpop.f32.mrb[0].mxu0
  %v4777 = vadd.f32 0.0, %v4776
  %v4778 = vpop.f32.mrb[0].mxu0
  %v4779 = vpop.f32.mrb[0].mxu0
  %v4780 = vadd.f32 0.0, %v4779
  %v4781 = vpop.f32.mrb[0].mxu0
  %4782 = vmatprep.mubr.bf16.mxu0 0
  %4783 = vmatmul.mubr.bf16.gmra.mrb[0].mxu0 %v2735
  %v4784 = vpop.f32.mrb[0].mxu0
  %v4785 = vadd.f32 0.0, %v4784
  %v4786 = vpop.f32.mrb[0].mxu0
  %v4787 = vpop.f32.mrb[0].mxu0
  %v4788 = vadd.f32 0.0, %v4787
  %v4789 = vpop.f32.mrb[0].mxu0
  %4790 = vmatprep.mubr.bf16.mxu0 0
  %4791 = vmatmul.mubr.bf16.gmra.mrb[0].mxu0 %v2738
  %v4792 = vpop.f32.mrb[0].mxu0
  %v4793 = vadd.f32 0.0, %v4792
  %v4794 = vpop.f32.mrb[0].mxu0
  %v4795 = vpop.f32.mrb[0].mxu0
  %v4796 = vadd.f32 0.0, %v4795
  %v4797 = vpop.f32.mrb[0].mxu0
  %4798 = vmatprep.mubr.bf16.mxu0 0
  %4799 = vmatmul.mubr.bf16.gmra.mrb[0].mxu0 %v2741
  %v4800 = vpop.f32.mrb[0].mxu0
  %v4801 = vadd.f32 0.0, %v4800
  %v4802 = vpop.f32.mrb[0].mxu0
  %v4803 = vpop.f32.mrb[0].mxu0
  %v4804 = vadd.f32 0.0, %v4803
  %v4805 = vpop.f32.mrb[0].mxu0
  %4806 = vmatprep.mubr.bf16.mxu0 0
  %4807 = vmatmul.mubr.bf16.gmra.mrb[0].mxu0 %v2744
  %v4808 = vpop.f32.mrb[0].mxu0
  %v4809 = vadd.f32 0.0, %v4808
  %v4810 = vpop.f32.mrb[0].mxu0
  %v4811 = vpop.f32.mrb[0].mxu0
  %v4812 = vadd.f32 0.0, %v4811
  %v4813 = vpop.f32.mrb[0].mxu0
  %4814 = vmatprep.mubr.bf16.mxu0 0
  %4815 = vmatmul.mubr.bf16.gmra.mrb[0].mxu0 %v2747
  %v4816 = vpop.f32.mrb[0].mxu0
  %v4817 = vadd.f32 0.0, %v4816
  %v4818 = vpop.f32.mrb[0].mxu0
  %v4819 = vpop.f32.mrb[0].mxu0
  %v4820 = vadd.f32 0.0, %v4819
  %v4821 = vpop.f32.mrb[0].mxu0
  %4822 = vmatprep.mubr.bf16.mxu0 0
  %4823 = vmatmul.mubr.bf16.gmra.mrb[0].mxu0 %v2750
  %v4824 = vpop.f32.mrb[0].mxu0
  %v4825 = vadd.f32 0.0, %v4824
  %v4826 = vpop.f32.mrb[0].mxu0
  %v4827 = vpop.f32.mrb[0].mxu0
  %v4828 = vadd.f32 0.0, %v4827
  %v4829 = vpop.f32.mrb[0].mxu0
  %4830 = vmatprep.mubr.bf16.mxu0 0
  %4831 = vmatmul.mubr.bf16.gmra.mrb[0].mxu0 %v2753
  %v4832 = vpop.f32.mrb[0].mxu0
  %v4833 = vadd.f32 0.0, %v4832
  %v4834 = vpop.f32.mrb[0].mxu0
  %v4835 = vpop.f32.mrb[0].mxu0
  %v4836 = vadd.f32 0.0, %v4835
  %v4837 = vpop.f32.mrb[0].mxu0
  %4838 = vmatprep.mubr.bf16.mxu0 0
  %4839 = vmatmul.mubr.bf16.gmra.mrb[0].mxu0 %v2756
  %v4840 = vpop.f32.mrb[0].mxu0
  %v4841 = vadd.f32 0.0, %v4840
  %v4842 = vpop.f32.mrb[0].mxu0
  %v4843 = vpop.f32.mrb[0].mxu0
  %v4844 = vadd.f32 0.0, %v4843
  %v4845 = vpop.f32.mrb[0].mxu0
  %4846 = vmatprep.mubr.bf16.mxu0 0
  %4847 = vmatmul.mubr.bf16.gmra.mrb[0].mxu0 %v2759
  %v4848 = vpop.f32.mrb[0].mxu0
  %v4849 = vadd.f32 0.0, %v4848
  %v4850 = vpop.f32.mrb[0].mxu0
  %v4851 = vpop.f32.mrb[0].mxu0
  %v4852 = vadd.f32 0.0, %v4851
  %v4853 = vpop.f32.mrb[0].mxu0
  %4854 = vmatprep.mubr.bf16.mxu0 0
  %4855 = vmatmul.mubr.bf16.gmra.mrb[0].mxu0 %v2762
  %v4856 = vpop.f32.mrb[0].mxu0
  %v4857 = vadd.f32 0.0, %v4856
  %v4858 = vpop.f32.mrb[0].mxu0
  %v4859 = vpop.f32.mrb[0].mxu0
  %v4860 = vadd.f32 0.0, %v4859
  %v4861 = vpop.f32.mrb[0].mxu0
  %4862 = vmatprep.mubr.bf16.mxu0 0
  %4863 = vmatmul.mubr.bf16.gmra.mrb[0].mxu0 %v2765
  %v4864 = vpop.f32.mrb[0].mxu0
  %v4865 = vadd.f32 0.0, %v4864
  %v4866 = vpop.f32.mrb[0].mxu0
  %v4867 = vpop.f32.mrb[0].mxu0
  %v4868 = vadd.f32 0.0, %v4867
  %v4869 = vpop.f32.mrb[0].mxu0
  %4870 = vmatprep.mubr.bf16.mxu0 0
  %4871 = vmatmul.mubr.bf16.gmra.mrb[0].mxu0 %v2768
  %v4872 = vpop.f32.mrb[0].mxu0
  %v4873 = vadd.f32 0.0, %v4872
  %v4874 = vpop.f32.mrb[0].mxu0
  %v4875 = vpop.f32.mrb[0].mxu0
  %v4876 = vadd.f32 0.0, %v4875
  %v4877 = vpop.f32.mrb[0].mxu0
  %4878 = vmatprep.mubr.bf16.mxu0 0
  %4879 = vmatmul.mubr.bf16.gmra.mrb[0].mxu0 %v2771
  %v4880 = vpop.f32.mrb[0].mxu0
  %v4881 = vadd.f32 0.0, %v4880
  %v4882 = vpop.f32.mrb[0].mxu0
  %v4883 = vpop.f32.mrb[0].mxu0
  %v4884 = vadd.f32 0.0, %v4883
  %v4885 = vpop.f32.mrb[0].mxu0
  %4886 = vmatprep.mubr.bf16.mxu0 0
  %4887 = vmatmul.mubr.bf16.gmra.mrb[0].mxu0 %v2774
  %v4888 = vpop.f32.mrb[0].mxu0
  %v4889 = vadd.f32 0.0, %v4888
  %v4890 = vpop.f32.mrb[0].mxu0
  %v4891 = vpop.f32.mrb[0].mxu0
  %v4892 = vadd.f32 0.0, %v4891
  %v4893 = vpop.f32.mrb[0].mxu0
  %4894 = vmatprep.mubr.bf16.mxu0 0
  %4895 = vmatmul.mubr.bf16.gmra.mrb[0].mxu0 %v2777
  %v4896 = vpop.f32.mrb[0].mxu0
  %v4897 = vadd.f32 0.0, %v4896
  %v4898 = vpop.f32.mrb[0].mxu0
  %v4899 = vpop.f32.mrb[0].mxu0
  %v4900 = vadd.f32 0.0, %v4899
  %v4901 = vpop.f32.mrb[0].mxu0
  %4902 = vmatprep.mubr.bf16.mxu0 0
  %4903 = vmatmul.mubr.bf16.gmra.mrb[0].mxu0 %v2780
  %v4904 = vpop.f32.mrb[0].mxu0
  %v4905 = vadd.f32 0.0, %v4904
  %v4906 = vpop.f32.mrb[0].mxu0
  %v4907 = vpop.f32.mrb[0].mxu0
  %v4908 = vadd.f32 0.0, %v4907
  %v4909 = vpop.f32.mrb[0].mxu0
  %4910 = vmatprep.mubr.bf16.mxu0 0
  %4911 = vmatmul.mubr.bf16.gmra.mrb[0].mxu0 %v2783
  %v4912 = vpop.f32.mrb[0].mxu0
  %v4913 = vadd.f32 0.0, %v4912
  %v4914 = vpop.f32.mrb[0].mxu0
  %v4915 = vpop.f32.mrb[0].mxu0
  %v4916 = vadd.f32 0.0, %v4915
  %v4917 = vpop.f32.mrb[0].mxu0
  %4918 = vmatprep.mubr.bf16.mxu0 0
  %4919 = vmatmul.mubr.bf16.gmra.mrb[0].mxu0 %v2786
  %v4920 = vpop.f32.mrb[0].mxu0
  %v4921 = vadd.f32 0.0, %v4920
  %v4922 = vpop.f32.mrb[0].mxu0
  %v4923 = vpop.f32.mrb[0].mxu0
  %v4924 = vadd.f32 0.0, %v4923
  %v4925 = vpop.f32.mrb[0].mxu0
  %4926 = vmatprep.mubr.bf16.mxu0 0
  %4927 = vmatmul.mubr.bf16.gmra.mrb[0].mxu0 %v2789
  %v4928 = vpop.f32.mrb[0].mxu0
  %v4929 = vadd.f32 0.0, %v4928
  %v4930 = vpop.f32.mrb[0].mxu0
  %v4931 = vpop.f32.mrb[0].mxu0
  %v4932 = vadd.f32 0.0, %v4931
  %v4933 = vpop.f32.mrb[0].mxu0
  %4934 = vmatprep.mubr.bf16.mxu0 0
  %4935 = vmatmul.mubr.bf16.gmra.mrb[0].mxu0 %v2792
  %v4936 = vpop.f32.mrb[0].mxu0
  %v4937 = vadd.f32 0.0, %v4936
  %v4938 = vpop.f32.mrb[0].mxu0
  %v4939 = vpop.f32.mrb[0].mxu0
  %v4940 = vadd.f32 0.0, %v4939
  %v4941 = vpop.f32.mrb[0].mxu0
  %4942 = vmatprep.mubr.bf16.mxu0 0
  %4943 = vmatmul.mubr.bf16.gmra.mrb[0].mxu0 %v2795
  %v4944 = vpop.f32.mrb[0].mxu0
  %v4945 = vadd.f32 0.0, %v4944
  %v4946 = vpop.f32.mrb[0].mxu0
  %v4947 = vpop.f32.mrb[0].mxu0
  %v4948 = vadd.f32 0.0, %v4947
  %v4949 = vpop.f32.mrb[0].mxu0
  %4950 = vmatprep.mubr.bf16.mxu0 0
  %4951 = vmatmul.mubr.bf16.gmra.mrb[0].mxu0 %v2798
  %v4952 = vpop.f32.mrb[0].mxu0
  %v4953 = vadd.f32 0.0, %v4952
  %v4954 = vpop.f32.mrb[0].mxu0
  %v4955 = vpop.f32.mrb[0].mxu0
  %v4956 = vadd.f32 0.0, %v4955
  %v4957 = vpop.f32.mrb[0].mxu0
  %4958 = vmatprep.mubr.bf16.mxu0 0
  %4959 = vmatmul.mubr.bf16.gmra.mrb[0].mxu0 %v2801
  %v4960 = vpop.f32.mrb[0].mxu0
  %v4961 = vadd.f32 0.0, %v4960
  %v4962 = vpop.f32.mrb[0].mxu0
  %v4963 = vpop.f32.mrb[0].mxu0
  %v4964 = vadd.f32 0.0, %v4963
  %v4965 = vpop.f32.mrb[0].mxu0
  %4966 = vmatprep.mubr.bf16.mxu0 0
  %4967 = vmatmul.mubr.bf16.gmra.mrb[0].mxu0 %v2804
  %v4968 = vpop.f32.mrb[0].mxu0
  %v4969 = vadd.f32 0.0, %v4968
  %v4970 = vpop.f32.mrb[0].mxu0
  %v4971 = vpop.f32.mrb[0].mxu0
  %v4972 = vadd.f32 0.0, %v4971
  %v4973 = vpop.f32.mrb[0].mxu0
  %4974 = vmatprep.mubr.bf16.mxu0 0
  %4975 = vmatmul.mubr.bf16.gmra.mrb[0].mxu0 %v2807
  %v4976 = vpop.f32.mrb[0].mxu0
  %v4977 = vadd.f32 0.0, %v4976
  %v4978 = vpop.f32.mrb[0].mxu0
  %v4979 = vpop.f32.mrb[0].mxu0
  %v4980 = vadd.f32 0.0, %v4979
  %v4981 = vpop.f32.mrb[0].mxu0
  %4982 = vmatprep.mubr.bf16.mxu0 0
  %4983 = vmatmul.mubr.bf16.gmra.mrb[0].mxu0 %v2810
  %v4984 = vpop.f32.mrb[0].mxu0
  %v4985 = vadd.f32 0.0, %v4984
  %v4986 = vpop.f32.mrb[0].mxu0
  %v4987 = vpop.f32.mrb[0].mxu0
  %v4988 = vadd.f32 0.0, %v4987
  %v4989 = vpop.f32.mrb[0].mxu0
  %4990 = vmatprep.mubr.bf16.mxu0 0
  %4991 = vmatmul.mubr.bf16.gmra.mrb[0].mxu0 %v2813
  %v4992 = vpop.f32.mrb[0].mxu0
  %v4993 = vadd.f32 0.0, %v4992
  %v4994 = vpop.f32.mrb[0].mxu0
  %v4995 = vpop.f32.mrb[0].mxu0
  %v4996 = vadd.f32 0.0, %v4995
  %v4997 = vpop.f32.mrb[0].mxu0
  %4998 = vmatprep.mubr.bf16.mxu0 0
  %4999 = vmatmul.mubr.bf16.gmra.mrb[0].mxu0 %v2816
  %v5000 = vpop.f32.mrb[0].mxu0
  %v5001 = vadd.f32 0.0, %v5000
  %v5002 = vpop.f32.mrb[0].mxu0
  %v5003 = vpop.f32.mrb[0].mxu0
  %v5004 = vadd.f32 0.0, %v5003
  %v5005 = vpop.f32.mrb[0].mxu0
  %5006 = vmatprep.mubr.bf16.mxu0 0
  %5007 = vmatmul.mubr.bf16.gmra.mrb[0].mxu0 %v2819
  %v5008 = vpop.f32.mrb[0].mxu0
  %v5009 = vadd.f32 0.0, %v5008
  %v5010 = vpop.f32.mrb[0].mxu0
  %v5011 = vpop.f32.mrb[0].mxu0
  %v5012 = vadd.f32 0.0, %v5011
  %v5013 = vpop.f32.mrb[0].mxu0
  %5014 = vmatprep.mubr.bf16.mxu0 0
  %5015 = vmatmul.mubr.bf16.gmra.mrb[0].mxu0 %v2822
  %v5016 = vpop.f32.mrb[0].mxu0
  %v5017 = vadd.f32 0.0, %v5016
  %v5018 = vpop.f32.mrb[0].mxu0
  %v5019 = vpop.f32.mrb[0].mxu0
  %v5020 = vadd.f32 0.0, %v5019
  %v5021 = vpop.f32.mrb[0].mxu0
  %5022 = vmatprep.mubr.bf16.mxu0 0
  %5023 = vmatmul.mubr.bf16.gmra.mrb[0].mxu0 %v2825
  %v5024 = vpop.f32.mrb[0].mxu0
  %v5025 = vadd.f32 0.0, %v5024
  %v5026 = vpop.f32.mrb[0].mxu0
  %v5027 = vpop.f32.mrb[0].mxu0
  %v5028 = vadd.f32 0.0, %v5027
  %v5029 = vpop.f32.mrb[0].mxu0
  %5030 = vmatprep.mubr.bf16.mxu0 0
  %5031 = vmatmul.mubr.bf16.gmra.mrb[0].mxu0 %v2828
  %v5032 = vpop.f32.mrb[0].mxu0
  %v5033 = vadd.f32 0.0, %v5032
  %v5034 = vpop.f32.mrb[0].mxu0
  %v5035 = vpop.f32.mrb[0].mxu0
  %v5036 = vadd.f32 0.0, %v5035
  %v5037 = vpop.f32.mrb[0].mxu0
  %5038 = vmatprep.mubr.bf16.mxu0 0
  %5039 = vmatmul.mubr.bf16.gmra.mrb[0].mxu0 %v2831
  %v5040 = vpop.f32.mrb[0].mxu0
  %v5041 = vadd.f32 0.0, %v5040
  %v5042 = vpop.f32.mrb[0].mxu0
  %v5043 = vpop.f32.mrb[0].mxu0
  %v5044 = vadd.f32 0.0, %v5043
  %v5045 = vpop.f32.mrb[0].mxu0
  %5046 = vmatprep.mubr.bf16.mxu0 0
  %5047 = vmatmul.mubr.bf16.gmra.mrb[0].mxu0 %v2834
  %v5048 = vpop.f32.mrb[0].mxu0
  %v5049 = vadd.f32 0.0, %v5048
  %v5050 = vpop.f32.mrb[0].mxu0
  %v5051 = vpop.f32.mrb[0].mxu0
  %v5052 = vadd.f32 0.0, %v5051
  %v5053 = vpop.f32.mrb[0].mxu0
  %5054 = vmatprep.mubr.bf16.mxu0 0
  %5055 = vmatmul.mubr.bf16.gmra.mrb[0].mxu0 %v2837
  %v5056 = vpop.f32.mrb[0].mxu0
  %v5057 = vadd.f32 0.0, %v5056
  %v5058 = vpop.f32.mrb[0].mxu0
  %v5059 = vpop.f32.mrb[0].mxu0
  %v5060 = vadd.f32 0.0, %v5059
  %v5061 = vpop.f32.mrb[0].mxu0
  %5062 = vmatprep.mubr.bf16.mxu0 0
  %5063 = vmatmul.mubr.bf16.gmra.mrb[0].mxu0 %v2840
  %v5064 = vpop.f32.mrb[0].mxu0
  %v5065 = vadd.f32 0.0, %v5064
  %v5066 = vpop.f32.mrb[0].mxu0
  %v5067 = vpop.f32.mrb[0].mxu0
  %v5068 = vadd.f32 0.0, %v5067
  %v5069 = vpop.f32.mrb[0].mxu0
  %5070 = vmatprep.mubr.bf16.mxu0 0
  %5071 = vmatmul.mubr.bf16.gmra.mrb[0].mxu0 %v2843
  %v5072 = vpop.f32.mrb[0].mxu0
  %v5073 = vadd.f32 0.0, %v5072
  %v5074 = vpop.f32.mrb[0].mxu0
  %v5075 = vpop.f32.mrb[0].mxu0
  %v5076 = vadd.f32 0.0, %v5075
  %v5077 = vpop.f32.mrb[0].mxu0
  %5078 = vmatprep.mubr.bf16.mxu0 0
  %5079 = vmatmul.mubr.bf16.gmra.mrb[0].mxu0 %v2846
  %v5080 = vpop.f32.mrb[0].mxu0
  %v5081 = vadd.f32 0.0, %v5080
  %v5082 = vpop.f32.mrb[0].mxu0
  %v5083 = vpop.f32.mrb[0].mxu0
  %v5084 = vadd.f32 0.0, %v5083
  %v5085 = vpop.f32.mrb[0].mxu0
  %5086 = vmatprep.mubr.bf16.mxu0 0
  %5087 = vmatmul.mubr.bf16.gmra.mrb[0].mxu0 %v2849
  %v5088 = vpop.f32.mrb[0].mxu0
  %v5089 = vadd.f32 0.0, %v5088
  %v5090 = vpop.f32.mrb[0].mxu0
  %v5091 = vpop.f32.mrb[0].mxu0
  %v5092 = vadd.f32 0.0, %v5091
  %v5093 = vpop.f32.mrb[0].mxu0
  %5094 = vmatprep.mubr.bf16.mxu0 0
  %5095 = vmatmul.mubr.bf16.gmra.mrb[0].mxu0 %v2852
  %v5096 = vpop.f32.mrb[0].mxu0
  %v5097 = vadd.f32 0.0, %v5096
  %v5098 = vpop.f32.mrb[0].mxu0
  %v5099 = vpop.f32.mrb[0].mxu0
  %v5100 = vadd.f32 0.0, %v5099
  %v5101 = vpop.f32.mrb[0].mxu0
  %5102 = vmatprep.mubr.bf16.mxu0 0
  %5103 = vmatmul.mubr.bf16.gmra.mrb[0].mxu0 %v2855
  %v5104 = vpop.f32.mrb[0].mxu0
  %v5105 = vadd.f32 0.0, %v5104
  %v5106 = vpop.f32.mrb[0].mxu0
  %v5107 = vpop.f32.mrb[0].mxu0
  %v5108 = vadd.f32 0.0, %v5107
  %v5109 = vpop.f32.mrb[0].mxu0
  %5110 = vmatprep.mubr.bf16.mxu0 0
  %5111 = vmatmul.mubr.bf16.gmra.mrb[0].mxu0 %v2858
  %v5112 = vpop.f32.mrb[0].mxu0
  %v5113 = vadd.f32 0.0, %v5112
  %v5114 = vpop.f32.mrb[0].mxu0
  %v5115 = vpop.f32.mrb[0].mxu0
  %v5116 = vadd.f32 0.0, %v5115
  %v5117 = vpop.f32.mrb[0].mxu0
  %5118 = vmatprep.mubr.bf16.mxu0 0
  %5119 = vmatmul.mubr.bf16.gmra.mrb[0].mxu0 %v2861
  %v5120 = vpop.f32.mrb[0].mxu0
  %v5121 = vadd.f32 0.0, %v5120
  %v5122 = vpop.f32.mrb[0].mxu0
  %v5123 = vpop.f32.mrb[0].mxu0
  %v5124 = vadd.f32 0.0, %v5123
  %v5125 = vpop.f32.mrb[0].mxu0
  %5126 = vmatprep.mubr.bf16.mxu0 0
  %5127 = vmatmul.mubr.bf16.gmra.mrb[0].mxu0 %v2864
  %v5128 = vpop.f32.mrb[0].mxu0
  %v5129 = vadd.f32 0.0, %v5128
  %v5130 = vpop.f32.mrb[0].mxu0
  %v5131 = vpop.f32.mrb[0].mxu0
  %v5132 = vadd.f32 0.0, %v5131
  %v5133 = vpop.f32.mrb[0].mxu0
  %5134 = vmatprep.mubr.bf16.mxu0 0
  %5135 = vmatmul.mubr.bf16.gmra.mrb[0].mxu0 %v2867
  %v5136 = vpop.f32.mrb[0].mxu0
  %v5137 = vadd.f32 0.0, %v5136
  %v5138 = vpop.f32.mrb[0].mxu0
  %v5139 = vpop.f32.mrb[0].mxu0
  %v5140 = vadd.f32 0.0, %v5139
  %v5141 = vpop.f32.mrb[0].mxu0
  %5142 = vmatprep.mubr.bf16.mxu0 0
  %5143 = vmatmul.mubr.bf16.gmra.mrb[0].mxu0 %v2870
  %v5144 = vpop.f32.mrb[0].mxu0
  %v5145 = vadd.f32 0.0, %v5144
  %v5146 = vpop.f32.mrb[0].mxu0
  %v5147 = vpop.f32.mrb[0].mxu0
  %v5148 = vadd.f32 0.0, %v5147
  %v5149 = vpop.f32.mrb[0].mxu0
  %5150 = vmatprep.mubr.bf16.mxu0 0
  %5151 = vmatmul.mubr.bf16.gmra.mrb[0].mxu0 %v2873
  %v5152 = vpop.f32.mrb[0].mxu0
  %v5153 = vadd.f32 0.0, %v5152
  %v5154 = vpop.f32.mrb[0].mxu0
  %v5155 = vpop.f32.mrb[0].mxu0
  %v5156 = vadd.f32 0.0, %v5155
  %v5157 = vpop.f32.mrb[0].mxu0
  %5158 = vmatprep.mubr.bf16.mxu0 0
  %5159 = vmatmul.mubr.bf16.gmra.mrb[0].mxu0 %v2876
  %v5160 = vpop.f32.mrb[0].mxu0
  %v5161 = vadd.f32 0.0, %v5160
  %v5162 = vpop.f32.mrb[0].mxu0
  %v5163 = vpop.f32.mrb[0].mxu0
  %v5164 = vadd.f32 0.0, %v5163
  %v5165 = vpop.f32.mrb[0].mxu0
  %5166 = vmatprep.mubr.bf16.mxu0 0
  %5167 = vmatmul.mubr.bf16.gmra.mrb[0].mxu0 %v2879
  %v5168 = vpop.f32.mrb[0].mxu0
  %v5169 = vadd.f32 0.0, %v5168
  %v5170 = vpop.f32.mrb[0].mxu0
  %v5171 = vpop.f32.mrb[0].mxu0
  %v5172 = vadd.f32 0.0, %v5171
  %v5173 = vpop.f32.mrb[0].mxu0
  %5174 = vmatprep.mubr.bf16.mxu0 0
  %5175 = vmatmul.mubr.bf16.gmra.mrb[0].mxu0 %v2882
  %v5176 = vpop.f32.mrb[0].mxu0
  %v5177 = vadd.f32 0.0, %v5176
  %v5178 = vpop.f32.mrb[0].mxu0
  %v5179 = vpop.f32.mrb[0].mxu0
  %v5180 = vadd.f32 0.0, %v5179
  %v5181 = vpop.f32.mrb[0].mxu0
  %5182 = vmatprep.mubr.bf16.mxu0 0
  %5183 = vmatmul.mubr.bf16.gmra.mrb[0].mxu0 %v2885
  %v5184 = vpop.f32.mrb[0].mxu0
  %v5185 = vadd.f32 0.0, %v5184
  %v5186 = vpop.f32.mrb[0].mxu0
  %v5187 = vpop.f32.mrb[0].mxu0
  %v5188 = vadd.f32 0.0, %v5187
  %v5189 = vpop.f32.mrb[0].mxu0
  %5190 = vmatprep.mubr.bf16.mxu0 0
  %5191 = vmatmul.mubr.bf16.gmra.mrb[0].mxu0 %v2888
  %v5192 = vpop.f32.mrb[0].mxu0
  %v5193 = vadd.f32 0.0, %v5192
  %v5194 = vpop.f32.mrb[0].mxu0
  %v5195 = vpop.f32.mrb[0].mxu0
  %v5196 = vadd.f32 0.0, %v5195
  %v5197 = vpop.f32.mrb[0].mxu0
  %5198 = vmatprep.mubr.bf16.mxu0 0
  %5199 = vmatmul.mubr.bf16.gmra.mrb[0].mxu0 %v2891
  %v5200 = vpop.f32.mrb[0].mxu0
  %v5201 = vadd.f32 0.0, %v5200
  %v5202 = vpop.f32.mrb[0].mxu0
  %v5203 = vpop.f32.mrb[0].mxu0
  %v5204 = vadd.f32 0.0, %v5203
  %v5205 = vpop.f32.mrb[0].mxu0
  %5206 = vmatprep.mubr.bf16.mxu0 0
  %5207 = vmatmul.mubr.bf16.gmra.mrb[0].mxu0 %v2894
  %v5208 = vpop.f32.mrb[0].mxu0
  %v5209 = vadd.f32 0.0, %v5208
  %v5210 = vpop.f32.mrb[0].mxu0
  %v5211 = vpop.f32.mrb[0].mxu0
  %v5212 = vadd.f32 0.0, %v5211
  %v5213 = vpop.f32.mrb[0].mxu0
  %5214 = vmatprep.mubr.bf16.mxu0 0
  %5215 = vmatmul.mubr.bf16.gmra.mrb[0].mxu0 %v2897
  %v5216 = vpop.f32.mrb[0].mxu0
  %v5217 = vadd.f32 0.0, %v5216
  %v5218 = vpop.f32.mrb[0].mxu0
  %v5219 = vpop.f32.mrb[0].mxu0
  %v5220 = vadd.f32 0.0, %v5219
  %v5221 = vpop.f32.mrb[0].mxu0
  %5222 = vmatprep.mubr.bf16.mxu0 0
  %5223 = vmatmul.mubr.bf16.gmra.mrb[0].mxu0 %v2900
  %v5224 = vpop.f32.mrb[0].mxu0
  %v5225 = vadd.f32 0.0, %v5224
  %v5226 = vpop.f32.mrb[0].mxu0
  %v5227 = vpop.f32.mrb[0].mxu0
  %v5228 = vadd.f32 0.0, %v5227
  %v5229 = vpop.f32.mrb[0].mxu0
  %5230 = vmatprep.mubr.bf16.mxu0 0
  %5231 = vmatmul.mubr.bf16.gmra.mrb[0].mxu0 %v2903
  %v5232 = vpop.f32.mrb[0].mxu0
  %v5233 = vadd.f32 0.0, %v5232
  %v5234 = vpop.f32.mrb[0].mxu0
  %v5235 = vpop.f32.mrb[0].mxu0
  %v5236 = vadd.f32 0.0, %v5235
  %v5237 = vpop.f32.mrb[0].mxu0
  %5238 = vmatprep.mubr.bf16.mxu0 0
  %5239 = vmatmul.mubr.bf16.gmra.mrb[0].mxu0 %v2906
  %v5240 = vpop.f32.mrb[0].mxu0
  %v5241 = vadd.f32 0.0, %v5240
  %v5242 = vpop.f32.mrb[0].mxu0
  %v5243 = vpop.f32.mrb[0].mxu0
  %v5244 = vadd.f32 0.0, %v5243
  %v5245 = vpop.f32.mrb[0].mxu0
  %5246 = vmatprep.mubr.bf16.mxu0 0
  %5247 = vmatmul.mubr.bf16.gmra.mrb[0].mxu0 %v2909
  %v5248 = vpop.f32.mrb[0].mxu0
  %v5249 = vadd.f32 0.0, %v5248
  %v5250 = vpop.f32.mrb[0].mxu0
  %v5251 = vpop.f32.mrb[0].mxu0
  %v5252 = vadd.f32 0.0, %v5251
  %v5253 = vpop.f32.mrb[0].mxu0
  %5254 = vdwg.mxu0
  %v5255 = vmax.f32 %v2953, %v3025
  %v5256 = vmax.f32 %v2956, %v3028
  %v5257 = vmax.f32 %v2961, %v3033
  %v5258 = vmax.f32 %v2964, %v3036
  %v5259 = vmax.f32 %v2969, %v3041
  %v5260 = vmax.f32 %v2972, %v3044
  %v5261 = vmax.f32 %v2977, %v3049
  %v5262 = vmax.f32 %v2980, %v3052
  %v5263 = vmax.f32 %v2985, %v3057
  %v5264 = vmax.f32 %v2988, %v3060
  %v5265 = vmax.f32 %v2993, %v3065
  %v5266 = vmax.f32 %v2996, %v3068
  %v5267 = vmax.f32 %v3001, %v3073
  %v5268 = vmax.f32 %v3004, %v3076
  %v5269 = vmax.f32 %v3009, %v3081
  %v5270 = vmax.f32 %v3012, %v3084
  %v5271 = vmax.f32 %v3017, %v3089
  %v5272 = vmax.f32 %v3020, %v3092
  %v5273 = vmax.f32 %v3241, %v3313
  %v5274 = vmax.f32 %v3244, %v3316
  %v5275 = vmax.f32 %v3249, %v3321
  %v5276 = vmax.f32 %v3252, %v3324
  %v5277 = vmax.f32 %v3257, %v3329
  %v5278 = vmax.f32 %v3260, %v3332
  %v5279 = vmax.f32 %v3265, %v3337
  %v5280 = vmax.f32 %v3268, %v3340
  %v5281 = vmax.f32 %v3273, %v3345
  %v5282 = vmax.f32 %v3276, %v3348
  %v5283 = vmax.f32 %v3281, %v3353
  %v5284 = vmax.f32 %v3284, %v3356
  %v5285 = vmax.f32 %v3289, %v3361
  %v5286 = vmax.f32 %v3292, %v3364
  %v5287 = vmax.f32 %v3297, %v3369
  %v5288 = vmax.f32 %v3300, %v3372
  %v5289 = vmax.f32 %v3305, %v3377
  %v5290 = vmax.f32 %v3308, %v3380
  %v5291 = vmax.f32 %v3529, %v3601
  %v5292 = vmax.f32 %v3532, %v3604
  %v5293 = vmax.f32 %v3537, %v3609
  %v5294 = vmax.f32 %v3540, %v3612
  %v5295 = vmax.f32 %v3545, %v3617
  %v5296 = vmax.f32 %v3548, %v3620
  %v5297 = vmax.f32 %v3553, %v3625
  %v5298 = vmax.f32 %v3556, %v3628
  %v5299 = vmax.f32 %v3561, %v3633
  %v5300 = vmax.f32 %v3564, %v3636
  %v5301 = vmax.f32 %v3569, %v3641
  %v5302 = vmax.f32 %v3572, %v3644
  %v5303 = vmax.f32 %v3577, %v3649
  %v5304 = vmax.f32 %v3580, %v3652
  %v5305 = vmax.f32 %v3585, %v3657
  %v5306 = vmax.f32 %v3588, %v3660
  %v5307 = vmax.f32 %v3593, %v3665
  %v5308 = vmax.f32 %v3596, %v3668
  %v5309 = vmax.f32 %v3817, %v3889
  %v5310 = vmax.f32 %v3820, %v3892
  %v5311 = vmax.f32 %v3825, %v3897
  %v5312 = vmax.f32 %v3828, %v3900
  %v5313 = vmax.f32 %v3833, %v3905
  %v5314 = vmax.f32 %v3836, %v3908
  %v5315 = vmax.f32 %v3841, %v3913
  %v5316 = vmax.f32 %v3844, %v3916
  %v5317 = vmax.f32 %v3849, %v3921
  %v5318 = vmax.f32 %v3852, %v3924
  %v5319 = vmax.f32 %v3857, %v3929
  %v5320 = vmax.f32 %v3860, %v3932
  %v5321 = vmax.f32 %v3865, %v3937
  %v5322 = vmax.f32 %v3868, %v3940
  %v5323 = vmax.f32 %v3873, %v3945
  %v5324 = vmax.f32 %v3876, %v3948
  %v5325 = vmax.f32 %v3881, %v3953
  %v5326 = vmax.f32 %v3884, %v3956
  %v5327 = vmax.f32 %v4105, %v4177
  %v5328 = vmax.f32 %v4108, %v4180
  %v5329 = vmax.f32 %v4113, %v4185
  %v5330 = vmax.f32 %v4116, %v4188
  %v5331 = vmax.f32 %v4121, %v4193
  %v5332 = vmax.f32 %v4124, %v4196
  %v5333 = vmax.f32 %v4129, %v4201
  %v5334 = vmax.f32 %v4132, %v4204
  %v5335 = vmax.f32 %v4137, %v4209
  %v5336 = vmax.f32 %v4140, %v4212
  %v5337 = vmax.f32 %v4145, %v4217
  %v5338 = vmax.f32 %v4148, %v4220
  %v5339 = vmax.f32 %v4153, %v4225
  %v5340 = vmax.f32 %v4156, %v4228
  %v5341 = vmax.f32 %v4161, %v4233
  %v5342 = vmax.f32 %v4164, %v4236
  %v5343 = vmax.f32 %v4169, %v4241
  %v5344 = vmax.f32 %v4172, %v4244
  %v5345 = vmax.f32 %v4393, %v4465
  %v5346 = vmax.f32 %v4396, %v4468
  %v5347 = vmax.f32 %v4401, %v4473
  %v5348 = vmax.f32 %v4404, %v4476
  %v5349 = vmax.f32 %v4409, %v4481
  %v5350 = vmax.f32 %v4412, %v4484
  %v5351 = vmax.f32 %v4417, %v4489
  %v5352 = vmax.f32 %v4420, %v4492
  %v5353 = vmax.f32 %v4425, %v4497
  %v5354 = vmax.f32 %v4428, %v4500
  %v5355 = vmax.f32 %v4433, %v4505
  %v5356 = vmax.f32 %v4436, %v4508
  %v5357 = vmax.f32 %v4441, %v4513
  %v5358 = vmax.f32 %v4444, %v4516
  %v5359 = vmax.f32 %v4449, %v4521
  %v5360 = vmax.f32 %v4452, %v4524
  %v5361 = vmax.f32 %v4457, %v4529
  %v5362 = vmax.f32 %v4460, %v4532
  %v5363 = vmax.f32 %v4681, %v4753
  %v5364 = vmax.f32 %v4684, %v4756
  %v5365 = vmax.f32 %v4689, %v4761
  %v5366 = vmax.f32 %v4692, %v4764
  %v5367 = vmax.f32 %v4697, %v4769
  %v5368 = vmax.f32 %v4700, %v4772
  %v5369 = vmax.f32 %v4705, %v4777
  %v5370 = vmax.f32 %v4708, %v4780
  %v5371 = vmax.f32 %v4713, %v4785
  %v5372 = vmax.f32 %v4716, %v4788
  %v5373 = vmax.f32 %v4721, %v4793
  %v5374 = vmax.f32 %v4724, %v4796
  %v5375 = vmax.f32 %v4729, %v4801
  %v5376 = vmax.f32 %v4732, %v4804
  %v5377 = vmax.f32 %v4737, %v4809
  %v5378 = vmax.f32 %v4740, %v4812
  %v5379 = vmax.f32 %v4745, %v4817
  %v5380 = vmax.f32 %v4748, %v4820
  %v5381 = vmax.f32 %v4969, %v5041
  %v5382 = vmax.f32 %v4972, %v5044
  %v5383 = vmax.f32 %v4977, %v5049
  %v5384 = vmax.f32 %v4980, %v5052
  %v5385 = vmax.f32 %v4985, %v5057
  %v5386 = vmax.f32 %v4988, %v5060
  %v5387 = vmax.f32 %v4993, %v5065
  %v5388 = vmax.f32 %v4996, %v5068
  %v5389 = vmax.f32 %v5001, %v5073
  %v5390 = vmax.f32 %v5004, %v5076
  %v5391 = vmax.f32 %v5009, %v5081
  %v5392 = vmax.f32 %v5012, %v5084
  %v5393 = vmax.f32 %v5017, %v5089
  %v5394 = vmax.f32 %v5020, %v5092
  %v5395 = vmax.f32 %v5025, %v5097
  %v5396 = vmax.f32 %v5028, %v5100
  %v5397 = vmax.f32 %v5033, %v5105
  %v5398 = vmax.f32 %v5036, %v5108
  %v5399 = vmax.f32 %v3097, %v3169
  %v5400 = vmax.f32 %v3100, %v3172
  %v5401 = vmax.f32 %v3105, %v3177
  %v5402 = vmax.f32 %v3108, %v3180
  %v5403 = vmax.f32 %v3113, %v3185
  %v5404 = vmax.f32 %v3116, %v3188
  %v5405 = vmax.f32 %v3121, %v3193
  %v5406 = vmax.f32 %v3124, %v3196
  %v5407 = vmax.f32 %v3129, %v3201
  %v5408 = vmax.f32 %v3132, %v3204
  %v5409 = vmax.f32 %v3137, %v3209
  %v5410 = vmax.f32 %v3140, %v3212
  %v5411 = vmax.f32 %v3145, %v3217
  %v5412 = vmax.f32 %v3148, %v3220
  %v5413 = vmax.f32 %v3153, %v3225
  %v5414 = vmax.f32 %v3156, %v3228
  %v5415 = vmax.f32 %v3161, %v3233
  %v5416 = vmax.f32 %v3164, %v3236
  %v5417 = vmax.f32 %v3385, %v3457
  %v5418 = vmax.f32 %v3388, %v3460
  %v5419 = vmax.f32 %v3393, %v3465
  %v5420 = vmax.f32 %v3396, %v3468
  %v5421 = vmax.f32 %v3401, %v3473
  %v5422 = vmax.f32 %v3404, %v3476
  %v5423 = vmax.f32 %v3409, %v3481
  %v5424 = vmax.f32 %v3412, %v3484
  %v5425 = vmax.f32 %v3417, %v3489
  %v5426 = vmax.f32 %v3420, %v3492
  %v5427 = vmax.f32 %v3425, %v3497
  %v5428 = vmax.f32 %v3428, %v3500
  %v5429 = vmax.f32 %v3433, %v3505
  %v5430 = vmax.f32 %v3436, %v3508
  %v5431 = vmax.f32 %v3441, %v3513
  %v5432 = vmax.f32 %v3444, %v3516
  %v5433 = vmax.f32 %v3449, %v3521
  %v5434 = vmax.f32 %v3452, %v3524
  %v5435 = vmax.f32 %v3673, %v3745
  %v5436 = vmax.f32 %v3676, %v3748
  %v5437 = vmax.f32 %v3681, %v3753
  %v5438 = vmax.f32 %v3684, %v3756
  %v5439 = vmax.f32 %v3689, %v3761
  %v5440 = vmax.f32 %v3692, %v3764
  %v5441 = vmax.f32 %v3697, %v3769
  %v5442 = vmax.f32 %v3700, %v3772
  %v5443 = vmax.f32 %v3705, %v3777
  %v5444 = vmax.f32 %v3708, %v3780
  %v5445 = vmax.f32 %v3713, %v3785
  %v5446 = vmax.f32 %v3716, %v3788
  %v5447 = vmax.f32 %v3721, %v3793
  %v5448 = vmax.f32 %v3724, %v3796
  %v5449 = vmax.f32 %v3729, %v3801
  %v5450 = vmax.f32 %v3732, %v3804
  %v5451 = vmax.f32 %v3737, %v3809
  %v5452 = vmax.f32 %v3740, %v3812
  %v5453 = vmax.f32 %v3961, %v4033
  %v5454 = vmax.f32 %v3964, %v4036
  %v5455 = vmax.f32 %v3969, %v4041
  %v5456 = vmax.f32 %v3972, %v4044
  %v5457 = vmax.f32 %v3977, %v4049
  %v5458 = vmax.f32 %v3980, %v4052
  %v5459 = vmax.f32 %v3985, %v4057
  %v5460 = vmax.f32 %v3988, %v4060
  %v5461 = vmax.f32 %v3993, %v4065
  %v5462 = vmax.f32 %v3996, %v4068
  %v5463 = vmax.f32 %v4001, %v4073
  %v5464 = vmax.f32 %v4004, %v4076
  %v5465 = vmax.f32 %v4009, %v4081
  %v5466 = vmax.f32 %v4012, %v4084
  %v5467 = vmax.f32 %v4017, %v4089
  %v5468 = vmax.f32 %v4020, %v4092
  %v5469 = vmax.f32 %v4025, %v4097
  %v5470 = vmax.f32 %v4028, %v4100
  %v5471 = vmax.f32 %v4249, %v4321
  %v5472 = vmax.f32 %v4252, %v4324
  %v5473 = vmax.f32 %v4257, %v4329
  %v5474 = vmax.f32 %v4260, %v4332
  %v5475 = vmax.f32 %v4265, %v4337
  %v5476 = vmax.f32 %v4268, %v4340
  %v5477 = vmax.f32 %v4273, %v4345
  %v5478 = vmax.f32 %v4276, %v4348
  %v5479 = vmax.f32 %v4281, %v4353
  %v5480 = vmax.f32 %v4284, %v4356
  %v5481 = vmax.f32 %v4289, %v4361
  %v5482 = vmax.f32 %v4292, %v4364
  %v5483 = vmax.f32 %v4297, %v4369
  %v5484 = vmax.f32 %v4300, %v4372
  %v5485 = vmax.f32 %v4305, %v4377
  %v5486 = vmax.f32 %v4308, %v4380
  %v5487 = vmax.f32 %v4313, %v4385
  %v5488 = vmax.f32 %v4316, %v4388
  %v5489 = vmax.f32 %v4537, %v4609
  %v5490 = vmax.f32 %v4540, %v4612
  %v5491 = vmax.f32 %v4545, %v4617
  %v5492 = vmax.f32 %v4548, %v4620
  %v5493 = vmax.f32 %v4553, %v4625
  %v5494 = vmax.f32 %v4556, %v4628
  %v5495 = vmax.f32 %v4561, %v4633
  %v5496 = vmax.f32 %v4564, %v4636
  %v5497 = vmax.f32 %v4569, %v4641
  %v5498 = vmax.f32 %v4572, %v4644
  %v5499 = vmax.f32 %v4577, %v4649
  %v5500 = vmax.f32 %v4580, %v4652
  %v5501 = vmax.f32 %v4585, %v4657
  %v5502 = vmax.f32 %v4588, %v4660
  %v5503 = vmax.f32 %v4593, %v4665
  %v5504 = vmax.f32 %v4596, %v4668
  %v5505 = vmax.f32 %v4601, %v4673
  %v5506 = vmax.f32 %v4604, %v4676
  %v5507 = vmax.f32 %v4825, %v4897
  %v5508 = vmax.f32 %v4828, %v4900
  %v5509 = vmax.f32 %v4833, %v4905
  %v5510 = vmax.f32 %v4836, %v4908
  %v5511 = vmax.f32 %v4841, %v4913
  %v5512 = vmax.f32 %v4844, %v4916
  %v5513 = vmax.f32 %v4849, %v4921
  %v5514 = vmax.f32 %v4852, %v4924
  %v5515 = vmax.f32 %v4857, %v4929
  %v5516 = vmax.f32 %v4860, %v4932
  %v5517 = vmax.f32 %v4865, %v4937
  %v5518 = vmax.f32 %v4868, %v4940
  %v5519 = vmax.f32 %v4873, %v4945
  %v5520 = vmax.f32 %v4876, %v4948
  %v5521 = vmax.f32 %v4881, %v4953
  %v5522 = vmax.f32 %v4884, %v4956
  %v5523 = vmax.f32 %v4889, %v4961
  %v5524 = vmax.f32 %v4892, %v4964
  %v5525 = vmax.f32 %v5113, %v5185
  %v5526 = vmax.f32 %v5116, %v5188
  %v5527 = vmax.f32 %v5121, %v5193
  %v5528 = vmax.f32 %v5124, %v5196
  %v5529 = vmax.f32 %v5129, %v5201
  %v5530 = vmax.f32 %v5132, %v5204
  %v5531 = vmax.f32 %v5137, %v5209
  %v5532 = vmax.f32 %v5140, %v5212
  %v5533 = vmax.f32 %v5145, %v5217
  %v5534 = vmax.f32 %v5148, %v5220
  %v5535 = vmax.f32 %v5153, %v5225
  %v5536 = vmax.f32 %v5156, %v5228
  %v5537 = vmax.f32 %v5161, %v5233
  %v5538 = vmax.f32 %v5164, %v5236
  %v5539 = vmax.f32 %v5169, %v5241
  %v5540 = vmax.f32 %v5172, %v5244
  %v5541 = vmax.f32 %v5177, %v5249
  %v5542 = vmax.f32 %v5180, %v5252
  %v5543 = vmax.f32 %v5255, %v5399
  %v5544 = vmax.f32 %v5256, %v5400
  %v5545 = vmax.f32 %v5257, %v5401
  %v5546 = vmax.f32 %v5258, %v5402
  %v5547 = vmax.f32 %v5259, %v5403
  %v5548 = vmax.f32 %v5260, %v5404
  %v5549 = vmax.f32 %v5261, %v5405
  %v5550 = vmax.f32 %v5262, %v5406
  %v5551 = vmax.f32 %v5263, %v5407
  %v5552 = vmax.f32 %v5264, %v5408
  %v5553 = vmax.f32 %v5265, %v5409
  %v5554 = vmax.f32 %v5266, %v5410
  %v5555 = vmax.f32 %v5267, %v5411
  %v5556 = vmax.f32 %v5268, %v5412
  %v5557 = vmax.f32 %v5269, %v5413
  %v5558 = vmax.f32 %v5270, %v5414
  %v5559 = vmax.f32 %v5271, %v5415
  %v5560 = vmax.f32 %v5272, %v5416
  %v5561 = vmax.f32 %v5273, %v5417
  %v5562 = vmax.f32 %v5274, %v5418
  %v5563 = vmax.f32 %v5275, %v5419
  %v5564 = vmax.f32 %v5276, %v5420
  %v5565 = vmax.f32 %v5277, %v5421
  %v5566 = vmax.f32 %v5278, %v5422
  %v5567 = vmax.f32 %v5279, %v5423
  %v5568 = vmax.f32 %v5280, %v5424
  %v5569 = vmax.f32 %v5281, %v5425
  %v5570 = vmax.f32 %v5282, %v5426
  %v5571 = vmax.f32 %v5283, %v5427
  %v5572 = vmax.f32 %v5284, %v5428
  %v5573 = vmax.f32 %v5285, %v5429
  %v5574 = vmax.f32 %v5286, %v5430
  %v5575 = vmax.f32 %v5287, %v5431
  %v5576 = vmax.f32 %v5288, %v5432
  %v5577 = vmax.f32 %v5289, %v5433
  %v5578 = vmax.f32 %v5290, %v5434
  %v5579 = vmax.f32 %v5291, %v5435
  %v5580 = vmax.f32 %v5292, %v5436
  %v5581 = vmax.f32 %v5293, %v5437
  %v5582 = vmax.f32 %v5294, %v5438
  %v5583 = vmax.f32 %v5295, %v5439
  %v5584 = vmax.f32 %v5296, %v5440
  %v5585 = vmax.f32 %v5297, %v5441
  %v5586 = vmax.f32 %v5298, %v5442
  %v5587 = vmax.f32 %v5299, %v5443
  %v5588 = vmax.f32 %v5300, %v5444
  %v5589 = vmax.f32 %v5301, %v5445
  %v5590 = vmax.f32 %v5302, %v5446
  %v5591 = vmax.f32 %v5303, %v5447
  %v5592 = vmax.f32 %v5304, %v5448
  %v5593 = vmax.f32 %v5305, %v5449
  %v5594 = vmax.f32 %v5306, %v5450
  %v5595 = vmax.f32 %v5307, %v5451
  %v5596 = vmax.f32 %v5308, %v5452
  %v5597 = vmax.f32 %v5309, %v5453
  %v5598 = vmax.f32 %v5310, %v5454
  %v5599 = vmax.f32 %v5311, %v5455
  %v5600 = vmax.f32 %v5312, %v5456
  %v5601 = vmax.f32 %v5313, %v5457
  %v5602 = vmax.f32 %v5314, %v5458
  %v5603 = vmax.f32 %v5315, %v5459
  %v5604 = vmax.f32 %v5316, %v5460
  %v5605 = vmax.f32 %v5317, %v5461
  %v5606 = vmax.f32 %v5318, %v5462
  %v5607 = vmax.f32 %v5319, %v5463
  %v5608 = vmax.f32 %v5320, %v5464
  %v5609 = vmax.f32 %v5321, %v5465
  %v5610 = vmax.f32 %v5322, %v5466
  %v5611 = vmax.f32 %v5323, %v5467
  %v5612 = vmax.f32 %v5324, %v5468
  %v5613 = vmax.f32 %v5325, %v5469
  %v5614 = vmax.f32 %v5326, %v5470
  %v5615 = vmax.f32 %v5327, %v5471
  %v5616 = vmax.f32 %v5328, %v5472
  %v5617 = vmax.f32 %v5329, %v5473
  %v5618 = vmax.f32 %v5330, %v5474
  %v5619 = vmax.f32 %v5331, %v5475
  %v5620 = vmax.f32 %v5332, %v5476
  %v5621 = vmax.f32 %v5333, %v5477
  %v5622 = vmax.f32 %v5334, %v5478
  %v5623 = vmax.f32 %v5335, %v5479
  %v5624 = vmax.f32 %v5336, %v5480
  %v5625 = vmax.f32 %v5337, %v5481
  %v5626 = vmax.f32 %v5338, %v5482
  %v5627 = vmax.f32 %v5339, %v5483
  %v5628 = vmax.f32 %v5340, %v5484
  %v5629 = vmax.f32 %v5341, %v5485
  %v5630 = vmax.f32 %v5342, %v5486
  %v5631 = vmax.f32 %v5343, %v5487
  %v5632 = vmax.f32 %v5344, %v5488
  %v5633 = vmax.f32 %v5345, %v5489
  %v5634 = vmax.f32 %v5346, %v5490
  %v5635 = vmax.f32 %v5347, %v5491
  %v5636 = vmax.f32 %v5348, %v5492
  %v5637 = vmax.f32 %v5349, %v5493
  %v5638 = vmax.f32 %v5350, %v5494
  %v5639 = vmax.f32 %v5351, %v5495
  %v5640 = vmax.f32 %v5352, %v5496
  %v5641 = vmax.f32 %v5353, %v5497
  %v5642 = vmax.f32 %v5354, %v5498
  %v5643 = vmax.f32 %v5355, %v5499
  %v5644 = vmax.f32 %v5356, %v5500
  %v5645 = vmax.f32 %v5357, %v5501
  %v5646 = vmax.f32 %v5358, %v5502
  %v5647 = vmax.f32 %v5359, %v5503
  %v5648 = vmax.f32 %v5360, %v5504
  %v5649 = vmax.f32 %v5361, %v5505
  %v5650 = vmax.f32 %v5362, %v5506
  %v5651 = vmax.f32 %v5363, %v5507
  %v5652 = vmax.f32 %v5364, %v5508
  %v5653 = vmax.f32 %v5365, %v5509
  %v5654 = vmax.f32 %v5366, %v5510
  %v5655 = vmax.f32 %v5367, %v5511
  %v5656 = vmax.f32 %v5368, %v5512
  %v5657 = vmax.f32 %v5369, %v5513
  %v5658 = vmax.f32 %v5370, %v5514
  %v5659 = vmax.f32 %v5371, %v5515
  %v5660 = vmax.f32 %v5372, %v5516
  %v5661 = vmax.f32 %v5373, %v5517
  %v5662 = vmax.f32 %v5374, %v5518
  %v5663 = vmax.f32 %v5375, %v5519
  %v5664 = vmax.f32 %v5376, %v5520
  %v5665 = vmax.f32 %v5377, %v5521
  %v5666 = vmax.f32 %v5378, %v5522
  %v5667 = vmax.f32 %v5379, %v5523
  %v5668 = vmax.f32 %v5380, %v5524
  %v5669 = vmax.f32 %v5381, %v5525
  %v5670 = vmax.f32 %v5382, %v5526
  %v5671 = vmax.f32 %v5383, %v5527
  %v5672 = vmax.f32 %v5384, %v5528
  %v5673 = vmax.f32 %v5385, %v5529
  %v5674 = vmax.f32 %v5386, %v5530
  %v5675 = vmax.f32 %v5387, %v5531
  %v5676 = vmax.f32 %v5388, %v5532
  %v5677 = vmax.f32 %v5389, %v5533
  %v5678 = vmax.f32 %v5390, %v5534
  %v5679 = vmax.f32 %v5391, %v5535
  %v5680 = vmax.f32 %v5392, %v5536
  %v5681 = vmax.f32 %v5393, %v5537
  %v5682 = vmax.f32 %v5394, %v5538
  %v5683 = vmax.f32 %v5395, %v5539
  %v5684 = vmax.f32 %v5396, %v5540
  %v5685 = vmax.f32 %v5397, %v5541
  %v5686 = vmax.f32 %v5398, %v5542
  %v5687 = vld [vmem:[%s2] sm:$0x1]
  %v5689 = vlaneseq
  %v5690 = vshrl.u32 %v5689, 7
  %v5691 = vsub.s32 0, %v5690
  %v5692 = vrot.slane %v5687, %v5691
  %v5694 = vadd.f32 %v5543, %v5692
  %v5695 = vadd.f32 %v5544, %v5692
  %v5696 = vadd.f32 %v5545, %v5692
  %v5697 = vadd.f32 %v5546, %v5692
  %v5698 = vadd.f32 %v5547, %v5692
  %v5699 = vadd.f32 %v5548, %v5692
  %v5700 = vadd.f32 %v5549, %v5692
  %v5701 = vadd.f32 %v5550, %v5692
  %v5702 = vadd.f32 %v5551, %v5692
  %v5703 = vadd.f32 %v5552, %v5692
  %v5704 = vadd.f32 %v5553, %v5692
  %v5705 = vadd.f32 %v5554, %v5692
  %v5706 = vadd.f32 %v5555, %v5692
  %v5707 = vadd.f32 %v5556, %v5692
  %v5708 = vadd.f32 %v5557, %v5692
  %v5709 = vadd.f32 %v5558, %v5692
  %v5710 = vadd.f32 %v5559, %v5692
  %v5711 = vadd.f32 %v5560, %v5692
  %v5712 = vadd.f32 %v5561, %v5692
  %v5713 = vadd.f32 %v5562, %v5692
  %v5714 = vadd.f32 %v5563, %v5692
  %v5715 = vadd.f32 %v5564, %v5692
  %v5716 = vadd.f32 %v5565, %v5692
  %v5717 = vadd.f32 %v5566, %v5692
  %v5718 = vadd.f32 %v5567, %v5692
  %v5719 = vadd.f32 %v5568, %v5692
  %v5720 = vadd.f32 %v5569, %v5692
  %v5721 = vadd.f32 %v5570, %v5692
  %v5722 = vadd.f32 %v5571, %v5692
  %v5723 = vadd.f32 %v5572, %v5692
  %v5724 = vadd.f32 %v5573, %v5692
  %v5725 = vadd.f32 %v5574, %v5692
  %v5726 = vadd.f32 %v5575, %v5692
  %v5727 = vadd.f32 %v5576, %v5692
  %v5728 = vadd.f32 %v5577, %v5692
  %v5729 = vadd.f32 %v5578, %v5692
  %v5730 = vadd.f32 %v5579, %v5692
  %v5731 = vadd.f32 %v5580, %v5692
  %v5732 = vadd.f32 %v5581, %v5692
  %v5733 = vadd.f32 %v5582, %v5692
  %v5734 = vadd.f32 %v5583, %v5692
  %v5735 = vadd.f32 %v5584, %v5692
  %v5736 = vadd.f32 %v5585, %v5692
  %v5737 = vadd.f32 %v5586, %v5692
  %v5738 = vadd.f32 %v5587, %v5692
  %v5739 = vadd.f32 %v5588, %v5692
  %v5740 = vadd.f32 %v5589, %v5692
  %v5741 = vadd.f32 %v5590, %v5692
  %v5742 = vadd.f32 %v5591, %v5692
  %v5743 = vadd.f32 %v5592, %v5692
  %v5744 = vadd.f32 %v5593, %v5692
  %v5745 = vadd.f32 %v5594, %v5692
  %v5746 = vadd.f32 %v5595, %v5692
  %v5747 = vadd.f32 %v5596, %v5692
  %v5748 = vadd.f32 %v5597, %v5692
  %v5749 = vadd.f32 %v5598, %v5692
  %v5750 = vadd.f32 %v5599, %v5692
  %v5751 = vadd.f32 %v5600, %v5692
  %v5752 = vadd.f32 %v5601, %v5692
  %v5753 = vadd.f32 %v5602, %v5692
  %v5754 = vadd.f32 %v5603, %v5692
  %v5755 = vadd.f32 %v5604, %v5692
  %v5756 = vadd.f32 %v5605, %v5692
  %v5757 = vadd.f32 %v5606, %v5692
  %v5758 = vadd.f32 %v5607, %v5692
  %v5759 = vadd.f32 %v5608, %v5692
  %v5760 = vadd.f32 %v5609, %v5692
  %v5761 = vadd.f32 %v5610, %v5692
  %v5762 = vadd.f32 %v5611, %v5692
  %v5763 = vadd.f32 %v5612, %v5692
  %v5764 = vadd.f32 %v5613, %v5692
  %v5765 = vadd.f32 %v5614, %v5692
  %v5766 = vadd.f32 %v5615, %v5692
  %v5767 = vadd.f32 %v5616, %v5692
  %v5768 = vadd.f32 %v5617, %v5692
  %v5769 = vadd.f32 %v5618, %v5692
  %v5770 = vadd.f32 %v5619, %v5692
  %v5771 = vadd.f32 %v5620, %v5692
  %v5772 = vadd.f32 %v5621, %v5692
  %v5773 = vadd.f32 %v5622, %v5692
  %v5774 = vadd.f32 %v5623, %v5692
  %v5775 = vadd.f32 %v5624, %v5692
  %v5776 = vadd.f32 %v5625, %v5692
  %v5777 = vadd.f32 %v5626, %v5692
  %v5778 = vadd.f32 %v5627, %v5692
  %v5779 = vadd.f32 %v5628, %v5692
  %v5780 = vadd.f32 %v5629, %v5692
  %v5781 = vadd.f32 %v5630, %v5692
  %v5782 = vadd.f32 %v5631, %v5692
  %v5783 = vadd.f32 %v5632, %v5692
  %v5784 = vadd.f32 %v5633, %v5692
  %v5785 = vadd.f32 %v5634, %v5692
  %v5786 = vadd.f32 %v5635, %v5692
  %v5787 = vadd.f32 %v5636, %v5692
  %v5788 = vadd.f32 %v5637, %v5692
  %v5789 = vadd.f32 %v5638, %v5692
  %v5790 = vadd.f32 %v5639, %v5692
  %v5791 = vadd.f32 %v5640, %v5692
  %v5792 = vadd.f32 %v5641, %v5692
  %v5793 = vadd.f32 %v5642, %v5692
  %v5794 = vadd.f32 %v5643, %v5692
  %v5795 = vadd.f32 %v5644, %v5692
  %v5796 = vadd.f32 %v5645, %v5692
  %v5797 = vadd.f32 %v5646, %v5692
  %v5798 = vadd.f32 %v5647, %v5692
  %v5799 = vadd.f32 %v5648, %v5692
  %v5800 = vadd.f32 %v5649, %v5692
  %v5801 = vadd.f32 %v5650, %v5692
  %v5802 = vadd.f32 %v5651, %v5692
  %v5803 = vadd.f32 %v5652, %v5692
  %v5804 = vadd.f32 %v5653, %v5692
  %v5805 = vadd.f32 %v5654, %v5692
  %v5806 = vadd.f32 %v5655, %v5692
  %v5807 = vadd.f32 %v5656, %v5692
  %v5808 = vadd.f32 %v5657, %v5692
  %v5809 = vadd.f32 %v5658, %v5692
  %v5810 = vadd.f32 %v5659, %v5692
  %v5811 = vadd.f32 %v5660, %v5692
  %v5812 = vadd.f32 %v5661, %v5692
  %v5813 = vadd.f32 %v5662, %v5692
  %v5814 = vadd.f32 %v5663, %v5692
  %v5815 = vadd.f32 %v5664, %v5692
  %v5816 = vadd.f32 %v5665, %v5692
  %v5817 = vadd.f32 %v5666, %v5692
  %v5818 = vadd.f32 %v5667, %v5692
  %v5819 = vadd.f32 %v5668, %v5692
  %v5820 = vadd.f32 %v5669, %v5692
  %v5821 = vadd.f32 %v5670, %v5692
  %v5822 = vadd.f32 %v5671, %v5692
  %v5823 = vadd.f32 %v5672, %v5692
  %v5824 = vadd.f32 %v5673, %v5692
  %v5825 = vadd.f32 %v5674, %v5692
  %v5826 = vadd.f32 %v5675, %v5692
  %v5827 = vadd.f32 %v5676, %v5692
  %v5828 = vadd.f32 %v5677, %v5692
  %v5829 = vadd.f32 %v5678, %v5692
  %v5830 = vadd.f32 %v5679, %v5692
  %v5831 = vadd.f32 %v5680, %v5692
  %v5832 = vadd.f32 %v5681, %v5692
  %v5833 = vadd.f32 %v5682, %v5692
  %v5834 = vadd.f32 %v5683, %v5692
  %v5835 = vadd.f32 %v5684, %v5692
  %v5836 = vadd.f32 %v5685, %v5692
  %v5837 = vadd.f32 %v5686, %v5692
  %v5838 = vmax.f32 %v5694, 0.0
  %v5839 = vmax.f32 %v5695, 0.0
  %v5840 = vmax.f32 %v5696, 0.0
  %v5841 = vmax.f32 %v5697, 0.0
  %v5842 = vmax.f32 %v5698, 0.0
  %v5843 = vmax.f32 %v5699, 0.0
  %v5844 = vmax.f32 %v5700, 0.0
  %v5845 = vmax.f32 %v5701, 0.0
  %v5846 = vmax.f32 %v5702, 0.0
  %v5847 = vmax.f32 %v5703, 0.0
  %v5848 = vmax.f32 %v5704, 0.0
  %v5849 = vmax.f32 %v5705, 0.0
  %v5850 = vmax.f32 %v5706, 0.0
  %v5851 = vmax.f32 %v5707, 0.0
  %v5852 = vmax.f32 %v5708, 0.0
  %v5853 = vmax.f32 %v5709, 0.0
  %v5854 = vmax.f32 %v5710, 0.0
  %v5855 = vmax.f32 %v5711, 0.0
  %v5856 = vmax.f32 %v5712, 0.0
  %v5857 = vmax.f32 %v5713, 0.0
  %v5858 = vmax.f32 %v5714, 0.0
  %v5859 = vmax.f32 %v5715, 0.0
  %v5860 = vmax.f32 %v5716, 0.0
  %v5861 = vmax.f32 %v5717, 0.0
  %v5862 = vmax.f32 %v5718, 0.0
  %v5863 = vmax.f32 %v5719, 0.0
  %v5864 = vmax.f32 %v5720, 0.0
  %v5865 = vmax.f32 %v5721, 0.0
  %v5866 = vmax.f32 %v5722, 0.0
  %v5867 = vmax.f32 %v5723, 0.0
  %v5868 = vmax.f32 %v5724, 0.0
  %v5869 = vmax.f32 %v5725, 0.0
  %v5870 = vmax.f32 %v5726, 0.0
  %v5871 = vmax.f32 %v5727, 0.0
  %v5872 = vmax.f32 %v5728, 0.0
  %v5873 = vmax.f32 %v5729, 0.0
  %v5874 = vmax.f32 %v5730, 0.0
  %v5875 = vmax.f32 %v5731, 0.0
  %v5876 = vmax.f32 %v5732, 0.0
  %v5877 = vmax.f32 %v5733, 0.0
  %v5878 = vmax.f32 %v5734, 0.0
  %v5879 = vmax.f32 %v5735, 0.0
  %v5880 = vmax.f32 %v5736, 0.0
  %v5881 = vmax.f32 %v5737, 0.0
  %v5882 = vmax.f32 %v5738, 0.0
  %v5883 = vmax.f32 %v5739, 0.0
  %v5884 = vmax.f32 %v5740, 0.0
  %v5885 = vmax.f32 %v5741, 0.0
  %v5886 = vmax.f32 %v5742, 0.0
  %v5887 = vmax.f32 %v5743, 0.0
  %v5888 = vmax.f32 %v5744, 0.0
  %v5889 = vmax.f32 %v5745, 0.0
  %v5890 = vmax.f32 %v5746, 0.0
  %v5891 = vmax.f32 %v5747, 0.0
  %v5892 = vmax.f32 %v5748, 0.0
  %v5893 = vmax.f32 %v5749, 0.0
  %v5894 = vmax.f32 %v5750, 0.0
  %v5895 = vmax.f32 %v5751, 0.0
  %v5896 = vmax.f32 %v5752, 0.0
  %v5897 = vmax.f32 %v5753, 0.0
  %v5898 = vmax.f32 %v5754, 0.0
  %v5899 = vmax.f32 %v5755, 0.0
  %v5900 = vmax.f32 %v5756, 0.0
  %v5901 = vmax.f32 %v5757, 0.0
  %v5902 = vmax.f32 %v5758, 0.0
  %v5903 = vmax.f32 %v5759, 0.0
  %v5904 = vmax.f32 %v5760, 0.0
  %v5905 = vmax.f32 %v5761, 0.0
  %v5906 = vmax.f32 %v5762, 0.0
  %v5907 = vmax.f32 %v5763, 0.0
  %v5908 = vmax.f32 %v5764, 0.0
  %v5909 = vmax.f32 %v5765, 0.0
  %v5910 = vmax.f32 %v5766, 0.0
  %v5911 = vmax.f32 %v5767, 0.0
  %v5912 = vmax.f32 %v5768, 0.0
  %v5913 = vmax.f32 %v5769, 0.0
  %v5914 = vmax.f32 %v5770, 0.0
  %v5915 = vmax.f32 %v5771, 0.0
  %v5916 = vmax.f32 %v5772, 0.0
  %v5917 = vmax.f32 %v5773, 0.0
  %v5918 = vmax.f32 %v5774, 0.0
  %v5919 = vmax.f32 %v5775, 0.0
  %v5920 = vmax.f32 %v5776, 0.0
  %v5921 = vmax.f32 %v5777, 0.0
  %v5922 = vmax.f32 %v5778, 0.0
  %v5923 = vmax.f32 %v5779, 0.0
  %v5924 = vmax.f32 %v5780, 0.0
  %v5925 = vmax.f32 %v5781, 0.0
  %v5926 = vmax.f32 %v5782, 0.0
  %v5927 = vmax.f32 %v5783, 0.0
  %v5928 = vmax.f32 %v5784, 0.0
  %v5929 = vmax.f32 %v5785, 0.0
  %v5930 = vmax.f32 %v5786, 0.0
  %v5931 = vmax.f32 %v5787, 0.0
  %v5932 = vmax.f32 %v5788, 0.0
  %v5933 = vmax.f32 %v5789, 0.0
  %v5934 = vmax.f32 %v5790, 0.0
  %v5935 = vmax.f32 %v5791, 0.0
  %v5936 = vmax.f32 %v5792, 0.0
  %v5937 = vmax.f32 %v5793, 0.0
  %v5938 = vmax.f32 %v5794, 0.0
  %v5939 = vmax.f32 %v5795, 0.0
  %v5940 = vmax.f32 %v5796, 0.0
  %v5941 = vmax.f32 %v5797, 0.0
  %v5942 = vmax.f32 %v5798, 0.0
  %v5943 = vmax.f32 %v5799, 0.0
  %v5944 = vmax.f32 %v5800, 0.0
  %v5945 = vmax.f32 %v5801, 0.0
  %v5946 = vmax.f32 %v5802, 0.0
  %v5947 = vmax.f32 %v5803, 0.0
  %v5948 = vmax.f32 %v5804, 0.0
  %v5949 = vmax.f32 %v5805, 0.0
  %v5950 = vmax.f32 %v5806, 0.0
  %v5951 = vmax.f32 %v5807, 0.0
  %v5952 = vmax.f32 %v5808, 0.0
  %v5953 = vmax.f32 %v5809, 0.0
  %v5954 = vmax.f32 %v5810, 0.0
  %v5955 = vmax.f32 %v5811, 0.0
  %v5956 = vmax.f32 %v5812, 0.0
  %v5957 = vmax.f32 %v5813, 0.0
  %v5958 = vmax.f32 %v5814, 0.0
  %v5959 = vmax.f32 %v5815, 0.0
  %v5960 = vmax.f32 %v5816, 0.0
  %v5961 = vmax.f32 %v5817, 0.0
  %v5962 = vmax.f32 %v5818, 0.0
  %v5963 = vmax.f32 %v5819, 0.0
  %v5964 = vmax.f32 %v5820, 0.0
  %v5965 = vmax.f32 %v5821, 0.0
  %v5966 = vmax.f32 %v5822, 0.0
  %v5967 = vmax.f32 %v5823, 0.0
  %v5968 = vmax.f32 %v5824, 0.0
  %v5969 = vmax.f32 %v5825, 0.0
  %v5970 = vmax.f32 %v5826, 0.0
  %v5971 = vmax.f32 %v5827, 0.0
  %v5972 = vmax.f32 %v5828, 0.0
  %v5973 = vmax.f32 %v5829, 0.0
  %v5974 = vmax.f32 %v5830, 0.0
  %v5975 = vmax.f32 %v5831, 0.0
  %v5976 = vmax.f32 %v5832, 0.0
  %v5977 = vmax.f32 %v5833, 0.0
  %v5978 = vmax.f32 %v5834, 0.0
  %v5979 = vmax.f32 %v5835, 0.0
  %v5980 = vmax.f32 %v5836, 0.0
  %v5981 = vmax.f32 %v5837, 0.0
  %v5982 = vpack.c.bf16 %v5839, %v5838
  %v5983 = vpack.c.bf16 %v5841, %v5840
  %v5984 = vpack.c.bf16 %v5843, %v5842
  %v5985 = vpack.c.bf16 %v5845, %v5844
  %v5986 = vpack.c.bf16 %v5847, %v5846
  %v5987 = vpack.c.bf16 %v5849, %v5848
  %v5988 = vpack.c.bf16 %v5851, %v5850
  %v5989 = vpack.c.bf16 %v5853, %v5852
  %v5990 = vpack.c.bf16 %v5855, %v5854
  %v5991 = vpack.c.bf16 %v5857, %v5856
  %v5992 = vpack.c.bf16 %v5859, %v5858
  %v5993 = vpack.c.bf16 %v5861, %v5860
  %v5994 = vpack.c.bf16 %v5863, %v5862
  %v5995 = vpack.c.bf16 %v5865, %v5864
  %v5996 = vpack.c.bf16 %v5867, %v5866
  %v5997 = vpack.c.bf16 %v5869, %v5868
  %v5998 = vpack.c.bf16 %v5871, %v5870
  %v5999 = vpack.c.bf16 %v5873, %v5872
  %v6000 = vpack.c.bf16 %v5875, %v5874
  %v6001 = vpack.c.bf16 %v5877, %v5876
  %v6002 = vpack.c.bf16 %v5879, %v5878
  %v6003 = vpack.c.bf16 %v5881, %v5880
  %v6004 = vpack.c.bf16 %v5883, %v5882
  %v6005 = vpack.c.bf16 %v5885, %v5884
  %v6006 = vpack.c.bf16 %v5887, %v5886
  %v6007 = vpack.c.bf16 %v5889, %v5888
  %v6008 = vpack.c.bf16 %v5891, %v5890
  %v6009 = vpack.c.bf16 %v5893, %v5892
  %v6010 = vpack.c.bf16 %v5895, %v5894
  %v6011 = vpack.c.bf16 %v5897, %v5896
  %v6012 = vpack.c.bf16 %v5899, %v5898
  %v6013 = vpack.c.bf16 %v5901, %v5900
  %v6014 = vpack.c.bf16 %v5903, %v5902
  %v6015 = vpack.c.bf16 %v5905, %v5904
  %v6016 = vpack.c.bf16 %v5907, %v5906
  %v6017 = vpack.c.bf16 %v5909, %v5908
  %v6018 = vpack.c.bf16 %v5911, %v5910
  %v6019 = vpack.c.bf16 %v5913, %v5912
  %v6020 = vpack.c.bf16 %v5915, %v5914
  %v6021 = vpack.c.bf16 %v5917, %v5916
  %v6022 = vpack.c.bf16 %v5919, %v5918
  %v6023 = vpack.c.bf16 %v5921, %v5920
  %v6024 = vpack.c.bf16 %v5923, %v5922
  %v6025 = vpack.c.bf16 %v5925, %v5924
  %v6026 = vpack.c.bf16 %v5927, %v5926
  %v6027 = vpack.c.bf16 %v5929, %v5928
  %v6028 = vpack.c.bf16 %v5931, %v5930
  %v6029 = vpack.c.bf16 %v5933, %v5932
  %v6030 = vpack.c.bf16 %v5935, %v5934
  %v6031 = vpack.c.bf16 %v5937, %v5936
  %v6032 = vpack.c.bf16 %v5939, %v5938
  %v6033 = vpack.c.bf16 %v5941, %v5940
  %v6034 = vpack.c.bf16 %v5943, %v5942
  %v6035 = vpack.c.bf16 %v5945, %v5944
  %v6036 = vpack.c.bf16 %v5947, %v5946
  %v6037 = vpack.c.bf16 %v5949, %v5948
  %v6038 = vpack.c.bf16 %v5951, %v5950
  %v6039 = vpack.c.bf16 %v5953, %v5952
  %v6040 = vpack.c.bf16 %v5955, %v5954
  %v6041 = vpack.c.bf16 %v5957, %v5956
  %v6042 = vpack.c.bf16 %v5959, %v5958
  %v6043 = vpack.c.bf16 %v5961, %v5960
  %v6044 = vpack.c.bf16 %v5963, %v5962
  %v6045 = vpack.c.bf16 %v5965, %v5964
  %v6046 = vpack.c.bf16 %v5967, %v5966
  %v6047 = vpack.c.bf16 %v5969, %v5968
  %v6048 = vpack.c.bf16 %v5971, %v5970
  %v6049 = vpack.c.bf16 %v5973, %v5972
  %v6050 = vpack.c.bf16 %v5975, %v5974
  %v6051 = vpack.c.bf16 %v5977, %v5976
  %v6052 = vpack.c.bf16 %v5979, %v5978
  %v6053 = vpack.c.bf16 %v5981, %v5980
  %v6126 = vunpack.c.l.b16 %v5982
  %v6127 = vunpack.c.h.b16 %v5982
  %v6128 = vunpack.c.l.b16 %v5983
  %v6129 = vunpack.c.h.b16 %v5983
  %v6130 = vunpack.c.l.b16 %v5984
  %v6131 = vunpack.c.h.b16 %v5984
  %v6132 = vunpack.c.l.b16 %v5985
  %v6133 = vunpack.c.h.b16 %v5985
  %v6134 = vunpack.c.l.b16 %v5986
  %v6135 = vunpack.c.h.b16 %v5986
  %v6136 = vunpack.c.l.b16 %v5987
  %v6137 = vunpack.c.h.b16 %v5987
  %v6138 = vunpack.c.l.b16 %v5988
  %v6139 = vunpack.c.h.b16 %v5988
  %v6140 = vunpack.c.l.b16 %v5989
  %v6141 = vunpack.c.h.b16 %v5989
  %v6142 = vunpack.c.l.b16 %v5990
  %v6143 = vunpack.c.h.b16 %v5990
  %v6144 = vunpack.c.l.b16 %v5991
  %v6145 = vunpack.c.h.b16 %v5991
  %v6146 = vunpack.c.l.b16 %v5992
  %v6147 = vunpack.c.h.b16 %v5992
  %v6148 = vunpack.c.l.b16 %v5993
  %v6149 = vunpack.c.h.b16 %v5993
  %v6150 = vunpack.c.l.b16 %v5994
  %v6151 = vunpack.c.h.b16 %v5994
  %v6152 = vunpack.c.l.b16 %v5995
  %v6153 = vunpack.c.h.b16 %v5995
  %v6154 = vunpack.c.l.b16 %v5996
  %v6155 = vunpack.c.h.b16 %v5996
  %v6156 = vunpack.c.l.b16 %v5997
  %v6157 = vunpack.c.h.b16 %v5997
  %v6158 = vunpack.c.l.b16 %v5998
  %v6159 = vunpack.c.h.b16 %v5998
  %v6160 = vunpack.c.l.b16 %v5999
  %v6161 = vunpack.c.h.b16 %v5999
  %v6162 = vunpack.c.l.b16 %v6000
  %v6163 = vunpack.c.h.b16 %v6000
  %v6164 = vunpack.c.l.b16 %v6001
  %v6165 = vunpack.c.h.b16 %v6001
  %v6166 = vunpack.c.l.b16 %v6002
  %v6167 = vunpack.c.h.b16 %v6002
  %v6168 = vunpack.c.l.b16 %v6003
  %v6169 = vunpack.c.h.b16 %v6003
  %v6170 = vunpack.c.l.b16 %v6004
  %v6171 = vunpack.c.h.b16 %v6004
  %v6172 = vunpack.c.l.b16 %v6005
  %v6173 = vunpack.c.h.b16 %v6005
  %v6174 = vunpack.c.l.b16 %v6006
  %v6175 = vunpack.c.h.b16 %v6006
  %v6176 = vunpack.c.l.b16 %v6007
  %v6177 = vunpack.c.h.b16 %v6007
  %v6178 = vunpack.c.l.b16 %v6008
  %v6179 = vunpack.c.h.b16 %v6008
  %v6180 = vunpack.c.l.b16 %v6009
  %v6181 = vunpack.c.h.b16 %v6009
  %v6182 = vunpack.c.l.b16 %v6010
  %v6183 = vunpack.c.h.b16 %v6010
  %v6184 = vunpack.c.l.b16 %v6011
  %v6185 = vunpack.c.h.b16 %v6011
  %v6186 = vunpack.c.l.b16 %v6012
  %v6187 = vunpack.c.h.b16 %v6012
  %v6188 = vunpack.c.l.b16 %v6013
  %v6189 = vunpack.c.h.b16 %v6013
  %v6190 = vunpack.c.l.b16 %v6014
  %v6191 = vunpack.c.h.b16 %v6014
  %v6192 = vunpack.c.l.b16 %v6015
  %v6193 = vunpack.c.h.b16 %v6015
  %v6194 = vunpack.c.l.b16 %v6016
  %v6195 = vunpack.c.h.b16 %v6016
  %v6196 = vunpack.c.l.b16 %v6017
  %v6197 = vunpack.c.h.b16 %v6017
  %v6198 = vunpack.c.l.b16 %v6018
  %v6199 = vunpack.c.h.b16 %v6018
  %v6200 = vunpack.c.l.b16 %v6019
  %v6201 = vunpack.c.h.b16 %v6019
  %v6202 = vunpack.c.l.b16 %v6020
  %v6203 = vunpack.c.h.b16 %v6020
  %v6204 = vunpack.c.l.b16 %v6021
  %v6205 = vunpack.c.h.b16 %v6021
  %v6206 = vunpack.c.l.b16 %v6022
  %v6207 = vunpack.c.h.b16 %v6022
  %v6208 = vunpack.c.l.b16 %v6023
  %v6209 = vunpack.c.h.b16 %v6023
  %v6210 = vunpack.c.l.b16 %v6024
  %v6211 = vunpack.c.h.b16 %v6024
  %v6212 = vunpack.c.l.b16 %v6025
  %v6213 = vunpack.c.h.b16 %v6025
  %v6214 = vunpack.c.l.b16 %v6026
  %v6215 = vunpack.c.h.b16 %v6026
  %v6216 = vunpack.c.l.b16 %v6027
  %v6217 = vunpack.c.h.b16 %v6027
  %v6218 = vunpack.c.l.b16 %v6028
  %v6219 = vunpack.c.h.b16 %v6028
  %v6220 = vunpack.c.l.b16 %v6029
  %v6221 = vunpack.c.h.b16 %v6029
  %v6222 = vunpack.c.l.b16 %v6030
  %v6223 = vunpack.c.h.b16 %v6030
  %v6224 = vunpack.c.l.b16 %v6031
  %v6225 = vunpack.c.h.b16 %v6031
  %v6226 = vunpack.c.l.b16 %v6032
  %v6227 = vunpack.c.h.b16 %v6032
  %v6228 = vunpack.c.l.b16 %v6033
  %v6229 = vunpack.c.h.b16 %v6033
  %v6230 = vunpack.c.l.b16 %v6034
  %v6231 = vunpack.c.h.b16 %v6034
  %v6232 = vunpack.c.l.b16 %v6035
  %v6233 = vunpack.c.h.b16 %v6035
  %v6234 = vunpack.c.l.b16 %v6036
  %v6235 = vunpack.c.h.b16 %v6036
  %v6236 = vunpack.c.l.b16 %v6037
  %v6237 = vunpack.c.h.b16 %v6037
  %v6238 = vunpack.c.l.b16 %v6038
  %v6239 = vunpack.c.h.b16 %v6038
  %v6240 = vunpack.c.l.b16 %v6039
  %v6241 = vunpack.c.h.b16 %v6039
  %v6242 = vunpack.c.l.b16 %v6040
  %v6243 = vunpack.c.h.b16 %v6040
  %v6244 = vunpack.c.l.b16 %v6041
  %v6245 = vunpack.c.h.b16 %v6041
  %v6246 = vunpack.c.l.b16 %v6042
  %v6247 = vunpack.c.h.b16 %v6042
  %v6248 = vunpack.c.l.b16 %v6043
  %v6249 = vunpack.c.h.b16 %v6043
  %v6250 = vunpack.c.l.b16 %v6044
  %v6251 = vunpack.c.h.b16 %v6044
  %v6252 = vunpack.c.l.b16 %v6045
  %v6253 = vunpack.c.h.b16 %v6045
  %v6254 = vunpack.c.l.b16 %v6046
  %v6255 = vunpack.c.h.b16 %v6046
  %v6256 = vunpack.c.l.b16 %v6047
  %v6257 = vunpack.c.h.b16 %v6047
  %v6258 = vunpack.c.l.b16 %v6048
  %v6259 = vunpack.c.h.b16 %v6048
  %v6260 = vunpack.c.l.b16 %v6049
  %v6261 = vunpack.c.h.b16 %v6049
  %v6262 = vunpack.c.l.b16 %v6050
  %v6263 = vunpack.c.h.b16 %v6050
  %v6264 = vunpack.c.l.b16 %v6051
  %v6265 = vunpack.c.h.b16 %v6051
  %v6266 = vunpack.c.l.b16 %v6052
  %v6267 = vunpack.c.h.b16 %v6052
  %v6268 = vunpack.c.l.b16 %v6053
  %v6269 = vunpack.c.h.b16 %v6053
  %v6270 = vpack.c.b16 %v6126, %v6126
  %v6271 = vpack.c.b16 %v6127, %v6127
  %v6272 = vpack.c.b16 %v6128, %v6128
  %v6273 = vpack.c.b16 %v6129, %v6129
  %v6274 = vpack.c.b16 %v6130, %v6130
  %v6275 = vpack.c.b16 %v6131, %v6131
  %v6276 = vpack.c.b16 %v6132, %v6132
  %v6277 = vpack.c.b16 %v6133, %v6133
  %v6278 = vpack.c.b16 %v6134, %v6134
  %v6279 = vpack.c.b16 %v6135, %v6135
  %v6280 = vpack.c.b16 %v6136, %v6136
  %v6281 = vpack.c.b16 %v6137, %v6137
  %v6282 = vpack.c.b16 %v6138, %v6138
  %v6283 = vpack.c.b16 %v6139, %v6139
  %v6284 = vpack.c.b16 %v6140, %v6140
  %v6285 = vpack.c.b16 %v6141, %v6141
  %v6286 = vpack.c.b16 %v6142, %v6142
  %v6287 = vpack.c.b16 %v6143, %v6143
  %v6288 = vpack.c.b16 %v6144, %v6144
  %v6289 = vpack.c.b16 %v6145, %v6145
  %v6290 = vpack.c.b16 %v6146, %v6146
  %v6291 = vpack.c.b16 %v6147, %v6147
  %v6292 = vpack.c.b16 %v6148, %v6148
  %v6293 = vpack.c.b16 %v6149, %v6149
  %v6294 = vpack.c.b16 %v6150, %v6150
  %v6295 = vpack.c.b16 %v6151, %v6151
  %v6296 = vpack.c.b16 %v6152, %v6152
  %v6297 = vpack.c.b16 %v6153, %v6153
  %v6298 = vpack.c.b16 %v6154, %v6154
  %v6299 = vpack.c.b16 %v6155, %v6155
  %v6300 = vpack.c.b16 %v6156, %v6156
  %v6301 = vpack.c.b16 %v6157, %v6157
  %v6302 = vpack.c.b16 %v6158, %v6158
  %v6303 = vpack.c.b16 %v6159, %v6159
  %v6304 = vpack.c.b16 %v6160, %v6160
  %v6305 = vpack.c.b16 %v6161, %v6161
  %v6306 = vpack.c.b16 %v6162, %v6162
  %v6307 = vpack.c.b16 %v6163, %v6163
  %v6308 = vpack.c.b16 %v6164, %v6164
  %v6309 = vpack.c.b16 %v6165, %v6165
  %v6310 = vpack.c.b16 %v6166, %v6166
  %v6311 = vpack.c.b16 %v6167, %v6167
  %v6312 = vpack.c.b16 %v6168, %v6168
  %v6313 = vpack.c.b16 %v6169, %v6169
  %v6314 = vpack.c.b16 %v6170, %v6170
  %v6315 = vpack.c.b16 %v6171, %v6171
  %v6316 = vpack.c.b16 %v6172, %v6172
  %v6317 = vpack.c.b16 %v6173, %v6173
  %v6318 = vpack.c.b16 %v6174, %v6174
  %v6319 = vpack.c.b16 %v6175, %v6175
  %v6320 = vpack.c.b16 %v6176, %v6176
  %v6321 = vpack.c.b16 %v6177, %v6177
  %v6322 = vpack.c.b16 %v6178, %v6178
  %v6323 = vpack.c.b16 %v6179, %v6179
  %v6324 = vpack.c.b16 %v6180, %v6180
  %v6325 = vpack.c.b16 %v6181, %v6181
  %v6326 = vpack.c.b16 %v6182, %v6182
  %v6327 = vpack.c.b16 %v6183, %v6183
  %v6328 = vpack.c.b16 %v6184, %v6184
  %v6329 = vpack.c.b16 %v6185, %v6185
  %v6330 = vpack.c.b16 %v6186, %v6186
  %v6331 = vpack.c.b16 %v6187, %v6187
  %v6332 = vpack.c.b16 %v6188, %v6188
  %v6333 = vpack.c.b16 %v6189, %v6189
  %v6334 = vpack.c.b16 %v6190, %v6190
  %v6335 = vpack.c.b16 %v6191, %v6191
  %v6336 = vpack.c.b16 %v6192, %v6192
  %v6337 = vpack.c.b16 %v6193, %v6193
  %v6338 = vpack.c.b16 %v6194, %v6194
  %v6339 = vpack.c.b16 %v6195, %v6195
  %v6340 = vpack.c.b16 %v6196, %v6196
  %v6341 = vpack.c.b16 %v6197, %v6197
  %v6342 = vpack.c.b16 %v6198, %v6198
  %v6343 = vpack.c.b16 %v6199, %v6199
  %v6344 = vpack.c.b16 %v6200, %v6200
  %v6345 = vpack.c.b16 %v6201, %v6201
  %v6346 = vpack.c.b16 %v6202, %v6202
  %v6347 = vpack.c.b16 %v6203, %v6203
  %v6348 = vpack.c.b16 %v6204, %v6204
  %v6349 = vpack.c.b16 %v6205, %v6205
  %v6350 = vpack.c.b16 %v6206, %v6206
  %v6351 = vpack.c.b16 %v6207, %v6207
  %v6352 = vpack.c.b16 %v6208, %v6208
  %v6353 = vpack.c.b16 %v6209, %v6209
  %v6354 = vpack.c.b16 %v6210, %v6210
  %v6355 = vpack.c.b16 %v6211, %v6211
  %v6356 = vpack.c.b16 %v6212, %v6212
  %v6357 = vpack.c.b16 %v6213, %v6213
  %v6358 = vpack.c.b16 %v6214, %v6214
  %v6359 = vpack.c.b16 %v6215, %v6215
  %v6360 = vpack.c.b16 %v6216, %v6216
  %v6361 = vpack.c.b16 %v6217, %v6217
  %v6362 = vpack.c.b16 %v6218, %v6218
  %v6363 = vpack.c.b16 %v6219, %v6219
  %v6364 = vpack.c.b16 %v6220, %v6220
  %v6365 = vpack.c.b16 %v6221, %v6221
  %v6366 = vpack.c.b16 %v6222, %v6222
  %v6367 = vpack.c.b16 %v6223, %v6223
  %v6368 = vpack.c.b16 %v6224, %v6224
  %v6369 = vpack.c.b16 %v6225, %v6225
  %v6370 = vpack.c.b16 %v6226, %v6226
  %v6371 = vpack.c.b16 %v6227, %v6227
  %v6372 = vpack.c.b16 %v6228, %v6228
  %v6373 = vpack.c.b16 %v6229, %v6229
  %v6374 = vpack.c.b16 %v6230, %v6230
  %v6375 = vpack.c.b16 %v6231, %v6231
  %v6376 = vpack.c.b16 %v6232, %v6232
  %v6377 = vpack.c.b16 %v6233, %v6233
  %v6378 = vpack.c.b16 %v6234, %v6234
  %v6379 = vpack.c.b16 %v6235, %v6235
  %v6380 = vpack.c.b16 %v6236, %v6236
  %v6381 = vpack.c.b16 %v6237, %v6237
  %v6382 = vpack.c.b16 %v6238, %v6238
  %v6383 = vpack.c.b16 %v6239, %v6239
  %v6384 = vpack.c.b16 %v6240, %v6240
  %v6385 = vpack.c.b16 %v6241, %v6241
  %v6386 = vpack.c.b16 %v6242, %v6242
  %v6387 = vpack.c.b16 %v6243, %v6243
  %v6388 = vpack.c.b16 %v6244, %v6244
  %v6389 = vpack.c.b16 %v6245, %v6245
  %v6390 = vpack.c.b16 %v6246, %v6246
  %v6391 = vpack.c.b16 %v6247, %v6247
  %v6392 = vpack.c.b16 %v6248, %v6248
  %v6393 = vpack.c.b16 %v6249, %v6249
  %v6394 = vpack.c.b16 %v6250, %v6250
  %v6395 = vpack.c.b16 %v6251, %v6251
  %v6396 = vpack.c.b16 %v6252, %v6252
  %v6397 = vpack.c.b16 %v6253, %v6253
  %v6398 = vpack.c.b16 %v6254, %v6254
  %v6399 = vpack.c.b16 %v6255, %v6255
  %v6400 = vpack.c.b16 %v6256, %v6256
  %v6401 = vpack.c.b16 %v6257, %v6257
  %v6402 = vpack.c.b16 %v6258, %v6258
  %v6403 = vpack.c.b16 %v6259, %v6259
  %v6404 = vpack.c.b16 %v6260, %v6260
  %v6405 = vpack.c.b16 %v6261, %v6261
  %v6406 = vpack.c.b16 %v6262, %v6262
  %v6407 = vpack.c.b16 %v6263, %v6263
  %v6408 = vpack.c.b16 %v6264, %v6264
  %v6409 = vpack.c.b16 %v6265, %v6265
  %v6410 = vpack.c.b16 %v6266, %v6266
  %v6411 = vpack.c.b16 %v6267, %v6267
  %v6412 = vpack.c.b16 %v6268, %v6268
  %v6413 = vpack.c.b16 %v6269, %v6269
  %vm6558 = vcmask 76800
  %6559 = vst.msk [vmem:[%s3] sm:$0xf] %vm6558, %v6270
  %6560 = vst.msk [vmem:[%s3 + $0x4] sm:$0xf] %vm6558, %v6271
  %6561 = vst.msk [vmem:[%s3 + $0x8] sm:$0xf] %vm6558, %v6272
  %6562 = vst.msk [vmem:[%s3 + $0xc] sm:$0xf] %vm6558, %v6273
  %6563 = vst.msk [vmem:[%s3 + $0x10] sm:$0xf] %vm6558, %v6274
  %6564 = vst.msk [vmem:[%s3 + $0x14] sm:$0xf] %vm6558, %v6275
  %6565 = vst.msk [vmem:[%s3 + $0x18] sm:$0xf] %vm6558, %v6276
  %6566 = vst.msk [vmem:[%s3 + $0x1c] sm:$0xf] %vm6558, %v6277
  %6567 = vst.msk [vmem:[%s3 + $0x20] sm:$0xf] %vm6558, %v6278
  %6568 = vst.msk [vmem:[%s3 + $0x24] sm:$0xf] %vm6558, %v6279
  %6569 = vst.msk [vmem:[%s3 + $0x28] sm:$0xf] %vm6558, %v6280
  %6570 = vst.msk [vmem:[%s3 + $0x2c] sm:$0xf] %vm6558, %v6281
  %6571 = vst.msk [vmem:[%s3 + $0x30] sm:$0xf] %vm6558, %v6282
  %6572 = vst.msk [vmem:[%s3 + $0x34] sm:$0xf] %vm6558, %v6283
  %6573 = vst.msk [vmem:[%s3 + $0x38] sm:$0xf] %vm6558, %v6284
  %6574 = vst.msk [vmem:[%s3 + $0x3c] sm:$0xf] %vm6558, %v6285
  %6575 = vst.msk [vmem:[%s3 + $0x40] sm:$0xf] %vm6558, %v6286
  %6576 = vst.msk [vmem:[%s3 + $0x44] sm:$0xf] %vm6558, %v6287
  %6577 = vst.msk [vmem:[%s3 + $0x48] sm:$0xf] %vm6558, %v6288
  %6578 = vst.msk [vmem:[%s3 + $0x4c] sm:$0xf] %vm6558, %v6289
  %6579 = vst.msk [vmem:[%s3 + $0x50] sm:$0xf] %vm6558, %v6290
  %6580 = vst.msk [vmem:[%s3 + $0x54] sm:$0xf] %vm6558, %v6291
  %6581 = vst.msk [vmem:[%s3 + $0x58] sm:$0xf] %vm6558, %v6292
  %6582 = vst.msk [vmem:[%s3 + $0x5c] sm:$0xf] %vm6558, %v6293
  %6583 = vst.msk [vmem:[%s3 + $0x60] sm:$0xf] %vm6558, %v6294
  %6584 = vst.msk [vmem:[%s3 + $0x64] sm:$0xf] %vm6558, %v6295
  %6585 = vst.msk [vmem:[%s3 + $0x68] sm:$0xf] %vm6558, %v6296
  %6586 = vst.msk [vmem:[%s3 + $0x6c] sm:$0xf] %vm6558, %v6297
  %6587 = vst.msk [vmem:[%s3 + $0x70] sm:$0xf] %vm6558, %v6298
  %6588 = vst.msk [vmem:[%s3 + $0x74] sm:$0xf] %vm6558, %v6299
  %6589 = vst.msk [vmem:[%s3 + $0x78] sm:$0xf] %vm6558, %v6300
  %6590 = vst.msk [vmem:[%s3 + $0x7c] sm:$0xf] %vm6558, %v6301
  %6591 = vst.msk [vmem:[%s3 + $0x80] sm:$0xf] %vm6558, %v6302
  %6592 = vst.msk [vmem:[%s3 + $0x84] sm:$0xf] %vm6558, %v6303
  %6593 = vst.msk [vmem:[%s3 + $0x88] sm:$0xf] %vm6558, %v6304
  %6594 = vst.msk [vmem:[%s3 + $0x8c] sm:$0xf] %vm6558, %v6305
  %6595 = vst.msk [vmem:[%s3 + $0x90] sm:$0xf] %vm6558, %v6306
  %6596 = vst.msk [vmem:[%s3 + $0x94] sm:$0xf] %vm6558, %v6307
  %6597 = vst.msk [vmem:[%s3 + $0x98] sm:$0xf] %vm6558, %v6308
  %6598 = vst.msk [vmem:[%s3 + $0x9c] sm:$0xf] %vm6558, %v6309
  %6599 = vst.msk [vmem:[%s3 + $0xa0] sm:$0xf] %vm6558, %v6310
  %6600 = vst.msk [vmem:[%s3 + $0xa4] sm:$0xf] %vm6558, %v6311
  %6601 = vst.msk [vmem:[%s3 + $0xa8] sm:$0xf] %vm6558, %v6312
  %6602 = vst.msk [vmem:[%s3 + $0xac] sm:$0xf] %vm6558, %v6313
  %6603 = vst.msk [vmem:[%s3 + $0xb0] sm:$0xf] %vm6558, %v6314
  %6604 = vst.msk [vmem:[%s3 + $0xb4] sm:$0xf] %vm6558, %v6315
  %6605 = vst.msk [vmem:[%s3 + $0xb8] sm:$0xf] %vm6558, %v6316
  %6606 = vst.msk [vmem:[%s3 + $0xbc] sm:$0xf] %vm6558, %v6317
  %6607 = vst.msk [vmem:[%s3 + $0xc0] sm:$0xf] %vm6558, %v6318
  %6608 = vst.msk [vmem:[%s3 + $0xc4] sm:$0xf] %vm6558, %v6319
  %6609 = vst.msk [vmem:[%s3 + $0xc8] sm:$0xf] %vm6558, %v6320
  %6610 = vst.msk [vmem:[%s3 + $0xcc] sm:$0xf] %vm6558, %v6321
  %6611 = vst.msk [vmem:[%s3 + $0xd0] sm:$0xf] %vm6558, %v6322
  %6612 = vst.msk [vmem:[%s3 + $0xd4] sm:$0xf] %vm6558, %v6323
  %6613 = vst.msk [vmem:[%s3 + $0xd8] sm:$0xf] %vm6558, %v6324
  %6614 = vst.msk [vmem:[%s3 + $0xdc] sm:$0xf] %vm6558, %v6325
  %6615 = vst.msk [vmem:[%s3 + $0xe0] sm:$0xf] %vm6558, %v6326
  %6616 = vst.msk [vmem:[%s3 + $0xe4] sm:$0xf] %vm6558, %v6327
  %6617 = vst.msk [vmem:[%s3 + $0xe8] sm:$0xf] %vm6558, %v6328
  %6618 = vst.msk [vmem:[%s3 + $0xec] sm:$0xf] %vm6558, %v6329
  %6619 = vst.msk [vmem:[%s3 + $0xf0] sm:$0xf] %vm6558, %v6330
  %6620 = vst.msk [vmem:[%s3 + $0xf4] sm:$0xf] %vm6558, %v6331
  %6621 = vst.msk [vmem:[%s3 + $0xf8] sm:$0xf] %vm6558, %v6332
  %6622 = vst.msk [vmem:[%s3 + $0xfc] sm:$0xf] %vm6558, %v6333
  %6623 = vst.msk [vmem:[%s3 + $0x100] sm:$0xf] %vm6558, %v6334
  %6624 = vst.msk [vmem:[%s3 + $0x104] sm:$0xf] %vm6558, %v6335
  %6625 = vst.msk [vmem:[%s3 + $0x108] sm:$0xf] %vm6558, %v6336
  %6626 = vst.msk [vmem:[%s3 + $0x10c] sm:$0xf] %vm6558, %v6337
  %6627 = vst.msk [vmem:[%s3 + $0x110] sm:$0xf] %vm6558, %v6338
  %6628 = vst.msk [vmem:[%s3 + $0x114] sm:$0xf] %vm6558, %v6339
  %6629 = vst.msk [vmem:[%s3 + $0x118] sm:$0xf] %vm6558, %v6340
  %6630 = vst.msk [vmem:[%s3 + $0x11c] sm:$0xf] %vm6558, %v6341
  %6631 = vst.msk [vmem:[%s3 + $0x120] sm:$0xf] %vm6558, %v6342
  %6632 = vst.msk [vmem:[%s3 + $0x124] sm:$0xf] %vm6558, %v6343
  %6633 = vst.msk [vmem:[%s3 + $0x128] sm:$0xf] %vm6558, %v6344
  %6634 = vst.msk [vmem:[%s3 + $0x12c] sm:$0xf] %vm6558, %v6345
  %6635 = vst.msk [vmem:[%s3 + $0x130] sm:$0xf] %vm6558, %v6346
  %6636 = vst.msk [vmem:[%s3 + $0x134] sm:$0xf] %vm6558, %v6347
  %6637 = vst.msk [vmem:[%s3 + $0x138] sm:$0xf] %vm6558, %v6348
  %6638 = vst.msk [vmem:[%s3 + $0x13c] sm:$0xf] %vm6558, %v6349
  %6639 = vst.msk [vmem:[%s3 + $0x140] sm:$0xf] %vm6558, %v6350
  %6640 = vst.msk [vmem:[%s3 + $0x144] sm:$0xf] %vm6558, %v6351
  %6641 = vst.msk [vmem:[%s3 + $0x148] sm:$0xf] %vm6558, %v6352
  %6642 = vst.msk [vmem:[%s3 + $0x14c] sm:$0xf] %vm6558, %v6353
  %6643 = vst.msk [vmem:[%s3 + $0x150] sm:$0xf] %vm6558, %v6354
  %6644 = vst.msk [vmem:[%s3 + $0x154] sm:$0xf] %vm6558, %v6355
  %6645 = vst.msk [vmem:[%s3 + $0x158] sm:$0xf] %vm6558, %v6356
  %6646 = vst.msk [vmem:[%s3 + $0x15c] sm:$0xf] %vm6558, %v6357
  %6647 = vst.msk [vmem:[%s3 + $0x160] sm:$0xf] %vm6558, %v6358
  %6648 = vst.msk [vmem:[%s3 + $0x164] sm:$0xf] %vm6558, %v6359
  %6649 = vst.msk [vmem:[%s3 + $0x168] sm:$0xf] %vm6558, %v6360
  %6650 = vst.msk [vmem:[%s3 + $0x16c] sm:$0xf] %vm6558, %v6361
  %6651 = vst.msk [vmem:[%s3 + $0x170] sm:$0xf] %vm6558, %v6362
  %6652 = vst.msk [vmem:[%s3 + $0x174] sm:$0xf] %vm6558, %v6363
  %6653 = vst.msk [vmem:[%s3 + $0x178] sm:$0xf] %vm6558, %v6364
  %6654 = vst.msk [vmem:[%s3 + $0x17c] sm:$0xf] %vm6558, %v6365
  %6655 = vst.msk [vmem:[%s3 + $0x180] sm:$0xf] %vm6558, %v6366
  %6656 = vst.msk [vmem:[%s3 + $0x184] sm:$0xf] %vm6558, %v6367
  %6657 = vst.msk [vmem:[%s3 + $0x188] sm:$0xf] %vm6558, %v6368
  %6658 = vst.msk [vmem:[%s3 + $0x18c] sm:$0xf] %vm6558, %v6369
  %6659 = vst.msk [vmem:[%s3 + $0x190] sm:$0xf] %vm6558, %v6370
  %6660 = vst.msk [vmem:[%s3 + $0x194] sm:$0xf] %vm6558, %v6371
  %6661 = vst.msk [vmem:[%s3 + $0x198] sm:$0xf] %vm6558, %v6372
  %6662 = vst.msk [vmem:[%s3 + $0x19c] sm:$0xf] %vm6558, %v6373
  %6663 = vst.msk [vmem:[%s3 + $0x1a0] sm:$0xf] %vm6558, %v6374
  %6664 = vst.msk [vmem:[%s3 + $0x1a4] sm:$0xf] %vm6558, %v6375
  %6665 = vst.msk [vmem:[%s3 + $0x1a8] sm:$0xf] %vm6558, %v6376
  %6666 = vst.msk [vmem:[%s3 + $0x1ac] sm:$0xf] %vm6558, %v6377
  %6667 = vst.msk [vmem:[%s3 + $0x1b0] sm:$0xf] %vm6558, %v6378
  %6668 = vst.msk [vmem:[%s3 + $0x1b4] sm:$0xf] %vm6558, %v6379
  %6669 = vst.msk [vmem:[%s3 + $0x1b8] sm:$0xf] %vm6558, %v6380
  %6670 = vst.msk [vmem:[%s3 + $0x1bc] sm:$0xf] %vm6558, %v6381
  %6671 = vst.msk [vmem:[%s3 + $0x1c0] sm:$0xf] %vm6558, %v6382
  %6672 = vst.msk [vmem:[%s3 + $0x1c4] sm:$0xf] %vm6558, %v6383
  %6673 = vst.msk [vmem:[%s3 + $0x1c8] sm:$0xf] %vm6558, %v6384
  %6674 = vst.msk [vmem:[%s3 + $0x1cc] sm:$0xf] %vm6558, %v6385
  %6675 = vst.msk [vmem:[%s3 + $0x1d0] sm:$0xf] %vm6558, %v6386
  %6676 = vst.msk [vmem:[%s3 + $0x1d4] sm:$0xf] %vm6558, %v6387
  %6677 = vst.msk [vmem:[%s3 + $0x1d8] sm:$0xf] %vm6558, %v6388
  %6678 = vst.msk [vmem:[%s3 + $0x1dc] sm:$0xf] %vm6558, %v6389
  %6679 = vst.msk [vmem:[%s3 + $0x1e0] sm:$0xf] %vm6558, %v6390
  %6680 = vst.msk [vmem:[%s3 + $0x1e4] sm:$0xf] %vm6558, %v6391
  %6681 = vst.msk [vmem:[%s3 + $0x1e8] sm:$0xf] %vm6558, %v6392
  %6682 = vst.msk [vmem:[%s3 + $0x1ec] sm:$0xf] %vm6558, %v6393
  %6683 = vst.msk [vmem:[%s3 + $0x1f0] sm:$0xf] %vm6558, %v6394
  %6684 = vst.msk [vmem:[%s3 + $0x1f4] sm:$0xf] %vm6558, %v6395
  %6685 = vst.msk [vmem:[%s3 + $0x1f8] sm:$0xf] %vm6558, %v6396
  %6686 = vst.msk [vmem:[%s3 + $0x1fc] sm:$0xf] %vm6558, %v6397
  %6687 = vst.msk [vmem:[%s3 + $0x200] sm:$0xf] %vm6558, %v6398
  %6688 = vst.msk [vmem:[%s3 + $0x204] sm:$0xf] %vm6558, %v6399
  %6689 = vst.msk [vmem:[%s3 + $0x208] sm:$0xf] %vm6558, %v6400
  %6690 = vst.msk [vmem:[%s3 + $0x20c] sm:$0xf] %vm6558, %v6401
  %6691 = vst.msk [vmem:[%s3 + $0x210] sm:$0xf] %vm6558, %v6402
  %6692 = vst.msk [vmem:[%s3 + $0x214] sm:$0xf] %vm6558, %v6403
  %6693 = vst.msk [vmem:[%s3 + $0x218] sm:$0xf] %vm6558, %v6404
  %6694 = vst.msk [vmem:[%s3 + $0x21c] sm:$0xf] %vm6558, %v6405
  %6695 = vst.msk [vmem:[%s3 + $0x220] sm:$0xf] %vm6558, %v6406
  %6696 = vst.msk [vmem:[%s3 + $0x224] sm:$0xf] %vm6558, %v6407
  %6697 = vst.msk [vmem:[%s3 + $0x228] sm:$0xf] %vm6558, %v6408
  %6698 = vst.msk [vmem:[%s3 + $0x22c] sm:$0xf] %vm6558, %v6409
  %6699 = vst.msk [vmem:[%s3 + $0x230] sm:$0xf] %vm6558, %v6410
  %6700 = vst.msk [vmem:[%s3 + $0x234] sm:$0xf] %vm6558, %v6411
  %6701 = vst.msk [vmem:[%s3 + $0x238] sm:$0xf] %vm6558, %v6412
  %6702 = vst.msk [vmem:[%s3 + $0x23c] sm:$0xf] %vm6558, %v6413
  // Predicated region
  $region14: #{net_forward.2} parent=0 // pred_check
    _
  $region15: #{net_forward.2} parent=0 // pred_check_branch
    %6704 = sbr.rel (0) target = $region17
  $region16: #{net_forward.2} parent=0 // pred_region
    _
  $region17: #{net_forward.2} parent=0 // pred_fallthru
    _
  // Predicated region
  $region18: #{net_forward.2} parent=0 // pred_check
    _
  $region19: #{net_forward.2} parent=0 // pred_check_branch
    %6706 = sbr.rel (0) target = $region21
  $region20: #{net_forward.2} parent=0 // pred_region
    _
  $region21: #{net_forward.2} parent=0 // pred_fallthru
    _

// kernel: net_forward.3
$region0: #{net_forward.3}
  #allocation0 [shape = 'u32[]', space=smem, size = 0x4, offset = 0x4, fixed_abs, tag = 'smem constant byte address 0x4 - core index']
  #allocation1 [shape = 'u32[144,128]{1,0:T(1,128)}', space=vmem, size = 0x12000, scoped, tag = 'internal scratch']
  #allocation2 [shape = 'bf16[8,16,20]{2,1,0:T(16,128)(2,1)}', space=vmem, size = 0x8000, scoped, tag = 'scratch operand']
  %s0 = inlined_call_operand.vmem [shape: bf16[8,4,16,250], index: 0, kind: input, shape index: {}]
  %s1 = inlined_call_operand.vmem [shape: bf16[250,20], index: 1, kind: input, shape index: {}]
  %s2 = inlined_call_operand.vmem [shape: f32[1,20], index: 2, kind: input, shape index: {}]
  %s3 = inlined_call_operand.vmem [shape: bf16[16,20,50], index: 3, kind: input, shape index: {}]
  %s4 = inlined_call_operand.vmem [shape: f32[1,50], index: 4, kind: input, shape index: {}]
  %s5 = inlined_call_operand.vmem [shape: bf16[50,10], index: 5, kind: input, shape index: {}]
  %s6 = inlined_call_operand.vmem [shape: f32[1,10], index: 6, kind: input, shape index: {}]
  %s7 = inlined_call_operand.vmem [shape: f32[8,10], index: 7, kind: output, shape index: {}]
  %s8 = sld [smem:[#allocation0]]
  $region38: #{net_forward.3} parent=0
    _
  %s10 = ssub.s32 1, %s8
  %s11 = scalar_select 0, %s10, %s8
  // Predicated region
  $region2: #{net_forward.3} parent=0 // pred_check
    _
  $region3: #{net_forward.3} parent=0 // pred_check_branch
    %13 = sbr.rel (0) target = $region5
  $region4: #{net_forward.3} parent=0 // pred_region
    _
  $region5: #{net_forward.3} parent=0 // pred_fallthru
    _
  // Predicated region
  $region6: #{net_forward.3} parent=0 // pred_check
    _
  $region7: #{net_forward.3} parent=0 // pred_check_branch
    %15 = sbr.rel (0) target = $region9
  $region8: #{net_forward.3} parent=0 // pred_region
    _
  $region9: #{net_forward.3} parent=0 // pred_fallthru
    _
  // Predicated region
  $region10: #{net_forward.3} parent=0 // pred_check
    _
  $region11: #{net_forward.3} parent=0 // pred_check_branch
    %17 = sbr.rel (0) target = $region13
  $region12: #{net_forward.3} parent=0 // pred_region
    _
  $region13: #{net_forward.3} parent=0 // pred_fallthru
    _
  // Predicated region
  $region14: #{net_forward.3} parent=0 // pred_check
    _
  $region15: #{net_forward.3} parent=0 // pred_check_branch
    %19 = sbr.rel (0) target = $region17
  $region16: #{net_forward.3} parent=0 // pred_region
    _
  $region17: #{net_forward.3} parent=0 // pred_fallthru
    _
  // Predicated region
  $region18: #{net_forward.3} parent=0 // pred_check
    _
  $region19: #{net_forward.3} parent=0 // pred_check_branch
    %21 = sbr.rel (0) target = $region21
  $region20: #{net_forward.3} parent=0 // pred_region
    _
  $region21: #{net_forward.3} parent=0 // pred_fallthru
    _
  // Predicated region
  $region22: #{net_forward.3} parent=0 // pred_check
    _
  $region23: #{net_forward.3} parent=0 // pred_check_branch
    %23 = sbr.rel (0) target = $region25
  $region24: #{net_forward.3} parent=0 // pred_region
    _
  $region25: #{net_forward.3} parent=0 // pred_fallthru
    _
  // Predicated region
  $region26: #{net_forward.3} parent=0 // pred_check
    _
  $region27: #{net_forward.3} parent=0 // pred_check_branch
    %25 = sbr.rel (0) target = $region29
  $region28: #{net_forward.3} parent=0 // pred_region
    _
  $region29: #{net_forward.3} parent=0 // pred_fallthru
    _
  %v27 = vld [vmem:[%s0] sm:$0xff]
  %v28 = vld [vmem:[%s0 + $0x8] sm:$0xff]
  %v29 = vld [vmem:[%s0 + $0x10] sm:$0xff]
  %v30 = vld [vmem:[%s0 + $0x18] sm:$0xff]
  %v31 = vld [vmem:[%s0 + $0x20] sm:$0xff]
  %v32 = vld [vmem:[%s0 + $0x28] sm:$0xff]
  %v33 = vld [vmem:[%s0 + $0x30] sm:$0xff]
  %v34 = vld [vmem:[%s0 + $0x38] sm:$0xff]
  %v35 = vld [vmem:[%s0 + $0x40] sm:$0xff]
  %v36 = vld [vmem:[%s0 + $0x48] sm:$0xff]
  %v37 = vld [vmem:[%s0 + $0x50] sm:$0xff]
  %v38 = vld [vmem:[%s0 + $0x58] sm:$0xff]
  %v39 = vld [vmem:[%s0 + $0x60] sm:$0xff]
  %v40 = vld [vmem:[%s0 + $0x68] sm:$0xff]
  %v41 = vld [vmem:[%s0 + $0x70] sm:$0xff]
  %v42 = vld [vmem:[%s0 + $0x78] sm:$0xff]
  %v43 = vld [vmem:[%s0 + $0x80] sm:$0xff]
  %v44 = vld [vmem:[%s0 + $0x88] sm:$0xff]
  %v45 = vld [vmem:[%s0 + $0x90] sm:$0xff]
  %v46 = vld [vmem:[%s0 + $0x98] sm:$0xff]
  %v47 = vld [vmem:[%s0 + $0xa0] sm:$0xff]
  %v48 = vld [vmem:[%s0 + $0xa8] sm:$0xff]
  %v49 = vld [vmem:[%s0 + $0xb0] sm:$0xff]
  %v50 = vld [vmem:[%s0 + $0xb8] sm:$0xff]
  %v51 = vld [vmem:[%s0 + $0xc0] sm:$0xff]
  %v52 = vld [vmem:[%s0 + $0xc8] sm:$0xff]
  %v53 = vld [vmem:[%s0 + $0xd0] sm:$0xff]
  %v54 = vld [vmem:[%s0 + $0xd8] sm:$0xff]
  %v55 = vld [vmem:[%s0 + $0xe0] sm:$0xff]
  %v56 = vld [vmem:[%s0 + $0xe8] sm:$0xff]
  %v57 = vld [vmem:[%s0 + $0xf0] sm:$0xff]
  %v58 = vld [vmem:[%s0 + $0xf8] sm:$0xff]
  %v59 = vld [vmem:[%s0 + $0x100] sm:$0xff]
  %v60 = vld [vmem:[%s0 + $0x108] sm:$0xff]
  %v61 = vld [vmem:[%s0 + $0x110] sm:$0xff]
  %v62 = vld [vmem:[%s0 + $0x118] sm:$0xff]
  %v63 = vld [vmem:[%s0 + $0x120] sm:$0xff]
  %v64 = vld [vmem:[%s0 + $0x128] sm:$0xff]
  %v65 = vld [vmem:[%s0 + $0x130] sm:$0xff]
  %v66 = vld [vmem:[%s0 + $0x138] sm:$0xff]
  %v67 = vld [vmem:[%s0 + $0x140] sm:$0xff]
  %v68 = vld [vmem:[%s0 + $0x148] sm:$0xff]
  %v69 = vld [vmem:[%s0 + $0x150] sm:$0xff]
  %v70 = vld [vmem:[%s0 + $0x158] sm:$0xff]
  %v71 = vld [vmem:[%s0 + $0x160] sm:$0xff]
  %v72 = vld [vmem:[%s0 + $0x168] sm:$0xff]
  %v73 = vld [vmem:[%s0 + $0x170] sm:$0xff]
  %v74 = vld [vmem:[%s0 + $0x178] sm:$0xff]
  %v75 = vld [vmem:[%s0 + $0x180] sm:$0xff]
  %v76 = vld [vmem:[%s0 + $0x188] sm:$0xff]
  %v77 = vld [vmem:[%s0 + $0x190] sm:$0xff]
  %v78 = vld [vmem:[%s0 + $0x198] sm:$0xff]
  %v79 = vld [vmem:[%s0 + $0x1a0] sm:$0xff]
  %v80 = vld [vmem:[%s0 + $0x1a8] sm:$0xff]
  %v81 = vld [vmem:[%s0 + $0x1b0] sm:$0xff]
  %v82 = vld [vmem:[%s0 + $0x1b8] sm:$0xff]
  %v83 = vld [vmem:[%s0 + $0x1c0] sm:$0xff]
  %v84 = vld [vmem:[%s0 + $0x1c8] sm:$0xff]
  %v85 = vld [vmem:[%s0 + $0x1d0] sm:$0xff]
  %v86 = vld [vmem:[%s0 + $0x1d8] sm:$0xff]
  %v87 = vld [vmem:[%s0 + $0x1e0] sm:$0xff]
  %v88 = vld [vmem:[%s0 + $0x1e8] sm:$0xff]
  %v89 = vld [vmem:[%s0 + $0x1f0] sm:$0xff]
  %v90 = vld [vmem:[%s0 + $0x1f8] sm:$0xff]
  %v91 = vld [vmem:[%s1] sm:$0xf]
  %v92 = vld [vmem:[%s1 + $0x4] sm:$0xf]
  %v93 = vld [vmem:[%s1 + $0x8] sm:$0xf]
  %v94 = vld [vmem:[%s1 + $0xc] sm:$0xf]
  %v95 = vld [vmem:[%s1 + $0x10] sm:$0xf]
  %v96 = vld [vmem:[%s1 + $0x14] sm:$0xf]
  %v97 = vld [vmem:[%s1 + $0x18] sm:$0xf]
  %v98 = vld [vmem:[%s1 + $0x1c] sm:$0xf]
  %v99 = vld [vmem:[%s1 + $0x20] sm:$0xf]
  %v100 = vld [vmem:[%s1 + $0x24] sm:$0xf]
  %v101 = vld [vmem:[%s1 + $0x28] sm:$0xf]
  %v102 = vld [vmem:[%s1 + $0x2c] sm:$0xf]
  %v103 = vld [vmem:[%s1 + $0x30] sm:$0xf]
  %v104 = vld [vmem:[%s1 + $0x34] sm:$0xf]
  %v105 = vld [vmem:[%s1 + $0x38] sm:$0xf]
  %v106 = vld [vmem:[%s1 + $0x3c] sm:$0xf]
  %v107 = vld [vmem:[%s1 + $0x40] sm:$0xf]
  %v108 = vld [vmem:[%s1 + $0x44] sm:$0xf]
  %v109 = vld [vmem:[%s1 + $0x48] sm:$0xf]
  %v110 = vld [vmem:[%s1 + $0x4c] sm:$0xf]
  %v111 = vld [vmem:[%s1 + $0x50] sm:$0xf]
  %v112 = vld [vmem:[%s1 + $0x54] sm:$0xf]
  %v113 = vld [vmem:[%s1 + $0x58] sm:$0xf]
  %v114 = vld [vmem:[%s1 + $0x5c] sm:$0xf]
  %v115 = vld [vmem:[%s1 + $0x60] sm:$0xf]
  %v116 = vld [vmem:[%s1 + $0x64] sm:$0xf]
  %v117 = vld [vmem:[%s1 + $0x68] sm:$0xf]
  %v118 = vld [vmem:[%s1 + $0x6c] sm:$0xf]
  %v119 = vld [vmem:[%s1 + $0x70] sm:$0xf]
  %v120 = vld [vmem:[%s1 + $0x74] sm:$0xf]
  %v121 = vld [vmem:[%s1 + $0x78] sm:$0xf]
  %v122 = vld [vmem:[%s1 + $0x7c] sm:$0x1]
  %v187 = vunpack.c.l.b16 %v27
  %v188 = vunpack.c.h.b16 %v27
  %v189 = vunpack.c.l.b16 %v28
  %v190 = vunpack.c.h.b16 %v28
  %v191 = vunpack.c.l.b16 %v29
  %v192 = vunpack.c.h.b16 %v29
  %v193 = vunpack.c.l.b16 %v30
  %v194 = vunpack.c.h.b16 %v30
  %v195 = vunpack.c.l.b16 %v31
  %v196 = vunpack.c.h.b16 %v31
  %v197 = vunpack.c.l.b16 %v32
  %v198 = vunpack.c.h.b16 %v32
  %v199 = vunpack.c.l.b16 %v33
  %v200 = vunpack.c.h.b16 %v33
  %v201 = vunpack.c.l.b16 %v34
  %v202 = vunpack.c.h.b16 %v34
  %v203 = vunpack.c.l.b16 %v35
  %v204 = vunpack.c.h.b16 %v35
  %v205 = vunpack.c.l.b16 %v36
  %v206 = vunpack.c.h.b16 %v36
  %v207 = vunpack.c.l.b16 %v37
  %v208 = vunpack.c.h.b16 %v37
  %v209 = vunpack.c.l.b16 %v38
  %v210 = vunpack.c.h.b16 %v38
  %v211 = vunpack.c.l.b16 %v39
  %v212 = vunpack.c.h.b16 %v39
  %v213 = vunpack.c.l.b16 %v40
  %v214 = vunpack.c.h.b16 %v40
  %v215 = vunpack.c.l.b16 %v41
  %v216 = vunpack.c.h.b16 %v41
  %v217 = vunpack.c.l.b16 %v42
  %v218 = vunpack.c.h.b16 %v42
  %v219 = vunpack.c.l.b16 %v43
  %v220 = vunpack.c.h.b16 %v43
  %v221 = vunpack.c.l.b16 %v44
  %v222 = vunpack.c.h.b16 %v44
  %v223 = vunpack.c.l.b16 %v45
  %v224 = vunpack.c.h.b16 %v45
  %v225 = vunpack.c.l.b16 %v46
  %v226 = vunpack.c.h.b16 %v46
  %v227 = vunpack.c.l.b16 %v47
  %v228 = vunpack.c.h.b16 %v47
  %v229 = vunpack.c.l.b16 %v48
  %v230 = vunpack.c.h.b16 %v48
  %v231 = vunpack.c.l.b16 %v49
  %v232 = vunpack.c.h.b16 %v49
  %v233 = vunpack.c.l.b16 %v50
  %v234 = vunpack.c.h.b16 %v50
  %v235 = vunpack.c.l.b16 %v51
  %v236 = vunpack.c.h.b16 %v51
  %v237 = vunpack.c.l.b16 %v52
  %v238 = vunpack.c.h.b16 %v52
  %v239 = vunpack.c.l.b16 %v53
  %v240 = vunpack.c.h.b16 %v53
  %v241 = vunpack.c.l.b16 %v54
  %v242 = vunpack.c.h.b16 %v54
  %v243 = vunpack.c.l.b16 %v55
  %v244 = vunpack.c.h.b16 %v55
  %v245 = vunpack.c.l.b16 %v56
  %v246 = vunpack.c.h.b16 %v56
  %v247 = vunpack.c.l.b16 %v57
  %v248 = vunpack.c.h.b16 %v57
  %v249 = vunpack.c.l.b16 %v58
  %v250 = vunpack.c.h.b16 %v58
  %v251 = vunpack.c.l.b16 %v59
  %v252 = vunpack.c.h.b16 %v59
  %v253 = vunpack.c.l.b16 %v60
  %v254 = vunpack.c.h.b16 %v60
  %v255 = vunpack.c.l.b16 %v61
  %v256 = vunpack.c.h.b16 %v61
  %v257 = vunpack.c.l.b16 %v62
  %v258 = vunpack.c.h.b16 %v62
  %v259 = vunpack.c.l.b16 %v63
  %v260 = vunpack.c.h.b16 %v63
  %v261 = vunpack.c.l.b16 %v64
  %v262 = vunpack.c.h.b16 %v64
  %v263 = vunpack.c.l.b16 %v65
  %v264 = vunpack.c.h.b16 %v65
  %v265 = vunpack.c.l.b16 %v66
  %v266 = vunpack.c.h.b16 %v66
  %v267 = vunpack.c.l.b16 %v67
  %v268 = vunpack.c.h.b16 %v67
  %v269 = vunpack.c.l.b16 %v68
  %v270 = vunpack.c.h.b16 %v68
  %v271 = vunpack.c.l.b16 %v69
  %v272 = vunpack.c.h.b16 %v69
  %v273 = vunpack.c.l.b16 %v70
  %v274 = vunpack.c.h.b16 %v70
  %v275 = vunpack.c.l.b16 %v71
  %v276 = vunpack.c.h.b16 %v71
  %v277 = vunpack.c.l.b16 %v72
  %v278 = vunpack.c.h.b16 %v72
  %v279 = vunpack.c.l.b16 %v73
  %v280 = vunpack.c.h.b16 %v73
  %v281 = vunpack.c.l.b16 %v74
  %v282 = vunpack.c.h.b16 %v74
  %v283 = vunpack.c.l.b16 %v75
  %v284 = vunpack.c.h.b16 %v75
  %v285 = vunpack.c.l.b16 %v76
  %v286 = vunpack.c.h.b16 %v76
  %v287 = vunpack.c.l.b16 %v77
  %v288 = vunpack.c.h.b16 %v77
  %v289 = vunpack.c.l.b16 %v78
  %v290 = vunpack.c.h.b16 %v78
  %v291 = vunpack.c.l.b16 %v79
  %v292 = vunpack.c.h.b16 %v79
  %v293 = vunpack.c.l.b16 %v80
  %v294 = vunpack.c.h.b16 %v80
  %v295 = vunpack.c.l.b16 %v81
  %v296 = vunpack.c.h.b16 %v81
  %v297 = vunpack.c.l.b16 %v82
  %v298 = vunpack.c.h.b16 %v82
  %v299 = vunpack.c.l.b16 %v83
  %v300 = vunpack.c.h.b16 %v83
  %v301 = vunpack.c.l.b16 %v84
  %v302 = vunpack.c.h.b16 %v84
  %v303 = vunpack.c.l.b16 %v85
  %v304 = vunpack.c.h.b16 %v85
  %v305 = vunpack.c.l.b16 %v86
  %v306 = vunpack.c.h.b16 %v86
  %v307 = vunpack.c.l.b16 %v87
  %v308 = vunpack.c.h.b16 %v87
  %v309 = vunpack.c.l.b16 %v88
  %v310 = vunpack.c.h.b16 %v88
  %v311 = vunpack.c.l.b16 %v89
  %v312 = vunpack.c.h.b16 %v89
  %v313 = vunpack.c.l.b16 %v90
  %v314 = vunpack.c.h.b16 %v90
  %v315 = vpack.c.b16 %v189, %v187
  %v316 = vpack.c.b16 %v190, %v188
  %v317 = vpack.c.b16 %v193, %v191
  %v318 = vpack.c.b16 %v194, %v192
  %v319 = vpack.c.b16 %v197, %v195
  %v320 = vpack.c.b16 %v198, %v196
  %v321 = vpack.c.b16 %v201, %v199
  %v322 = vpack.c.b16 %v202, %v200
  %v323 = vpack.c.b16 %v205, %v203
  %v324 = vpack.c.b16 %v206, %v204
  %v325 = vpack.c.b16 %v209, %v207
  %v326 = vpack.c.b16 %v210, %v208
  %v327 = vpack.c.b16 %v213, %v211
  %v328 = vpack.c.b16 %v214, %v212
  %v329 = vpack.c.b16 %v217, %v215
  %v330 = vpack.c.b16 %v218, %v216
  %v331 = vpack.c.b16 %v221, %v219
  %v332 = vpack.c.b16 %v222, %v220
  %v333 = vpack.c.b16 %v225, %v223
  %v334 = vpack.c.b16 %v226, %v224
  %v335 = vpack.c.b16 %v229, %v227
  %v336 = vpack.c.b16 %v230, %v228
  %v337 = vpack.c.b16 %v233, %v231
  %v338 = vpack.c.b16 %v234, %v232
  %v339 = vpack.c.b16 %v237, %v235
  %v340 = vpack.c.b16 %v238, %v236
  %v341 = vpack.c.b16 %v241, %v239
  %v342 = vpack.c.b16 %v242, %v240
  %v343 = vpack.c.b16 %v245, %v243
  %v344 = vpack.c.b16 %v246, %v244
  %v345 = vpack.c.b16 %v249, %v247
  %v346 = vpack.c.b16 %v250, %v248
  %v347 = vpack.c.b16 %v253, %v251
  %v348 = vpack.c.b16 %v254, %v252
  %v349 = vpack.c.b16 %v257, %v255
  %v350 = vpack.c.b16 %v258, %v256
  %v351 = vpack.c.b16 %v261, %v259
  %v352 = vpack.c.b16 %v262, %v260
  %v353 = vpack.c.b16 %v265, %v263
  %v354 = vpack.c.b16 %v266, %v264
  %v355 = vpack.c.b16 %v269, %v267
  %v356 = vpack.c.b16 %v270, %v268
  %v357 = vpack.c.b16 %v273, %v271
  %v358 = vpack.c.b16 %v274, %v272
  %v359 = vpack.c.b16 %v277, %v275
  %v360 = vpack.c.b16 %v278, %v276
  %v361 = vpack.c.b16 %v281, %v279
  %v362 = vpack.c.b16 %v282, %v280
  %v363 = vpack.c.b16 %v285, %v283
  %v364 = vpack.c.b16 %v286, %v284
  %v365 = vpack.c.b16 %v289, %v287
  %v366 = vpack.c.b16 %v290, %v288
  %v367 = vpack.c.b16 %v293, %v291
  %v368 = vpack.c.b16 %v294, %v292
  %v369 = vpack.c.b16 %v297, %v295
  %v370 = vpack.c.b16 %v298, %v296
  %v371 = vpack.c.b16 %v301, %v299
  %v372 = vpack.c.b16 %v302, %v300
  %v373 = vpack.c.b16 %v305, %v303
  %v374 = vpack.c.b16 %v306, %v304
  %v375 = vpack.c.b16 %v309, %v307
  %v376 = vpack.c.b16 %v310, %v308
  %v377 = vpack.c.b16 %v313, %v311
  %v378 = vpack.c.b16 %v314, %v312
  %v443 = vunpack.c.l.b16 %v91
  %v444 = vunpack.c.l.b16 %v92
  %v445 = vunpack.c.l.b16 %v93
  %v446 = vunpack.c.l.b16 %v94
  %v447 = vunpack.c.l.b16 %v95
  %v448 = vunpack.c.l.b16 %v96
  %v449 = vunpack.c.l.b16 %v97
  %v450 = vunpack.c.l.b16 %v98
  %v451 = vunpack.c.l.b16 %v99
  %v452 = vunpack.c.l.b16 %v100
  %v453 = vunpack.c.l.b16 %v101
  %v454 = vunpack.c.l.b16 %v102
  %v455 = vunpack.c.l.b16 %v103
  %v456 = vunpack.c.l.b16 %v104
  %v457 = vunpack.c.l.b16 %v105
  %v458 = vunpack.c.l.b16 %v106
  %v459 = vunpack.c.l.b16 %v107
  %v460 = vunpack.c.l.b16 %v108
  %v461 = vunpack.c.l.b16 %v109
  %v462 = vunpack.c.l.b16 %v110
  %v463 = vunpack.c.l.b16 %v111
  %v464 = vunpack.c.l.b16 %v112
  %v465 = vunpack.c.l.b16 %v113
  %v466 = vunpack.c.l.b16 %v114
  %v467 = vunpack.c.l.b16 %v115
  %v468 = vunpack.c.l.b16 %v116
  %v469 = vunpack.c.l.b16 %v117
  %v470 = vunpack.c.l.b16 %v118
  %v471 = vunpack.c.l.b16 %v119
  %v472 = vunpack.c.l.b16 %v120
  %v473 = vunpack.c.l.b16 %v121
  %v474 = vunpack.c.l.b16 %v122
  %v475 = vpack.c.b16 %v444, %v443
  %v476 = vpack.c.b16 %v446, %v445
  %v477 = vpack.c.b16 %v448, %v447
  %v478 = vpack.c.b16 %v450, %v449
  %v479 = vpack.c.b16 %v452, %v451
  %v480 = vpack.c.b16 %v454, %v453
  %v481 = vpack.c.b16 %v456, %v455
  %v482 = vpack.c.b16 %v458, %v457
  %v483 = vpack.c.b16 %v460, %v459
  %v484 = vpack.c.b16 %v462, %v461
  %v485 = vpack.c.b16 %v464, %v463
  %v486 = vpack.c.b16 %v466, %v465
  %v487 = vpack.c.b16 %v468, %v467
  %v488 = vpack.c.b16 %v470, %v469
  %v489 = vpack.c.b16 %v472, %v471
  %v490 = vpack.c.b16 %v474, %v473
  %vm506 = vcmask 998400
  %v508 = vsel %vm506, %v316, 0
  %v511 = vsel %vm506, %v318, 0
  %v514 = vsel %vm506, %v320, 0
  %v517 = vsel %vm506, %v322, 0
  %v520 = vsel %vm506, %v324, 0
  %v523 = vsel %vm506, %v326, 0
  %v526 = vsel %vm506, %v328, 0
  %v529 = vsel %vm506, %v330, 0
  %v532 = vsel %vm506, %v332, 0
  %v535 = vsel %vm506, %v334, 0
  %v538 = vsel %vm506, %v336, 0
  %v541 = vsel %vm506, %v338, 0
  %v544 = vsel %vm506, %v340, 0
  %v547 = vsel %vm506, %v342, 0
  %v550 = vsel %vm506, %v344, 0
  %v553 = vsel %vm506, %v346, 0
  %v556 = vsel %vm506, %v348, 0
  %v559 = vsel %vm506, %v350, 0
  %v562 = vsel %vm506, %v352, 0
  %v565 = vsel %vm506, %v354, 0
  %v568 = vsel %vm506, %v356, 0
  %v571 = vsel %vm506, %v358, 0
  %v574 = vsel %vm506, %v360, 0
  %v577 = vsel %vm506, %v362, 0
  %v580 = vsel %vm506, %v364, 0
  %v583 = vsel %vm506, %v366, 0
  %v586 = vsel %vm506, %v368, 0
  %v589 = vsel %vm506, %v370, 0
  %v592 = vsel %vm506, %v372, 0
  %v595 = vsel %vm506, %v374, 0
  %v598 = vsel %vm506, %v376, 0
  %v601 = vsel %vm506, %v378, 0
  %vm603 = vcmask 1044480
  %v605 = vsel %vm603, %v490, 0
  %607 = vmatprep.subr.bf16.mxu0 0
  %608 = vmatpush1.bf16.msra.mxu0 %v475
  %609 = vmatprep.subr.bf16.mxu0 0
  %610 = vmatpush1.bf16.msra.mxu0 %v476
  %611 = vmatprep.subr.bf16.mxu0 0
  %612 = vmatpush1.bf16.msra.mxu0 %v477
  %613 = vmatprep.subr.bf16.mxu0 0
  %614 = vmatpush1.bf16.msra.mxu0 %v478
  %615 = vmatprep.subr.bf16.mxu0 0
  %616 = vmatpush1.bf16.msra.mxu0 %v479
  %617 = vmatprep.subr.bf16.mxu0 0
  %618 = vmatpush1.bf16.msra.mxu0 %v480
  %619 = vmatprep.subr.bf16.mxu0 0
  %620 = vmatpush1.bf16.msra.mxu0 %v481
  %621 = vmatprep.subr.bf16.mxu0 0
  %622 = vmatpush1.bf16.msra.mxu0 %v482
  %623 = vmatprep.subr.bf16.mxu0 0
  %624 = vmatpush1.bf16.msra.mxu0 %v483
  %625 = vmatprep.subr.bf16.mxu0 0
  %626 = vmatpush1.bf16.msra.mxu0 %v484
  %627 = vmatprep.subr.bf16.mxu0 0
  %628 = vmatpush1.bf16.msra.mxu0 %v485
  %629 = vmatprep.subr.bf16.mxu0 0
  %630 = vmatpush1.bf16.msra.mxu0 %v486
  %631 = vmatprep.subr.bf16.mxu0 0
  %632 = vmatpush1.bf16.msra.mxu0 %v487
  %633 = vmatprep.subr.bf16.mxu0 0
  %634 = vmatpush1.bf16.msra.mxu0 %v488
  %635 = vmatprep.subr.bf16.mxu0 0
  %636 = vmatpush1.bf16.msra.mxu0 %v489
  %637 = vmatprep.subr.bf16.mxu0 0
  %638 = vmatpush1.bf16.msra.mxu0 %v605
  %639 = vmatprep.mubr.bf16.mxu0 %v508
  %640 = vmatmul.mubr.bf16.gmra.mrb[0].mxu0 %v315
  %v641 = vpop.f32.mrb[0].mxu0
  %v642 = vadd.f32 0.0, %v641
  %v643 = vpop.f32.mrb[0].mxu0
  %v644 = vpop.f32.mrb[0].mxu0
  %v645 = vadd.f32 0.0, %v644
  %v646 = vpop.f32.mrb[0].mxu0
  %647 = vmatprep.mubr.bf16.mxu0 %v511
  %648 = vmatmul.mubr.bf16.gmra.mrb[0].mxu0 %v317
  %v649 = vpop.f32.mrb[0].mxu0
  %v650 = vadd.f32 0.0, %v649
  %v651 = vpop.f32.mrb[0].mxu0
  %v652 = vpop.f32.mrb[0].mxu0
  %v653 = vadd.f32 0.0, %v652
  %v654 = vpop.f32.mrb[0].mxu0
  %655 = vmatprep.mubr.bf16.mxu0 %v514
  %656 = vmatmul.mubr.bf16.gmra.mrb[0].mxu0 %v319
  %v657 = vpop.f32.mrb[0].mxu0
  %v658 = vadd.f32 0.0, %v657
  %v659 = vpop.f32.mrb[0].mxu0
  %v660 = vpop.f32.mrb[0].mxu0
  %v661 = vadd.f32 0.0, %v660
  %v662 = vpop.f32.mrb[0].mxu0
  %663 = vmatprep.mubr.bf16.mxu0 %v517
  %664 = vmatmul.mubr.bf16.gmra.mrb[0].mxu0 %v321
  %v665 = vpop.f32.mrb[0].mxu0
  %v666 = vadd.f32 0.0, %v665
  %v667 = vpop.f32.mrb[0].mxu0
  %v668 = vpop.f32.mrb[0].mxu0
  %v669 = vadd.f32 0.0, %v668
  %v670 = vpop.f32.mrb[0].mxu0
  %671 = vmatprep.mubr.bf16.mxu0 %v520
  %672 = vmatmul.mubr.bf16.gmra.mrb[0].mxu0 %v323
  %v673 = vpop.f32.mrb[0].mxu0
  %v674 = vadd.f32 0.0, %v673
  %v675 = vpop.f32.mrb[0].mxu0
  %v676 = vpop.f32.mrb[0].mxu0
  %v677 = vadd.f32 0.0, %v676
  %v678 = vpop.f32.mrb[0].mxu0
  %679 = vmatprep.mubr.bf16.mxu0 %v523
  %680 = vmatmul.mubr.bf16.gmra.mrb[0].mxu0 %v325
  %v681 = vpop.f32.mrb[0].mxu0
  %v682 = vadd.f32 0.0, %v681
  %v683 = vpop.f32.mrb[0].mxu0
  %v684 = vpop.f32.mrb[0].mxu0
  %v685 = vadd.f32 0.0, %v684
  %v686 = vpop.f32.mrb[0].mxu0
  %687 = vmatprep.mubr.bf16.mxu0 %v526
  %688 = vmatmul.mubr.bf16.gmra.mrb[0].mxu0 %v327
  %v689 = vpop.f32.mrb[0].mxu0
  %v690 = vadd.f32 0.0, %v689
  %v691 = vpop.f32.mrb[0].mxu0
  %v692 = vpop.f32.mrb[0].mxu0
  %v693 = vadd.f32 0.0, %v692
  %v694 = vpop.f32.mrb[0].mxu0
  %695 = vmatprep.mubr.bf16.mxu0 %v529
  %696 = vmatmul.mubr.bf16.gmra.mrb[0].mxu0 %v329
  %v697 = vpop.f32.mrb[0].mxu0
  %v698 = vadd.f32 0.0, %v697
  %v699 = vpop.f32.mrb[0].mxu0
  %v700 = vpop.f32.mrb[0].mxu0
  %v701 = vadd.f32 0.0, %v700
  %v702 = vpop.f32.mrb[0].mxu0
  %703 = vmatprep.mubr.bf16.mxu0 %v532
  %704 = vmatmul.mubr.bf16.gmra.mrb[0].mxu0 %v331
  %v705 = vpop.f32.mrb[0].mxu0
  %v706 = vadd.f32 0.0, %v705
  %v707 = vpop.f32.mrb[0].mxu0
  %v708 = vpop.f32.mrb[0].mxu0
  %v709 = vadd.f32 0.0, %v708
  %v710 = vpop.f32.mrb[0].mxu0
  %711 = vmatprep.mubr.bf16.mxu0 %v535
  %712 = vmatmul.mubr.bf16.gmra.mrb[0].mxu0 %v333
  %v713 = vpop.f32.mrb[0].mxu0
  %v714 = vadd.f32 0.0, %v713
  %v715 = vpop.f32.mrb[0].mxu0
  %v716 = vpop.f32.mrb[0].mxu0
  %v717 = vadd.f32 0.0, %v716
  %v718 = vpop.f32.mrb[0].mxu0
  %719 = vmatprep.mubr.bf16.mxu0 %v538
  %720 = vmatmul.mubr.bf16.gmra.mrb[0].mxu0 %v335
  %v721 = vpop.f32.mrb[0].mxu0
  %v722 = vadd.f32 0.0, %v721
  %v723 = vpop.f32.mrb[0].mxu0
  %v724 = vpop.f32.mrb[0].mxu0
  %v725 = vadd.f32 0.0, %v724
  %v726 = vpop.f32.mrb[0].mxu0
  %727 = vmatprep.mubr.bf16.mxu0 %v541
  %728 = vmatmul.mubr.bf16.gmra.mrb[0].mxu0 %v337
  %v729 = vpop.f32.mrb[0].mxu0
  %v730 = vadd.f32 0.0, %v729
  %v731 = vpop.f32.mrb[0].mxu0
  %v732 = vpop.f32.mrb[0].mxu0
  %v733 = vadd.f32 0.0, %v732
  %v734 = vpop.f32.mrb[0].mxu0
  %735 = vmatprep.mubr.bf16.mxu0 %v544
  %736 = vmatmul.mubr.bf16.gmra.mrb[0].mxu0 %v339
  %v737 = vpop.f32.mrb[0].mxu0
  %v738 = vadd.f32 0.0, %v737
  %v739 = vpop.f32.mrb[0].mxu0
  %v740 = vpop.f32.mrb[0].mxu0
  %v741 = vadd.f32 0.0, %v740
  %v742 = vpop.f32.mrb[0].mxu0
  %743 = vmatprep.mubr.bf16.mxu0 %v547
  %744 = vmatmul.mubr.bf16.gmra.mrb[0].mxu0 %v341
  %v745 = vpop.f32.mrb[0].mxu0
  %v746 = vadd.f32 0.0, %v745
  %v747 = vpop.f32.mrb[0].mxu0
  %v748 = vpop.f32.mrb[0].mxu0
  %v749 = vadd.f32 0.0, %v748
  %v750 = vpop.f32.mrb[0].mxu0
  %751 = vmatprep.mubr.bf16.mxu0 %v550
  %752 = vmatmul.mubr.bf16.gmra.mrb[0].mxu0 %v343
  %v753 = vpop.f32.mrb[0].mxu0
  %v754 = vadd.f32 0.0, %v753
  %v755 = vpop.f32.mrb[0].mxu0
  %v756 = vpop.f32.mrb[0].mxu0
  %v757 = vadd.f32 0.0, %v756
  %v758 = vpop.f32.mrb[0].mxu0
  %759 = vmatprep.mubr.bf16.mxu0 %v553
  %760 = vmatmul.mubr.bf16.gmra.mrb[0].mxu0 %v345
  %v761 = vpop.f32.mrb[0].mxu0
  %v762 = vadd.f32 0.0, %v761
  %v763 = vpop.f32.mrb[0].mxu0
  %v764 = vpop.f32.mrb[0].mxu0
  %v765 = vadd.f32 0.0, %v764
  %v766 = vpop.f32.mrb[0].mxu0
  %767 = vmatprep.mubr.bf16.mxu0 %v556
  %768 = vmatmul.mubr.bf16.gmra.mrb[0].mxu0 %v347
  %v769 = vpop.f32.mrb[0].mxu0
  %v770 = vadd.f32 0.0, %v769
  %v771 = vpop.f32.mrb[0].mxu0
  %v772 = vpop.f32.mrb[0].mxu0
  %v773 = vadd.f32 0.0, %v772
  %v774 = vpop.f32.mrb[0].mxu0
  %775 = vmatprep.mubr.bf16.mxu0 %v559
  %776 = vmatmul.mubr.bf16.gmra.mrb[0].mxu0 %v349
  %v777 = vpop.f32.mrb[0].mxu0
  %v778 = vadd.f32 0.0, %v777
  %v779 = vpop.f32.mrb[0].mxu0
  %v780 = vpop.f32.mrb[0].mxu0
  %v781 = vadd.f32 0.0, %v780
  %v782 = vpop.f32.mrb[0].mxu0
  %783 = vmatprep.mubr.bf16.mxu0 %v562
  %784 = vmatmul.mubr.bf16.gmra.mrb[0].mxu0 %v351
  %v785 = vpop.f32.mrb[0].mxu0
  %v786 = vadd.f32 0.0, %v785
  %v787 = vpop.f32.mrb[0].mxu0
  %v788 = vpop.f32.mrb[0].mxu0
  %v789 = vadd.f32 0.0, %v788
  %v790 = vpop.f32.mrb[0].mxu0
  %791 = vmatprep.mubr.bf16.mxu0 %v565
  %792 = vmatmul.mubr.bf16.gmra.mrb[0].mxu0 %v353
  %v793 = vpop.f32.mrb[0].mxu0
  %v794 = vadd.f32 0.0, %v793
  %v795 = vpop.f32.mrb[0].mxu0
  %v796 = vpop.f32.mrb[0].mxu0
  %v797 = vadd.f32 0.0, %v796
  %v798 = vpop.f32.mrb[0].mxu0
  %799 = vmatprep.mubr.bf16.mxu0 %v568
  %800 = vmatmul.mubr.bf16.gmra.mrb[0].mxu0 %v355
  %v801 = vpop.f32.mrb[0].mxu0
  %v802 = vadd.f32 0.0, %v801
  %v803 = vpop.f32.mrb[0].mxu0
  %v804 = vpop.f32.mrb[0].mxu0
  %v805 = vadd.f32 0.0, %v804
  %v806 = vpop.f32.mrb[0].mxu0
  %807 = vmatprep.mubr.bf16.mxu0 %v571
  %808 = vmatmul.mubr.bf16.gmra.mrb[0].mxu0 %v357
  %v809 = vpop.f32.mrb[0].mxu0
  %v810 = vadd.f32 0.0, %v809
  %v811 = vpop.f32.mrb[0].mxu0
  %v812 = vpop.f32.mrb[0].mxu0
  %v813 = vadd.f32 0.0, %v812
  %v814 = vpop.f32.mrb[0].mxu0
  %815 = vmatprep.mubr.bf16.mxu0 %v574
  %816 = vmatmul.mubr.bf16.gmra.mrb[0].mxu0 %v359
  %v817 = vpop.f32.mrb[0].mxu0
  %v818 = vadd.f32 0.0, %v817
  %v819 = vpop.f32.mrb[0].mxu0
  %v820 = vpop.f32.mrb[0].mxu0
  %v821 = vadd.f32 0.0, %v820
  %v822 = vpop.f32.mrb[0].mxu0
  %823 = vmatprep.mubr.bf16.mxu0 %v577
  %824 = vmatmul.mubr.bf16.gmra.mrb[0].mxu0 %v361
  %v825 = vpop.f32.mrb[0].mxu0
  %v826 = vadd.f32 0.0, %v825
  %v827 = vpop.f32.mrb[0].mxu0
  %v828 = vpop.f32.mrb[0].mxu0
  %v829 = vadd.f32 0.0, %v828
  %v830 = vpop.f32.mrb[0].mxu0
  %831 = vmatprep.mubr.bf16.mxu0 %v580
  %832 = vmatmul.mubr.bf16.gmra.mrb[0].mxu0 %v363
  %v833 = vpop.f32.mrb[0].mxu0
  %v834 = vadd.f32 0.0, %v833
  %v835 = vpop.f32.mrb[0].mxu0
  %v836 = vpop.f32.mrb[0].mxu0
  %v837 = vadd.f32 0.0, %v836
  %v838 = vpop.f32.mrb[0].mxu0
  %839 = vmatprep.mubr.bf16.mxu0 %v583
  %840 = vmatmul.mubr.bf16.gmra.mrb[0].mxu0 %v365
  %v841 = vpop.f32.mrb[0].mxu0
  %v842 = vadd.f32 0.0, %v841
  %v843 = vpop.f32.mrb[0].mxu0
  %v844 = vpop.f32.mrb[0].mxu0
  %v845 = vadd.f32 0.0, %v844
  %v846 = vpop.f32.mrb[0].mxu0
  %847 = vmatprep.mubr.bf16.mxu0 %v586
  %848 = vmatmul.mubr.bf16.gmra.mrb[0].mxu0 %v367
  %v849 = vpop.f32.mrb[0].mxu0
  %v850 = vadd.f32 0.0, %v849
  %v851 = vpop.f32.mrb[0].mxu0
  %v852 = vpop.f32.mrb[0].mxu0
  %v853 = vadd.f32 0.0, %v852
  %v854 = vpop.f32.mrb[0].mxu0
  %855 = vmatprep.mubr.bf16.mxu0 %v589
  %856 = vmatmul.mubr.bf16.gmra.mrb[0].mxu0 %v369
  %v857 = vpop.f32.mrb[0].mxu0
  %v858 = vadd.f32 0.0, %v857
  %v859 = vpop.f32.mrb[0].mxu0
  %v860 = vpop.f32.mrb[0].mxu0
  %v861 = vadd.f32 0.0, %v860
  %v862 = vpop.f32.mrb[0].mxu0
  %863 = vmatprep.mubr.bf16.mxu0 %v592
  %864 = vmatmul.mubr.bf16.gmra.mrb[0].mxu0 %v371
  %v865 = vpop.f32.mrb[0].mxu0
  %v866 = vadd.f32 0.0, %v865
  %v867 = vpop.f32.mrb[0].mxu0
  %v868 = vpop.f32.mrb[0].mxu0
  %v869 = vadd.f32 0.0, %v868
  %v870 = vpop.f32.mrb[0].mxu0
  %871 = vmatprep.mubr.bf16.mxu0 %v595
  %872 = vmatmul.mubr.bf16.gmra.mrb[0].mxu0 %v373
  %v873 = vpop.f32.mrb[0].mxu0
  %v874 = vadd.f32 0.0, %v873
  %v875 = vpop.f32.mrb[0].mxu0
  %v876 = vpop.f32.mrb[0].mxu0
  %v877 = vadd.f32 0.0, %v876
  %v878 = vpop.f32.mrb[0].mxu0
  %879 = vmatprep.mubr.bf16.mxu0 %v598
  %880 = vmatmul.mubr.bf16.gmra.mrb[0].mxu0 %v375
  %v881 = vpop.f32.mrb[0].mxu0
  %v882 = vadd.f32 0.0, %v881
  %v883 = vpop.f32.mrb[0].mxu0
  %v884 = vpop.f32.mrb[0].mxu0
  %v885 = vadd.f32 0.0, %v884
  %v886 = vpop.f32.mrb[0].mxu0
  %887 = vmatprep.mubr.bf16.mxu0 %v601
  %888 = vmatmul.mubr.bf16.gmra.mrb[0].mxu0 %v377
  %v889 = vpop.f32.mrb[0].mxu0
  %v890 = vadd.f32 0.0, %v889
  %v891 = vpop.f32.mrb[0].mxu0
  %v892 = vpop.f32.mrb[0].mxu0
  %v893 = vadd.f32 0.0, %v892
  %v894 = vpop.f32.mrb[0].mxu0
  %895 = vdwg.mxu0
  %v896 = vmax.f32 %v642, %v650
  %v897 = vmax.f32 %v645, %v653
  %v898 = vmax.f32 %v674, %v682
  %v899 = vmax.f32 %v677, %v685
  %v900 = vmax.f32 %v706, %v714
  %v901 = vmax.f32 %v709, %v717
  %v902 = vmax.f32 %v738, %v746
  %v903 = vmax.f32 %v741, %v749
  %v904 = vmax.f32 %v770, %v778
  %v905 = vmax.f32 %v773, %v781
  %v906 = vmax.f32 %v802, %v810
  %v907 = vmax.f32 %v805, %v813
  %v908 = vmax.f32 %v834, %v842
  %v909 = vmax.f32 %v837, %v845
  %v910 = vmax.f32 %v866, %v874
  %v911 = vmax.f32 %v869, %v877
  %v912 = vmax.f32 %v658, %v666
  %v913 = vmax.f32 %v661, %v669
  %v914 = vmax.f32 %v690, %v698
  %v915 = vmax.f32 %v693, %v701
  %v916 = vmax.f32 %v722, %v730
  %v917 = vmax.f32 %v725, %v733
  %v918 = vmax.f32 %v754, %v762
  %v919 = vmax.f32 %v757, %v765
  %v920 = vmax.f32 %v786, %v794
  %v921 = vmax.f32 %v789, %v797
  %v922 = vmax.f32 %v818, %v826
  %v923 = vmax.f32 %v821, %v829
  %v924 = vmax.f32 %v850, %v858
  %v925 = vmax.f32 %v853, %v861
  %v926 = vmax.f32 %v882, %v890
  %v927 = vmax.f32 %v885, %v893
  %v928 = vmax.f32 %v896, %v912
  %v929 = vmax.f32 %v897, %v913
  %v930 = vmax.f32 %v898, %v914
  %v931 = vmax.f32 %v899, %v915
  %v932 = vmax.f32 %v900, %v916
  %v933 = vmax.f32 %v901, %v917
  %v934 = vmax.f32 %v902, %v918
  %v935 = vmax.f32 %v903, %v919
  %v936 = vmax.f32 %v904, %v920
  %v937 = vmax.f32 %v905, %v921
  %v938 = vmax.f32 %v906, %v922
  %v939 = vmax.f32 %v907, %v923
  %v940 = vmax.f32 %v908, %v924
  %v941 = vmax.f32 %v909, %v925
  %v942 = vmax.f32 %v910, %v926
  %v943 = vmax.f32 %v911, %v927
  %v944 = vld [vmem:[%s2] sm:$0x1]
  %v946 = vlaneseq
  %v947 = vshrl.u32 %v946, 7
  %v948 = vsub.s32 0, %v947
  %v949 = vrot.slane %v944, %v948
  %v951 = vadd.f32 %v928, %v949
  %v952 = vadd.f32 %v929, %v949
  %v953 = vadd.f32 %v930, %v949
  %v954 = vadd.f32 %v931, %v949
  %v955 = vadd.f32 %v932, %v949
  %v956 = vadd.f32 %v933, %v949
  %v957 = vadd.f32 %v934, %v949
  %v958 = vadd.f32 %v935, %v949
  %v959 = vadd.f32 %v936, %v949
  %v960 = vadd.f32 %v937, %v949
  %v961 = vadd.f32 %v938, %v949
  %v962 = vadd.f32 %v939, %v949
  %v963 = vadd.f32 %v940, %v949
  %v964 = vadd.f32 %v941, %v949
  %v965 = vadd.f32 %v942, %v949
  %v966 = vadd.f32 %v943, %v949
  %v967 = vmax.f32 %v951, 0.0
  %v968 = vmax.f32 %v952, 0.0
  %v969 = vmax.f32 %v953, 0.0
  %v970 = vmax.f32 %v954, 0.0
  %v971 = vmax.f32 %v955, 0.0
  %v972 = vmax.f32 %v956, 0.0
  %v973 = vmax.f32 %v957, 0.0
  %v974 = vmax.f32 %v958, 0.0
  %v975 = vmax.f32 %v959, 0.0
  %v976 = vmax.f32 %v960, 0.0
  %v977 = vmax.f32 %v961, 0.0
  %v978 = vmax.f32 %v962, 0.0
  %v979 = vmax.f32 %v963, 0.0
  %v980 = vmax.f32 %v964, 0.0
  %v981 = vmax.f32 %v965, 0.0
  %v982 = vmax.f32 %v966, 0.0
  %v983 = vpack.c.bf16 %v968, %v967
  %v984 = vpack.c.bf16 %v970, %v969
  %v985 = vpack.c.bf16 %v972, %v971
  %v986 = vpack.c.bf16 %v974, %v973
  %v987 = vpack.c.bf16 %v976, %v975
  %v988 = vpack.c.bf16 %v978, %v977
  %v989 = vpack.c.bf16 %v980, %v979
  %v990 = vpack.c.bf16 %v982, %v981
  %vm991 = vcmask 162816
  %992 = vst.msk [vmem:[#allocation2] sm:$0xff] %vm991, %v983
  %993 = vst.msk [vmem:[#allocation2 + $0x8] sm:$0xff] %vm991, %v984
  %994 = vst.msk [vmem:[#allocation2 + $0x10] sm:$0xff] %vm991, %v985
  %995 = vst.msk [vmem:[#allocation2 + $0x18] sm:$0xff] %vm991, %v986
  %996 = vst.msk [vmem:[#allocation2 + $0x20] sm:$0xff] %vm991, %v987
  %997 = vst.msk [vmem:[#allocation2 + $0x28] sm:$0xff] %vm991, %v988
  %998 = vst.msk [vmem:[#allocation2 + $0x30] sm:$0xff] %vm991, %v989
  %999 = vst.msk [vmem:[#allocation2 + $0x38] sm:$0xff] %vm991, %v990
  %v1000 = vld [vmem:[%s3] sm:$0xf]
  %v1001 = vld [vmem:[%s3 + $0x4] sm:$0xf]
  %v1002 = vld [vmem:[%s3 + $0x8] sm:$0x3]
  %v1003 = vld [vmem:[%s3 + $0xc] sm:$0xf]
  %v1004 = vld [vmem:[%s3 + $0x10] sm:$0xf]
  %v1005 = vld [vmem:[%s3 + $0x14] sm:$0x3]
  %v1006 = vld [vmem:[%s3 + $0x18] sm:$0xf]
  %v1007 = vld [vmem:[%s3 + $0x1c] sm:$0xf]
  %v1008 = vld [vmem:[%s3 + $0x20] sm:$0x3]
  %v1009 = vld [vmem:[%s3 + $0x24] sm:$0xf]
  %v1010 = vld [vmem:[%s3 + $0x28] sm:$0xf]
  %v1011 = vld [vmem:[%s3 + $0x2c] sm:$0x3]
  %v1012 = vld [vmem:[%s3 + $0x30] sm:$0xf]
  %v1013 = vld [vmem:[%s3 + $0x34] sm:$0xf]
  %v1014 = vld [vmem:[%s3 + $0x38] sm:$0x3]
  %v1015 = vld [vmem:[%s3 + $0x3c] sm:$0xf]
  %v1016 = vld [vmem:[%s3 + $0x40] sm:$0xf]
  %v1017 = vld [vmem:[%s3 + $0x44] sm:$0x3]
  %v1018 = vld [vmem:[%s3 + $0x48] sm:$0xf]
  %v1019 = vld [vmem:[%s3 + $0x4c] sm:$0xf]
  %v1020 = vld [vmem:[%s3 + $0x50] sm:$0x3]
  %v1021 = vld [vmem:[%s3 + $0x54] sm:$0xf]
  %v1022 = vld [vmem:[%s3 + $0x58] sm:$0xf]
  %v1023 = vld [vmem:[%s3 + $0x5c] sm:$0x3]
  %v1024 = vld [vmem:[%s3 + $0x60] sm:$0xf]
  %v1025 = vld [vmem:[%s3 + $0x64] sm:$0xf]
  %v1026 = vld [vmem:[%s3 + $0x68] sm:$0x3]
  %v1027 = vld [vmem:[%s3 + $0x6c] sm:$0xf]
  %v1028 = vld [vmem:[%s3 + $0x70] sm:$0xf]
  %v1029 = vld [vmem:[%s3 + $0x74] sm:$0x3]
  %v1030 = vld [vmem:[%s3 + $0x78] sm:$0xf]
  %v1031 = vld [vmem:[%s3 + $0x7c] sm:$0xf]
  %v1032 = vld [vmem:[%s3 + $0x80] sm:$0x3]
  %v1033 = vld [vmem:[%s3 + $0x84] sm:$0xf]
  %v1034 = vld [vmem:[%s3 + $0x88] sm:$0xf]
  %v1035 = vld [vmem:[%s3 + $0x8c] sm:$0x3]
  %v1036 = vld [vmem:[%s3 + $0x90] sm:$0xf]
  %v1037 = vld [vmem:[%s3 + $0x94] sm:$0xf]
  %v1038 = vld [vmem:[%s3 + $0x98] sm:$0x3]
  %v1039 = vld [vmem:[%s3 + $0x9c] sm:$0xf]
  %v1040 = vld [vmem:[%s3 + $0xa0] sm:$0xf]
  %v1041 = vld [vmem:[%s3 + $0xa4] sm:$0x3]
  %v1042 = vld [vmem:[%s3 + $0xa8] sm:$0xf]
  %v1043 = vld [vmem:[%s3 + $0xac] sm:$0xf]
  %v1044 = vld [vmem:[%s3 + $0xb0] sm:$0x3]
  %v1045 = vld [vmem:[%s3 + $0xb4] sm:$0xf]
  %v1046 = vld [vmem:[%s3 + $0xb8] sm:$0xf]
  %v1047 = vld [vmem:[%s3 + $0xbc] sm:$0x3]
  %v1048 = vld [vmem:[#allocation2] sm:$0x1]
  %v1049 = vld [vmem:[#allocation2 + $0x8] sm:$0x1]
  %v1050 = vld [vmem:[#allocation2 + $0x10] sm:$0x1]
  %v1051 = vld [vmem:[#allocation2 + $0x18] sm:$0x1]
  %v1052 = vld [vmem:[#allocation2 + $0x20] sm:$0x1]
  %v1053 = vld [vmem:[#allocation2 + $0x28] sm:$0x1]
  %v1054 = vld [vmem:[#allocation2 + $0x30] sm:$0x1]
  %v1055 = vld [vmem:[#allocation2 + $0x38] sm:$0x1]
  %v1064 = vunpack.c.l.b16 %v1048
  %v1065 = vunpack.c.l.b16 %v1049
  %v1066 = vunpack.c.l.b16 %v1050
  %v1067 = vunpack.c.l.b16 %v1051
  %v1068 = vunpack.c.l.b16 %v1052
  %v1069 = vunpack.c.l.b16 %v1053
  %v1070 = vunpack.c.l.b16 %v1054
  %v1071 = vunpack.c.l.b16 %v1055
  %v1072 = vrot.slane %v1064, 1
  %vm1073 = vcmask 1041409
  %v1074 = vsel %vm1073, %v1065, %v1072
  %v1075 = vrot.slane %v1066, 7
  %vm1076 = vcmask 1042434
  %v1077 = vsel %vm1076, %v1075, %v1074
  %v1078 = vrot.slane %v1067, 6
  %vm1079 = vcmask 1043459
  %v1080 = vsel %vm1079, %v1078, %v1077
  %v1081 = vrot.slane %v1068, 5
  %vm1082 = vcmask 1044484
  %v1083 = vsel %vm1082, %v1081, %v1080
  %v1084 = vrot.slane %v1069, 4
  %vm1085 = vcmask 1045509
  %v1086 = vsel %vm1085, %v1084, %v1083
  %v1087 = vrot.slane %v1070, 3
  %vm1088 = vcmask 1046534
  %v1089 = vsel %vm1088, %v1087, %v1086
  %v1090 = vrot.slane %v1071, 2
  %vm1091 = vcmask 1047559
  %v1092 = vsel %vm1091, %v1090, %v1089
  %v1093 = vpack.c.b16 %v1092, %v1092
  %v1097 = vunpack.c.l.b16 %v1003
  %v1098 = vunpack.c.l.b16 %v1004
  %v1099 = vunpack.c.l.b16 %v1005
  %v1100 = vpack.c.b16 %v1098, %v1097
  %v1101 = vpack.c.b16 %v1099, %v1099
  %v1104 = vsel %vm991, %v1093, 0
  %vm1106 = vcmask 1041408
  %v1108 = vsel %vm1106, %v1101, 0
  %1110 = vmatprep.subr.bf16.mxu0 0
  %1111 = vmatpush1.bf16.msra.mxu0 %v1100
  %1112 = vmatprep.subr.bf16.mxu0 0
  %1113 = vmatpush1.bf16.msra.mxu0 %v1108
  %1114 = vmatprep.subr.bf16.mxu0 0
  %1115 = vmatpush1.bf16.msra.mxu0 0
  %1116 = vmatprep.subr.bf16.mxu0 0
  %1117 = vmatpush1.bf16.msra.mxu0 0
  %1118 = vmatprep.subr.bf16.mxu0 0
  %1119 = vmatpush1.bf16.msra.mxu0 0
  %1120 = vmatprep.subr.bf16.mxu0 0
  %1121 = vmatpush1.bf16.msra.mxu0 0
  %1122 = vmatprep.subr.bf16.mxu0 0
  %1123 = vmatpush1.bf16.msra.mxu0 0
  %1124 = vmatprep.subr.bf16.mxu0 0
  %1125 = vmatpush1.bf16.msra.mxu0 0
  %1126 = vmatprep.subr.bf16.mxu0 0
  %1127 = vmatpush1.bf16.msra.mxu0 0
  %1128 = vmatprep.subr.bf16.mxu0 0
  %1129 = vmatpush1.bf16.msra.mxu0 0
  %1130 = vmatprep.subr.bf16.mxu0 0
  %1131 = vmatpush1.bf16.msra.mxu0 0
  %1132 = vmatprep.subr.bf16.mxu0 0
  %1133 = vmatpush1.bf16.msra.mxu0 0
  %1134 = vmatprep.subr.bf16.mxu0 0
  %1135 = vmatpush1.bf16.msra.mxu0 0
  %1136 = vmatprep.subr.bf16.mxu0 0
  %1137 = vmatpush1.bf16.msra.mxu0 0
  %1138 = vmatprep.subr.bf16.mxu0 0
  %1139 = vmatpush1.bf16.msra.mxu0 0
  %1140 = vmatprep.subr.bf16.mxu0 0
  %1141 = vmatpush1.bf16.msra.mxu0 0
  %1142 = vmatprep.mubr.bf16.mxu0 0
  %1143 = vmatmul.mubr.bf16.gmra.mrb[0].mxu0 %v1104
  %v1144 = vpop.f32.mrb[0].mxu0
  %v1145 = vadd.f32 0.0, %v1144
  %v1146 = vpop.f32.mrb[0].mxu0
  %v1147 = vpop.f32.mrb[0].mxu0
  %v1148 = vpop.f32.mrb[0].mxu0
  %1149 = vdwg.mxu0
  %v1150 = vrot.slane %v1065, 7
  %v1151 = vsel %vm1073, %v1150, %v1064
  %v1152 = vrot.slane %v1066, 6
  %v1153 = vsel %vm1076, %v1152, %v1151
  %v1154 = vrot.slane %v1067, 5
  %v1155 = vsel %vm1079, %v1154, %v1153
  %v1156 = vrot.slane %v1068, 4
  %v1157 = vsel %vm1082, %v1156, %v1155
  %v1158 = vrot.slane %v1069, 3
  %v1159 = vsel %vm1085, %v1158, %v1157
  %v1160 = vrot.slane %v1070, 2
  %v1161 = vsel %vm1088, %v1160, %v1159
  %v1162 = vrot.slane %v1071, 1
  %v1163 = vsel %vm1091, %v1162, %v1161
  %v1164 = vpack.c.b16 %v1163, %v1163
  %v1168 = vunpack.c.l.b16 %v1000
  %v1169 = vunpack.c.l.b16 %v1001
  %v1170 = vunpack.c.l.b16 %v1002
  %v1171 = vpack.c.b16 %v1169, %v1168
  %v1172 = vpack.c.b16 %v1170, %v1170
  %v1175 = vsel %vm991, %v1164, 0
  %v1178 = vsel %vm1106, %v1172, 0
  %1180 = vmatprep.subr.bf16.mxu0 0
  %1181 = vmatpush1.bf16.msra.mxu0 %v1171
  %1182 = vmatprep.subr.bf16.mxu0 0
  %1183 = vmatpush1.bf16.msra.mxu0 %v1178
  %1184 = vmatprep.subr.bf16.mxu0 0
  %1185 = vmatpush1.bf16.msra.mxu0 0
  %1186 = vmatprep.subr.bf16.mxu0 0
  %1187 = vmatpush1.bf16.msra.mxu0 0
  %1188 = vmatprep.subr.bf16.mxu0 0
  %1189 = vmatpush1.bf16.msra.mxu0 0
  %1190 = vmatprep.subr.bf16.mxu0 0
  %1191 = vmatpush1.bf16.msra.mxu0 0
  %1192 = vmatprep.subr.bf16.mxu0 0
  %1193 = vmatpush1.bf16.msra.mxu0 0
  %1194 = vmatprep.subr.bf16.mxu0 0
  %1195 = vmatpush1.bf16.msra.mxu0 0
  %1196 = vmatprep.subr.bf16.mxu0 0
  %1197 = vmatpush1.bf16.msra.mxu0 0
  %1198 = vmatprep.subr.bf16.mxu0 0
  %1199 = vmatpush1.bf16.msra.mxu0 0
  %1200 = vmatprep.subr.bf16.mxu0 0
  %1201 = vmatpush1.bf16.msra.mxu0 0
  %1202 = vmatprep.subr.bf16.mxu0 0
  %1203 = vmatpush1.bf16.msra.mxu0 0
  %1204 = vmatprep.subr.bf16.mxu0 0
  %1205 = vmatpush1.bf16.msra.mxu0 0
  %1206 = vmatprep.subr.bf16.mxu0 0
  %1207 = vmatpush1.bf16.msra.mxu0 0
  %1208 = vmatprep.subr.bf16.mxu0 0
  %1209 = vmatpush1.bf16.msra.mxu0 0
  %1210 = vmatprep.subr.bf16.mxu0 0
  %1211 = vmatpush1.bf16.msra.mxu0 0
  %1212 = vmatprep.mubr.bf16.mxu0 0
  %1213 = vmatmul.mubr.bf16.gmra.mrb[0].mxu0 %v1175
  %v1214 = vpop.f32.mrb[0].mxu0
  %v1215 = vadd.f32 %v1145, %v1214
  %v1216 = vpop.f32.mrb[0].mxu0
  %v1217 = vpop.f32.mrb[0].mxu0
  %v1218 = vpop.f32.mrb[0].mxu0
  %1219 = vdwg.mxu0
  %v1220 = vld [vmem:[#allocation2] sm:$0x2]
  %v1221 = vld [vmem:[#allocation2 + $0x8] sm:$0x2]
  %v1222 = vld [vmem:[#allocation2 + $0x10] sm:$0x2]
  %v1223 = vld [vmem:[#allocation2 + $0x18] sm:$0x2]
  %v1224 = vld [vmem:[#allocation2 + $0x20] sm:$0x2]
  %v1225 = vld [vmem:[#allocation2 + $0x28] sm:$0x2]
  %v1226 = vld [vmem:[#allocation2 + $0x30] sm:$0x2]
  %v1227 = vld [vmem:[#allocation2 + $0x38] sm:$0x2]
  %v1236 = vunpack.c.l.b16 %v1220
  %v1237 = vunpack.c.l.b16 %v1221
  %v1238 = vunpack.c.l.b16 %v1222
  %v1239 = vunpack.c.l.b16 %v1223
  %v1240 = vunpack.c.l.b16 %v1224
  %v1241 = vunpack.c.l.b16 %v1225
  %v1242 = vunpack.c.l.b16 %v1226
  %v1243 = vunpack.c.l.b16 %v1227
  %v1244 = vrot.slane %v1236, 2
  %v1245 = vrot.slane %v1237, 1
  %v1246 = vsel %vm1073, %v1245, %v1244
  %v1247 = vsel %vm1076, %v1238, %v1246
  %v1248 = vrot.slane %v1239, 7
  %v1249 = vsel %vm1079, %v1248, %v1247
  %v1250 = vrot.slane %v1240, 6
  %v1251 = vsel %vm1082, %v1250, %v1249
  %v1252 = vrot.slane %v1241, 5
  %v1253 = vsel %vm1085, %v1252, %v1251
  %v1254 = vrot.slane %v1242, 4
  %v1255 = vsel %vm1088, %v1254, %v1253
  %v1256 = vrot.slane %v1243, 3
  %v1257 = vsel %vm1091, %v1256, %v1255
  %v1258 = vpack.c.b16 %v1257, %v1257
  %v1262 = vunpack.c.l.b16 %v1006
  %v1263 = vunpack.c.l.b16 %v1007
  %v1264 = vunpack.c.l.b16 %v1008
  %v1265 = vpack.c.b16 %v1263, %v1262
  %v1266 = vpack.c.b16 %v1264, %v1264
  %v1269 = vsel %vm991, %v1258, 0
  %v1272 = vsel %vm1106, %v1266, 0
  %1274 = vmatprep.subr.bf16.mxu0 0
  %1275 = vmatpush1.bf16.msra.mxu0 %v1265
  %1276 = vmatprep.subr.bf16.mxu0 0
  %1277 = vmatpush1.bf16.msra.mxu0 %v1272
  %1278 = vmatprep.subr.bf16.mxu0 0
  %1279 = vmatpush1.bf16.msra.mxu0 0
  %1280 = vmatprep.subr.bf16.mxu0 0
  %1281 = vmatpush1.bf16.msra.mxu0 0
  %1282 = vmatprep.subr.bf16.mxu0 0
  %1283 = vmatpush1.bf16.msra.mxu0 0
  %1284 = vmatprep.subr.bf16.mxu0 0
  %1285 = vmatpush1.bf16.msra.mxu0 0
  %1286 = vmatprep.subr.bf16.mxu0 0
  %1287 = vmatpush1.bf16.msra.mxu0 0
  %1288 = vmatprep.subr.bf16.mxu0 0
  %1289 = vmatpush1.bf16.msra.mxu0 0
  %1290 = vmatprep.subr.bf16.mxu0 0
  %1291 = vmatpush1.bf16.msra.mxu0 0
  %1292 = vmatprep.subr.bf16.mxu0 0
  %1293 = vmatpush1.bf16.msra.mxu0 0
  %1294 = vmatprep.subr.bf16.mxu0 0
  %1295 = vmatpush1.bf16.msra.mxu0 0
  %1296 = vmatprep.subr.bf16.mxu0 0
  %1297 = vmatpush1.bf16.msra.mxu0 0
  %1298 = vmatprep.subr.bf16.mxu0 0
  %1299 = vmatpush1.bf16.msra.mxu0 0
  %1300 = vmatprep.subr.bf16.mxu0 0
  %1301 = vmatpush1.bf16.msra.mxu0 0
  %1302 = vmatprep.subr.bf16.mxu0 0
  %1303 = vmatpush1.bf16.msra.mxu0 0
  %1304 = vmatprep.subr.bf16.mxu0 0
  %1305 = vmatpush1.bf16.msra.mxu0 0
  %1306 = vmatprep.mubr.bf16.mxu0 0
  %1307 = vmatmul.mubr.bf16.gmra.mrb[0].mxu0 %v1269
  %v1308 = vpop.f32.mrb[0].mxu0
  %v1309 = vadd.f32 0.0, %v1308
  %v1310 = vpop.f32.mrb[0].mxu0
  %v1311 = vpop.f32.mrb[0].mxu0
  %v1312 = vpop.f32.mrb[0].mxu0
  %1313 = vdwg.mxu0
  %v1314 = vadd.f32 %v1215, %v1309
  %v1315 = vrot.slane %v1236, 3
  %v1316 = vrot.slane %v1237, 2
  %v1317 = vsel %vm1073, %v1316, %v1315
  %v1318 = vrot.slane %v1238, 1
  %v1319 = vsel %vm1076, %v1318, %v1317
  %v1320 = vsel %vm1079, %v1239, %v1319
  %v1321 = vrot.slane %v1240, 7
  %v1322 = vsel %vm1082, %v1321, %v1320
  %v1323 = vrot.slane %v1241, 6
  %v1324 = vsel %vm1085, %v1323, %v1322
  %v1325 = vrot.slane %v1242, 5
  %v1326 = vsel %vm1088, %v1325, %v1324
  %v1327 = vrot.slane %v1243, 4
  %v1328 = vsel %vm1091, %v1327, %v1326
  %v1329 = vpack.c.b16 %v1328, %v1328
  %v1333 = vunpack.c.l.b16 %v1009
  %v1334 = vunpack.c.l.b16 %v1010
  %v1335 = vunpack.c.l.b16 %v1011
  %v1336 = vpack.c.b16 %v1334, %v1333
  %v1337 = vpack.c.b16 %v1335, %v1335
  %v1340 = vsel %vm991, %v1329, 0
  %v1343 = vsel %vm1106, %v1337, 0
  %1345 = vmatprep.subr.bf16.mxu0 0
  %1346 = vmatpush1.bf16.msra.mxu0 %v1336
  %1347 = vmatprep.subr.bf16.mxu0 0
  %1348 = vmatpush1.bf16.msra.mxu0 %v1343
  %1349 = vmatprep.subr.bf16.mxu0 0
  %1350 = vmatpush1.bf16.msra.mxu0 0
  %1351 = vmatprep.subr.bf16.mxu0 0
  %1352 = vmatpush1.bf16.msra.mxu0 0
  %1353 = vmatprep.subr.bf16.mxu0 0
  %1354 = vmatpush1.bf16.msra.mxu0 0
  %1355 = vmatprep.subr.bf16.mxu0 0
  %1356 = vmatpush1.bf16.msra.mxu0 0
  %1357 = vmatprep.subr.bf16.mxu0 0
  %1358 = vmatpush1.bf16.msra.mxu0 0
  %1359 = vmatprep.subr.bf16.mxu0 0
  %1360 = vmatpush1.bf16.msra.mxu0 0
  %1361 = vmatprep.subr.bf16.mxu0 0
  %1362 = vmatpush1.bf16.msra.mxu0 0
  %1363 = vmatprep.subr.bf16.mxu0 0
  %1364 = vmatpush1.bf16.msra.mxu0 0
  %1365 = vmatprep.subr.bf16.mxu0 0
  %1366 = vmatpush1.bf16.msra.mxu0 0
  %1367 = vmatprep.subr.bf16.mxu0 0
  %1368 = vmatpush1.bf16.msra.mxu0 0
  %1369 = vmatprep.subr.bf16.mxu0 0
  %1370 = vmatpush1.bf16.msra.mxu0 0
  %1371 = vmatprep.subr.bf16.mxu0 0
  %1372 = vmatpush1.bf16.msra.mxu0 0
  %1373 = vmatprep.subr.bf16.mxu0 0
  %1374 = vmatpush1.bf16.msra.mxu0 0
  %1375 = vmatprep.subr.bf16.mxu0 0
  %1376 = vmatpush1.bf16.msra.mxu0 0
  %1377 = vmatprep.mubr.bf16.mxu0 0
  %1378 = vmatmul.mubr.bf16.gmra.mrb[0].mxu0 %v1340
  %v1379 = vpop.f32.mrb[0].mxu0
  %v1380 = vadd.f32 0.0, %v1379
  %v1381 = vpop.f32.mrb[0].mxu0
  %v1382 = vpop.f32.mrb[0].mxu0
  %v1383 = vpop.f32.mrb[0].mxu0
  %1384 = vdwg.mxu0
  %v1385 = vadd.f32 %v1314, %v1380
  %v1386 = vld [vmem:[#allocation2] sm:$0x4]
  %v1387 = vld [vmem:[#allocation2 + $0x8] sm:$0x4]
  %v1388 = vld [vmem:[#allocation2 + $0x10] sm:$0x4]
  %v1389 = vld [vmem:[#allocation2 + $0x18] sm:$0x4]
  %v1390 = vld [vmem:[#allocation2 + $0x20] sm:$0x4]
  %v1391 = vld [vmem:[#allocation2 + $0x28] sm:$0x4]
  %v1392 = vld [vmem:[#allocation2 + $0x30] sm:$0x4]
  %v1393 = vld [vmem:[#allocation2 + $0x38] sm:$0x4]
  %v1402 = vunpack.c.l.b16 %v1386
  %v1403 = vunpack.c.l.b16 %v1387
  %v1404 = vunpack.c.l.b16 %v1388
  %v1405 = vunpack.c.l.b16 %v1389
  %v1406 = vunpack.c.l.b16 %v1390
  %v1407 = vunpack.c.l.b16 %v1391
  %v1408 = vunpack.c.l.b16 %v1392
  %v1409 = vunpack.c.l.b16 %v1393
  %v1410 = vrot.slane %v1402, 4
  %v1411 = vrot.slane %v1403, 3
  %v1412 = vsel %vm1073, %v1411, %v1410
  %v1413 = vrot.slane %v1404, 2
  %v1414 = vsel %vm1076, %v1413, %v1412
  %v1415 = vrot.slane %v1405, 1
  %v1416 = vsel %vm1079, %v1415, %v1414
  %v1417 = vsel %vm1082, %v1406, %v1416
  %v1418 = vrot.slane %v1407, 7
  %v1419 = vsel %vm1085, %v1418, %v1417
  %v1420 = vrot.slane %v1408, 6
  %v1421 = vsel %vm1088, %v1420, %v1419
  %v1422 = vrot.slane %v1409, 5
  %v1423 = vsel %vm1091, %v1422, %v1421
  %v1424 = vpack.c.b16 %v1423, %v1423
  %v1428 = vunpack.c.l.b16 %v1012
  %v1429 = vunpack.c.l.b16 %v1013
  %v1430 = vunpack.c.l.b16 %v1014
  %v1431 = vpack.c.b16 %v1429, %v1428
  %v1432 = vpack.c.b16 %v1430, %v1430
  %v1435 = vsel %vm991, %v1424, 0
  %v1438 = vsel %vm1106, %v1432, 0
  %1440 = vmatprep.subr.bf16.mxu0 0
  %1441 = vmatpush1.bf16.msra.mxu0 %v1431
  %1442 = vmatprep.subr.bf16.mxu0 0
  %1443 = vmatpush1.bf16.msra.mxu0 %v1438
  %1444 = vmatprep.subr.bf16.mxu0 0
  %1445 = vmatpush1.bf16.msra.mxu0 0
  %1446 = vmatprep.subr.bf16.mxu0 0
  %1447 = vmatpush1.bf16.msra.mxu0 0
  %1448 = vmatprep.subr.bf16.mxu0 0
  %1449 = vmatpush1.bf16.msra.mxu0 0
  %1450 = vmatprep.subr.bf16.mxu0 0
  %1451 = vmatpush1.bf16.msra.mxu0 0
  %1452 = vmatprep.subr.bf16.mxu0 0
  %1453 = vmatpush1.bf16.msra.mxu0 0
  %1454 = vmatprep.subr.bf16.mxu0 0
  %1455 = vmatpush1.bf16.msra.mxu0 0
  %1456 = vmatprep.subr.bf16.mxu0 0
  %1457 = vmatpush1.bf16.msra.mxu0 0
  %1458 = vmatprep.subr.bf16.mxu0 0
  %1459 = vmatpush1.bf16.msra.mxu0 0
  %1460 = vmatprep.subr.bf16.mxu0 0
  %1461 = vmatpush1.bf16.msra.mxu0 0
  %1462 = vmatprep.subr.bf16.mxu0 0
  %1463 = vmatpush1.bf16.msra.mxu0 0
  %1464 = vmatprep.subr.bf16.mxu0 0
  %1465 = vmatpush1.bf16.msra.mxu0 0
  %1466 = vmatprep.subr.bf16.mxu0 0
  %1467 = vmatpush1.bf16.msra.mxu0 0
  %1468 = vmatprep.subr.bf16.mxu0 0
  %1469 = vmatpush1.bf16.msra.mxu0 0
  %1470 = vmatprep.subr.bf16.mxu0 0
  %1471 = vmatpush1.bf16.msra.mxu0 0
  %1472 = vmatprep.mubr.bf16.mxu0 0
  %1473 = vmatmul.mubr.bf16.gmra.mrb[0].mxu0 %v1435
  %v1474 = vpop.f32.mrb[0].mxu0
  %v1475 = vadd.f32 0.0, %v1474
  %v1476 = vpop.f32.mrb[0].mxu0
  %v1477 = vpop.f32.mrb[0].mxu0
  %v1478 = vpop.f32.mrb[0].mxu0
  %1479 = vdwg.mxu0
  %v1480 = vadd.f32 %v1385, %v1475
  %v1481 = vrot.slane %v1402, 5
  %v1482 = vrot.slane %v1403, 4
  %v1483 = vsel %vm1073, %v1482, %v1481
  %v1484 = vrot.slane %v1404, 3
  %v1485 = vsel %vm1076, %v1484, %v1483
  %v1486 = vrot.slane %v1405, 2
  %v1487 = vsel %vm1079, %v1486, %v1485
  %v1488 = vrot.slane %v1406, 1
  %v1489 = vsel %vm1082, %v1488, %v1487
  %v1490 = vsel %vm1085, %v1407, %v1489
  %v1491 = vrot.slane %v1408, 7
  %v1492 = vsel %vm1088, %v1491, %v1490
  %v1493 = vrot.slane %v1409, 6
  %v1494 = vsel %vm1091, %v1493, %v1492
  %v1495 = vpack.c.b16 %v1494, %v1494
  %v1499 = vunpack.c.l.b16 %v1015
  %v1500 = vunpack.c.l.b16 %v1016
  %v1501 = vunpack.c.l.b16 %v1017
  %v1502 = vpack.c.b16 %v1500, %v1499
  %v1503 = vpack.c.b16 %v1501, %v1501
  %v1506 = vsel %vm991, %v1495, 0
  %v1509 = vsel %vm1106, %v1503, 0
  %1511 = vmatprep.subr.bf16.mxu0 0
  %1512 = vmatpush1.bf16.msra.mxu0 %v1502
  %1513 = vmatprep.subr.bf16.mxu0 0
  %1514 = vmatpush1.bf16.msra.mxu0 %v1509
  %1515 = vmatprep.subr.bf16.mxu0 0
  %1516 = vmatpush1.bf16.msra.mxu0 0
  %1517 = vmatprep.subr.bf16.mxu0 0
  %1518 = vmatpush1.bf16.msra.mxu0 0
  %1519 = vmatprep.subr.bf16.mxu0 0
  %1520 = vmatpush1.bf16.msra.mxu0 0
  %1521 = vmatprep.subr.bf16.mxu0 0
  %1522 = vmatpush1.bf16.msra.mxu0 0
  %1523 = vmatprep.subr.bf16.mxu0 0
  %1524 = vmatpush1.bf16.msra.mxu0 0
  %1525 = vmatprep.subr.bf16.mxu0 0
  %1526 = vmatpush1.bf16.msra.mxu0 0
  %1527 = vmatprep.subr.bf16.mxu0 0
  %1528 = vmatpush1.bf16.msra.mxu0 0
  %1529 = vmatprep.subr.bf16.mxu0 0
  %1530 = vmatpush1.bf16.msra.mxu0 0
  %1531 = vmatprep.subr.bf16.mxu0 0
  %1532 = vmatpush1.bf16.msra.mxu0 0
  %1533 = vmatprep.subr.bf16.mxu0 0
  %1534 = vmatpush1.bf16.msra.mxu0 0
  %1535 = vmatprep.subr.bf16.mxu0 0
  %1536 = vmatpush1.bf16.msra.mxu0 0
  %1537 = vmatprep.subr.bf16.mxu0 0
  %1538 = vmatpush1.bf16.msra.mxu0 0
  %1539 = vmatprep.subr.bf16.mxu0 0
  %1540 = vmatpush1.bf16.msra.mxu0 0
  %1541 = vmatprep.subr.bf16.mxu0 0
  %1542 = vmatpush1.bf16.msra.mxu0 0
  %1543 = vmatprep.mubr.bf16.mxu0 0
  %1544 = vmatmul.mubr.bf16.gmra.mrb[0].mxu0 %v1506
  %v1545 = vpop.f32.mrb[0].mxu0
  %v1546 = vadd.f32 0.0, %v1545
  %v1547 = vpop.f32.mrb[0].mxu0
  %v1548 = vpop.f32.mrb[0].mxu0
  %v1549 = vpop.f32.mrb[0].mxu0
  %1550 = vdwg.mxu0
  %v1551 = vadd.f32 %v1480, %v1546
  %v1552 = vld [vmem:[#allocation2] sm:$0x8]
  %v1553 = vld [vmem:[#allocation2 + $0x8] sm:$0x8]
  %v1554 = vld [vmem:[#allocation2 + $0x10] sm:$0x8]
  %v1555 = vld [vmem:[#allocation2 + $0x18] sm:$0x8]
  %v1556 = vld [vmem:[#allocation2 + $0x20] sm:$0x8]
  %v1557 = vld [vmem:[#allocation2 + $0x28] sm:$0x8]
  %v1558 = vld [vmem:[#allocation2 + $0x30] sm:$0x8]
  %v1559 = vld [vmem:[#allocation2 + $0x38] sm:$0x8]
  %v1568 = vunpack.c.l.b16 %v1552
  %v1569 = vunpack.c.l.b16 %v1553
  %v1570 = vunpack.c.l.b16 %v1554
  %v1571 = vunpack.c.l.b16 %v1555
  %v1572 = vunpack.c.l.b16 %v1556
  %v1573 = vunpack.c.l.b16 %v1557
  %v1574 = vunpack.c.l.b16 %v1558
  %v1575 = vunpack.c.l.b16 %v1559
  %v1576 = vrot.slane %v1568, 6
  %v1577 = vrot.slane %v1569, 5
  %v1578 = vsel %vm1073, %v1577, %v1576
  %v1579 = vrot.slane %v1570, 4
  %v1580 = vsel %vm1076, %v1579, %v1578
  %v1581 = vrot.slane %v1571, 3
  %v1582 = vsel %vm1079, %v1581, %v1580
  %v1583 = vrot.slane %v1572, 2
  %v1584 = vsel %vm1082, %v1583, %v1582
  %v1585 = vrot.slane %v1573, 1
  %v1586 = vsel %vm1085, %v1585, %v1584
  %v1587 = vsel %vm1088, %v1574, %v1586
  %v1588 = vrot.slane %v1575, 7
  %v1589 = vsel %vm1091, %v1588, %v1587
  %v1590 = vpack.c.b16 %v1589, %v1589
  %v1594 = vunpack.c.l.b16 %v1018
  %v1595 = vunpack.c.l.b16 %v1019
  %v1596 = vunpack.c.l.b16 %v1020
  %v1597 = vpack.c.b16 %v1595, %v1594
  %v1598 = vpack.c.b16 %v1596, %v1596
  %v1601 = vsel %vm991, %v1590, 0
  %v1604 = vsel %vm1106, %v1598, 0
  %1606 = vmatprep.subr.bf16.mxu0 0
  %1607 = vmatpush1.bf16.msra.mxu0 %v1597
  %1608 = vmatprep.subr.bf16.mxu0 0
  %1609 = vmatpush1.bf16.msra.mxu0 %v1604
  %1610 = vmatprep.subr.bf16.mxu0 0
  %1611 = vmatpush1.bf16.msra.mxu0 0
  %1612 = vmatprep.subr.bf16.mxu0 0
  %1613 = vmatpush1.bf16.msra.mxu0 0
  %1614 = vmatprep.subr.bf16.mxu0 0
  %1615 = vmatpush1.bf16.msra.mxu0 0
  %1616 = vmatprep.subr.bf16.mxu0 0
  %1617 = vmatpush1.bf16.msra.mxu0 0
  %1618 = vmatprep.subr.bf16.mxu0 0
  %1619 = vmatpush1.bf16.msra.mxu0 0
  %1620 = vmatprep.subr.bf16.mxu0 0
  %1621 = vmatpush1.bf16.msra.mxu0 0
  %1622 = vmatprep.subr.bf16.mxu0 0
  %1623 = vmatpush1.bf16.msra.mxu0 0
  %1624 = vmatprep.subr.bf16.mxu0 0
  %1625 = vmatpush1.bf16.msra.mxu0 0
  %1626 = vmatprep.subr.bf16.mxu0 0
  %1627 = vmatpush1.bf16.msra.mxu0 0
  %1628 = vmatprep.subr.bf16.mxu0 0
  %1629 = vmatpush1.bf16.msra.mxu0 0
  %1630 = vmatprep.subr.bf16.mxu0 0
  %1631 = vmatpush1.bf16.msra.mxu0 0
  %1632 = vmatprep.subr.bf16.mxu0 0
  %1633 = vmatpush1.bf16.msra.mxu0 0
  %1634 = vmatprep.subr.bf16.mxu0 0
  %1635 = vmatpush1.bf16.msra.mxu0 0
  %1636 = vmatprep.subr.bf16.mxu0 0
  %1637 = vmatpush1.bf16.msra.mxu0 0
  %1638 = vmatprep.mubr.bf16.mxu0 0
  %1639 = vmatmul.mubr.bf16.gmra.mrb[0].mxu0 %v1601
  %v1640 = vpop.f32.mrb[0].mxu0
  %v1641 = vadd.f32 0.0, %v1640
  %v1642 = vpop.f32.mrb[0].mxu0
  %v1643 = vpop.f32.mrb[0].mxu0
  %v1644 = vpop.f32.mrb[0].mxu0
  %1645 = vdwg.mxu0
  %v1646 = vadd.f32 %v1551, %v1641
  %v1647 = vrot.slane %v1568, 7
  %v1648 = vrot.slane %v1569, 6
  %v1649 = vsel %vm1073, %v1648, %v1647
  %v1650 = vrot.slane %v1570, 5
  %v1651 = vsel %vm1076, %v1650, %v1649
  %v1652 = vrot.slane %v1571, 4
  %v1653 = vsel %vm1079, %v1652, %v1651
  %v1654 = vrot.slane %v1572, 3
  %v1655 = vsel %vm1082, %v1654, %v1653
  %v1656 = vrot.slane %v1573, 2
  %v1657 = vsel %vm1085, %v1656, %v1655
  %v1658 = vrot.slane %v1574, 1
  %v1659 = vsel %vm1088, %v1658, %v1657
  %v1660 = vsel %vm1091, %v1575, %v1659
  %v1661 = vpack.c.b16 %v1660, %v1660
  %v1665 = vunpack.c.l.b16 %v1021
  %v1666 = vunpack.c.l.b16 %v1022
  %v1667 = vunpack.c.l.b16 %v1023
  %v1668 = vpack.c.b16 %v1666, %v1665
  %v1669 = vpack.c.b16 %v1667, %v1667
  %v1672 = vsel %vm991, %v1661, 0
  %v1675 = vsel %vm1106, %v1669, 0
  %1677 = vmatprep.subr.bf16.mxu0 0
  %1678 = vmatpush1.bf16.msra.mxu0 %v1668
  %1679 = vmatprep.subr.bf16.mxu0 0
  %1680 = vmatpush1.bf16.msra.mxu0 %v1675
  %1681 = vmatprep.subr.bf16.mxu0 0
  %1682 = vmatpush1.bf16.msra.mxu0 0
  %1683 = vmatprep.subr.bf16.mxu0 0
  %1684 = vmatpush1.bf16.msra.mxu0 0
  %1685 = vmatprep.subr.bf16.mxu0 0
  %1686 = vmatpush1.bf16.msra.mxu0 0
  %1687 = vmatprep.subr.bf16.mxu0 0
  %1688 = vmatpush1.bf16.msra.mxu0 0
  %1689 = vmatprep.subr.bf16.mxu0 0
  %1690 = vmatpush1.bf16.msra.mxu0 0
  %1691 = vmatprep.subr.bf16.mxu0 0
  %1692 = vmatpush1.bf16.msra.mxu0 0
  %1693 = vmatprep.subr.bf16.mxu0 0
  %1694 = vmatpush1.bf16.msra.mxu0 0
  %1695 = vmatprep.subr.bf16.mxu0 0
  %1696 = vmatpush1.bf16.msra.mxu0 0
  %1697 = vmatprep.subr.bf16.mxu0 0
  %1698 = vmatpush1.bf16.msra.mxu0 0
  %1699 = vmatprep.subr.bf16.mxu0 0
  %1700 = vmatpush1.bf16.msra.mxu0 0
  %1701 = vmatprep.subr.bf16.mxu0 0
  %1702 = vmatpush1.bf16.msra.mxu0 0
  %1703 = vmatprep.subr.bf16.mxu0 0
  %1704 = vmatpush1.bf16.msra.mxu0 0
  %1705 = vmatprep.subr.bf16.mxu0 0
  %1706 = vmatpush1.bf16.msra.mxu0 0
  %1707 = vmatprep.subr.bf16.mxu0 0
  %1708 = vmatpush1.bf16.msra.mxu0 0
  %1709 = vmatprep.mubr.bf16.mxu0 0
  %1710 = vmatmul.mubr.bf16.gmra.mrb[0].mxu0 %v1672
  %v1711 = vpop.f32.mrb[0].mxu0
  %v1712 = vadd.f32 0.0, %v1711
  %v1713 = vpop.f32.mrb[0].mxu0
  %v1714 = vpop.f32.mrb[0].mxu0
  %v1715 = vpop.f32.mrb[0].mxu0
  %1716 = vdwg.mxu0
  %v1717 = vadd.f32 %v1646, %v1712
  %v1718 = vld [vmem:[#allocation2] sm:$0x10]
  %v1719 = vld [vmem:[#allocation2 + $0x8] sm:$0x10]
  %v1720 = vld [vmem:[#allocation2 + $0x10] sm:$0x10]
  %v1721 = vld [vmem:[#allocation2 + $0x18] sm:$0x10]
  %v1722 = vld [vmem:[#allocation2 + $0x20] sm:$0x10]
  %v1723 = vld [vmem:[#allocation2 + $0x28] sm:$0x10]
  %v1724 = vld [vmem:[#allocation2 + $0x30] sm:$0x10]
  %v1725 = vld [vmem:[#allocation2 + $0x38] sm:$0x10]
  %v1734 = vunpack.c.h.b16 %v1718
  %v1735 = vunpack.c.h.b16 %v1719
  %v1736 = vunpack.c.h.b16 %v1720
  %v1737 = vunpack.c.h.b16 %v1721
  %v1738 = vunpack.c.h.b16 %v1722
  %v1739 = vunpack.c.h.b16 %v1723
  %v1740 = vunpack.c.h.b16 %v1724
  %v1741 = vunpack.c.h.b16 %v1725
  %v1742 = vrot.slane %v1735, 7
  %v1743 = vsel %vm1073, %v1742, %v1734
  %v1744 = vrot.slane %v1736, 6
  %v1745 = vsel %vm1076, %v1744, %v1743
  %v1746 = vrot.slane %v1737, 5
  %v1747 = vsel %vm1079, %v1746, %v1745
  %v1748 = vrot.slane %v1738, 4
  %v1749 = vsel %vm1082, %v1748, %v1747
  %v1750 = vrot.slane %v1739, 3
  %v1751 = vsel %vm1085, %v1750, %v1749
  %v1752 = vrot.slane %v1740, 2
  %v1753 = vsel %vm1088, %v1752, %v1751
  %v1754 = vrot.slane %v1741, 1
  %v1755 = vsel %vm1091, %v1754, %v1753
  %v1756 = vpack.c.b16 %v1755, %v1755
  %v1760 = vunpack.c.l.b16 %v1024
  %v1761 = vunpack.c.l.b16 %v1025
  %v1762 = vunpack.c.l.b16 %v1026
  %v1763 = vpack.c.b16 %v1761, %v1760
  %v1764 = vpack.c.b16 %v1762, %v1762
  %v1767 = vsel %vm991, %v1756, 0
  %v1770 = vsel %vm1106, %v1764, 0
  %1772 = vmatprep.subr.bf16.mxu0 0
  %1773 = vmatpush1.bf16.msra.mxu0 %v1763
  %1774 = vmatprep.subr.bf16.mxu0 0
  %1775 = vmatpush1.bf16.msra.mxu0 %v1770
  %1776 = vmatprep.subr.bf16.mxu0 0
  %1777 = vmatpush1.bf16.msra.mxu0 0
  %1778 = vmatprep.subr.bf16.mxu0 0
  %1779 = vmatpush1.bf16.msra.mxu0 0
  %1780 = vmatprep.subr.bf16.mxu0 0
  %1781 = vmatpush1.bf16.msra.mxu0 0
  %1782 = vmatprep.subr.bf16.mxu0 0
  %1783 = vmatpush1.bf16.msra.mxu0 0
  %1784 = vmatprep.subr.bf16.mxu0 0
  %1785 = vmatpush1.bf16.msra.mxu0 0
  %1786 = vmatprep.subr.bf16.mxu0 0
  %1787 = vmatpush1.bf16.msra.mxu0 0
  %1788 = vmatprep.subr.bf16.mxu0 0
  %1789 = vmatpush1.bf16.msra.mxu0 0
  %1790 = vmatprep.subr.bf16.mxu0 0
  %1791 = vmatpush1.bf16.msra.mxu0 0
  %1792 = vmatprep.subr.bf16.mxu0 0
  %1793 = vmatpush1.bf16.msra.mxu0 0
  %1794 = vmatprep.subr.bf16.mxu0 0
  %1795 = vmatpush1.bf16.msra.mxu0 0
  %1796 = vmatprep.subr.bf16.mxu0 0
  %1797 = vmatpush1.bf16.msra.mxu0 0
  %1798 = vmatprep.subr.bf16.mxu0 0
  %1799 = vmatpush1.bf16.msra.mxu0 0
  %1800 = vmatprep.subr.bf16.mxu0 0
  %1801 = vmatpush1.bf16.msra.mxu0 0
  %1802 = vmatprep.subr.bf16.mxu0 0
  %1803 = vmatpush1.bf16.msra.mxu0 0
  %1804 = vmatprep.mubr.bf16.mxu0 0
  %1805 = vmatmul.mubr.bf16.gmra.mrb[0].mxu0 %v1767
  %v1806 = vpop.f32.mrb[0].mxu0
  %v1807 = vadd.f32 0.0, %v1806
  %v1808 = vpop.f32.mrb[0].mxu0
  %v1809 = vpop.f32.mrb[0].mxu0
  %v1810 = vpop.f32.mrb[0].mxu0
  %1811 = vdwg.mxu0
  %v1812 = vadd.f32 %v1717, %v1807
  %v1813 = vrot.slane %v1734, 1
  %v1814 = vsel %vm1073, %v1735, %v1813
  %v1815 = vrot.slane %v1736, 7
  %v1816 = vsel %vm1076, %v1815, %v1814
  %v1817 = vrot.slane %v1737, 6
  %v1818 = vsel %vm1079, %v1817, %v1816
  %v1819 = vrot.slane %v1738, 5
  %v1820 = vsel %vm1082, %v1819, %v1818
  %v1821 = vrot.slane %v1739, 4
  %v1822 = vsel %vm1085, %v1821, %v1820
  %v1823 = vrot.slane %v1740, 3
  %v1824 = vsel %vm1088, %v1823, %v1822
  %v1825 = vrot.slane %v1741, 2
  %v1826 = vsel %vm1091, %v1825, %v1824
  %v1827 = vpack.c.b16 %v1826, %v1826
  %v1831 = vunpack.c.l.b16 %v1027
  %v1832 = vunpack.c.l.b16 %v1028
  %v1833 = vunpack.c.l.b16 %v1029
  %v1834 = vpack.c.b16 %v1832, %v1831
  %v1835 = vpack.c.b16 %v1833, %v1833
  %v1838 = vsel %vm991, %v1827, 0
  %v1841 = vsel %vm1106, %v1835, 0
  %1843 = vmatprep.subr.bf16.mxu0 0
  %1844 = vmatpush1.bf16.msra.mxu0 %v1834
  %1845 = vmatprep.subr.bf16.mxu0 0
  %1846 = vmatpush1.bf16.msra.mxu0 %v1841
  %1847 = vmatprep.subr.bf16.mxu0 0
  %1848 = vmatpush1.bf16.msra.mxu0 0
  %1849 = vmatprep.subr.bf16.mxu0 0
  %1850 = vmatpush1.bf16.msra.mxu0 0
  %1851 = vmatprep.subr.bf16.mxu0 0
  %1852 = vmatpush1.bf16.msra.mxu0 0
  %1853 = vmatprep.subr.bf16.mxu0 0
  %1854 = vmatpush1.bf16.msra.mxu0 0
  %1855 = vmatprep.subr.bf16.mxu0 0
  %1856 = vmatpush1.bf16.msra.mxu0 0
  %1857 = vmatprep.subr.bf16.mxu0 0
  %1858 = vmatpush1.bf16.msra.mxu0 0
  %1859 = vmatprep.subr.bf16.mxu0 0
  %1860 = vmatpush1.bf16.msra.mxu0 0
  %1861 = vmatprep.subr.bf16.mxu0 0
  %1862 = vmatpush1.bf16.msra.mxu0 0
  %1863 = vmatprep.subr.bf16.mxu0 0
  %1864 = vmatpush1.bf16.msra.mxu0 0
  %1865 = vmatprep.subr.bf16.mxu0 0
  %1866 = vmatpush1.bf16.msra.mxu0 0
  %1867 = vmatprep.subr.bf16.mxu0 0
  %1868 = vmatpush1.bf16.msra.mxu0 0
  %1869 = vmatprep.subr.bf16.mxu0 0
  %1870 = vmatpush1.bf16.msra.mxu0 0
  %1871 = vmatprep.subr.bf16.mxu0 0
  %1872 = vmatpush1.bf16.msra.mxu0 0
  %1873 = vmatprep.subr.bf16.mxu0 0
  %1874 = vmatpush1.bf16.msra.mxu0 0
  %1875 = vmatprep.mubr.bf16.mxu0 0
  %1876 = vmatmul.mubr.bf16.gmra.mrb[0].mxu0 %v1838
  %v1877 = vpop.f32.mrb[0].mxu0
  %v1878 = vadd.f32 0.0, %v1877
  %v1879 = vpop.f32.mrb[0].mxu0
  %v1880 = vpop.f32.mrb[0].mxu0
  %v1881 = vpop.f32.mrb[0].mxu0
  %1882 = vdwg.mxu0
  %v1883 = vadd.f32 %v1812, %v1878
  %v1884 = vld [vmem:[#allocation2] sm:$0x20]
  %v1885 = vld [vmem:[#allocation2 + $0x8] sm:$0x20]
  %v1886 = vld [vmem:[#allocation2 + $0x10] sm:$0x20]
  %v1887 = vld [vmem:[#allocation2 + $0x18] sm:$0x20]
  %v1888 = vld [vmem:[#allocation2 + $0x20] sm:$0x20]
  %v1889 = vld [vmem:[#allocation2 + $0x28] sm:$0x20]
  %v1890 = vld [vmem:[#allocation2 + $0x30] sm:$0x20]
  %v1891 = vld [vmem:[#allocation2 + $0x38] sm:$0x20]
  %v1900 = vunpack.c.h.b16 %v1884
  %v1901 = vunpack.c.h.b16 %v1885
  %v1902 = vunpack.c.h.b16 %v1886
  %v1903 = vunpack.c.h.b16 %v1887
  %v1904 = vunpack.c.h.b16 %v1888
  %v1905 = vunpack.c.h.b16 %v1889
  %v1906 = vunpack.c.h.b16 %v1890
  %v1907 = vunpack.c.h.b16 %v1891
  %v1908 = vrot.slane %v1900, 2
  %v1909 = vrot.slane %v1901, 1
  %v1910 = vsel %vm1073, %v1909, %v1908
  %v1911 = vsel %vm1076, %v1902, %v1910
  %v1912 = vrot.slane %v1903, 7
  %v1913 = vsel %vm1079, %v1912, %v1911
  %v1914 = vrot.slane %v1904, 6
  %v1915 = vsel %vm1082, %v1914, %v1913
  %v1916 = vrot.slane %v1905, 5
  %v1917 = vsel %vm1085, %v1916, %v1915
  %v1918 = vrot.slane %v1906, 4
  %v1919 = vsel %vm1088, %v1918, %v1917
  %v1920 = vrot.slane %v1907, 3
  %v1921 = vsel %vm1091, %v1920, %v1919
  %v1922 = vpack.c.b16 %v1921, %v1921
  %v1926 = vunpack.c.l.b16 %v1030
  %v1927 = vunpack.c.l.b16 %v1031
  %v1928 = vunpack.c.l.b16 %v1032
  %v1929 = vpack.c.b16 %v1927, %v1926
  %v1930 = vpack.c.b16 %v1928, %v1928
  %v1933 = vsel %vm991, %v1922, 0
  %v1936 = vsel %vm1106, %v1930, 0
  %1938 = vmatprep.subr.bf16.mxu0 0
  %1939 = vmatpush1.bf16.msra.mxu0 %v1929
  %1940 = vmatprep.subr.bf16.mxu0 0
  %1941 = vmatpush1.bf16.msra.mxu0 %v1936
  %1942 = vmatprep.subr.bf16.mxu0 0
  %1943 = vmatpush1.bf16.msra.mxu0 0
  %1944 = vmatprep.subr.bf16.mxu0 0
  %1945 = vmatpush1.bf16.msra.mxu0 0
  %1946 = vmatprep.subr.bf16.mxu0 0
  %1947 = vmatpush1.bf16.msra.mxu0 0
  %1948 = vmatprep.subr.bf16.mxu0 0
  %1949 = vmatpush1.bf16.msra.mxu0 0
  %1950 = vmatprep.subr.bf16.mxu0 0
  %1951 = vmatpush1.bf16.msra.mxu0 0
  %1952 = vmatprep.subr.bf16.mxu0 0
  %1953 = vmatpush1.bf16.msra.mxu0 0
  %1954 = vmatprep.subr.bf16.mxu0 0
  %1955 = vmatpush1.bf16.msra.mxu0 0
  %1956 = vmatprep.subr.bf16.mxu0 0
  %1957 = vmatpush1.bf16.msra.mxu0 0
  %1958 = vmatprep.subr.bf16.mxu0 0
  %1959 = vmatpush1.bf16.msra.mxu0 0
  %1960 = vmatprep.subr.bf16.mxu0 0
  %1961 = vmatpush1.bf16.msra.mxu0 0
  %1962 = vmatprep.subr.bf16.mxu0 0
  %1963 = vmatpush1.bf16.msra.mxu0 0
  %1964 = vmatprep.subr.bf16.mxu0 0
  %1965 = vmatpush1.bf16.msra.mxu0 0
  %1966 = vmatprep.subr.bf16.mxu0 0
  %1967 = vmatpush1.bf16.msra.mxu0 0
  %1968 = vmatprep.subr.bf16.mxu0 0
  %1969 = vmatpush1.bf16.msra.mxu0 0
  %1970 = vmatprep.mubr.bf16.mxu0 0
  %1971 = vmatmul.mubr.bf16.gmra.mrb[0].mxu0 %v1933
  %v1972 = vpop.f32.mrb[0].mxu0
  %v1973 = vadd.f32 0.0, %v1972
  %v1974 = vpop.f32.mrb[0].mxu0
  %v1975 = vpop.f32.mrb[0].mxu0
  %v1976 = vpop.f32.mrb[0].mxu0
  %1977 = vdwg.mxu0
  %v1978 = vadd.f32 %v1883, %v1973
  %v1979 = vrot.slane %v1900, 3
  %v1980 = vrot.slane %v1901, 2
  %v1981 = vsel %vm1073, %v1980, %v1979
  %v1982 = vrot.slane %v1902, 1
  %v1983 = vsel %vm1076, %v1982, %v1981
  %v1984 = vsel %vm1079, %v1903, %v1983
  %v1985 = vrot.slane %v1904, 7
  %v1986 = vsel %vm1082, %v1985, %v1984
  %v1987 = vrot.slane %v1905, 6
  %v1988 = vsel %vm1085, %v1987, %v1986
  %v1989 = vrot.slane %v1906, 5
  %v1990 = vsel %vm1088, %v1989, %v1988
  %v1991 = vrot.slane %v1907, 4
  %v1992 = vsel %vm1091, %v1991, %v1990
  %v1993 = vpack.c.b16 %v1992, %v1992
  %v1997 = vunpack.c.l.b16 %v1033
  %v1998 = vunpack.c.l.b16 %v1034
  %v1999 = vunpack.c.l.b16 %v1035
  %v2000 = vpack.c.b16 %v1998, %v1997
  %v2001 = vpack.c.b16 %v1999, %v1999
  %v2004 = vsel %vm991, %v1993, 0
  %v2007 = vsel %vm1106, %v2001, 0
  %2009 = vmatprep.subr.bf16.mxu0 0
  %2010 = vmatpush1.bf16.msra.mxu0 %v2000
  %2011 = vmatprep.subr.bf16.mxu0 0
  %2012 = vmatpush1.bf16.msra.mxu0 %v2007
  %2013 = vmatprep.subr.bf16.mxu0 0
  %2014 = vmatpush1.bf16.msra.mxu0 0
  %2015 = vmatprep.subr.bf16.mxu0 0
  %2016 = vmatpush1.bf16.msra.mxu0 0
  %2017 = vmatprep.subr.bf16.mxu0 0
  %2018 = vmatpush1.bf16.msra.mxu0 0
  %2019 = vmatprep.subr.bf16.mxu0 0
  %2020 = vmatpush1.bf16.msra.mxu0 0
  %2021 = vmatprep.subr.bf16.mxu0 0
  %2022 = vmatpush1.bf16.msra.mxu0 0
  %2023 = vmatprep.subr.bf16.mxu0 0
  %2024 = vmatpush1.bf16.msra.mxu0 0
  %2025 = vmatprep.subr.bf16.mxu0 0
  %2026 = vmatpush1.bf16.msra.mxu0 0
  %2027 = vmatprep.subr.bf16.mxu0 0
  %2028 = vmatpush1.bf16.msra.mxu0 0
  %2029 = vmatprep.subr.bf16.mxu0 0
  %2030 = vmatpush1.bf16.msra.mxu0 0
  %2031 = vmatprep.subr.bf16.mxu0 0
  %2032 = vmatpush1.bf16.msra.mxu0 0
  %2033 = vmatprep.subr.bf16.mxu0 0
  %2034 = vmatpush1.bf16.msra.mxu0 0
  %2035 = vmatprep.subr.bf16.mxu0 0
  %2036 = vmatpush1.bf16.msra.mxu0 0
  %2037 = vmatprep.subr.bf16.mxu0 0
  %2038 = vmatpush1.bf16.msra.mxu0 0
  %2039 = vmatprep.subr.bf16.mxu0 0
  %2040 = vmatpush1.bf16.msra.mxu0 0
  %2041 = vmatprep.mubr.bf16.mxu0 0
  %2042 = vmatmul.mubr.bf16.gmra.mrb[0].mxu0 %v2004
  %v2043 = vpop.f32.mrb[0].mxu0
  %v2044 = vadd.f32 0.0, %v2043
  %v2045 = vpop.f32.mrb[0].mxu0
  %v2046 = vpop.f32.mrb[0].mxu0
  %v2047 = vpop.f32.mrb[0].mxu0
  %2048 = vdwg.mxu0
  %v2049 = vadd.f32 %v1978, %v2044
  %v2050 = vld [vmem:[#allocation2] sm:$0x40]
  %v2051 = vld [vmem:[#allocation2 + $0x8] sm:$0x40]
  %v2052 = vld [vmem:[#allocation2 + $0x10] sm:$0x40]
  %v2053 = vld [vmem:[#allocation2 + $0x18] sm:$0x40]
  %v2054 = vld [vmem:[#allocation2 + $0x20] sm:$0x40]
  %v2055 = vld [vmem:[#allocation2 + $0x28] sm:$0x40]
  %v2056 = vld [vmem:[#allocation2 + $0x30] sm:$0x40]
  %v2057 = vld [vmem:[#allocation2 + $0x38] sm:$0x40]
  %v2066 = vunpack.c.h.b16 %v2050
  %v2067 = vunpack.c.h.b16 %v2051
  %v2068 = vunpack.c.h.b16 %v2052
  %v2069 = vunpack.c.h.b16 %v2053
  %v2070 = vunpack.c.h.b16 %v2054
  %v2071 = vunpack.c.h.b16 %v2055
  %v2072 = vunpack.c.h.b16 %v2056
  %v2073 = vunpack.c.h.b16 %v2057
  %v2074 = vrot.slane %v2066, 4
  %v2075 = vrot.slane %v2067, 3
  %v2076 = vsel %vm1073, %v2075, %v2074
  %v2077 = vrot.slane %v2068, 2
  %v2078 = vsel %vm1076, %v2077, %v2076
  %v2079 = vrot.slane %v2069, 1
  %v2080 = vsel %vm1079, %v2079, %v2078
  %v2081 = vsel %vm1082, %v2070, %v2080
  %v2082 = vrot.slane %v2071, 7
  %v2083 = vsel %vm1085, %v2082, %v2081
  %v2084 = vrot.slane %v2072, 6
  %v2085 = vsel %vm1088, %v2084, %v2083
  %v2086 = vrot.slane %v2073, 5
  %v2087 = vsel %vm1091, %v2086, %v2085
  %v2088 = vpack.c.b16 %v2087, %v2087
  %v2092 = vunpack.c.l.b16 %v1036
  %v2093 = vunpack.c.l.b16 %v1037
  %v2094 = vunpack.c.l.b16 %v1038
  %v2095 = vpack.c.b16 %v2093, %v2092
  %v2096 = vpack.c.b16 %v2094, %v2094
  %v2099 = vsel %vm991, %v2088, 0
  %v2102 = vsel %vm1106, %v2096, 0
  %2104 = vmatprep.subr.bf16.mxu0 0
  %2105 = vmatpush1.bf16.msra.mxu0 %v2095
  %2106 = vmatprep.subr.bf16.mxu0 0
  %2107 = vmatpush1.bf16.msra.mxu0 %v2102
  %2108 = vmatprep.subr.bf16.mxu0 0
  %2109 = vmatpush1.bf16.msra.mxu0 0
  %2110 = vmatprep.subr.bf16.mxu0 0
  %2111 = vmatpush1.bf16.msra.mxu0 0
  %2112 = vmatprep.subr.bf16.mxu0 0
  %2113 = vmatpush1.bf16.msra.mxu0 0
  %2114 = vmatprep.subr.bf16.mxu0 0
  %2115 = vmatpush1.bf16.msra.mxu0 0
  %2116 = vmatprep.subr.bf16.mxu0 0
  %2117 = vmatpush1.bf16.msra.mxu0 0
  %2118 = vmatprep.subr.bf16.mxu0 0
  %2119 = vmatpush1.bf16.msra.mxu0 0
  %2120 = vmatprep.subr.bf16.mxu0 0
  %2121 = vmatpush1.bf16.msra.mxu0 0
  %2122 = vmatprep.subr.bf16.mxu0 0
  %2123 = vmatpush1.bf16.msra.mxu0 0
  %2124 = vmatprep.subr.bf16.mxu0 0
  %2125 = vmatpush1.bf16.msra.mxu0 0
  %2126 = vmatprep.subr.bf16.mxu0 0
  %2127 = vmatpush1.bf16.msra.mxu0 0
  %2128 = vmatprep.subr.bf16.mxu0 0
  %2129 = vmatpush1.bf16.msra.mxu0 0
  %2130 = vmatprep.subr.bf16.mxu0 0
  %2131 = vmatpush1.bf16.msra.mxu0 0
  %2132 = vmatprep.subr.bf16.mxu0 0
  %2133 = vmatpush1.bf16.msra.mxu0 0
  %2134 = vmatprep.subr.bf16.mxu0 0
  %2135 = vmatpush1.bf16.msra.mxu0 0
  %2136 = vmatprep.mubr.bf16.mxu0 0
  %2137 = vmatmul.mubr.bf16.gmra.mrb[0].mxu0 %v2099
  %v2138 = vpop.f32.mrb[0].mxu0
  %v2139 = vadd.f32 0.0, %v2138
  %v2140 = vpop.f32.mrb[0].mxu0
  %v2141 = vpop.f32.mrb[0].mxu0
  %v2142 = vpop.f32.mrb[0].mxu0
  %2143 = vdwg.mxu0
  %v2144 = vadd.f32 %v2049, %v2139
  %v2145 = vrot.slane %v2066, 5
  %v2146 = vrot.slane %v2067, 4
  %v2147 = vsel %vm1073, %v2146, %v2145
  %v2148 = vrot.slane %v2068, 3
  %v2149 = vsel %vm1076, %v2148, %v2147
  %v2150 = vrot.slane %v2069, 2
  %v2151 = vsel %vm1079, %v2150, %v2149
  %v2152 = vrot.slane %v2070, 1
  %v2153 = vsel %vm1082, %v2152, %v2151
  %v2154 = vsel %vm1085, %v2071, %v2153
  %v2155 = vrot.slane %v2072, 7
  %v2156 = vsel %vm1088, %v2155, %v2154
  %v2157 = vrot.slane %v2073, 6
  %v2158 = vsel %vm1091, %v2157, %v2156
  %v2159 = vpack.c.b16 %v2158, %v2158
  %v2163 = vunpack.c.l.b16 %v1039
  %v2164 = vunpack.c.l.b16 %v1040
  %v2165 = vunpack.c.l.b16 %v1041
  %v2166 = vpack.c.b16 %v2164, %v2163
  %v2167 = vpack.c.b16 %v2165, %v2165
  %v2170 = vsel %vm991, %v2159, 0
  %v2173 = vsel %vm1106, %v2167, 0
  %2175 = vmatprep.subr.bf16.mxu0 0
  %2176 = vmatpush1.bf16.msra.mxu0 %v2166
  %2177 = vmatprep.subr.bf16.mxu0 0
  %2178 = vmatpush1.bf16.msra.mxu0 %v2173
  %2179 = vmatprep.subr.bf16.mxu0 0
  %2180 = vmatpush1.bf16.msra.mxu0 0
  %2181 = vmatprep.subr.bf16.mxu0 0
  %2182 = vmatpush1.bf16.msra.mxu0 0
  %2183 = vmatprep.subr.bf16.mxu0 0
  %2184 = vmatpush1.bf16.msra.mxu0 0
  %2185 = vmatprep.subr.bf16.mxu0 0
  %2186 = vmatpush1.bf16.msra.mxu0 0
  %2187 = vmatprep.subr.bf16.mxu0 0
  %2188 = vmatpush1.bf16.msra.mxu0 0
  %2189 = vmatprep.subr.bf16.mxu0 0
  %2190 = vmatpush1.bf16.msra.mxu0 0
  %2191 = vmatprep.subr.bf16.mxu0 0
  %2192 = vmatpush1.bf16.msra.mxu0 0
  %2193 = vmatprep.subr.bf16.mxu0 0
  %2194 = vmatpush1.bf16.msra.mxu0 0
  %2195 = vmatprep.subr.bf16.mxu0 0
  %2196 = vmatpush1.bf16.msra.mxu0 0
  %2197 = vmatprep.subr.bf16.mxu0 0
  %2198 = vmatpush1.bf16.msra.mxu0 0
  %2199 = vmatprep.subr.bf16.mxu0 0
  %2200 = vmatpush1.bf16.msra.mxu0 0
  %2201 = vmatprep.subr.bf16.mxu0 0
  %2202 = vmatpush1.bf16.msra.mxu0 0
  %2203 = vmatprep.subr.bf16.mxu0 0
  %2204 = vmatpush1.bf16.msra.mxu0 0
  %2205 = vmatprep.subr.bf16.mxu0 0
  %2206 = vmatpush1.bf16.msra.mxu0 0
  %2207 = vmatprep.mubr.bf16.mxu0 0
  %2208 = vmatmul.mubr.bf16.gmra.mrb[0].mxu0 %v2170
  %v2209 = vpop.f32.mrb[0].mxu0
  %v2210 = vadd.f32 0.0, %v2209
  %v2211 = vpop.f32.mrb[0].mxu0
  %v2212 = vpop.f32.mrb[0].mxu0
  %v2213 = vpop.f32.mrb[0].mxu0
  %2214 = vdwg.mxu0
  %v2215 = vadd.f32 %v2144, %v2210
  %v2216 = vld [vmem:[#allocation2] sm:$0x80]
  %v2217 = vld [vmem:[#allocation2 + $0x8] sm:$0x80]
  %v2218 = vld [vmem:[#allocation2 + $0x10] sm:$0x80]
  %v2219 = vld [vmem:[#allocation2 + $0x18] sm:$0x80]
  %v2220 = vld [vmem:[#allocation2 + $0x20] sm:$0x80]
  %v2221 = vld [vmem:[#allocation2 + $0x28] sm:$0x80]
  %v2222 = vld [vmem:[#allocation2 + $0x30] sm:$0x80]
  %v2223 = vld [vmem:[#allocation2 + $0x38] sm:$0x80]
  %v2232 = vunpack.c.h.b16 %v2216
  %v2233 = vunpack.c.h.b16 %v2217
  %v2234 = vunpack.c.h.b16 %v2218
  %v2235 = vunpack.c.h.b16 %v2219
  %v2236 = vunpack.c.h.b16 %v2220
  %v2237 = vunpack.c.h.b16 %v2221
  %v2238 = vunpack.c.h.b16 %v2222
  %v2239 = vunpack.c.h.b16 %v2223
  %v2240 = vrot.slane %v2232, 6
  %v2241 = vrot.slane %v2233, 5
  %v2242 = vsel %vm1073, %v2241, %v2240
  %v2243 = vrot.slane %v2234, 4
  %v2244 = vsel %vm1076, %v2243, %v2242
  %v2245 = vrot.slane %v2235, 3
  %v2246 = vsel %vm1079, %v2245, %v2244
  %v2247 = vrot.slane %v2236, 2
  %v2248 = vsel %vm1082, %v2247, %v2246
  %v2249 = vrot.slane %v2237, 1
  %v2250 = vsel %vm1085, %v2249, %v2248
  %v2251 = vsel %vm1088, %v2238, %v2250
  %v2252 = vrot.slane %v2239, 7
  %v2253 = vsel %vm1091, %v2252, %v2251
  %v2254 = vpack.c.b16 %v2253, %v2253
  %v2258 = vunpack.c.l.b16 %v1042
  %v2259 = vunpack.c.l.b16 %v1043
  %v2260 = vunpack.c.l.b16 %v1044
  %v2261 = vpack.c.b16 %v2259, %v2258
  %v2262 = vpack.c.b16 %v2260, %v2260
  %v2265 = vsel %vm991, %v2254, 0
  %v2268 = vsel %vm1106, %v2262, 0
  %2270 = vmatprep.subr.bf16.mxu0 0
  %2271 = vmatpush1.bf16.msra.mxu0 %v2261
  %2272 = vmatprep.subr.bf16.mxu0 0
  %2273 = vmatpush1.bf16.msra.mxu0 %v2268
  %2274 = vmatprep.subr.bf16.mxu0 0
  %2275 = vmatpush1.bf16.msra.mxu0 0
  %2276 = vmatprep.subr.bf16.mxu0 0
  %2277 = vmatpush1.bf16.msra.mxu0 0
  %2278 = vmatprep.subr.bf16.mxu0 0
  %2279 = vmatpush1.bf16.msra.mxu0 0
  %2280 = vmatprep.subr.bf16.mxu0 0
  %2281 = vmatpush1.bf16.msra.mxu0 0
  %2282 = vmatprep.subr.bf16.mxu0 0
  %2283 = vmatpush1.bf16.msra.mxu0 0
  %2284 = vmatprep.subr.bf16.mxu0 0
  %2285 = vmatpush1.bf16.msra.mxu0 0
  %2286 = vmatprep.subr.bf16.mxu0 0
  %2287 = vmatpush1.bf16.msra.mxu0 0
  %2288 = vmatprep.subr.bf16.mxu0 0
  %2289 = vmatpush1.bf16.msra.mxu0 0
  %2290 = vmatprep.subr.bf16.mxu0 0
  %2291 = vmatpush1.bf16.msra.mxu0 0
  %2292 = vmatprep.subr.bf16.mxu0 0
  %2293 = vmatpush1.bf16.msra.mxu0 0
  %2294 = vmatprep.subr.bf16.mxu0 0
  %2295 = vmatpush1.bf16.msra.mxu0 0
  %2296 = vmatprep.subr.bf16.mxu0 0
  %2297 = vmatpush1.bf16.msra.mxu0 0
  %2298 = vmatprep.subr.bf16.mxu0 0
  %2299 = vmatpush1.bf16.msra.mxu0 0
  %2300 = vmatprep.subr.bf16.mxu0 0
  %2301 = vmatpush1.bf16.msra.mxu0 0
  %2302 = vmatprep.mubr.bf16.mxu0 0
  %2303 = vmatmul.mubr.bf16.gmra.mrb[0].mxu0 %v2265
  %v2304 = vpop.f32.mrb[0].mxu0
  %v2305 = vadd.f32 0.0, %v2304
  %v2306 = vpop.f32.mrb[0].mxu0
  %v2307 = vpop.f32.mrb[0].mxu0
  %v2308 = vpop.f32.mrb[0].mxu0
  %2309 = vdwg.mxu0
  %v2310 = vadd.f32 %v2215, %v2305
  %v2311 = vrot.slane %v2232, 7
  %v2312 = vrot.slane %v2233, 6
  %v2313 = vsel %vm1073, %v2312, %v2311
  %v2314 = vrot.slane %v2234, 5
  %v2315 = vsel %vm1076, %v2314, %v2313
  %v2316 = vrot.slane %v2235, 4
  %v2317 = vsel %vm1079, %v2316, %v2315
  %v2318 = vrot.slane %v2236, 3
  %v2319 = vsel %vm1082, %v2318, %v2317
  %v2320 = vrot.slane %v2237, 2
  %v2321 = vsel %vm1085, %v2320, %v2319
  %v2322 = vrot.slane %v2238, 1
  %v2323 = vsel %vm1088, %v2322, %v2321
  %v2324 = vsel %vm1091, %v2239, %v2323
  %v2325 = vpack.c.b16 %v2324, %v2324
  %v2329 = vunpack.c.l.b16 %v1045
  %v2330 = vunpack.c.l.b16 %v1046
  %v2331 = vunpack.c.l.b16 %v1047
  %v2332 = vpack.c.b16 %v2330, %v2329
  %v2333 = vpack.c.b16 %v2331, %v2331
  %v2336 = vsel %vm991, %v2325, 0
  %v2339 = vsel %vm1106, %v2333, 0
  %2341 = vmatprep.subr.bf16.mxu0 0
  %2342 = vmatpush1.bf16.msra.mxu0 %v2332
  %2343 = vmatprep.subr.bf16.mxu0 0
  %2344 = vmatpush1.bf16.msra.mxu0 %v2339
  %2345 = vmatprep.subr.bf16.mxu0 0
  %2346 = vmatpush1.bf16.msra.mxu0 0
  %2347 = vmatprep.subr.bf16.mxu0 0
  %2348 = vmatpush1.bf16.msra.mxu0 0
  %2349 = vmatprep.subr.bf16.mxu0 0
  %2350 = vmatpush1.bf16.msra.mxu0 0
  %2351 = vmatprep.subr.bf16.mxu0 0
  %2352 = vmatpush1.bf16.msra.mxu0 0
  %2353 = vmatprep.subr.bf16.mxu0 0
  %2354 = vmatpush1.bf16.msra.mxu0 0
  %2355 = vmatprep.subr.bf16.mxu0 0
  %2356 = vmatpush1.bf16.msra.mxu0 0
  %2357 = vmatprep.subr.bf16.mxu0 0
  %2358 = vmatpush1.bf16.msra.mxu0 0
  %2359 = vmatprep.subr.bf16.mxu0 0
  %2360 = vmatpush1.bf16.msra.mxu0 0
  %2361 = vmatprep.subr.bf16.mxu0 0
  %2362 = vmatpush1.bf16.msra.mxu0 0
  %2363 = vmatprep.subr.bf16.mxu0 0
  %2364 = vmatpush1.bf16.msra.mxu0 0
  %2365 = vmatprep.subr.bf16.mxu0 0
  %2366 = vmatpush1.bf16.msra.mxu0 0
  %2367 = vmatprep.subr.bf16.mxu0 0
  %2368 = vmatpush1.bf16.msra.mxu0 0
  %2369 = vmatprep.subr.bf16.mxu0 0
  %2370 = vmatpush1.bf16.msra.mxu0 0
  %2371 = vmatprep.subr.bf16.mxu0 0
  %2372 = vmatpush1.bf16.msra.mxu0 0
  %2373 = vmatprep.mubr.bf16.mxu0 0
  %2374 = vmatmul.mubr.bf16.gmra.mrb[0].mxu0 %v2336
  %v2375 = vpop.f32.mrb[0].mxu0
  %v2376 = vadd.f32 0.0, %v2375
  %v2377 = vpop.f32.mrb[0].mxu0
  %v2378 = vpop.f32.mrb[0].mxu0
  %v2379 = vpop.f32.mrb[0].mxu0
  %2380 = vdwg.mxu0
  %v2381 = vadd.f32 %v2310, %v2376
  %v2382 = vld [vmem:[%s4] sm:$0x1]
  %v2384 = vlaneseq
  %v2385 = vshrl.u32 %v2384, 7
  %v2386 = vsub.s32 0, %v2385
  %v2387 = vrot.slane %v2382, %v2386
  %v2389 = vadd.f32 %v2381, %v2387
  %v2390 = vmax.f32 %v2389, 0.0
  %v2391 = vpack.c.bf16 %v2390, %v2390
  %v2392 = vld [vmem:[%s5] sm:$0xf]
  %v2393 = vld [vmem:[%s5 + $0x4] sm:$0xf]
  %v2394 = vld [vmem:[%s5 + $0x8] sm:$0xf]
  %v2395 = vld [vmem:[%s5 + $0xc] sm:$0xf]
  %v2396 = vld [vmem:[%s5 + $0x10] sm:$0xf]
  %v2397 = vld [vmem:[%s5 + $0x14] sm:$0xf]
  %v2398 = vld [vmem:[%s5 + $0x18] sm:$0x1]
  %v2399 = vld [vmem:[%s6] sm:$0x1]
  %v2401 = vlaneseq
  %v2402 = vshrl.u32 %v2401, 7
  %v2403 = vsub.s32 0, %v2402
  %v2404 = vrot.slane %v2399, %v2403
  %v2413 = vunpack.c.l.b16 %v2392
  %v2414 = vunpack.c.l.b16 %v2393
  %v2415 = vunpack.c.l.b16 %v2394
  %v2416 = vunpack.c.l.b16 %v2395
  %v2417 = vunpack.c.l.b16 %v2396
  %v2418 = vunpack.c.l.b16 %v2397
  %v2419 = vunpack.c.l.b16 %v2398
  %v2420 = vpack.c.b16 %v2414, %v2413
  %v2421 = vpack.c.b16 %v2416, %v2415
  %v2422 = vpack.c.b16 %v2418, %v2417
  %v2423 = vpack.c.b16 %v2419, %v2419
  %vm2427 = vcmask 408576
  %v2429 = vsel %vm2427, %v2391, 0
  %vm2431 = vcmask 1040384
  %v2433 = vsel %vm2431, %v2423, 0
  %2435 = vmatprep.subr.bf16.mxu0 0
  %2436 = vmatpush1.bf16.msra.mxu0 %v2420
  %2437 = vmatprep.subr.bf16.mxu0 0
  %2438 = vmatpush1.bf16.msra.mxu0 %v2421
  %2439 = vmatprep.subr.bf16.mxu0 0
  %2440 = vmatpush1.bf16.msra.mxu0 %v2422
  %2441 = vmatprep.subr.bf16.mxu0 0
  %2442 = vmatpush1.bf16.msra.mxu0 %v2433
  %2443 = vmatprep.subr.bf16.mxu0 0
  %2444 = vmatpush1.bf16.msra.mxu0 0
  %2445 = vmatprep.subr.bf16.mxu0 0
  %2446 = vmatpush1.bf16.msra.mxu0 0
  %2447 = vmatprep.subr.bf16.mxu0 0
  %2448 = vmatpush1.bf16.msra.mxu0 0
  %2449 = vmatprep.subr.bf16.mxu0 0
  %2450 = vmatpush1.bf16.msra.mxu0 0
  %2451 = vmatprep.subr.bf16.mxu0 0
  %2452 = vmatpush1.bf16.msra.mxu0 0
  %2453 = vmatprep.subr.bf16.mxu0 0
  %2454 = vmatpush1.bf16.msra.mxu0 0
  %2455 = vmatprep.subr.bf16.mxu0 0
  %2456 = vmatpush1.bf16.msra.mxu0 0
  %2457 = vmatprep.subr.bf16.mxu0 0
  %2458 = vmatpush1.bf16.msra.mxu0 0
  %2459 = vmatprep.subr.bf16.mxu0 0
  %2460 = vmatpush1.bf16.msra.mxu0 0
  %2461 = vmatprep.subr.bf16.mxu0 0
  %2462 = vmatpush1.bf16.msra.mxu0 0
  %2463 = vmatprep.subr.bf16.mxu0 0
  %2464 = vmatpush1.bf16.msra.mxu0 0
  %2465 = vmatprep.subr.bf16.mxu0 0
  %2466 = vmatpush1.bf16.msra.mxu0 0
  %2467 = vmatprep.mubr.bf16.mxu0 0
  %2468 = vmatmul.mubr.bf16.gmra.mrb[0].mxu0 %v2429
  %v2469 = vpop.f32.mrb[0].mxu0
  %v2470 = vadd.f32 %v2404, %v2469
  %v2471 = vpop.f32.mrb[0].mxu0
  %v2472 = vpop.f32.mrb[0].mxu0
  %v2473 = vpop.f32.mrb[0].mxu0
  %2474 = vdwg.mxu0
  %vm2475 = vcmask 80896
  %v2476 = vsel %vm2475, %v2470, -inf
  %2477 = vmax.xlane.f32.xlu0 %v2476
  %v2478 = vpop.xlane.xlu0 %2477
  %v2479 = vsub.f32 %v2470, %v2478
  %v2480 = vmul.f32 %v2479, 1.442695
  %v2481 = vpow.pop %v2480
  %v2482 = vsel %vm2475, %v2481, 0.0
  %2483 = vadd.xlane.f32.xlu0 %v2482
  %v2484 = vpop.xlane.xlu0 %2483
  %v2485 = vlog2.pop %v2484
  %v2486 = vmul.f32 %v2485, 0.6931472
  %v2487 = vsub.f32 %v2479, %v2486
  %2488 = vst.msk [vmem:[%s7] sm:$0xff] %vm2475, %v2487
  // Predicated region
  $region30: #{net_forward.3} parent=0 // pred_check
    _
  $region31: #{net_forward.3} parent=0 // pred_check_branch
    %2490 = sbr.rel (0) target = $region33
  $region32: #{net_forward.3} parent=0 // pred_region
    _
  $region33: #{net_forward.3} parent=0 // pred_fallthru
    _
  // Predicated region
  $region34: #{net_forward.3} parent=0 // pred_check
    _
  $region35: #{net_forward.3} parent=0 // pred_check_branch
    %2492 = sbr.rel (0) target = $region37
  $region36: #{net_forward.3} parent=0 // pred_region
    _
  $region37: #{net_forward.3} parent=0 // pred_fallthru
    _

</llo_original>
